<compile_context>
chip_gen: v5e
topology: v5e:2x2
jax: 0.10.0
libtpu: 0.0.40
codegen_flags: <defaults>
</compile_context>

<pallas_src>
import jax
import jax.numpy as jnp
from jax import lax
from jax.experimental import pallas as pl
from jax.experimental.pallas import tpu as pltpu

F = 1000            # backbone feature dim (Linear(1000, 2) in the reference)
F_PAD = 1024        # contraction dim padded to a multiple of 128
H = 4000            # siamese hidden dim
H_PAD = 4096        # padded to a multiple of 128
NEG_SLOPE = 0.2
EPS = 1e-12         # torch F.normalize default eps


def _detect_num_cores():
    """2 TensorCores per chip on v7x, 1 on v5e/v6e (default to 1 if unknown)."""
    try:
        kind = jax.devices()[0].device_kind.lower()
    except Exception:
        return 1
    if "v7" in kind or "7x" in kind:
        return 2
    return 1


NUM_CORES = _detect_num_cores()
TN = 2048 if NUM_CORES == 2 else 1024   # hidden-dim tile (one step/core on v7x)
JSTEPS = H_PAD // (NUM_CORES * TN)      # inner hidden-dim steps per core
assert NUM_CORES * TN * JSTEPS == H_PAD, "hidden-dim tiling must cover H_PAD"

_DN_T = (((1,), (1,)), ((), ()))        # contract last axis of both (a @ b.T)


def _disc_kernel(x1_ref, x2_ref, wdt_ref, bd_ref,
                 w1t_ref, w1b_ref, bs1_ref, w2t_ref,
                 ident_ref, cls1_ref, cls2_ref,
                 ft1_sc, ft2_sc):
    j = pl.program_id(1)

    @pl.when(j == 0)
    def _():
        # l2-normalize (F.normalize: x / max(||x||_2, eps)).  The 1000->1024
        # zero padding leaves the norm unchanged.  Done once per core, not
        # once per hidden-dim step.
        x1 = x1_ref[...]
        x2 = x2_ref[...]
        n1 = jnp.sqrt(jnp.sum(x1 * x1, axis=-1, keepdims=True))
        n2 = jnp.sqrt(jnp.sum(x2 * x2, axis=-1, keepdims=True))
        ft1 = x1 / jnp.maximum(n1, EPS)
        ft2 = x2 / jnp.maximum(n2, EPS)

        # per-image classifier Linear(1000, 2): tiny, f32 end-to-end.
        # Wd is stored transposed (2, F_PAD) -> contract the last axes.
        wdt = wdt_ref[...]
        cls1_ref[...] = (lax.dot_general(ft1, wdt, _DN_T,
                                         preferred_element_type=jnp.float32)
                         + bd_ref[...])
        cls2_ref[...] = (lax.dot_general(ft2, wdt, _DN_T,
                                         preferred_element_type=jnp.float32)
                         + bd_ref[...])

        # bf16 activations for the siamese weight stream, cached in scratch
        ft1_sc[...] = ft1.astype(jnp.bfloat16)
        ft2_sc[...] = ft2.astype(jnp.bfloat16)

        # init this core's partial-ident accumulator (bs2 added in wrapper)
        ident_ref[...] = jnp.zeros_like(ident_ref)

    # siamese branch, one hidden-dim tile per grid step:
    # concat(ft1, ft2) @ Ws1 == ft1 @ Ws1_top + ft2 @ Ws1_bot
    # bf16 weight stream, f32 MXU accumulation.
    h = (jnp.dot(ft1_sc[...], w1t_ref[...], preferred_element_type=jnp.float32)
         + jnp.dot(ft2_sc[...], w1b_ref[...], preferred_element_type=jnp.float32)
         + bs1_ref[...])
    h = jnp.where(h >= 0, h, NEG_SLOPE * h)          # LeakyReLU(0.2)

    # Linear(4000, 2) partial: Ws2 tile stored transposed (2, TN) -> a @ b.T
    ident_ref[...] += lax.dot_general(h, w2t_ref[...], _DN_T,
                                      preferred_element_type=jnp.float32)


def prepare_params(params):
    """One-time weight prep: split/pad/cast/transpose. Reuse across forwards."""
    wd, bd, ws1, bs1, ws2, bs2 = params
    f32, bf16 = jnp.float32, jnp.bfloat16
    # Wd transposed + feature-dim padded 1000 -> 1024 (zero columns).
    wdt = jnp.zeros((2, F_PAD), f32).at[:, :F].set(wd.astype(f32).T)
    # ws1 row-split (top rows multiply ft1, bottom rows multiply ft2),
    # K padded 1000 -> 1024, hidden dim padded 4000 -> 4096, streamed as bf16.
    w1t = jnp.zeros((F_PAD, H_PAD), bf16).at[:F, :H].set(ws1[:F, :].astype(bf16))
    w1b = jnp.zeros((F_PAD, H_PAD), bf16).at[:F, :H].set(ws1[F:, :].astype(bf16))
    bs1_p = jnp.zeros((1, H_PAD), f32).at[0, :H].set(bs1.astype(f32))
    # Ws2 transposed (2, H_PAD): avoids lane-padding the "2" output dim.
    w2t = jnp.zeros((2, H_PAD), f32).at[:, :H].set(ws2.astype(f32).T)
    return dict(
        wdt=wdt, bd=bd.reshape(1, 2).astype(f32),
        w1t=w1t, w1b=w1b, bs1=bs1_p, w2t=w2t,
        bs2=bs2.reshape(1, 2).astype(f32),
    )


def discriminator_forward(x1, x2, p):
    """x1, x2: [B, 1000] backbone outputs; p: prepare_params(...) output.

    Returns (ident [B,2], cls1 [B,2], cls2 [B,2]).
    Note: raise B (64-512) to amortize the ~16 MiB weight stream per call."""
    B = x1.shape[0]
    f32 = jnp.float32

    # zero-pad the contraction dim 1000 -> 1024 (cheap, [B, 1024])
    x1p = jnp.zeros((B, F_PAD), f32).at[:, :F].set(x1.astype(f32))
    x2p = jnp.zeros((B, F_PAD), f32).at[:, :F].set(x2.astype(f32))

    grid = (NUM_CORES, JSTEPS)

    def w_col(c, j):            # hidden-dim column-tile index for this step
        return (0, c * JSTEPS + j)

    out_shapes = (
        jax.ShapeDtypeStruct((NUM_CORES, B, 2), f32),   # per-core partial ident
        jax.ShapeDtypeStruct((NUM_CORES, B, 2), f32),   # cls1 (replicated/core)
        jax.ShapeDtypeStruct((NUM_CORES, B, 2), f32),   # cls2 (replicated/core)
    )

    grid_spec = pltpu.PrefetchScalarGridSpec(
        num_scalar_prefetch=0,
        grid=grid,
        in_specs=[
            pl.BlockSpec((B, F_PAD), lambda c, j: (0, 0)),    # x1 (resident)
            pl.BlockSpec((B, F_PAD), lambda c, j: (0, 0)),    # x2 (resident)
            pl.BlockSpec((2, F_PAD), lambda c, j: (0, 0)),    # Wd^T (resident)
            pl.BlockSpec((1, 2), lambda c, j: (0, 0)),        # bd (resident)
            pl.BlockSpec((F_PAD, TN), w_col),                 # ws1 top-half tile (bf16)
            pl.BlockSpec((F_PAD, TN), w_col),                 # ws1 bottom-half tile (bf16)
            pl.BlockSpec((1, TN), w_col),                     # bs1 tile
            pl.BlockSpec((2, TN), w_col),                     # Ws2^T tile
        ],
        out_specs=[
            pl.BlockSpec((None, B, 2), lambda c, j: (c, 0, 0)),  # partial ident
            pl.BlockSpec((None, B, 2), lambda c, j: (c, 0, 0)),  # cls1
            pl.BlockSpec((None, B, 2), lambda c, j: (c, 0, 0)),  # cls2
        ],
        scratch_shapes=[pltpu.VMEM((B, F_PAD), jnp.bfloat16),   # ft1 (bf16)
                        pltpu.VMEM((B, F_PAD), jnp.bfloat16)],  # ft2 (bf16)
    )

    ident_part, cls1_part, cls2_part = pl.pallas_call(
        _disc_kernel,
        out_shape=out_shapes,
        grid_spec=grid_spec,
        compiler_params=pltpu.CompilerParams(
            dimension_semantics=("parallel", "arbitrary"),
            vmem_limit_bytes=32 * 1024 * 1024),
    )(x1p, x2p, p["wdt"], p["bd"], p["w1t"], p["w1b"], p["bs1"], p["w2t"])

    ident = ident_part.sum(axis=0) + p["bs2"]   # combine per-core partials + bias
    return ident, cls1_part[0], cls2_part[0]


def _reference(x1, x2, params, *, emulate_bf16=False):
    wd, bd, ws1, bs1, ws2, bs2 = params

    def norm(x):
        n = jnp.sqrt(jnp.sum(x * x, axis=-1, keepdims=True))
        return x / jnp.maximum(n, EPS)

    ft1, ft2 = norm(x1), norm(x2)
    ft = jnp.concatenate([ft1, ft2], axis=1)
    if emulate_bf16:   # mirror the kernel's bf16 ws1/ft stream (f32 accumulate)
        ft_m = ft.astype(jnp.bfloat16).astype(jnp.float32)
        ws1_m = ws1.astype(jnp.bfloat16).astype(jnp.float32)
    else:
        ft_m, ws1_m = ft, ws1
    h = ft_m @ ws1_m + bs1
    h = jnp.where(h >= 0, h, NEG_SLOPE * h)
    ident = h @ ws2 + bs2
    return ident, ft1 @ wd + bd, ft2 @ wd + bd


def _init_params(key):
    ks = jax.random.split(key, 6)
    wd = jax.random.normal(ks[0], (F, 2), jnp.float32) * 0.02
    bd = jax.random.normal(ks[1], (2,), jnp.float32) * 0.02
    ws1 = jax.random.normal(ks[2], (2 * F, H), jnp.float32) * 0.02
    bs1 = jax.random.normal(ks[3], (H,), jnp.float32) * 0.02
    ws2 = jax.random.normal(ks[4], (H, 2), jnp.float32) * 0.02
    bs2 = jax.random.normal(ks[5], (2,), jnp.float32) * 0.02
    return wd, bd, ws1, bs1, ws2, bs2


if __name__ == "__main__":
    key = jax.random.PRNGKey(0)
    k1, k2, kp = jax.random.split(key, 3)
    B = 2
    x1 = jax.random.normal(k1, (B, F), jnp.float32)
    x2 = jax.random.normal(k2, (B, F), jnp.float32)
    params = _init_params(kp)

    prepared = prepare_params(params)            # one-time pad/split/cast
    fwd = jax.jit(discriminator_forward)

    ident, cls1, cls2 = fwd(x1, x2, prepared)
    jax.block_until_ready((ident, cls1, cls2))

    # exact-path check: reference emulating the bf16 ws1/ft stream
    emu_ident, ref_cls1, ref_cls2 = _reference(x1, x2, params, emulate_bf16=True)
    assert jnp.allclose(ident, emu_ident, atol=1e-3, rtol=1e-3)
    # cls path stays f32 end-to-end -> tight check vs full-f32 reference
    f32_ident, f32_cls1, f32_cls2 = _reference(x1, x2, params)
    assert jnp.allclose(cls1, f32_cls1, atol=1e-4, rtol=1e-4)
    assert jnp.allclose(cls2, f32_cls2, atol=1e-4, rtol=1e-4)
    # sanity: bf16 weight stream stays close to the full-f32 module output
    assert jnp.allclose(ident, f32_ident, atol=1e-2, rtol=1e-2)
    print("KERNEL_OK")
</pallas_src>

<mosaic_0001>
module attributes {stable_mosaic.version = 11 : i64} {
  func.func @_disc_kernel(%arg0: i32, %arg1: i32, %arg2: memref<2x1024xf32, #tpu.memory_space<vmem>>, %arg3: memref<2x1024xf32, #tpu.memory_space<vmem>>, %arg4: memref<2x1024xf32, #tpu.memory_space<vmem>>, %arg5: memref<1x2xf32, #tpu.memory_space<vmem>>, %arg6: memref<1024x1024xbf16, #tpu.memory_space<vmem>>, %arg7: memref<1024x1024xbf16, #tpu.memory_space<vmem>>, %arg8: memref<1x1024xf32, #tpu.memory_space<vmem>>, %arg9: memref<2x1024xf32, #tpu.memory_space<vmem>>, %arg10: memref<1x2x2xf32, #tpu.memory_space<vmem>>, %arg11: memref<1x2x2xf32, #tpu.memory_space<vmem>>, %arg12: memref<1x2x2xf32, #tpu.memory_space<vmem>>, %arg13: memref<2x1024xbf16, #tpu.memory_space<vmem>>, %arg14: memref<2x1024xbf16, #tpu.memory_space<vmem>>) attributes {dimension_semantics = [#tpu.dimension_semantics<parallel>, #tpu.dimension_semantics<arbitrary>], iteration_bounds = array<i64: 1, 4>, scalar_prefetch = 0 : i64, scratch_operands = 2 : i64, tpu.core_type = #tpu.core_type<tc>, window_params = [{pipeline_mode = #tpu.pipeline_mode<synchronous>, transform_indices = @transform_0, window_bounds = array<i64: 2, 1024>}, {pipeline_mode = #tpu.pipeline_mode<synchronous>, transform_indices = @transform_1, window_bounds = array<i64: 2, 1024>}, {pipeline_mode = #tpu.pipeline_mode<synchronous>, transform_indices = @transform_2, window_bounds = array<i64: 2, 1024>}, {pipeline_mode = #tpu.pipeline_mode<synchronous>, transform_indices = @transform_3, window_bounds = array<i64: 1, 2>}, {transform_indices = @transform_4, window_bounds = array<i64: 1024, 1024>}, {transform_indices = @transform_5, window_bounds = array<i64: 1024, 1024>}, {transform_indices = @transform_6, window_bounds = array<i64: 1, 1024>}, {transform_indices = @transform_7, window_bounds = array<i64: 2, 1024>}, {transform_indices = @transform_8, window_bounds = array<i64: 1, 2, 2>}, {transform_indices = @transform_9, window_bounds = array<i64: 1, 2, 2>}, {transform_indices = @transform_10, window_bounds = array<i64: 1, 2, 2>}]} {
    %c0_i32 = arith.constant 0 : i32
    %0 = arith.cmpi eq, %arg1, %c0_i32 : i32
    %1 = arith.extui %0 : i1 to i32
    %c0_i32_0 = arith.constant 0 : i32
    %2 = arith.cmpi ne, %1, %c0_i32_0 : i32
    scf.if %2 {
      %c0_22 = arith.constant 0 : index
      %c0_23 = arith.constant 0 : index
      %26 = vector.load %arg2[%c0_22, %c0_23] : memref<2x1024xf32, #tpu.memory_space<vmem>>, vector<2x1024xf32>
      %c0_24 = arith.constant 0 : index
      %c0_25 = arith.constant 0 : index
      %27 = vector.load %arg3[%c0_24, %c0_25] : memref<2x1024xf32, #tpu.memory_space<vmem>>, vector<2x1024xf32>
      %28 = arith.mulf %26, %26 : vector<2x1024xf32>
      %cst_26 = arith.constant dense<0.000000e+00> : vector<2xf32>
      %29 = vector.multi_reduction <add>, %28, %cst_26 [1] : vector<2x1024xf32> to vector<2xf32>
      %30 = vector.shape_cast %29 : vector<2xf32> to vector<2x1xf32>
      %31 = math.sqrt %30 : vector<2x1xf32>
      %32 = arith.mulf %27, %27 : vector<2x1024xf32>
      %cst_27 = arith.constant dense<0.000000e+00> : vector<2xf32>
      %33 = vector.multi_reduction <add>, %32, %cst_27 [1] : vector<2x1024xf32> to vector<2xf32>
      %34 = vector.shape_cast %33 : vector<2xf32> to vector<2x1xf32>
      %35 = math.sqrt %34 : vector<2x1xf32>
      %cst_28 = arith.constant 9.99999996E-13 : f32
      %36 = vector.broadcast %cst_28 : f32 to vector<2x1xf32>
      %37 = arith.maximumf %31, %36 : vector<2x1xf32>
      %38 = vector.broadcast %37 : vector<2x1xf32> to vector<2x1024xf32>
      %39 = arith.divf %26, %38 : vector<2x1024xf32>
      %cst_29 = arith.constant 9.99999996E-13 : f32
      %40 = vector.broadcast %cst_29 : f32 to vector<2x1xf32>
      %41 = arith.maximumf %35, %40 : vector<2x1xf32>
      %42 = vector.broadcast %41 : vector<2x1xf32> to vector<2x1024xf32>
      %43 = arith.divf %27, %42 : vector<2x1024xf32>
      %c0_30 = arith.constant 0 : index
      %c0_31 = arith.constant 0 : index
      %44 = vector.load %arg4[%c0_30, %c0_31] : memref<2x1024xf32, #tpu.memory_space<vmem>>, vector<2x1024xf32>
      %cst_32 = arith.constant dense<0.000000e+00> : vector<2x2xf32>
      %45 = tpu.matmul %39, %44, %cst_32 {dimension_numbers = #tpu.dot_dimension_numbers<[1], [1], [0], [0], [0, 0, 1, 0], [], []>} : vector<2x1024xf32>, vector<2x1024xf32>, vector<2x2xf32> -> vector<2x2xf32>
      %c0_33 = arith.constant 0 : index
      %c0_34 = arith.constant 0 : index
      %46 = vector.load %arg5[%c0_33, %c0_34] : memref<1x2xf32, #tpu.memory_space<vmem>>, vector<1x2xf32>
      %47 = vector.broadcast %46 : vector<1x2xf32> to vector<2x2xf32>
      %48 = arith.addf %45, %47 : vector<2x2xf32>
      %c0_35 = arith.constant 0 : index
      %c0_36 = arith.constant 0 : index
      %c0_37 = arith.constant 0 : index
      %49 = vector.load %arg11[%c0_35, %c0_36, %c0_37] : memref<1x2x2xf32, #tpu.memory_space<vmem>>, vector<1x2x2xf32>
      %50 = vector.shape_cast %49 : vector<1x2x2xf32> to vector<2x2xf32>
      %51 = vector.shape_cast %48 : vector<2x2xf32> to vector<1x2x2xf32>
      tpu.vector_store %arg11[%c0_35, %c0_36, %c0_37], %51 {strides = array<i32>} : memref<1x2x2xf32, #tpu.memory_space<vmem>>, vector<1x2x2xf32>,
      %cst_38 = arith.constant dense<0.000000e+00> : vector<2x2xf32>
      %52 = tpu.matmul %43, %44, %cst_38 {dimension_numbers = #tpu.dot_dimension_numbers<[1], [1], [0], [0], [0, 0, 1, 0], [], []>} : vector<2x1024xf32>, vector<2x1024xf32>, vector<2x2xf32> -> vector<2x2xf32>
      %c0_39 = arith.constant 0 : index
      %c0_40 = arith.constant 0 : index
      %53 = vector.load %arg5[%c0_39, %c0_40] : memref<1x2xf32, #tpu.memory_space<vmem>>, vector<1x2xf32>
      %54 = vector.broadcast %53 : vector<1x2xf32> to vector<2x2xf32>
      %55 = arith.addf %52, %54 : vector<2x2xf32>
      %c0_41 = arith.constant 0 : index
      %c0_42 = arith.constant 0 : index
      %c0_43 = arith.constant 0 : index
      %56 = vector.load %arg12[%c0_41, %c0_42, %c0_43] : memref<1x2x2xf32, #tpu.memory_space<vmem>>, vector<1x2x2xf32>
      %57 = vector.shape_cast %56 : vector<1x2x2xf32> to vector<2x2xf32>
      %58 = vector.shape_cast %55 : vector<2x2xf32> to vector<1x2x2xf32>
      tpu.vector_store %arg12[%c0_41, %c0_42, %c0_43], %58 {strides = array<i32>} : memref<1x2x2xf32, #tpu.memory_space<vmem>>, vector<1x2x2xf32>,
      %59 = arith.truncf %39 : vector<2x1024xf32> to vector<2x1024xbf16>
      %c0_44 = arith.constant 0 : index
      %c0_45 = arith.constant 0 : index
      %60 = vector.load %arg13[%c0_44, %c0_45] : memref<2x1024xbf16, #tpu.memory_space<vmem>>, vector<2x1024xbf16>
      tpu.vector_store %arg13[%c0_44, %c0_45], %59 {strides = array<i32>} : memref<2x1024xbf16, #tpu.memory_space<vmem>>, vector<2x1024xbf16>,
      %61 = arith.truncf %43 : vector<2x1024xf32> to vector<2x1024xbf16>
      %c0_46 = arith.constant 0 : index
      %c0_47 = arith.constant 0 : index
      %62 = vector.load %arg14[%c0_46, %c0_47] : memref<2x1024xbf16, #tpu.memory_space<vmem>>, vector<2x1024xbf16>
      tpu.vector_store %arg14[%c0_46, %c0_47], %61 {strides = array<i32>} : memref<2x1024xbf16, #tpu.memory_space<vmem>>, vector<2x1024xbf16>,
      %cst_48 = arith.constant 0.000000e+00 : f32
      %63 = vector.broadcast %cst_48 : f32 to vector<2x2xf32>
      %c0_49 = arith.constant 0 : index
      %c0_50 = arith.constant 0 : index
      %c0_51 = arith.constant 0 : index
      %64 = vector.load %arg10[%c0_49, %c0_50, %c0_51] : memref<1x2x2xf32, #tpu.memory_space<vmem>>, vector<1x2x2xf32>
      %65 = vector.shape_cast %64 : vector<1x2x2xf32> to vector<2x2xf32>
      %66 = vector.shape_cast %63 : vector<2x2xf32> to vector<1x2x2xf32>
      tpu.vector_store %arg10[%c0_49, %c0_50, %c0_51], %66 {strides = array<i32>} : memref<1x2x2xf32, #tpu.memory_space<vmem>>, vector<1x2x2xf32>,
    } else {
    }
    %c0 = arith.constant 0 : index
    %c0_1 = arith.constant 0 : index
    %3 = vector.load %arg13[%c0, %c0_1] : memref<2x1024xbf16, #tpu.memory_space<vmem>>, vector<2x1024xbf16>
    %c0_2 = arith.constant 0 : index
    %c0_3 = arith.constant 0 : index
    %4 = vector.load %arg6[%c0_2, %c0_3] : memref<1024x1024xbf16, #tpu.memory_space<vmem>>, vector<1024x1024xbf16>
    %cst = arith.constant dense<0.000000e+00> : vector<2x1024xf32>
    %5 = tpu.matmul %3, %4, %cst {dimension_numbers = #tpu.dot_dimension_numbers<[1], [0], [0], [1], [0, 0, 1, 1], [], []>} : vector<2x1024xbf16>, vector<1024x1024xbf16>, vector<2x1024xf32> -> vector<2x1024xf32>
    %c0_4 = arith.constant 0 : index
    %c0_5 = arith.constant 0 : index
    %6 = vector.load %arg14[%c0_4, %c0_5] : memref<2x1024xbf16, #tpu.memory_space<vmem>>, vector<2x1024xbf16>
    %c0_6 = arith.constant 0 : index
    %c0_7 = arith.constant 0 : index
    %7 = vector.load %arg7[%c0_6, %c0_7] : memref<1024x1024xbf16, #tpu.memory_space<vmem>>, vector<1024x1024xbf16>
    %cst_8 = arith.constant dense<0.000000e+00> : vector<2x1024xf32>
    %8 = tpu.matmul %6, %7, %cst_8 {dimension_numbers = #tpu.dot_dimension_numbers<[1], [0], [0], [1], [0, 0, 1, 1], [], []>} : vector<2x1024xbf16>, vector<1024x1024xbf16>, vector<2x1024xf32> -> vector<2x1024xf32>
    %9 = arith.addf %5, %8 : vector<2x1024xf32>
    %c0_9 = arith.constant 0 : index
    %c0_10 = arith.constant 0 : index
    %10 = vector.load %arg8[%c0_9, %c0_10] : memref<1x1024xf32, #tpu.memory_space<vmem>>, vector<1x1024xf32>
    %11 = vector.broadcast %10 : vector<1x1024xf32> to vector<2x1024xf32>
    %12 = arith.addf %9, %11 : vector<2x1024xf32>
    %cst_11 = arith.constant 0.000000e+00 : f32
    %13 = vector.broadcast %cst_11 : f32 to vector<2x1024xf32>
    %14 = arith.cmpf oge, %12, %13 : vector<2x1024xf32>
    %cst_12 = arith.constant 2.000000e-01 : f32
    %15 = vector.broadcast %cst_12 : f32 to vector<2x1024xf32>
    %16 = arith.mulf %15, %12 : vector<2x1024xf32>
    %17 = arith.select %14, %12, %16 : vector<2x1024xi1>, vector<2x1024xf32>
    %c0_13 = arith.constant 0 : index
    %c0_14 = arith.constant 0 : index
    %c0_15 = arith.constant 0 : index
    %18 = vector.load %arg10[%c0_13, %c0_14, %c0_15] : memref<1x2x2xf32, #tpu.memory_space<vmem>>, vector<1x2x2xf32>
    %19 = vector.shape_cast %18 : vector<1x2x2xf32> to vector<2x2xf32>
    %c0_16 = arith.constant 0 : index
    %c0_17 = arith.constant 0 : index
    %20 = vector.load %arg9[%c0_16, %c0_17] : memref<2x1024xf32, #tpu.memory_space<vmem>>, vector<2x1024xf32>
    %cst_18 = arith.constant dense<0.000000e+00> : vector<2x2xf32>
    %21 = tpu.matmul %17, %20, %cst_18 {dimension_numbers = #tpu.dot_dimension_numbers<[1], [1], [0], [0], [0, 0, 1, 0], [], []>} : vector<2x1024xf32>, vector<2x1024xf32>, vector<2x2xf32> -> vector<2x2xf32>
    %22 = arith.addf %19, %21 : vector<2x2xf32>
    %c0_19 = arith.constant 0 : index
    %c0_20 = arith.constant 0 : index
    %c0_21 = arith.constant 0 : index
    %23 = vector.load %arg10[%c0_19, %c0_20, %c0_21] : memref<1x2x2xf32, #tpu.memory_space<vmem>>, vector<1x2x2xf32>
    %24 = vector.shape_cast %23 : vector<1x2x2xf32> to vector<2x2xf32>
    %25 = vector.shape_cast %22 : vector<2x2xf32> to vector<1x2x2xf32>
    tpu.vector_store %arg10[%c0_19, %c0_20, %c0_21], %25 {strides = array<i32>} : memref<1x2x2xf32, #tpu.memory_space<vmem>>, vector<1x2x2xf32>,
    return
  }
  func.func @transform_0(%arg0: i32, %arg1: i32) -> (i32, i32) {
    %c0_i32 = arith.constant 0 : i32
    %c0_i32_0 = arith.constant 0 : i32
    %c0_i32_1 = arith.constant 0 : i32
    return %c0_i32, %c0_i32_0 : i32, i32
  }
  func.func @transform_1(%arg0: i32, %arg1: i32) -> (i32, i32) {
    %c0_i32 = arith.constant 0 : i32
    %c0_i32_0 = arith.constant 0 : i32
    %c0_i32_1 = arith.constant 0 : i32
    return %c0_i32, %c0_i32_0 : i32, i32
  }
  func.func @transform_2(%arg0: i32, %arg1: i32) -> (i32, i32) {
    %c0_i32 = arith.constant 0 : i32
    %c0_i32_0 = arith.constant 0 : i32
    %c0_i32_1 = arith.constant 0 : i32
    return %c0_i32, %c0_i32_0 : i32, i32
  }
  func.func @transform_3(%arg0: i32, %arg1: i32) -> (i32, i32) {
    %c0_i32 = arith.constant 0 : i32
    %c0_i32_0 = arith.constant 0 : i32
    %c0_i32_1 = arith.constant 0 : i32
    return %c0_i32, %c0_i32_0 : i32, i32
  }
  func.func @transform_4(%arg0: i32, %arg1: i32) -> (i32, i32) {
    %c4_i32 = arith.constant 4 : i32
    %0 = arith.muli %arg0, %c4_i32 : i32
    %1 = arith.addi %0, %arg1 : i32
    %c0_i32 = arith.constant 0 : i32
    %c0_i32_0 = arith.constant 0 : i32
    return %c0_i32, %1 : i32, i32
  }
  func.func @transform_5(%arg0: i32, %arg1: i32) -> (i32, i32) {
    %c4_i32 = arith.constant 4 : i32
    %0 = arith.muli %arg0, %c4_i32 : i32
    %1 = arith.addi %0, %arg1 : i32
    %c0_i32 = arith.constant 0 : i32
    %c0_i32_0 = arith.constant 0 : i32
    return %c0_i32, %1 : i32, i32
  }
  func.func @transform_6(%arg0: i32, %arg1: i32) -> (i32, i32) {
    %c4_i32 = arith.constant 4 : i32
    %0 = arith.muli %arg0, %c4_i32 : i32
    %1 = arith.addi %0, %arg1 : i32
    %c0_i32 = arith.constant 0 : i32
    %c0_i32_0 = arith.constant 0 : i32
    return %c0_i32, %1 : i32, i32
  }
  func.func @transform_7(%arg0: i32, %arg1: i32) -> (i32, i32) {
    %c4_i32 = arith.constant 4 : i32
    %0 = arith.muli %arg0, %c4_i32 : i32
    %1 = arith.addi %0, %arg1 : i32
    %c0_i32 = arith.constant 0 : i32
    %c0_i32_0 = arith.constant 0 : i32
    return %c0_i32, %1 : i32, i32
  }
  func.func @transform_8(%arg0: i32, %arg1: i32) -> (i32, i32, i32) {
    %c0_i32 = arith.constant 0 : i32
    %c0_i32_0 = arith.constant 0 : i32
    %c0_i32_1 = arith.constant 0 : i32
    return %arg0, %c0_i32, %c0_i32_0 : i32, i32, i32
  }
  func.func @transform_9(%arg0: i32, %arg1: i32) -> (i32, i32, i32) {
    %c0_i32 = arith.constant 0 : i32
    %c0_i32_0 = arith.constant 0 : i32
    %c0_i32_1 = arith.constant 0 : i32
    return %arg0, %c0_i32, %c0_i32_0 : i32, i32, i32
  }
  func.func @transform_10(%arg0: i32, %arg1: i32) -> (i32, i32, i32) {
    %c0_i32 = arith.constant 0 : i32
    %c0_i32_0 = arith.constant 0 : i32
    %c0_i32_1 = arith.constant 0 : i32
    return %arg0, %c0_i32, %c0_i32_0 : i32, i32, i32
  }
}

</mosaic_0001>

<llo_original>
// kernel: discriminator_forward.1
$region0: #{discriminator_forward.1}
  #allocation0 [shape = 'u32[]', space=smem, size = 0x4, offset = 0x4, fixed_abs, tag = 'smem constant byte address 0x4 - core index']
  #allocation1 [shape = 'u32[72,128]{1,0:T(1,128)}', space=vmem, size = 0x9000, scoped, tag = 'internal scratch']
  #allocation2 [shape = 'bf16[2,1024]{1,0:T(2,128)(2,1)}', space=vmem, size = 0x1000, scoped, tag = 'scratch operand']
  #allocation3 [shape = 'bf16[2,1024]{1,0:T(2,128)(2,1)}', space=vmem, size = 0x1000, scoped, tag = 'scratch operand']
  %s0 = inlined_call_operand.vmem [shape: f32[2,1024], index: 0, kind: input, shape index: {}]
  %s1 = inlined_call_operand.vmem [shape: f32[2,1024], index: 1, kind: input, shape index: {}]
  %s2 = inlined_call_operand.hbm [shape: f32[2,1024], index: 2, kind: input, shape index: {}]
  %s3 = inlined_call_operand.hbm [shape: f32[1,2], index: 3, kind: input, shape index: {}]
  %s4 = inlined_call_operand.hbm [shape: bf16[1024,4096], index: 4, kind: input, shape index: {}]
  %s5 = inlined_call_operand.hbm [shape: bf16[1024,4096], index: 5, kind: input, shape index: {}]
  %s6 = inlined_call_operand.hbm [shape: f32[1,4096], index: 6, kind: input, shape index: {}]
  %s7 = inlined_call_operand.hbm [shape: f32[2,4096], index: 7, kind: input, shape index: {}]
  %s8 = inlined_call_operand.vmem [shape: f32[1,2,2], index: 8, kind: output, shape index: {0}]
  %s9 = inlined_call_operand.hbm [shape: f32[1,2,2], index: 9, kind: output, shape index: {1}]
  %s10 = inlined_call_operand.hbm [shape: f32[1,2,2], index: 10, kind: output, shape index: {2}]
  %11 = xla_tuple %s8, %s9, %s10
  %s12 = sld [smem:[#allocation0]]
  $region109: #{discriminator_forward.1} parent=0
    _
  %s14 = ssub.s32 1, %s12
  %s15 = scalar_select 0, %s14, %s12
  $region1: #{discriminator_forward.1} parent=0
    #allocation4 [shape = 'u8[8192]{0}', space=vmem, size = 0x2000, scoped, tag = 'input window, operand 2, single buffered']
    #allocation5 [shape = 's32[2]{0}', space=sflag, size = 0x8, scoped, tag = 'scoped memory for discriminator_forward.1']
    #allocation6 [shape = 's32[2]{0}', space=sflag, size = 0x8, scoped, tag = 'scoped memory for discriminator_forward.1']
    #allocation7 [shape = 'u8[512]{0}', space=vmem, size = 0x400, scoped, tag = 'input window, operand 3, single buffered']
    #allocation8 [shape = 's32[1]{0}', space=sflag, size = 0x4, scoped, tag = 'scoped memory for discriminator_forward.1']
    #allocation9 [shape = 'u8[4194304]{0}', space=vmem, size = 0x400000, scoped, tag = 'input window, operand 4']
    #allocation10 [shape = 'u8[4194304]{0}', space=vmem, size = 0x400000, scoped, tag = 'input window, operand 5']
    #allocation11 [shape = 'u8[8192]{0}', space=vmem, size = 0x2000, scoped, tag = 'input window, operand 6']
    #allocation12 [shape = 'u8[16384]{0}', space=vmem, size = 0x4000, scoped, tag = 'input window, operand 7']
    #allocation13 [shape = 'u8[1024]{0}', space=vmem, size = 0x400, scoped, tag = 'output window, operand 1, single buffered']
    #allocation14 [shape = 'u8[1024]{0}', space=vmem, size = 0x400, scoped, tag = 'output window, operand 2, single buffered']
    #allocation15 [shape = 's32[1]{0}', space=sflag, size = 0x4, scoped, tag = 'scoped memory for discriminator_forward.1']
    %16 = vsyncpa [#allocation5], 0
    %17 = vsyncpa [#allocation8], 0
    %18 = vsyncpa [#allocation6], 0
    %19 = vsyncpa [#allocation15], 0
    loop: start=0, step=1, limit=6
    $region2: #{discriminator_forward.1} parent=1 // loop_pre_header
      _
    $region3: #{discriminator_forward.1} parent=1 // loop_header
      %s21 = sphi 0, %s25
      %p22 = scmp.ge.s32.totalorder %s21, 6
      %s28 = sphi 0, %s40
      %s29 = sphi 0, %s36
      %s30 = sphi 0, %s28
      %s31 = sphi 0, %s29
      %s32 = sphi 0, %s30
      %s33 = sphi 0, %s31
      %s41 = sphi 0, %s41
      %s43 = sphi 0, %s41
      %s44 = sphi 0, %s43
      %s58 = sphi 0, %s44
      %s62 = sphi 0, %s62
      %s64 = sphi 0, %s62
      %s65 = sphi 0, %s64
      %s79 = sphi 0, %s65
      %s83 = sphi 0, %s83
      %s85 = sphi 0, %s83
      %s86 = sphi 0, %s85
      %s100 = sphi 0, %s86
      %s104 = sphi 0, %s104
      %s106 = sphi 0, %s104
      %s107 = sphi 0, %s106
      %s121 = sphi 0, %s107
      %s131 = sphi 0, %s133
      %s134 = sphi 0, %s131
      %s135 = sphi 0, %s134
      %s151 = sphi 0, %s135
      %s161 = sphi 0, %s163
      %s164 = sphi 0, %s161
      %s165 = sphi 0, %s164
      %s181 = sphi 0, %s165
      %s191 = sphi 0, %s193
      %s194 = sphi 0, %s191
      %s195 = sphi 0, %s194
      %s211 = sphi 0, %s195
      %s221 = sphi 0, %s223
      %s224 = sphi 0, %s221
      %s225 = sphi 0, %s224
      %s241 = sphi 0, %s225
      %s247 = sphi 0, %s249
      %s250 = sphi 0, %s247
      %s251 = sphi 0, %s250
      %s267 = sphi 0, %s251
      %s273 = sphi 0, %s275
      %s276 = sphi 0, %s273
      %s277 = sphi 0, %s276
      %s293 = sphi 0, %s277
      %s299 = sphi 0, %s301
      %s302 = sphi 0, %s299
      %s303 = sphi 0, %s302
      %s319 = sphi 0, %s303
    $region4: #{discriminator_forward.1} parent=1 // loop_header_branch
      %24 = sbr.rel (%p22) target = $region8
    $region5: #{discriminator_forward.1} parent=1 // loop_body
      %s26 = ssub.s32 %s21, 1
      %s27 = ssub.s32 %s21, 2
      %s34 = sadd.s32 1, %s29
      %p35 = scmp.ge.s32.totalorder %s34, 4
      %s36 = scalar_select %p35, 0, %s34
      %s37 = sadd.s32 1, %s28
      %s38 = scalar_select %p35, %s37, %s28
      %p39 = scmp.ge.s32.totalorder %s38, 1
      %s40 = scalar_select %p39, 0, %s38
      %s42 = sadd.s32 %s41, 1
      %p45 = scmp.eq.s32.totalorder %s21, 3
      %p46 = scmp.ne.s32.totalorder %s41, %s43
      %p47 = scmp.eq.s32.totalorder %s21, 0
      %p48 = por %p46, %p47
      %p49 = scmp.ne.s32.totalorder %s41, %s43
      %p50 = scmp.eq.s32.totalorder %s26, 3
      %p51 = por %p49, %p50
      %p52 = scmp.ne.s32.totalorder %s43, %s44
      %p53 = scmp.eq.s32.totalorder %s26, 0
      %p54 = por %p52, %p53
      %p55 = scmp.ne.s32.totalorder %s43, %s44
      %p56 = scmp.eq.s32.totalorder %s27, 3
      %p57 = por %p55, %p56
      %p59 = scmp.ne.s32.totalorder %s44, %s58
      %p60 = scmp.eq.s32.totalorder %s27, 0
      %p61 = por %p59, %p60
      %s63 = sadd.s32 %s62, 1
      %p66 = scmp.eq.s32.totalorder %s21, 3
      %p67 = scmp.ne.s32.totalorder %s62, %s64
      %p68 = scmp.eq.s32.totalorder %s21, 0
      %p69 = por %p67, %p68
      %p70 = scmp.ne.s32.totalorder %s62, %s64
      %p71 = scmp.eq.s32.totalorder %s26, 3
      %p72 = por %p70, %p71
      %p73 = scmp.ne.s32.totalorder %s64, %s65
      %p74 = scmp.eq.s32.totalorder %s26, 0
      %p75 = por %p73, %p74
      %p76 = scmp.ne.s32.totalorder %s64, %s65
      %p77 = scmp.eq.s32.totalorder %s27, 3
      %p78 = por %p76, %p77
      %p80 = scmp.ne.s32.totalorder %s65, %s79
      %p81 = scmp.eq.s32.totalorder %s27, 0
      %p82 = por %p80, %p81
      %s84 = sadd.s32 %s83, 1
      %p87 = scmp.eq.s32.totalorder %s21, 3
      %p88 = scmp.ne.s32.totalorder %s83, %s85
      %p89 = scmp.eq.s32.totalorder %s21, 0
      %p90 = por %p88, %p89
      %p91 = scmp.ne.s32.totalorder %s83, %s85
      %p92 = scmp.eq.s32.totalorder %s26, 3
      %p93 = por %p91, %p92
      %p94 = scmp.ne.s32.totalorder %s85, %s86
      %p95 = scmp.eq.s32.totalorder %s26, 0
      %p96 = por %p94, %p95
      %p97 = scmp.ne.s32.totalorder %s85, %s86
      %p98 = scmp.eq.s32.totalorder %s27, 3
      %p99 = por %p97, %p98
      %p101 = scmp.ne.s32.totalorder %s86, %s100
      %p102 = scmp.eq.s32.totalorder %s27, 0
      %p103 = por %p101, %p102
      %s105 = sadd.s32 %s104, 1
      %p108 = scmp.eq.s32.totalorder %s21, 3
      %p109 = scmp.ne.s32.totalorder %s104, %s106
      %p110 = scmp.eq.s32.totalorder %s21, 0
      %p111 = por %p109, %p110
      %p112 = scmp.ne.s32.totalorder %s104, %s106
      %p113 = scmp.eq.s32.totalorder %s26, 3
      %p114 = por %p112, %p113
      %p115 = scmp.ne.s32.totalorder %s106, %s107
      %p116 = scmp.eq.s32.totalorder %s26, 0
      %p117 = por %p115, %p116
      %p118 = scmp.ne.s32.totalorder %s106, %s107
      %p119 = scmp.eq.s32.totalorder %s27, 3
      %p120 = por %p118, %p119
      %p122 = scmp.ne.s32.totalorder %s107, %s121
      %p123 = scmp.eq.s32.totalorder %s27, 0
      %p124 = por %p122, %p123
      %s125 = smul.u32 %s28, 4
      %s126 = sadd.s32 %s125, %s29
      %s127 = smul.u32 %s40, 4
      %s128 = sadd.s32 %s127, %s36
      %s129 = ssub.s32 %s126, %s128
      %p130 = scmp.eq.s32.totalorder %s129, 0
      %s132 = sadd.s32 %s131, 1
      %s133 = scalar_select %p130, %s131, %s132
      %p136 = pneg %p130
      %p137 = scmp.eq.s32.totalorder %s21, 3
      %p138 = por %p136, %p137
      %p139 = scmp.ne.s32.totalorder %s131, %s134
      %p140 = scmp.eq.s32.totalorder %s21, 0
      %p141 = por %p139, %p140
      %p142 = scmp.ne.s32.totalorder %s131, %s134
      %p143 = scmp.eq.s32.totalorder %s26, 3
      %p144 = por %p142, %p143
      %p145 = scmp.ne.s32.totalorder %s134, %s135
      %p146 = scmp.eq.s32.totalorder %s26, 0
      %p147 = por %p145, %p146
      %p148 = scmp.ne.s32.totalorder %s134, %s135
      %p149 = scmp.eq.s32.totalorder %s27, 3
      %p150 = por %p148, %p149
      %p152 = scmp.ne.s32.totalorder %s135, %s151
      %p153 = scmp.eq.s32.totalorder %s27, 0
      %p154 = por %p152, %p153
      %s155 = smul.u32 %s28, 4
      %s156 = sadd.s32 %s155, %s29
      %s157 = smul.u32 %s40, 4
      %s158 = sadd.s32 %s157, %s36
      %s159 = ssub.s32 %s156, %s158
      %p160 = scmp.eq.s32.totalorder %s159, 0
      %s162 = sadd.s32 %s161, 1
      %s163 = scalar_select %p160, %s161, %s162
      %p166 = pneg %p160
      %p167 = scmp.eq.s32.totalorder %s21, 3
      %p168 = por %p166, %p167
      %p169 = scmp.ne.s32.totalorder %s161, %s164
      %p170 = scmp.eq.s32.totalorder %s21, 0
      %p171 = por %p169, %p170
      %p172 = scmp.ne.s32.totalorder %s161, %s164
      %p173 = scmp.eq.s32.totalorder %s26, 3
      %p174 = por %p172, %p173
      %p175 = scmp.ne.s32.totalorder %s164, %s165
      %p176 = scmp.eq.s32.totalorder %s26, 0
      %p177 = por %p175, %p176
      %p178 = scmp.ne.s32.totalorder %s164, %s165
      %p179 = scmp.eq.s32.totalorder %s27, 3
      %p180 = por %p178, %p179
      %p182 = scmp.ne.s32.totalorder %s165, %s181
      %p183 = scmp.eq.s32.totalorder %s27, 0
      %p184 = por %p182, %p183
      %s185 = smul.u32 %s28, 4
      %s186 = sadd.s32 %s185, %s29
      %s187 = smul.u32 %s40, 4
      %s188 = sadd.s32 %s187, %s36
      %s189 = ssub.s32 %s186, %s188
      %p190 = scmp.eq.s32.totalorder %s189, 0
      %s192 = sadd.s32 %s191, 1
      %s193 = scalar_select %p190, %s191, %s192
      %p196 = pneg %p190
      %p197 = scmp.eq.s32.totalorder %s21, 3
      %p198 = por %p196, %p197
      %p199 = scmp.ne.s32.totalorder %s191, %s194
      %p200 = scmp.eq.s32.totalorder %s21, 0
      %p201 = por %p199, %p200
      %p202 = scmp.ne.s32.totalorder %s191, %s194
      %p203 = scmp.eq.s32.totalorder %s26, 3
      %p204 = por %p202, %p203
      %p205 = scmp.ne.s32.totalorder %s194, %s195
      %p206 = scmp.eq.s32.totalorder %s26, 0
      %p207 = por %p205, %p206
      %p208 = scmp.ne.s32.totalorder %s194, %s195
      %p209 = scmp.eq.s32.totalorder %s27, 3
      %p210 = por %p208, %p209
      %p212 = scmp.ne.s32.totalorder %s195, %s211
      %p213 = scmp.eq.s32.totalorder %s27, 0
      %p214 = por %p212, %p213
      %s215 = smul.u32 %s28, 4
      %s216 = sadd.s32 %s215, %s29
      %s217 = smul.u32 %s40, 4
      %s218 = sadd.s32 %s217, %s36
      %s219 = ssub.s32 %s216, %s218
      %p220 = scmp.eq.s32.totalorder %s219, 0
      %s222 = sadd.s32 %s221, 1
      %s223 = scalar_select %p220, %s221, %s222
      %p226 = pneg %p220
      %p227 = scmp.eq.s32.totalorder %s21, 3
      %p228 = por %p226, %p227
      %p229 = scmp.ne.s32.totalorder %s221, %s224
      %p230 = scmp.eq.s32.totalorder %s21, 0
      %p231 = por %p229, %p230
      %p232 = scmp.ne.s32.totalorder %s221, %s224
      %p233 = scmp.eq.s32.totalorder %s26, 3
      %p234 = por %p232, %p233
      %p235 = scmp.ne.s32.totalorder %s224, %s225
      %p236 = scmp.eq.s32.totalorder %s26, 0
      %p237 = por %p235, %p236
      %p238 = scmp.ne.s32.totalorder %s224, %s225
      %p239 = scmp.eq.s32.totalorder %s27, 3
      %p240 = por %p238, %p239
      %p242 = scmp.ne.s32.totalorder %s225, %s241
      %p243 = scmp.eq.s32.totalorder %s27, 0
      %p244 = por %p242, %p243
      %s245 = ssub.s32 %s28, %s40
      %p246 = scmp.eq.s32.totalorder %s245, 0
      %s248 = sadd.s32 %s247, 1
      %s249 = scalar_select %p246, %s247, %s248
      %p252 = pneg %p246
      %p253 = scmp.eq.s32.totalorder %s21, 3
      %p254 = por %p252, %p253
      %p255 = scmp.ne.s32.totalorder %s247, %s250
      %p256 = scmp.eq.s32.totalorder %s21, 0
      %p257 = por %p255, %p256
      %p258 = scmp.ne.s32.totalorder %s247, %s250
      %p259 = scmp.eq.s32.totalorder %s26, 3
      %p260 = por %p258, %p259
      %p261 = scmp.ne.s32.totalorder %s250, %s251
      %p262 = scmp.eq.s32.totalorder %s26, 0
      %p263 = por %p261, %p262
      %p264 = scmp.ne.s32.totalorder %s250, %s251
      %p265 = scmp.eq.s32.totalorder %s27, 3
      %p266 = por %p264, %p265
      %p268 = scmp.ne.s32.totalorder %s251, %s267
      %p269 = scmp.eq.s32.totalorder %s27, 0
      %p270 = por %p268, %p269
      %s271 = ssub.s32 %s28, %s40
      %p272 = scmp.eq.s32.totalorder %s271, 0
      %s274 = sadd.s32 %s273, 1
      %s275 = scalar_select %p272, %s273, %s274
      %p278 = pneg %p272
      %p279 = scmp.eq.s32.totalorder %s21, 3
      %p280 = por %p278, %p279
      %p281 = scmp.ne.s32.totalorder %s273, %s276
      %p282 = scmp.eq.s32.totalorder %s21, 0
      %p283 = por %p281, %p282
      %p284 = scmp.ne.s32.totalorder %s273, %s276
      %p285 = scmp.eq.s32.totalorder %s26, 3
      %p286 = por %p284, %p285
      %p287 = scmp.ne.s32.totalorder %s276, %s277
      %p288 = scmp.eq.s32.totalorder %s26, 0
      %p289 = por %p287, %p288
      %p290 = scmp.ne.s32.totalorder %s276, %s277
      %p291 = scmp.eq.s32.totalorder %s27, 3
      %p292 = por %p290, %p291
      %p294 = scmp.ne.s32.totalorder %s277, %s293
      %p295 = scmp.eq.s32.totalorder %s27, 0
      %p296 = por %p294, %p295
      %s297 = ssub.s32 %s28, %s40
      %p298 = scmp.eq.s32.totalorder %s297, 0
      %s300 = sadd.s32 %s299, 1
      %s301 = scalar_select %p298, %s299, %s300
      %p304 = pneg %p298
      %p305 = scmp.eq.s32.totalorder %s21, 3
      %p306 = por %p304, %p305
      %p307 = scmp.ne.s32.totalorder %s299, %s302
      %p308 = scmp.eq.s32.totalorder %s21, 0
      %p309 = por %p307, %p308
      %p310 = scmp.ne.s32.totalorder %s299, %s302
      %p311 = scmp.eq.s32.totalorder %s26, 3
      %p312 = por %p310, %p311
      %p313 = scmp.ne.s32.totalorder %s302, %s303
      %p314 = scmp.eq.s32.totalorder %s26, 0
      %p315 = por %p313, %p314
      %p316 = scmp.ne.s32.totalorder %s302, %s303
      %p317 = scmp.eq.s32.totalorder %s27, 3
      %p318 = por %p316, %p317
      %p320 = scmp.ne.s32.totalorder %s303, %s319
      %p321 = scmp.eq.s32.totalorder %s27, 0
      %p322 = por %p320, %p321
      %p323 = scmp.le.s32.totalorder 1, %s21
      %p324 = scmp.lt.s32.totalorder %s21, 5
      %p325 = pnand %p323, %p324
      %p326 = pneg %p325
      // Predicated region
      $region9: #{discriminator_forward.1} parent=5 // pred_check
        _
      $region10: #{discriminator_forward.1} parent=5 // pred_check_branch
        %328 = sbr.rel (%p325) target = $region12
      $region11: #{discriminator_forward.1} parent=5 // pred_region
        %s329 = ssub.s32 %s21, 1
        // Predicated region
        $region13: #{discriminator_forward.1} parent=11 // pred_check
          %p330 = pneg %p54
        $region14: #{discriminator_forward.1} parent=11 // pred_check_branch
          %332 = sbr.rel (%p330) target = $region16
        $region15: #{discriminator_forward.1} parent=11 // pred_region
          _
        $region16: #{discriminator_forward.1} parent=11 // pred_fallthru
          _
        // Predicated region
        $region17: #{discriminator_forward.1} parent=11 // pred_check
          %p333 = pneg %p75
        $region18: #{discriminator_forward.1} parent=11 // pred_check_branch
          %335 = sbr.rel (%p333) target = $region20
        $region19: #{discriminator_forward.1} parent=11 // pred_region
          _
        $region20: #{discriminator_forward.1} parent=11 // pred_fallthru
          _
        // Predicated region
        $region21: #{discriminator_forward.1} parent=11 // pred_check
          %p336 = pneg %p96
        $region22: #{discriminator_forward.1} parent=11 // pred_check_branch
          %338 = sbr.rel (%p336) target = $region24
        $region23: #{discriminator_forward.1} parent=11 // pred_region
          %340 = vsyncadd [#allocation5], 0
          %s342 = sshll.u32 %s2, 4
          %s343 = int_to_ptr.hbm [resolvable:$true] %s342
          %s344 = sshll.u32 [#allocation4], 4
          %s345 = int_to_ptr.vmem [resolvable:$true] %s344
          %347 = dma.hbm_to_vmem [thread:$0]  %s343, 256, %s345, [#allocation5]
        $region24: #{discriminator_forward.1} parent=11 // pred_fallthru
          _
        // Predicated region
        $region25: #{discriminator_forward.1} parent=11 // pred_check
          %p348 = pneg %p117
        $region26: #{discriminator_forward.1} parent=11 // pred_check_branch
          %350 = sbr.rel (%p348) target = $region28
        $region27: #{discriminator_forward.1} parent=11 // pred_region
          %352 = vsyncadd [#allocation8], 0
          %s354 = sshll.u32 %s3, 4
          %s355 = int_to_ptr.hbm [resolvable:$true] %s354
          %s356 = sshll.u32 [#allocation7], 4
          %s357 = int_to_ptr.vmem [resolvable:$true] %s356
          %359 = dma.hbm_to_vmem [thread:$0]  %s355, 16, %s357, [#allocation8]
        $region28: #{discriminator_forward.1} parent=11 // pred_fallthru
          _
      $region12: #{discriminator_forward.1} parent=5 // pred_fallthru
        _
      %p360 = scmp.lt.s32.totalorder %s21, 4
      // Predicated region
      $region29: #{discriminator_forward.1} parent=5 // pred_check
        %p361 = pneg %p360
      $region30: #{discriminator_forward.1} parent=5 // pred_check_branch
        %363 = sbr.rel (%p361) target = $region32
      $region31: #{discriminator_forward.1} parent=5 // pred_region
        // Predicated region
        $region33: #{discriminator_forward.1} parent=31 // pred_check
          %p364 = pneg %p141
        $region34: #{discriminator_forward.1} parent=31 // pred_check_branch
          %366 = sbr.rel (%p364) target = $region36
        $region35: #{discriminator_forward.1} parent=31 // pred_region
          %s367 = sand.u32 %s21, 1
          %s368 = scalar_lea.sflag [#allocation5], %s367
          %s369 = sand.u32 %s131, 1
          %s370 = smul.addr %s369, 4096
          %s371 = scalar_lea.vmem [#allocation9], %s370
          %s372 = smul.u32 %s28, 4
          %s373 = sadd.s32 %s372, %s29
          %s374 = smul.u32 8, %s373
          %376 = vsyncadd %s368, 0
          %s377 = smul.addr %s374, 4
          %s378 = scalar_lea.hbm %s4, %s377
          %s379 = sshll.u32 %s378, 4
          %s380 = int_to_ptr.hbm [resolvable:$true] %s379
          %s381 = sshll.u32 %s371, 4
          %s382 = int_to_ptr.vmem [resolvable:$true] %s381
          %387 = dma.hbm_to_vmem [thread:$0]  %s380, 65536, %s382, %s368, 2048, 512, 32
        $region36: #{discriminator_forward.1} parent=31 // pred_fallthru
          _
        // Predicated region
        $region37: #{discriminator_forward.1} parent=31 // pred_check
          %p388 = pneg %p171
        $region38: #{discriminator_forward.1} parent=31 // pred_check_branch
          %390 = sbr.rel (%p388) target = $region40
        $region39: #{discriminator_forward.1} parent=31 // pred_region
          %s391 = sand.u32 %s21, 1
          %s392 = scalar_lea.sflag [#allocation5], %s391
          %s393 = sand.u32 %s161, 1
          %s394 = smul.addr %s393, 4096
          %s395 = scalar_lea.vmem [#allocation10], %s394
          %s396 = smul.u32 %s28, 4
          %s397 = sadd.s32 %s396, %s29
          %s398 = smul.u32 8, %s397
          %400 = vsyncadd %s392, 0
          %s401 = smul.addr %s398, 4
          %s402 = scalar_lea.hbm %s5, %s401
          %s403 = sshll.u32 %s402, 4
          %s404 = int_to_ptr.hbm [resolvable:$true] %s403
          %s405 = sshll.u32 %s395, 4
          %s406 = int_to_ptr.vmem [resolvable:$true] %s405
          %411 = dma.hbm_to_vmem [thread:$0]  %s404, 65536, %s406, %s392, 2048, 512, 32
        $region40: #{discriminator_forward.1} parent=31 // pred_fallthru
          _
        // Predicated region
        $region41: #{discriminator_forward.1} parent=31 // pred_check
          %p412 = pneg %p201
        $region42: #{discriminator_forward.1} parent=31 // pred_check_branch
          %414 = sbr.rel (%p412) target = $region44
        $region43: #{discriminator_forward.1} parent=31 // pred_region
          %s415 = sand.u32 %s21, 1
          %s416 = scalar_lea.sflag [#allocation5], %s415
          %s417 = sand.u32 %s191, 1
          %s418 = smul.addr %s417, 8
          %s419 = scalar_lea.vmem [#allocation11], %s418
          %s420 = smul.u32 %s28, 4
          %s421 = sadd.s32 %s420, %s29
          %s422 = smul.u32 8, %s421
          %424 = vsyncadd %s416, 0
          %s425 = scalar_lea.hbm %s6, %s422
          %s427 = sshll.u32 %s425, 4
          %s428 = int_to_ptr.hbm [resolvable:$true] %s427
          %s429 = sshll.u32 %s419, 4
          %s430 = int_to_ptr.vmem [resolvable:$true] %s429
          %432 = dma.hbm_to_vmem [thread:$0]  %s428, 128, %s430, %s416
        $region44: #{discriminator_forward.1} parent=31 // pred_fallthru
          _
        // Predicated region
        $region45: #{discriminator_forward.1} parent=31 // pred_check
          %p433 = pneg %p231
        $region46: #{discriminator_forward.1} parent=31 // pred_check_branch
          %435 = sbr.rel (%p433) target = $region48
        $region47: #{discriminator_forward.1} parent=31 // pred_region
          %s436 = sand.u32 %s21, 1
          %s437 = scalar_lea.sflag [#allocation5], %s436
          %s438 = sand.u32 %s221, 1
          %s439 = smul.addr %s438, 16
          %s440 = scalar_lea.vmem [#allocation12], %s439
          %s441 = smul.u32 %s28, 4
          %s442 = sadd.s32 %s441, %s29
          %s443 = smul.u32 8, %s442
          %445 = vsyncadd %s437, 0
          %s446 = smul.addr %s443, 2
          %s447 = scalar_lea.hbm %s7, %s446
          %s449 = sshll.u32 %s447, 4
          %s450 = int_to_ptr.hbm [resolvable:$true] %s449
          %s451 = sshll.u32 %s440, 4
          %s452 = int_to_ptr.vmem [resolvable:$true] %s451
          %454 = dma.hbm_to_vmem [thread:$0]  %s450, 256, %s452, %s437
        $region48: #{discriminator_forward.1} parent=31 // pred_fallthru
          _
      $region32: #{discriminator_forward.1} parent=5 // pred_fallthru
        _
      %p455 = scmp.le.s32.totalorder 1, %s21
      %p456 = scmp.lt.s32.totalorder %s21, 5
      %p457 = pnand %p455, %p456
      %p458 = pneg %p457
      // Predicated region
      $region49: #{discriminator_forward.1} parent=5 // pred_check
        _
      $region50: #{discriminator_forward.1} parent=5 // pred_check_branch
        %460 = sbr.rel (%p457) target = $region52
      $region51: #{discriminator_forward.1} parent=5 // pred_region
        %s461 = ssub.s32 %s21, 1
        // Predicated region
        $region53: #{discriminator_forward.1} parent=51 // pred_check
          %p462 = pneg %p96
        $region54: #{discriminator_forward.1} parent=51 // pred_check_branch
          %464 = sbr.rel (%p462) target = $region56
        $region55: #{discriminator_forward.1} parent=51 // pred_region
          %466 = dma.done [#allocation5], 256
        $region56: #{discriminator_forward.1} parent=51 // pred_fallthru
          _
        // Predicated region
        $region57: #{discriminator_forward.1} parent=51 // pred_check
          %p467 = pneg %p117
        $region58: #{discriminator_forward.1} parent=51 // pred_check_branch
          %469 = sbr.rel (%p467) target = $region60
        $region59: #{discriminator_forward.1} parent=51 // pred_region
          %471 = dma.done [#allocation8], 16
        $region60: #{discriminator_forward.1} parent=51 // pred_fallthru
          _
        %s472 = sand.u32 %s26, 1
        %s473 = scalar_lea.sflag [#allocation5], %s472
        %s474 = sand.u32 %s134, 1
        %s475 = smul.addr %s474, 4096
        %s476 = scalar_lea.vmem [#allocation9], %s475
        // Predicated region
        $region61: #{discriminator_forward.1} parent=51 // pred_check
          %p477 = pneg %p147
        $region62: #{discriminator_forward.1} parent=51 // pred_check_branch
          %479 = sbr.rel (%p477) target = $region64
        $region63: #{discriminator_forward.1} parent=51 // pred_region
          %481 = dma.done %s473, 65536
        $region64: #{discriminator_forward.1} parent=51 // pred_fallthru
          _
        %s482 = sand.u32 %s26, 1
        %s483 = scalar_lea.sflag [#allocation5], %s482
        %s484 = sand.u32 %s164, 1
        %s485 = smul.addr %s484, 4096
        %s486 = scalar_lea.vmem [#allocation10], %s485
        // Predicated region
        $region65: #{discriminator_forward.1} parent=51 // pred_check
          %p487 = pneg %p177
        $region66: #{discriminator_forward.1} parent=51 // pred_check_branch
          %489 = sbr.rel (%p487) target = $region68
        $region67: #{discriminator_forward.1} parent=51 // pred_region
          %491 = dma.done %s483, 65536
        $region68: #{discriminator_forward.1} parent=51 // pred_fallthru
          _
        %s492 = sand.u32 %s26, 1
        %s493 = scalar_lea.sflag [#allocation5], %s492
        %s494 = sand.u32 %s194, 1
        %s495 = smul.addr %s494, 8
        %s496 = scalar_lea.vmem [#allocation11], %s495
        // Predicated region
        $region69: #{discriminator_forward.1} parent=51 // pred_check
          %p497 = pneg %p207
        $region70: #{discriminator_forward.1} parent=51 // pred_check_branch
          %499 = sbr.rel (%p497) target = $region72
        $region71: #{discriminator_forward.1} parent=51 // pred_region
          %501 = dma.done %s493, 128
        $region72: #{discriminator_forward.1} parent=51 // pred_fallthru
          _
        %s502 = sand.u32 %s26, 1
        %s503 = scalar_lea.sflag [#allocation5], %s502
        %s504 = sand.u32 %s224, 1
        %s505 = smul.addr %s504, 16
        %s506 = scalar_lea.vmem [#allocation12], %s505
        // Predicated region
        $region73: #{discriminator_forward.1} parent=51 // pred_check
          %p507 = pneg %p237
        $region74: #{discriminator_forward.1} parent=51 // pred_check_branch
          %509 = sbr.rel (%p507) target = $region76
        $region75: #{discriminator_forward.1} parent=51 // pred_region
          %511 = dma.done %s503, 256
        $region76: #{discriminator_forward.1} parent=51 // pred_fallthru
          _
        %p512 = pneg %p54
        %p513 = pneg %p51
        %p514 = pneg %p75
        %p515 = pneg %p72
        %p516 = pneg %p96
        %p517 = pneg %p93
        %p518 = pneg %p117
        %p519 = pneg %p114
        %s520 = sand.u32 %s26, 1
        %s521 = scalar_lea.sflag [#allocation5], %s520
        %s522 = sand.u32 %s134, 1
        %s523 = smul.addr %s522, 4096
        %s524 = scalar_lea.vmem [#allocation9], %s523
        %p525 = pneg %p147
        %p526 = pneg %p144
        %s527 = sand.u32 %s26, 1
        %s528 = scalar_lea.sflag [#allocation5], %s527
        %s529 = sand.u32 %s164, 1
        %s530 = smul.addr %s529, 4096
        %s531 = scalar_lea.vmem [#allocation10], %s530
        %p532 = pneg %p177
        %p533 = pneg %p174
        %s534 = sand.u32 %s26, 1
        %s535 = scalar_lea.sflag [#allocation5], %s534
        %s536 = sand.u32 %s194, 1
        %s537 = smul.addr %s536, 8
        %s538 = scalar_lea.vmem [#allocation11], %s537
        %p539 = pneg %p207
        %p540 = pneg %p204
        %s541 = sand.u32 %s26, 1
        %s542 = scalar_lea.sflag [#allocation5], %s541
        %s543 = sand.u32 %s224, 1
        %s544 = smul.addr %s543, 16
        %s545 = scalar_lea.vmem [#allocation12], %s544
        %p546 = pneg %p237
        %p547 = pneg %p234
        %p548 = pneg %p263
        %p549 = pneg %p260
        %p550 = scmp.lt.s32.totalorder %s30, 0
        %s551 = scalar_select %p550, %s30, 0
        %s552 = smul.addr %s551, 2
        %s553 = scalar_lea.vmem %s8, %s552
        %p554 = pneg %p289
        %p555 = pneg %p286
        %p556 = pneg %p315
        %p557 = pneg %p312
        %s558 = smul.u32 %s30, 4
        %s559 = sadd.s32 %s558, %s31
        %s560 = smul.u32 8, %s559
        %s561 = smul.u32 %s30, 4
        %s562 = sadd.s32 %s561, %s31
        %s563 = smul.u32 8, %s562
        %s564 = smul.u32 %s30, 4
        %s565 = sadd.s32 %s564, %s31
        %s566 = smul.u32 8, %s565
        %s567 = smul.u32 %s30, 4
        %s568 = sadd.s32 %s567, %s31
        %s569 = smul.u32 8, %s568
        %p570 = scmp.lt.s32.totalorder %s30, 0
        %s571 = scalar_select %p570, %s30, 0
        %s572 = smul.addr %s571, 2
        %s573 = scalar_lea.vmem %s8, %s572
        %p574 = scmp.eq.s32.totalorder %s31, 0
        // Predicated region
        $region77: #{discriminator_forward.1} parent=51 // pred_check
          %p575 = pneg %p574
        $region78: #{discriminator_forward.1} parent=51 // pred_check_branch
          %577 = sbr.rel (%p575) target = $region80
        $region79: #{discriminator_forward.1} parent=51 // pred_region
          %v578 = vld [vmem:[%s0] sm:$0xff]
          %v579 = vld [vmem:[%s0 + $0x8] sm:$0xff]
          %v580 = vld [vmem:[%s1] sm:$0xff]
          %v581 = vld [vmem:[%s1 + $0x8] sm:$0xff]
          %v582 = vmul.f32 %v578, %v578
          %v583 = vmul.f32 %v579, %v579
          %586 = vst [vmem:[#allocation1] ss:$4 sm:$0xff] %v582
          %s587 = scalar_lea.vmem [#allocation1], 32
          %588 = vst [vmem:[%s587] ss:$4 sm:$0xff] %v583
          %v589 = vld.sshfl [vmem:[#allocation1] sm:$0xff pattern:$0x73625140]
          %v590 = vld.sshfl [vmem:[#allocation1 + $0x8] sm:$0xff pattern:$0x73625140]
          %v591 = vld.sshfl [vmem:[#allocation1 + $0x10] sm:$0xff pattern:$0x73625140]
          %v592 = vld.sshfl [vmem:[#allocation1 + $0x18] sm:$0xff pattern:$0x73625140]
          %v593 = vld.sshfl [vmem:[#allocation1 + $0x20] sm:$0xff pattern:$0x73625140]
          %v594 = vld.sshfl [vmem:[#allocation1 + $0x28] sm:$0xff pattern:$0x73625140]
          %v595 = vld.sshfl [vmem:[#allocation1 + $0x30] sm:$0xff pattern:$0x73625140]
          %v596 = vld.sshfl [vmem:[#allocation1 + $0x38] sm:$0xff pattern:$0x73625140]
          %vm605 = vcmask 1041408
          %v606 = vsel %vm605, %v589, 0.0
          %v607 = vsel %vm605, %v590, 0.0
          %v608 = vadd.f32 %v606, %v607
          %v609 = vsel %vm605, %v591, 0.0
          %v610 = vadd.f32 %v608, %v609
          %v611 = vsel %vm605, %v592, 0.0
          %v612 = vadd.f32 %v610, %v611
          %v613 = vsel %vm605, %v593, 0.0
          %v614 = vadd.f32 %v612, %v613
          %v615 = vsel %vm605, %v594, 0.0
          %v616 = vadd.f32 %v614, %v615
          %v617 = vsel %vm605, %v595, 0.0
          %v618 = vadd.f32 %v616, %v617
          %v619 = vsel %vm605, %v596, 0.0
          %v620 = vadd.f32 %v618, %v619
          %621 = vadd.xlane.f32.xlu0 %v620
          %v622 = vpop.xlane.xlu0 %621
          %v623 = vrsqrt.pop %v622
          %v624 = vmul.f32 %v623, %v622
          %v625 = vmul.f32 %v624, %v623
          %v626 = vmul.f32 0.5, %v625
          %v627 = vsub.f32 1.5, %v626
          %v628 = vmul.f32 %v623, %v627
          %v629 = vmul.f32 %v622, %v628
          %vm630 = vcmp.eq.f32.partialorder %v622, inf
          %v631 = vsel %vm630, %v622, %v629
          %vm632 = vcmp.eq.f32.partialorder %v622, 0.0
          %v633 = vand.u32 %v622, 2147483648
          %v634 = vsel %vm632, %v633, %v631
          %v635 = vmul.f32 %v580, %v580
          %v636 = vmul.f32 %v581, %v581
          %639 = vst [vmem:[#allocation1] ss:$4 sm:$0xff] %v635
          %s640 = scalar_lea.vmem [#allocation1], 32
          %641 = vst [vmem:[%s640] ss:$4 sm:$0xff] %v636
          %v642 = vld.sshfl [vmem:[#allocation1] sm:$0xff pattern:$0x73625140]
          %v643 = vld.sshfl [vmem:[#allocation1 + $0x8] sm:$0xff pattern:$0x73625140]
          %v644 = vld.sshfl [vmem:[#allocation1 + $0x10] sm:$0xff pattern:$0x73625140]
          %v645 = vld.sshfl [vmem:[#allocation1 + $0x18] sm:$0xff pattern:$0x73625140]
          %v646 = vld.sshfl [vmem:[#allocation1 + $0x20] sm:$0xff pattern:$0x73625140]
          %v647 = vld.sshfl [vmem:[#allocation1 + $0x28] sm:$0xff pattern:$0x73625140]
          %v648 = vld.sshfl [vmem:[#allocation1 + $0x30] sm:$0xff pattern:$0x73625140]
          %v649 = vld.sshfl [vmem:[#allocation1 + $0x38] sm:$0xff pattern:$0x73625140]
          %v658 = vsel %vm605, %v642, 0.0
          %v659 = vsel %vm605, %v643, 0.0
          %v660 = vadd.f32 %v658, %v659
          %v661 = vsel %vm605, %v644, 0.0
          %v662 = vadd.f32 %v660, %v661
          %v663 = vsel %vm605, %v645, 0.0
          %v664 = vadd.f32 %v662, %v663
          %v665 = vsel %vm605, %v646, 0.0
          %v666 = vadd.f32 %v664, %v665
          %v667 = vsel %vm605, %v647, 0.0
          %v668 = vadd.f32 %v666, %v667
          %v669 = vsel %vm605, %v648, 0.0
          %v670 = vadd.f32 %v668, %v669
          %v671 = vsel %vm605, %v649, 0.0
          %v672 = vadd.f32 %v670, %v671
          %673 = vadd.xlane.f32.xlu0 %v672
          %v674 = vpop.xlane.xlu0 %673
          %v675 = vrsqrt.pop %v674
          %v676 = vmul.f32 %v675, %v674
          %v677 = vmul.f32 %v676, %v675
          %v678 = vmul.f32 0.5, %v677
          %v679 = vsub.f32 1.5, %v678
          %v680 = vmul.f32 %v675, %v679
          %v681 = vmul.f32 %v674, %v680
          %vm682 = vcmp.eq.f32.partialorder %v674, inf
          %v683 = vsel %vm682, %v674, %v681
          %vm684 = vcmp.eq.f32.partialorder %v674, 0.0
          %v685 = vand.u32 %v674, 2147483648
          %v686 = vsel %vm684, %v685, %v683
          %v687 = vmax.f32 %v634, 1e-12
          %v690 = vunpack.c.l.s4 269488144
          %v691 = vunpack.c.0.s8 %v690
          %v692 = vperm.slane %v687, %v691
          %v694 = vrcp.pop %v692
          %v695 = vmul.f32 %v692, %v694
          %v696 = vsub.f32 1.0, %v695
          %v697 = vmul.f32 %v694, %v696
          %v698 = vadd.f32 %v694, %v697
          %vm699 = vweird.f32 %v692
          %vm700 = vweird.f32 %v694
          %vm701 = vmor %vm699, %vm700
          %v702 = vsel %vm701, %v694, %v698
          %v703 = vand.u32 2147483647, %v692
          %vm704 = vcmp.eq.f32.partialorder %v703, 8.507059e+37
          %v705 = vand.u32 %v692, 2147483648
          %v706 = vor.u32 1.1754944e-38, %v705
          %v707 = vsel %vm704, %v706, %v702
          %v708 = vmul.f32 %v578, %v707
          %v709 = vmul.f32 %v579, %v707
          %v710 = vmax.f32 %v686, 1e-12
          %v713 = vunpack.c.l.s4 269488144
          %v714 = vunpack.c.0.s8 %v713
          %v715 = vperm.slane %v710, %v714
          %v717 = vrcp.pop %v715
          %v718 = vmul.f32 %v715, %v717
          %v719 = vsub.f32 1.0, %v718
          %v720 = vmul.f32 %v717, %v719
          %v721 = vadd.f32 %v717, %v720
          %vm722 = vweird.f32 %v715
          %vm723 = vweird.f32 %v717
          %vm724 = vmor %vm722, %vm723
          %v725 = vsel %vm724, %v717, %v721
          %v726 = vand.u32 2147483647, %v715
          %vm727 = vcmp.eq.f32.partialorder %v726, 8.507059e+37
          %v728 = vand.u32 %v715, 2147483648
          %v729 = vor.u32 1.1754944e-38, %v728
          %v730 = vsel %vm727, %v729, %v725
          %v731 = vmul.f32 %v580, %v730
          %v732 = vmul.f32 %v581, %v730
          %v733 = vld [vmem:[#allocation4] sm:$0xff]
          %v734 = vld [vmem:[#allocation4 + $0x8] sm:$0xff]
          %v735 = vld [vmem:[#allocation7] sm:$0x1]
          %v737 = vperm.slane %v735, 0
          %741 = vst [vmem:[#allocation1] ss:$4 sm:$0xff] %v708
          %s742 = scalar_lea.vmem [#allocation1], 32
          %743 = vst [vmem:[%s742] ss:$4 sm:$0xff] %v709
          %v744 = vld.sshfl [vmem:[#allocation1] sm:$0xff pattern:$0x73625140]
          %v745 = vld.sshfl [vmem:[#allocation1 + $0x8] sm:$0xff pattern:$0x73625140]
          %v746 = vld.sshfl [vmem:[#allocation1 + $0x10] sm:$0xff pattern:$0x73625140]
          %v747 = vld.sshfl [vmem:[#allocation1 + $0x18] sm:$0xff pattern:$0x73625140]
          %v748 = vld.sshfl [vmem:[#allocation1 + $0x20] sm:$0xff pattern:$0x73625140]
          %v749 = vld.sshfl [vmem:[#allocation1 + $0x28] sm:$0xff pattern:$0x73625140]
          %v750 = vld.sshfl [vmem:[#allocation1 + $0x30] sm:$0xff pattern:$0x73625140]
          %v751 = vld.sshfl [vmem:[#allocation1 + $0x38] sm:$0xff pattern:$0x73625140]
          %762 = vst [vmem:[#allocation1] ss:$4 sm:$0xff] %v733
          %s763 = scalar_lea.vmem [#allocation1], 32
          %764 = vst [vmem:[%s763] ss:$4 sm:$0xff] %v734
          %v765 = vld.sshfl [vmem:[#allocation1] sm:$0xff pattern:$0x73625140]
          %v766 = vld.sshfl [vmem:[#allocation1 + $0x8] sm:$0xff pattern:$0x73625140]
          %v767 = vld.sshfl [vmem:[#allocation1 + $0x10] sm:$0xff pattern:$0x73625140]
          %v768 = vld.sshfl [vmem:[#allocation1 + $0x18] sm:$0xff pattern:$0x73625140]
          %v769 = vld.sshfl [vmem:[#allocation1 + $0x20] sm:$0xff pattern:$0x73625140]
          %v770 = vld.sshfl [vmem:[#allocation1 + $0x28] sm:$0xff pattern:$0x73625140]
          %v771 = vld.sshfl [vmem:[#allocation1 + $0x30] sm:$0xff pattern:$0x73625140]
          %v772 = vld.sshfl [vmem:[#allocation1 + $0x38] sm:$0xff pattern:$0x73625140]
          %781 = vmatpush.xpose.msra.mxu0 0.0
          %782 = vmatpush.xpose.msra.mxu0 0.0
          %783 = vmatpush.xpose.msra.mxu0 0.0
          %784 = vmatpush.xpose.msra.mxu0 0.0
          %785 = vmatpush.xpose.msra.mxu0 0.0
          %786 = vmatpush.xpose.msra.mxu0 0.0
          %787 = vmatpush.xpose.msra.mxu0 0.0
          %788 = vmatpush.xpose.msra.mxu0 0.0
          %789 = vmatpush.xpose.msra.mxu0 0.0
          %790 = vmatpush.xpose.msra.mxu0 0.0
          %791 = vmatpush.xpose.msra.mxu0 0.0
          %792 = vmatpush.xpose.msra.mxu0 0.0
          %793 = vmatpush.xpose.msra.mxu0 0.0
          %794 = vmatpush.xpose.msra.mxu0 0.0
          %795 = vmatpush.xpose.msra.mxu0 0.0
          %796 = vmatpush.xpose.msra.mxu0 %v765
          %797 = vmatmul.f32.gmra.mxu0 %v744
          %v798 = vpop.f32.mrf.mxu0
          %v799 = vadd.f32 %v737, %v798
          %800 = vdwg.mxu0
          %801 = vmatpush.xpose.msra.mxu0 0.0
          %802 = vmatpush.xpose.msra.mxu0 0.0
          %803 = vmatpush.xpose.msra.mxu0 0.0
          %804 = vmatpush.xpose.msra.mxu0 0.0
          %805 = vmatpush.xpose.msra.mxu0 0.0
          %806 = vmatpush.xpose.msra.mxu0 0.0
          %807 = vmatpush.xpose.msra.mxu0 0.0
          %808 = vmatpush.xpose.msra.mxu0 0.0
          %809 = vmatpush.xpose.msra.mxu0 0.0
          %810 = vmatpush.xpose.msra.mxu0 0.0
          %811 = vmatpush.xpose.msra.mxu0 0.0
          %812 = vmatpush.xpose.msra.mxu0 0.0
          %813 = vmatpush.xpose.msra.mxu0 0.0
          %814 = vmatpush.xpose.msra.mxu0 0.0
          %815 = vmatpush.xpose.msra.mxu0 0.0
          %816 = vmatpush.xpose.msra.mxu0 %v766
          %817 = vmatmul.f32.gmra.mxu0 %v745
          %v818 = vpop.f32.mrf.mxu0
          %v819 = vadd.f32 %v799, %v818
          %820 = vdwg.mxu0
          %821 = vmatpush.xpose.msra.mxu0 0.0
          %822 = vmatpush.xpose.msra.mxu0 0.0
          %823 = vmatpush.xpose.msra.mxu0 0.0
          %824 = vmatpush.xpose.msra.mxu0 0.0
          %825 = vmatpush.xpose.msra.mxu0 0.0
          %826 = vmatpush.xpose.msra.mxu0 0.0
          %827 = vmatpush.xpose.msra.mxu0 0.0
          %828 = vmatpush.xpose.msra.mxu0 0.0
          %829 = vmatpush.xpose.msra.mxu0 0.0
          %830 = vmatpush.xpose.msra.mxu0 0.0
          %831 = vmatpush.xpose.msra.mxu0 0.0
          %832 = vmatpush.xpose.msra.mxu0 0.0
          %833 = vmatpush.xpose.msra.mxu0 0.0
          %834 = vmatpush.xpose.msra.mxu0 0.0
          %835 = vmatpush.xpose.msra.mxu0 0.0
          %836 = vmatpush.xpose.msra.mxu0 %v767
          %837 = vmatmul.f32.gmra.mxu0 %v746
          %v838 = vpop.f32.mrf.mxu0
          %v839 = vadd.f32 %v819, %v838
          %840 = vdwg.mxu0
          %841 = vmatpush.xpose.msra.mxu0 0.0
          %842 = vmatpush.xpose.msra.mxu0 0.0
          %843 = vmatpush.xpose.msra.mxu0 0.0
          %844 = vmatpush.xpose.msra.mxu0 0.0
          %845 = vmatpush.xpose.msra.mxu0 0.0
          %846 = vmatpush.xpose.msra.mxu0 0.0
          %847 = vmatpush.xpose.msra.mxu0 0.0
          %848 = vmatpush.xpose.msra.mxu0 0.0
          %849 = vmatpush.xpose.msra.mxu0 0.0
          %850 = vmatpush.xpose.msra.mxu0 0.0
          %851 = vmatpush.xpose.msra.mxu0 0.0
          %852 = vmatpush.xpose.msra.mxu0 0.0
          %853 = vmatpush.xpose.msra.mxu0 0.0
          %854 = vmatpush.xpose.msra.mxu0 0.0
          %855 = vmatpush.xpose.msra.mxu0 0.0
          %856 = vmatpush.xpose.msra.mxu0 %v768
          %857 = vmatmul.f32.gmra.mxu0 %v747
          %v858 = vpop.f32.mrf.mxu0
          %v859 = vadd.f32 %v839, %v858
          %860 = vdwg.mxu0
          %861 = vmatpush.xpose.msra.mxu0 0.0
          %862 = vmatpush.xpose.msra.mxu0 0.0
          %863 = vmatpush.xpose.msra.mxu0 0.0
          %864 = vmatpush.xpose.msra.mxu0 0.0
          %865 = vmatpush.xpose.msra.mxu0 0.0
          %866 = vmatpush.xpose.msra.mxu0 0.0
          %867 = vmatpush.xpose.msra.mxu0 0.0
          %868 = vmatpush.xpose.msra.mxu0 0.0
          %869 = vmatpush.xpose.msra.mxu0 0.0
          %870 = vmatpush.xpose.msra.mxu0 0.0
          %871 = vmatpush.xpose.msra.mxu0 0.0
          %872 = vmatpush.xpose.msra.mxu0 0.0
          %873 = vmatpush.xpose.msra.mxu0 0.0
          %874 = vmatpush.xpose.msra.mxu0 0.0
          %875 = vmatpush.xpose.msra.mxu0 0.0
          %876 = vmatpush.xpose.msra.mxu0 %v769
          %877 = vmatmul.f32.gmra.mxu0 %v748
          %v878 = vpop.f32.mrf.mxu0
          %v879 = vadd.f32 %v859, %v878
          %880 = vdwg.mxu0
          %881 = vmatpush.xpose.msra.mxu0 0.0
          %882 = vmatpush.xpose.msra.mxu0 0.0
          %883 = vmatpush.xpose.msra.mxu0 0.0
          %884 = vmatpush.xpose.msra.mxu0 0.0
          %885 = vmatpush.xpose.msra.mxu0 0.0
          %886 = vmatpush.xpose.msra.mxu0 0.0
          %887 = vmatpush.xpose.msra.mxu0 0.0
          %888 = vmatpush.xpose.msra.mxu0 0.0
          %889 = vmatpush.xpose.msra.mxu0 0.0
          %890 = vmatpush.xpose.msra.mxu0 0.0
          %891 = vmatpush.xpose.msra.mxu0 0.0
          %892 = vmatpush.xpose.msra.mxu0 0.0
          %893 = vmatpush.xpose.msra.mxu0 0.0
          %894 = vmatpush.xpose.msra.mxu0 0.0
          %895 = vmatpush.xpose.msra.mxu0 0.0
          %896 = vmatpush.xpose.msra.mxu0 %v770
          %897 = vmatmul.f32.gmra.mxu0 %v749
          %v898 = vpop.f32.mrf.mxu0
          %v899 = vadd.f32 %v879, %v898
          %900 = vdwg.mxu0
          %901 = vmatpush.xpose.msra.mxu0 0.0
          %902 = vmatpush.xpose.msra.mxu0 0.0
          %903 = vmatpush.xpose.msra.mxu0 0.0
          %904 = vmatpush.xpose.msra.mxu0 0.0
          %905 = vmatpush.xpose.msra.mxu0 0.0
          %906 = vmatpush.xpose.msra.mxu0 0.0
          %907 = vmatpush.xpose.msra.mxu0 0.0
          %908 = vmatpush.xpose.msra.mxu0 0.0
          %909 = vmatpush.xpose.msra.mxu0 0.0
          %910 = vmatpush.xpose.msra.mxu0 0.0
          %911 = vmatpush.xpose.msra.mxu0 0.0
          %912 = vmatpush.xpose.msra.mxu0 0.0
          %913 = vmatpush.xpose.msra.mxu0 0.0
          %914 = vmatpush.xpose.msra.mxu0 0.0
          %915 = vmatpush.xpose.msra.mxu0 0.0
          %916 = vmatpush.xpose.msra.mxu0 %v771
          %917 = vmatmul.f32.gmra.mxu0 %v750
          %v918 = vpop.f32.mrf.mxu0
          %v919 = vadd.f32 %v899, %v918
          %920 = vdwg.mxu0
          %921 = vmatpush.xpose.msra.mxu0 0.0
          %922 = vmatpush.xpose.msra.mxu0 0.0
          %923 = vmatpush.xpose.msra.mxu0 0.0
          %924 = vmatpush.xpose.msra.mxu0 0.0
          %925 = vmatpush.xpose.msra.mxu0 0.0
          %926 = vmatpush.xpose.msra.mxu0 0.0
          %927 = vmatpush.xpose.msra.mxu0 0.0
          %928 = vmatpush.xpose.msra.mxu0 0.0
          %929 = vmatpush.xpose.msra.mxu0 0.0
          %930 = vmatpush.xpose.msra.mxu0 0.0
          %931 = vmatpush.xpose.msra.mxu0 0.0
          %932 = vmatpush.xpose.msra.mxu0 0.0
          %933 = vmatpush.xpose.msra.mxu0 0.0
          %934 = vmatpush.xpose.msra.mxu0 0.0
          %935 = vmatpush.xpose.msra.mxu0 0.0
          %936 = vmatpush.xpose.msra.mxu0 %v772
          %937 = vmatmul.f32.gmra.mxu0 %v751
          %v938 = vpop.f32.mrf.mxu0
          %v939 = vadd.f32 %v919, %v938
          %940 = vdwg.mxu0
          %vm941 = vcmask 9216
          %942 = vst.msk [vmem:[#allocation13] sm:$0x3] %vm941, %v939
          %v943 = vld [vmem:[#allocation7] sm:$0x1]
          %v945 = vperm.slane %v943, 0
          %949 = vst [vmem:[#allocation1] ss:$4 sm:$0xff] %v731
          %s950 = scalar_lea.vmem [#allocation1], 32
          %951 = vst [vmem:[%s950] ss:$4 sm:$0xff] %v732
          %v952 = vld.sshfl [vmem:[#allocation1] sm:$0xff pattern:$0x73625140]
          %v953 = vld.sshfl [vmem:[#allocation1 + $0x8] sm:$0xff pattern:$0x73625140]
          %v954 = vld.sshfl [vmem:[#allocation1 + $0x10] sm:$0xff pattern:$0x73625140]
          %v955 = vld.sshfl [vmem:[#allocation1 + $0x18] sm:$0xff pattern:$0x73625140]
          %v956 = vld.sshfl [vmem:[#allocation1 + $0x20] sm:$0xff pattern:$0x73625140]
          %v957 = vld.sshfl [vmem:[#allocation1 + $0x28] sm:$0xff pattern:$0x73625140]
          %v958 = vld.sshfl [vmem:[#allocation1 + $0x30] sm:$0xff pattern:$0x73625140]
          %v959 = vld.sshfl [vmem:[#allocation1 + $0x38] sm:$0xff pattern:$0x73625140]
          %968 = vst [vmem:[#allocation1] ss:$4 sm:$0xff] %v733
          %s969 = scalar_lea.vmem [#allocation1], 32
          %970 = vst [vmem:[%s969] ss:$4 sm:$0xff] %v734
          %v971 = vld.sshfl [vmem:[#allocation1] sm:$0xff pattern:$0x73625140]
          %v972 = vld.sshfl [vmem:[#allocation1 + $0x8] sm:$0xff pattern:$0x73625140]
          %v973 = vld.sshfl [vmem:[#allocation1 + $0x10] sm:$0xff pattern:$0x73625140]
          %v974 = vld.sshfl [vmem:[#allocation1 + $0x18] sm:$0xff pattern:$0x73625140]
          %v975 = vld.sshfl [vmem:[#allocation1 + $0x20] sm:$0xff pattern:$0x73625140]
          %v976 = vld.sshfl [vmem:[#allocation1 + $0x28] sm:$0xff pattern:$0x73625140]
          %v977 = vld.sshfl [vmem:[#allocation1 + $0x30] sm:$0xff pattern:$0x73625140]
          %v978 = vld.sshfl [vmem:[#allocation1 + $0x38] sm:$0xff pattern:$0x73625140]
          %987 = vmatpush.xpose.msra.mxu0 0.0
          %988 = vmatpush.xpose.msra.mxu0 0.0
          %989 = vmatpush.xpose.msra.mxu0 0.0
          %990 = vmatpush.xpose.msra.mxu0 0.0
          %991 = vmatpush.xpose.msra.mxu0 0.0
          %992 = vmatpush.xpose.msra.mxu0 0.0
          %993 = vmatpush.xpose.msra.mxu0 0.0
          %994 = vmatpush.xpose.msra.mxu0 0.0
          %995 = vmatpush.xpose.msra.mxu0 0.0
          %996 = vmatpush.xpose.msra.mxu0 0.0
          %997 = vmatpush.xpose.msra.mxu0 0.0
          %998 = vmatpush.xpose.msra.mxu0 0.0
          %999 = vmatpush.xpose.msra.mxu0 0.0
          %1000 = vmatpush.xpose.msra.mxu0 0.0
          %1001 = vmatpush.xpose.msra.mxu0 0.0
          %1002 = vmatpush.xpose.msra.mxu0 %v971
          %1003 = vmatmul.f32.gmra.mxu0 %v952
          %v1004 = vpop.f32.mrf.mxu0
          %v1005 = vadd.f32 %v945, %v1004
          %1006 = vdwg.mxu0
          %1007 = vmatpush.xpose.msra.mxu0 0.0
          %1008 = vmatpush.xpose.msra.mxu0 0.0
          %1009 = vmatpush.xpose.msra.mxu0 0.0
          %1010 = vmatpush.xpose.msra.mxu0 0.0
          %1011 = vmatpush.xpose.msra.mxu0 0.0
          %1012 = vmatpush.xpose.msra.mxu0 0.0
          %1013 = vmatpush.xpose.msra.mxu0 0.0
          %1014 = vmatpush.xpose.msra.mxu0 0.0
          %1015 = vmatpush.xpose.msra.mxu0 0.0
          %1016 = vmatpush.xpose.msra.mxu0 0.0
          %1017 = vmatpush.xpose.msra.mxu0 0.0
          %1018 = vmatpush.xpose.msra.mxu0 0.0
          %1019 = vmatpush.xpose.msra.mxu0 0.0
          %1020 = vmatpush.xpose.msra.mxu0 0.0
          %1021 = vmatpush.xpose.msra.mxu0 0.0
          %1022 = vmatpush.xpose.msra.mxu0 %v972
          %1023 = vmatmul.f32.gmra.mxu0 %v953
          %v1024 = vpop.f32.mrf.mxu0
          %v1025 = vadd.f32 %v1005, %v1024
          %1026 = vdwg.mxu0
          %1027 = vmatpush.xpose.msra.mxu0 0.0
          %1028 = vmatpush.xpose.msra.mxu0 0.0
          %1029 = vmatpush.xpose.msra.mxu0 0.0
          %1030 = vmatpush.xpose.msra.mxu0 0.0
          %1031 = vmatpush.xpose.msra.mxu0 0.0
          %1032 = vmatpush.xpose.msra.mxu0 0.0
          %1033 = vmatpush.xpose.msra.mxu0 0.0
          %1034 = vmatpush.xpose.msra.mxu0 0.0
          %1035 = vmatpush.xpose.msra.mxu0 0.0
          %1036 = vmatpush.xpose.msra.mxu0 0.0
          %1037 = vmatpush.xpose.msra.mxu0 0.0
          %1038 = vmatpush.xpose.msra.mxu0 0.0
          %1039 = vmatpush.xpose.msra.mxu0 0.0
          %1040 = vmatpush.xpose.msra.mxu0 0.0
          %1041 = vmatpush.xpose.msra.mxu0 0.0
          %1042 = vmatpush.xpose.msra.mxu0 %v973
          %1043 = vmatmul.f32.gmra.mxu0 %v954
          %v1044 = vpop.f32.mrf.mxu0
          %v1045 = vadd.f32 %v1025, %v1044
          %1046 = vdwg.mxu0
          %1047 = vmatpush.xpose.msra.mxu0 0.0
          %1048 = vmatpush.xpose.msra.mxu0 0.0
          %1049 = vmatpush.xpose.msra.mxu0 0.0
          %1050 = vmatpush.xpose.msra.mxu0 0.0
          %1051 = vmatpush.xpose.msra.mxu0 0.0
          %1052 = vmatpush.xpose.msra.mxu0 0.0
          %1053 = vmatpush.xpose.msra.mxu0 0.0
          %1054 = vmatpush.xpose.msra.mxu0 0.0
          %1055 = vmatpush.xpose.msra.mxu0 0.0
          %1056 = vmatpush.xpose.msra.mxu0 0.0
          %1057 = vmatpush.xpose.msra.mxu0 0.0
          %1058 = vmatpush.xpose.msra.mxu0 0.0
          %1059 = vmatpush.xpose.msra.mxu0 0.0
          %1060 = vmatpush.xpose.msra.mxu0 0.0
          %1061 = vmatpush.xpose.msra.mxu0 0.0
          %1062 = vmatpush.xpose.msra.mxu0 %v974
          %1063 = vmatmul.f32.gmra.mxu0 %v955
          %v1064 = vpop.f32.mrf.mxu0
          %v1065 = vadd.f32 %v1045, %v1064
          %1066 = vdwg.mxu0
          %1067 = vmatpush.xpose.msra.mxu0 0.0
          %1068 = vmatpush.xpose.msra.mxu0 0.0
          %1069 = vmatpush.xpose.msra.mxu0 0.0
          %1070 = vmatpush.xpose.msra.mxu0 0.0
          %1071 = vmatpush.xpose.msra.mxu0 0.0
          %1072 = vmatpush.xpose.msra.mxu0 0.0
          %1073 = vmatpush.xpose.msra.mxu0 0.0
          %1074 = vmatpush.xpose.msra.mxu0 0.0
          %1075 = vmatpush.xpose.msra.mxu0 0.0
          %1076 = vmatpush.xpose.msra.mxu0 0.0
          %1077 = vmatpush.xpose.msra.mxu0 0.0
          %1078 = vmatpush.xpose.msra.mxu0 0.0
          %1079 = vmatpush.xpose.msra.mxu0 0.0
          %1080 = vmatpush.xpose.msra.mxu0 0.0
          %1081 = vmatpush.xpose.msra.mxu0 0.0
          %1082 = vmatpush.xpose.msra.mxu0 %v975
          %1083 = vmatmul.f32.gmra.mxu0 %v956
          %v1084 = vpop.f32.mrf.mxu0
          %v1085 = vadd.f32 %v1065, %v1084
          %1086 = vdwg.mxu0
          %1087 = vmatpush.xpose.msra.mxu0 0.0
          %1088 = vmatpush.xpose.msra.mxu0 0.0
          %1089 = vmatpush.xpose.msra.mxu0 0.0
          %1090 = vmatpush.xpose.msra.mxu0 0.0
          %1091 = vmatpush.xpose.msra.mxu0 0.0
          %1092 = vmatpush.xpose.msra.mxu0 0.0
          %1093 = vmatpush.xpose.msra.mxu0 0.0
          %1094 = vmatpush.xpose.msra.mxu0 0.0
          %1095 = vmatpush.xpose.msra.mxu0 0.0
          %1096 = vmatpush.xpose.msra.mxu0 0.0
          %1097 = vmatpush.xpose.msra.mxu0 0.0
          %1098 = vmatpush.xpose.msra.mxu0 0.0
          %1099 = vmatpush.xpose.msra.mxu0 0.0
          %1100 = vmatpush.xpose.msra.mxu0 0.0
          %1101 = vmatpush.xpose.msra.mxu0 0.0
          %1102 = vmatpush.xpose.msra.mxu0 %v976
          %1103 = vmatmul.f32.gmra.mxu0 %v957
          %v1104 = vpop.f32.mrf.mxu0
          %v1105 = vadd.f32 %v1085, %v1104
          %1106 = vdwg.mxu0
          %1107 = vmatpush.xpose.msra.mxu0 0.0
          %1108 = vmatpush.xpose.msra.mxu0 0.0
          %1109 = vmatpush.xpose.msra.mxu0 0.0
          %1110 = vmatpush.xpose.msra.mxu0 0.0
          %1111 = vmatpush.xpose.msra.mxu0 0.0
          %1112 = vmatpush.xpose.msra.mxu0 0.0
          %1113 = vmatpush.xpose.msra.mxu0 0.0
          %1114 = vmatpush.xpose.msra.mxu0 0.0
          %1115 = vmatpush.xpose.msra.mxu0 0.0
          %1116 = vmatpush.xpose.msra.mxu0 0.0
          %1117 = vmatpush.xpose.msra.mxu0 0.0
          %1118 = vmatpush.xpose.msra.mxu0 0.0
          %1119 = vmatpush.xpose.msra.mxu0 0.0
          %1120 = vmatpush.xpose.msra.mxu0 0.0
          %1121 = vmatpush.xpose.msra.mxu0 0.0
          %1122 = vmatpush.xpose.msra.mxu0 %v977
          %1123 = vmatmul.f32.gmra.mxu0 %v958
          %v1124 = vpop.f32.mrf.mxu0
          %v1125 = vadd.f32 %v1105, %v1124
          %1126 = vdwg.mxu0
          %1127 = vmatpush.xpose.msra.mxu0 0.0
          %1128 = vmatpush.xpose.msra.mxu0 0.0
          %1129 = vmatpush.xpose.msra.mxu0 0.0
          %1130 = vmatpush.xpose.msra.mxu0 0.0
          %1131 = vmatpush.xpose.msra.mxu0 0.0
          %1132 = vmatpush.xpose.msra.mxu0 0.0
          %1133 = vmatpush.xpose.msra.mxu0 0.0
          %1134 = vmatpush.xpose.msra.mxu0 0.0
          %1135 = vmatpush.xpose.msra.mxu0 0.0
          %1136 = vmatpush.xpose.msra.mxu0 0.0
          %1137 = vmatpush.xpose.msra.mxu0 0.0
          %1138 = vmatpush.xpose.msra.mxu0 0.0
          %1139 = vmatpush.xpose.msra.mxu0 0.0
          %1140 = vmatpush.xpose.msra.mxu0 0.0
          %1141 = vmatpush.xpose.msra.mxu0 0.0
          %1142 = vmatpush.xpose.msra.mxu0 %v978
          %1143 = vmatmul.f32.gmra.mxu0 %v959
          %v1144 = vpop.f32.mrf.mxu0
          %v1145 = vadd.f32 %v1125, %v1144
          %1146 = vdwg.mxu0
          %1147 = vst.msk [vmem:[#allocation14] sm:$0x3] %vm941, %v1145
          %1148 = vst [vmem:[#allocation1] ss:$4 sm:$0xff] %v708
          %s1149 = scalar_lea.vmem [#allocation1], 32
          %1150 = vst [vmem:[%s1149] ss:$4 sm:$0xff] %v709
          %v1151 = vld.sshfl [vmem:[#allocation1] sm:$0xff pattern:$0x73625140]
          %v1152 = vld.sshfl [vmem:[#allocation1 + $0x8] sm:$0xff pattern:$0x73625140]
          %v1153 = vld.sshfl [vmem:[#allocation1 + $0x10] sm:$0xff pattern:$0x73625140]
          %v1154 = vld.sshfl [vmem:[#allocation1 + $0x18] sm:$0xff pattern:$0x73625140]
          %v1155 = vld.sshfl [vmem:[#allocation1 + $0x20] sm:$0xff pattern:$0x73625140]
          %v1156 = vld.sshfl [vmem:[#allocation1 + $0x28] sm:$0xff pattern:$0x73625140]
          %v1157 = vld.sshfl [vmem:[#allocation1 + $0x30] sm:$0xff pattern:$0x73625140]
          %v1158 = vld.sshfl [vmem:[#allocation1 + $0x38] sm:$0xff pattern:$0x73625140]
          %v1167 = vpack.c.bf16 %v1152, %v1151
          %v1168 = vpack.c.bf16 %v1154, %v1153
          %v1169 = vpack.c.bf16 %v1156, %v1155
          %v1170 = vpack.c.bf16 %v1158, %v1157
          %v1175 = vrot.slane %v1167, 3
          %v1176 = vrot.slane %v1168, 6
          %v1177 = vrot.slane %v1168, 1
          %v1178 = vrot.slane %v1169, 4
          %v1179 = vrot.slane %v1169, 7
          %v1180 = vrot.slane %v1170, 2
          %v1181 = vrot.slane %v1170, 5
          %vm1182 = vcmask 1040384
          %v1185 = vsel %vm1182, %v1167, %v1175
          %vm1186 = vcmask 1042434
          %v1189 = vsel %vm1186, %v1176, %v1177
          %v1190 = vsel %vm605, %v1185, %v1189
          %vm1191 = vcmask 1044484
          %v1194 = vsel %vm1191, %v1178, %v1179
          %vm1195 = vcmask 1046534
          %v1198 = vsel %vm1195, %v1180, %v1181
          %vm1199 = vcmask 1045508
          %v1200 = vsel %vm1199, %v1194, %v1198
          %vm1201 = vcmask 1043456
          %v1202 = vsel %vm1201, %v1190, %v1200
          %1204 = vst [vmem:[#allocation2] sm:$0xff] %v1202
          %1205 = vst [vmem:[#allocation1] ss:$4 sm:$0xff] %v731
          %s1206 = scalar_lea.vmem [#allocation1], 32
          %1207 = vst [vmem:[%s1206] ss:$4 sm:$0xff] %v732
          %v1208 = vld.sshfl [vmem:[#allocation1] sm:$0xff pattern:$0x73625140]
          %v1209 = vld.sshfl [vmem:[#allocation1 + $0x8] sm:$0xff pattern:$0x73625140]
          %v1210 = vld.sshfl [vmem:[#allocation1 + $0x10] sm:$0xff pattern:$0x73625140]
          %v1211 = vld.sshfl [vmem:[#allocation1 + $0x18] sm:$0xff pattern:$0x73625140]
          %v1212 = vld.sshfl [vmem:[#allocation1 + $0x20] sm:$0xff pattern:$0x73625140]
          %v1213 = vld.sshfl [vmem:[#allocation1 + $0x28] sm:$0xff pattern:$0x73625140]
          %v1214 = vld.sshfl [vmem:[#allocation1 + $0x30] sm:$0xff pattern:$0x73625140]
          %v1215 = vld.sshfl [vmem:[#allocation1 + $0x38] sm:$0xff pattern:$0x73625140]
          %v1224 = vpack.c.bf16 %v1209, %v1208
          %v1225 = vpack.c.bf16 %v1211, %v1210
          %v1226 = vpack.c.bf16 %v1213, %v1212
          %v1227 = vpack.c.bf16 %v1215, %v1214
          %v1232 = vrot.slane %v1224, 3
          %v1233 = vrot.slane %v1225, 6
          %v1234 = vrot.slane %v1225, 1
          %v1235 = vrot.slane %v1226, 4
          %v1236 = vrot.slane %v1226, 7
          %v1237 = vrot.slane %v1227, 2
          %v1238 = vrot.slane %v1227, 5
          %v1241 = vsel %vm1182, %v1224, %v1232
          %v1244 = vsel %vm1186, %v1233, %v1234
          %v1245 = vsel %vm605, %v1241, %v1244
          %v1248 = vsel %vm1191, %v1235, %v1236
          %v1251 = vsel %vm1195, %v1237, %v1238
          %v1252 = vsel %vm1199, %v1248, %v1251
          %v1253 = vsel %vm1201, %v1245, %v1252
          %1255 = vst [vmem:[#allocation3] sm:$0xff] %v1253
          %1256 = vst.msk [vmem:[%s573] sm:$0x3] %vm941, 0.0
        $region80: #{discriminator_forward.1} parent=51 // pred_fallthru
          _
        %v1257 = vld [vmem:[#allocation2] sm:$0xff]
        %v1258 = vld [vmem:[%s476] sm:$0xff]
        %v1259 = vld [vmem:[%s476 + $0x8] sm:$0xff]
        %v1260 = vld [vmem:[%s476 + $0x10] sm:$0xff]
        %v1261 = vld [vmem:[%s476 + $0x18] sm:$0xff]
        %v1262 = vld [vmem:[%s476 + $0x20] sm:$0xff]
        %v1263 = vld [vmem:[%s476 + $0x28] sm:$0xff]
        %v1264 = vld [vmem:[%s476 + $0x30] sm:$0xff]
        %v1265 = vld [vmem:[%s476 + $0x38] sm:$0xff]
        %v1266 = vld [vmem:[%s476 + $0x40] sm:$0xff]
        %v1267 = vld [vmem:[%s476 + $0x48] sm:$0xff]
        %v1268 = vld [vmem:[%s476 + $0x50] sm:$0xff]
        %v1269 = vld [vmem:[%s476 + $0x58] sm:$0xff]
        %v1270 = vld [vmem:[%s476 + $0x60] sm:$0xff]
        %v1271 = vld [vmem:[%s476 + $0x68] sm:$0xff]
        %v1272 = vld [vmem:[%s476 + $0x70] sm:$0xff]
        %v1273 = vld [vmem:[%s476 + $0x78] sm:$0xff]
        %v1274 = vld [vmem:[%s476 + $0x80] sm:$0xff]
        %v1275 = vld [vmem:[%s476 + $0x88] sm:$0xff]
        %v1276 = vld [vmem:[%s476 + $0x90] sm:$0xff]
        %v1277 = vld [vmem:[%s476 + $0x98] sm:$0xff]
        %v1278 = vld [vmem:[%s476 + $0xa0] sm:$0xff]
        %v1279 = vld [vmem:[%s476 + $0xa8] sm:$0xff]
        %v1280 = vld [vmem:[%s476 + $0xb0] sm:$0xff]
        %v1281 = vld [vmem:[%s476 + $0xb8] sm:$0xff]
        %v1282 = vld [vmem:[%s476 + $0xc0] sm:$0xff]
        %v1283 = vld [vmem:[%s476 + $0xc8] sm:$0xff]
        %v1284 = vld [vmem:[%s476 + $0xd0] sm:$0xff]
        %v1285 = vld [vmem:[%s476 + $0xd8] sm:$0xff]
        %v1286 = vld [vmem:[%s476 + $0xe0] sm:$0xff]
        %v1287 = vld [vmem:[%s476 + $0xe8] sm:$0xff]
        %v1288 = vld [vmem:[%s476 + $0xf0] sm:$0xff]
        %v1289 = vld [vmem:[%s476 + $0xf8] sm:$0xff]
        %v1290 = vld [vmem:[%s476 + $0x100] sm:$0xff]
        %v1291 = vld [vmem:[%s476 + $0x108] sm:$0xff]
        %v1292 = vld [vmem:[%s476 + $0x110] sm:$0xff]
        %v1293 = vld [vmem:[%s476 + $0x118] sm:$0xff]
        %v1294 = vld [vmem:[%s476 + $0x120] sm:$0xff]
        %v1295 = vld [vmem:[%s476 + $0x128] sm:$0xff]
        %v1296 = vld [vmem:[%s476 + $0x130] sm:$0xff]
        %v1297 = vld [vmem:[%s476 + $0x138] sm:$0xff]
        %v1298 = vld [vmem:[%s476 + $0x140] sm:$0xff]
        %v1299 = vld [vmem:[%s476 + $0x148] sm:$0xff]
        %v1300 = vld [vmem:[%s476 + $0x150] sm:$0xff]
        %v1301 = vld [vmem:[%s476 + $0x158] sm:$0xff]
        %v1302 = vld [vmem:[%s476 + $0x160] sm:$0xff]
        %v1303 = vld [vmem:[%s476 + $0x168] sm:$0xff]
        %v1304 = vld [vmem:[%s476 + $0x170] sm:$0xff]
        %v1305 = vld [vmem:[%s476 + $0x178] sm:$0xff]
        %v1306 = vld [vmem:[%s476 + $0x180] sm:$0xff]
        %v1307 = vld [vmem:[%s476 + $0x188] sm:$0xff]
        %v1308 = vld [vmem:[%s476 + $0x190] sm:$0xff]
        %v1309 = vld [vmem:[%s476 + $0x198] sm:$0xff]
        %v1310 = vld [vmem:[%s476 + $0x1a0] sm:$0xff]
        %v1311 = vld [vmem:[%s476 + $0x1a8] sm:$0xff]
        %v1312 = vld [vmem:[%s476 + $0x1b0] sm:$0xff]
        %v1313 = vld [vmem:[%s476 + $0x1b8] sm:$0xff]
        %v1314 = vld [vmem:[%s476 + $0x1c0] sm:$0xff]
        %v1315 = vld [vmem:[%s476 + $0x1c8] sm:$0xff]
        %v1316 = vld [vmem:[%s476 + $0x1d0] sm:$0xff]
        %v1317 = vld [vmem:[%s476 + $0x1d8] sm:$0xff]
        %v1318 = vld [vmem:[%s476 + $0x1e0] sm:$0xff]
        %v1319 = vld [vmem:[%s476 + $0x1e8] sm:$0xff]
        %v1320 = vld [vmem:[%s476 + $0x1f0] sm:$0xff]
        %v1321 = vld [vmem:[%s476 + $0x1f8] sm:$0xff]
        %v1322 = vld [vmem:[%s476 + $0x200] sm:$0xff]
        %v1323 = vld [vmem:[%s476 + $0x208] sm:$0xff]
        %v1324 = vld [vmem:[%s476 + $0x210] sm:$0xff]
        %v1325 = vld [vmem:[%s476 + $0x218] sm:$0xff]
        %v1326 = vld [vmem:[%s476 + $0x220] sm:$0xff]
        %v1327 = vld [vmem:[%s476 + $0x228] sm:$0xff]
        %v1328 = vld [vmem:[%s476 + $0x230] sm:$0xff]
        %v1329 = vld [vmem:[%s476 + $0x238] sm:$0xff]
        %v1330 = vld [vmem:[%s476 + $0x240] sm:$0xff]
        %v1331 = vld [vmem:[%s476 + $0x248] sm:$0xff]
        %v1332 = vld [vmem:[%s476 + $0x250] sm:$0xff]
        %v1333 = vld [vmem:[%s476 + $0x258] sm:$0xff]
        %v1334 = vld [vmem:[%s476 + $0x260] sm:$0xff]
        %v1335 = vld [vmem:[%s476 + $0x268] sm:$0xff]
        %v1336 = vld [vmem:[%s476 + $0x270] sm:$0xff]
        %v1337 = vld [vmem:[%s476 + $0x278] sm:$0xff]
        %v1338 = vld [vmem:[%s476 + $0x280] sm:$0xff]
        %v1339 = vld [vmem:[%s476 + $0x288] sm:$0xff]
        %v1340 = vld [vmem:[%s476 + $0x290] sm:$0xff]
        %v1341 = vld [vmem:[%s476 + $0x298] sm:$0xff]
        %v1342 = vld [vmem:[%s476 + $0x2a0] sm:$0xff]
        %v1343 = vld [vmem:[%s476 + $0x2a8] sm:$0xff]
        %v1344 = vld [vmem:[%s476 + $0x2b0] sm:$0xff]
        %v1345 = vld [vmem:[%s476 + $0x2b8] sm:$0xff]
        %v1346 = vld [vmem:[%s476 + $0x2c0] sm:$0xff]
        %v1347 = vld [vmem:[%s476 + $0x2c8] sm:$0xff]
        %v1348 = vld [vmem:[%s476 + $0x2d0] sm:$0xff]
        %v1349 = vld [vmem:[%s476 + $0x2d8] sm:$0xff]
        %v1350 = vld [vmem:[%s476 + $0x2e0] sm:$0xff]
        %v1351 = vld [vmem:[%s476 + $0x2e8] sm:$0xff]
        %v1352 = vld [vmem:[%s476 + $0x2f0] sm:$0xff]
        %v1353 = vld [vmem:[%s476 + $0x2f8] sm:$0xff]
        %v1354 = vld [vmem:[%s476 + $0x300] sm:$0xff]
        %v1355 = vld [vmem:[%s476 + $0x308] sm:$0xff]
        %v1356 = vld [vmem:[%s476 + $0x310] sm:$0xff]
        %v1357 = vld [vmem:[%s476 + $0x318] sm:$0xff]
        %v1358 = vld [vmem:[%s476 + $0x320] sm:$0xff]
        %v1359 = vld [vmem:[%s476 + $0x328] sm:$0xff]
        %v1360 = vld [vmem:[%s476 + $0x330] sm:$0xff]
        %v1361 = vld [vmem:[%s476 + $0x338] sm:$0xff]
        %v1362 = vld [vmem:[%s476 + $0x340] sm:$0xff]
        %v1363 = vld [vmem:[%s476 + $0x348] sm:$0xff]
        %v1364 = vld [vmem:[%s476 + $0x350] sm:$0xff]
        %v1365 = vld [vmem:[%s476 + $0x358] sm:$0xff]
        %v1366 = vld [vmem:[%s476 + $0x360] sm:$0xff]
        %v1367 = vld [vmem:[%s476 + $0x368] sm:$0xff]
        %v1368 = vld [vmem:[%s476 + $0x370] sm:$0xff]
        %v1369 = vld [vmem:[%s476 + $0x378] sm:$0xff]
        %v1370 = vld [vmem:[%s476 + $0x380] sm:$0xff]
        %v1371 = vld [vmem:[%s476 + $0x388] sm:$0xff]
        %v1372 = vld [vmem:[%s476 + $0x390] sm:$0xff]
        %v1373 = vld [vmem:[%s476 + $0x398] sm:$0xff]
        %v1374 = vld [vmem:[%s476 + $0x3a0] sm:$0xff]
        %v1375 = vld [vmem:[%s476 + $0x3a8] sm:$0xff]
        %v1376 = vld [vmem:[%s476 + $0x3b0] sm:$0xff]
        %v1377 = vld [vmem:[%s476 + $0x3b8] sm:$0xff]
        %v1378 = vld [vmem:[%s476 + $0x3c0] sm:$0xff]
        %v1379 = vld [vmem:[%s476 + $0x3c8] sm:$0xff]
        %v1380 = vld [vmem:[%s476 + $0x3d0] sm:$0xff]
        %v1381 = vld [vmem:[%s476 + $0x3d8] sm:$0xff]
        %v1382 = vld [vmem:[%s476 + $0x3e0] sm:$0xff]
        %v1383 = vld [vmem:[%s476 + $0x3e8] sm:$0xff]
        %v1384 = vld [vmem:[%s476 + $0x3f0] sm:$0xff]
        %v1385 = vld [vmem:[%s476 + $0x3f8] sm:$0xff]
        %v1386 = vld [vmem:[%s476 + $0x400] sm:$0xff]
        %v1387 = vld [vmem:[%s476 + $0x408] sm:$0xff]
        %v1388 = vld [vmem:[%s476 + $0x410] sm:$0xff]
        %v1389 = vld [vmem:[%s476 + $0x418] sm:$0xff]
        %v1390 = vld [vmem:[%s476 + $0x420] sm:$0xff]
        %v1391 = vld [vmem:[%s476 + $0x428] sm:$0xff]
        %v1392 = vld [vmem:[%s476 + $0x430] sm:$0xff]
        %v1393 = vld [vmem:[%s476 + $0x438] sm:$0xff]
        %v1394 = vld [vmem:[%s476 + $0x440] sm:$0xff]
        %v1395 = vld [vmem:[%s476 + $0x448] sm:$0xff]
        %v1396 = vld [vmem:[%s476 + $0x450] sm:$0xff]
        %v1397 = vld [vmem:[%s476 + $0x458] sm:$0xff]
        %v1398 = vld [vmem:[%s476 + $0x460] sm:$0xff]
        %v1399 = vld [vmem:[%s476 + $0x468] sm:$0xff]
        %v1400 = vld [vmem:[%s476 + $0x470] sm:$0xff]
        %v1401 = vld [vmem:[%s476 + $0x478] sm:$0xff]
        %v1402 = vld [vmem:[%s476 + $0x480] sm:$0xff]
        %v1403 = vld [vmem:[%s476 + $0x488] sm:$0xff]
        %v1404 = vld [vmem:[%s476 + $0x490] sm:$0xff]
        %v1405 = vld [vmem:[%s476 + $0x498] sm:$0xff]
        %v1406 = vld [vmem:[%s476 + $0x4a0] sm:$0xff]
        %v1407 = vld [vmem:[%s476 + $0x4a8] sm:$0xff]
        %v1408 = vld [vmem:[%s476 + $0x4b0] sm:$0xff]
        %v1409 = vld [vmem:[%s476 + $0x4b8] sm:$0xff]
        %v1410 = vld [vmem:[%s476 + $0x4c0] sm:$0xff]
        %v1411 = vld [vmem:[%s476 + $0x4c8] sm:$0xff]
        %v1412 = vld [vmem:[%s476 + $0x4d0] sm:$0xff]
        %v1413 = vld [vmem:[%s476 + $0x4d8] sm:$0xff]
        %v1414 = vld [vmem:[%s476 + $0x4e0] sm:$0xff]
        %v1415 = vld [vmem:[%s476 + $0x4e8] sm:$0xff]
        %v1416 = vld [vmem:[%s476 + $0x4f0] sm:$0xff]
        %v1417 = vld [vmem:[%s476 + $0x4f8] sm:$0xff]
        %v1418 = vld [vmem:[%s476 + $0x500] sm:$0xff]
        %v1419 = vld [vmem:[%s476 + $0x508] sm:$0xff]
        %v1420 = vld [vmem:[%s476 + $0x510] sm:$0xff]
        %v1421 = vld [vmem:[%s476 + $0x518] sm:$0xff]
        %v1422 = vld [vmem:[%s476 + $0x520] sm:$0xff]
        %v1423 = vld [vmem:[%s476 + $0x528] sm:$0xff]
        %v1424 = vld [vmem:[%s476 + $0x530] sm:$0xff]
        %v1425 = vld [vmem:[%s476 + $0x538] sm:$0xff]
        %v1426 = vld [vmem:[%s476 + $0x540] sm:$0xff]
        %v1427 = vld [vmem:[%s476 + $0x548] sm:$0xff]
        %v1428 = vld [vmem:[%s476 + $0x550] sm:$0xff]
        %v1429 = vld [vmem:[%s476 + $0x558] sm:$0xff]
        %v1430 = vld [vmem:[%s476 + $0x560] sm:$0xff]
        %v1431 = vld [vmem:[%s476 + $0x568] sm:$0xff]
        %v1432 = vld [vmem:[%s476 + $0x570] sm:$0xff]
        %v1433 = vld [vmem:[%s476 + $0x578] sm:$0xff]
        %v1434 = vld [vmem:[%s476 + $0x580] sm:$0xff]
        %v1435 = vld [vmem:[%s476 + $0x588] sm:$0xff]
        %v1436 = vld [vmem:[%s476 + $0x590] sm:$0xff]
        %v1437 = vld [vmem:[%s476 + $0x598] sm:$0xff]
        %v1438 = vld [vmem:[%s476 + $0x5a0] sm:$0xff]
        %v1439 = vld [vmem:[%s476 + $0x5a8] sm:$0xff]
        %v1440 = vld [vmem:[%s476 + $0x5b0] sm:$0xff]
        %v1441 = vld [vmem:[%s476 + $0x5b8] sm:$0xff]
        %v1442 = vld [vmem:[%s476 + $0x5c0] sm:$0xff]
        %v1443 = vld [vmem:[%s476 + $0x5c8] sm:$0xff]
        %v1444 = vld [vmem:[%s476 + $0x5d0] sm:$0xff]
        %v1445 = vld [vmem:[%s476 + $0x5d8] sm:$0xff]
        %v1446 = vld [vmem:[%s476 + $0x5e0] sm:$0xff]
        %v1447 = vld [vmem:[%s476 + $0x5e8] sm:$0xff]
        %v1448 = vld [vmem:[%s476 + $0x5f0] sm:$0xff]
        %v1449 = vld [vmem:[%s476 + $0x5f8] sm:$0xff]
        %v1450 = vld [vmem:[%s476 + $0x600] sm:$0xff]
        %v1451 = vld [vmem:[%s476 + $0x608] sm:$0xff]
        %v1452 = vld [vmem:[%s476 + $0x610] sm:$0xff]
        %v1453 = vld [vmem:[%s476 + $0x618] sm:$0xff]
        %v1454 = vld [vmem:[%s476 + $0x620] sm:$0xff]
        %v1455 = vld [vmem:[%s476 + $0x628] sm:$0xff]
        %v1456 = vld [vmem:[%s476 + $0x630] sm:$0xff]
        %v1457 = vld [vmem:[%s476 + $0x638] sm:$0xff]
        %v1458 = vld [vmem:[%s476 + $0x640] sm:$0xff]
        %v1459 = vld [vmem:[%s476 + $0x648] sm:$0xff]
        %v1460 = vld [vmem:[%s476 + $0x650] sm:$0xff]
        %v1461 = vld [vmem:[%s476 + $0x658] sm:$0xff]
        %v1462 = vld [vmem:[%s476 + $0x660] sm:$0xff]
        %v1463 = vld [vmem:[%s476 + $0x668] sm:$0xff]
        %v1464 = vld [vmem:[%s476 + $0x670] sm:$0xff]
        %v1465 = vld [vmem:[%s476 + $0x678] sm:$0xff]
        %v1466 = vld [vmem:[%s476 + $0x680] sm:$0xff]
        %v1467 = vld [vmem:[%s476 + $0x688] sm:$0xff]
        %v1468 = vld [vmem:[%s476 + $0x690] sm:$0xff]
        %v1469 = vld [vmem:[%s476 + $0x698] sm:$0xff]
        %v1470 = vld [vmem:[%s476 + $0x6a0] sm:$0xff]
        %v1471 = vld [vmem:[%s476 + $0x6a8] sm:$0xff]
        %v1472 = vld [vmem:[%s476 + $0x6b0] sm:$0xff]
        %v1473 = vld [vmem:[%s476 + $0x6b8] sm:$0xff]
        %v1474 = vld [vmem:[%s476 + $0x6c0] sm:$0xff]
        %v1475 = vld [vmem:[%s476 + $0x6c8] sm:$0xff]
        %v1476 = vld [vmem:[%s476 + $0x6d0] sm:$0xff]
        %v1477 = vld [vmem:[%s476 + $0x6d8] sm:$0xff]
        %v1478 = vld [vmem:[%s476 + $0x6e0] sm:$0xff]
        %v1479 = vld [vmem:[%s476 + $0x6e8] sm:$0xff]
        %v1480 = vld [vmem:[%s476 + $0x6f0] sm:$0xff]
        %v1481 = vld [vmem:[%s476 + $0x6f8] sm:$0xff]
        %v1482 = vld [vmem:[%s476 + $0x700] sm:$0xff]
        %v1483 = vld [vmem:[%s476 + $0x708] sm:$0xff]
        %v1484 = vld [vmem:[%s476 + $0x710] sm:$0xff]
        %v1485 = vld [vmem:[%s476 + $0x718] sm:$0xff]
        %v1486 = vld [vmem:[%s476 + $0x720] sm:$0xff]
        %v1487 = vld [vmem:[%s476 + $0x728] sm:$0xff]
        %v1488 = vld [vmem:[%s476 + $0x730] sm:$0xff]
        %v1489 = vld [vmem:[%s476 + $0x738] sm:$0xff]
        %v1490 = vld [vmem:[%s476 + $0x740] sm:$0xff]
        %v1491 = vld [vmem:[%s476 + $0x748] sm:$0xff]
        %v1492 = vld [vmem:[%s476 + $0x750] sm:$0xff]
        %v1493 = vld [vmem:[%s476 + $0x758] sm:$0xff]
        %v1494 = vld [vmem:[%s476 + $0x760] sm:$0xff]
        %v1495 = vld [vmem:[%s476 + $0x768] sm:$0xff]
        %v1496 = vld [vmem:[%s476 + $0x770] sm:$0xff]
        %v1497 = vld [vmem:[%s476 + $0x778] sm:$0xff]
        %v1498 = vld [vmem:[%s476 + $0x780] sm:$0xff]
        %v1499 = vld [vmem:[%s476 + $0x788] sm:$0xff]
        %v1500 = vld [vmem:[%s476 + $0x790] sm:$0xff]
        %v1501 = vld [vmem:[%s476 + $0x798] sm:$0xff]
        %v1502 = vld [vmem:[%s476 + $0x7a0] sm:$0xff]
        %v1503 = vld [vmem:[%s476 + $0x7a8] sm:$0xff]
        %v1504 = vld [vmem:[%s476 + $0x7b0] sm:$0xff]
        %v1505 = vld [vmem:[%s476 + $0x7b8] sm:$0xff]
        %v1506 = vld [vmem:[%s476 + $0x7c0] sm:$0xff]
        %v1507 = vld [vmem:[%s476 + $0x7c8] sm:$0xff]
        %v1508 = vld [vmem:[%s476 + $0x7d0] sm:$0xff]
        %v1509 = vld [vmem:[%s476 + $0x7d8] sm:$0xff]
        %v1510 = vld [vmem:[%s476 + $0x7e0] sm:$0xff]
        %v1511 = vld [vmem:[%s476 + $0x7e8] sm:$0xff]
        %v1512 = vld [vmem:[%s476 + $0x7f0] sm:$0xff]
        %v1513 = vld [vmem:[%s476 + $0x7f8] sm:$0xff]
        %v1514 = vld [vmem:[%s476 + $0x800] sm:$0xff]
        %v1515 = vld [vmem:[%s476 + $0x808] sm:$0xff]
        %v1516 = vld [vmem:[%s476 + $0x810] sm:$0xff]
        %v1517 = vld [vmem:[%s476 + $0x818] sm:$0xff]
        %v1518 = vld [vmem:[%s476 + $0x820] sm:$0xff]
        %v1519 = vld [vmem:[%s476 + $0x828] sm:$0xff]
        %v1520 = vld [vmem:[%s476 + $0x830] sm:$0xff]
        %v1521 = vld [vmem:[%s476 + $0x838] sm:$0xff]
        %v1522 = vld [vmem:[%s476 + $0x840] sm:$0xff]
        %v1523 = vld [vmem:[%s476 + $0x848] sm:$0xff]
        %v1524 = vld [vmem:[%s476 + $0x850] sm:$0xff]
        %v1525 = vld [vmem:[%s476 + $0x858] sm:$0xff]
        %v1526 = vld [vmem:[%s476 + $0x860] sm:$0xff]
        %v1527 = vld [vmem:[%s476 + $0x868] sm:$0xff]
        %v1528 = vld [vmem:[%s476 + $0x870] sm:$0xff]
        %v1529 = vld [vmem:[%s476 + $0x878] sm:$0xff]
        %v1530 = vld [vmem:[%s476 + $0x880] sm:$0xff]
        %v1531 = vld [vmem:[%s476 + $0x888] sm:$0xff]
        %v1532 = vld [vmem:[%s476 + $0x890] sm:$0xff]
        %v1533 = vld [vmem:[%s476 + $0x898] sm:$0xff]
        %v1534 = vld [vmem:[%s476 + $0x8a0] sm:$0xff]
        %v1535 = vld [vmem:[%s476 + $0x8a8] sm:$0xff]
        %v1536 = vld [vmem:[%s476 + $0x8b0] sm:$0xff]
        %v1537 = vld [vmem:[%s476 + $0x8b8] sm:$0xff]
        %v1538 = vld [vmem:[%s476 + $0x8c0] sm:$0xff]
        %v1539 = vld [vmem:[%s476 + $0x8c8] sm:$0xff]
        %v1540 = vld [vmem:[%s476 + $0x8d0] sm:$0xff]
        %v1541 = vld [vmem:[%s476 + $0x8d8] sm:$0xff]
        %v1542 = vld [vmem:[%s476 + $0x8e0] sm:$0xff]
        %v1543 = vld [vmem:[%s476 + $0x8e8] sm:$0xff]
        %v1544 = vld [vmem:[%s476 + $0x8f0] sm:$0xff]
        %v1545 = vld [vmem:[%s476 + $0x8f8] sm:$0xff]
        %v1546 = vld [vmem:[%s476 + $0x900] sm:$0xff]
        %v1547 = vld [vmem:[%s476 + $0x908] sm:$0xff]
        %v1548 = vld [vmem:[%s476 + $0x910] sm:$0xff]
        %v1549 = vld [vmem:[%s476 + $0x918] sm:$0xff]
        %v1550 = vld [vmem:[%s476 + $0x920] sm:$0xff]
        %v1551 = vld [vmem:[%s476 + $0x928] sm:$0xff]
        %v1552 = vld [vmem:[%s476 + $0x930] sm:$0xff]
        %v1553 = vld [vmem:[%s476 + $0x938] sm:$0xff]
        %v1554 = vld [vmem:[%s476 + $0x940] sm:$0xff]
        %v1555 = vld [vmem:[%s476 + $0x948] sm:$0xff]
        %v1556 = vld [vmem:[%s476 + $0x950] sm:$0xff]
        %v1557 = vld [vmem:[%s476 + $0x958] sm:$0xff]
        %v1558 = vld [vmem:[%s476 + $0x960] sm:$0xff]
        %v1559 = vld [vmem:[%s476 + $0x968] sm:$0xff]
        %v1560 = vld [vmem:[%s476 + $0x970] sm:$0xff]
        %v1561 = vld [vmem:[%s476 + $0x978] sm:$0xff]
        %v1562 = vld [vmem:[%s476 + $0x980] sm:$0xff]
        %v1563 = vld [vmem:[%s476 + $0x988] sm:$0xff]
        %v1564 = vld [vmem:[%s476 + $0x990] sm:$0xff]
        %v1565 = vld [vmem:[%s476 + $0x998] sm:$0xff]
        %v1566 = vld [vmem:[%s476 + $0x9a0] sm:$0xff]
        %v1567 = vld [vmem:[%s476 + $0x9a8] sm:$0xff]
        %v1568 = vld [vmem:[%s476 + $0x9b0] sm:$0xff]
        %v1569 = vld [vmem:[%s476 + $0x9b8] sm:$0xff]
        %v1570 = vld [vmem:[%s476 + $0x9c0] sm:$0xff]
        %v1571 = vld [vmem:[%s476 + $0x9c8] sm:$0xff]
        %v1572 = vld [vmem:[%s476 + $0x9d0] sm:$0xff]
        %v1573 = vld [vmem:[%s476 + $0x9d8] sm:$0xff]
        %v1574 = vld [vmem:[%s476 + $0x9e0] sm:$0xff]
        %v1575 = vld [vmem:[%s476 + $0x9e8] sm:$0xff]
        %v1576 = vld [vmem:[%s476 + $0x9f0] sm:$0xff]
        %v1577 = vld [vmem:[%s476 + $0x9f8] sm:$0xff]
        %v1578 = vld [vmem:[%s476 + $0xa00] sm:$0xff]
        %v1579 = vld [vmem:[%s476 + $0xa08] sm:$0xff]
        %v1580 = vld [vmem:[%s476 + $0xa10] sm:$0xff]
        %v1581 = vld [vmem:[%s476 + $0xa18] sm:$0xff]
        %v1582 = vld [vmem:[%s476 + $0xa20] sm:$0xff]
        %v1583 = vld [vmem:[%s476 + $0xa28] sm:$0xff]
        %v1584 = vld [vmem:[%s476 + $0xa30] sm:$0xff]
        %v1585 = vld [vmem:[%s476 + $0xa38] sm:$0xff]
        %v1586 = vld [vmem:[%s476 + $0xa40] sm:$0xff]
        %v1587 = vld [vmem:[%s476 + $0xa48] sm:$0xff]
        %v1588 = vld [vmem:[%s476 + $0xa50] sm:$0xff]
        %v1589 = vld [vmem:[%s476 + $0xa58] sm:$0xff]
        %v1590 = vld [vmem:[%s476 + $0xa60] sm:$0xff]
        %v1591 = vld [vmem:[%s476 + $0xa68] sm:$0xff]
        %v1592 = vld [vmem:[%s476 + $0xa70] sm:$0xff]
        %v1593 = vld [vmem:[%s476 + $0xa78] sm:$0xff]
        %v1594 = vld [vmem:[%s476 + $0xa80] sm:$0xff]
        %v1595 = vld [vmem:[%s476 + $0xa88] sm:$0xff]
        %v1596 = vld [vmem:[%s476 + $0xa90] sm:$0xff]
        %v1597 = vld [vmem:[%s476 + $0xa98] sm:$0xff]
        %v1598 = vld [vmem:[%s476 + $0xaa0] sm:$0xff]
        %v1599 = vld [vmem:[%s476 + $0xaa8] sm:$0xff]
        %v1600 = vld [vmem:[%s476 + $0xab0] sm:$0xff]
        %v1601 = vld [vmem:[%s476 + $0xab8] sm:$0xff]
        %v1602 = vld [vmem:[%s476 + $0xac0] sm:$0xff]
        %v1603 = vld [vmem:[%s476 + $0xac8] sm:$0xff]
        %v1604 = vld [vmem:[%s476 + $0xad0] sm:$0xff]
        %v1605 = vld [vmem:[%s476 + $0xad8] sm:$0xff]
        %v1606 = vld [vmem:[%s476 + $0xae0] sm:$0xff]
        %v1607 = vld [vmem:[%s476 + $0xae8] sm:$0xff]
        %v1608 = vld [vmem:[%s476 + $0xaf0] sm:$0xff]
        %v1609 = vld [vmem:[%s476 + $0xaf8] sm:$0xff]
        %v1610 = vld [vmem:[%s476 + $0xb00] sm:$0xff]
        %v1611 = vld [vmem:[%s476 + $0xb08] sm:$0xff]
        %v1612 = vld [vmem:[%s476 + $0xb10] sm:$0xff]
        %v1613 = vld [vmem:[%s476 + $0xb18] sm:$0xff]
        %v1614 = vld [vmem:[%s476 + $0xb20] sm:$0xff]
        %v1615 = vld [vmem:[%s476 + $0xb28] sm:$0xff]
        %v1616 = vld [vmem:[%s476 + $0xb30] sm:$0xff]
        %v1617 = vld [vmem:[%s476 + $0xb38] sm:$0xff]
        %v1618 = vld [vmem:[%s476 + $0xb40] sm:$0xff]
        %v1619 = vld [vmem:[%s476 + $0xb48] sm:$0xff]
        %v1620 = vld [vmem:[%s476 + $0xb50] sm:$0xff]
        %v1621 = vld [vmem:[%s476 + $0xb58] sm:$0xff]
        %v1622 = vld [vmem:[%s476 + $0xb60] sm:$0xff]
        %v1623 = vld [vmem:[%s476 + $0xb68] sm:$0xff]
        %v1624 = vld [vmem:[%s476 + $0xb70] sm:$0xff]
        %v1625 = vld [vmem:[%s476 + $0xb78] sm:$0xff]
        %v1626 = vld [vmem:[%s476 + $0xb80] sm:$0xff]
        %v1627 = vld [vmem:[%s476 + $0xb88] sm:$0xff]
        %v1628 = vld [vmem:[%s476 + $0xb90] sm:$0xff]
        %v1629 = vld [vmem:[%s476 + $0xb98] sm:$0xff]
        %v1630 = vld [vmem:[%s476 + $0xba0] sm:$0xff]
        %v1631 = vld [vmem:[%s476 + $0xba8] sm:$0xff]
        %v1632 = vld [vmem:[%s476 + $0xbb0] sm:$0xff]
        %v1633 = vld [vmem:[%s476 + $0xbb8] sm:$0xff]
        %v1634 = vld [vmem:[%s476 + $0xbc0] sm:$0xff]
        %v1635 = vld [vmem:[%s476 + $0xbc8] sm:$0xff]
        %v1636 = vld [vmem:[%s476 + $0xbd0] sm:$0xff]
        %v1637 = vld [vmem:[%s476 + $0xbd8] sm:$0xff]
        %v1638 = vld [vmem:[%s476 + $0xbe0] sm:$0xff]
        %v1639 = vld [vmem:[%s476 + $0xbe8] sm:$0xff]
        %v1640 = vld [vmem:[%s476 + $0xbf0] sm:$0xff]
        %v1641 = vld [vmem:[%s476 + $0xbf8] sm:$0xff]
        %v1642 = vld [vmem:[%s476 + $0xc00] sm:$0xff]
        %v1643 = vld [vmem:[%s476 + $0xc08] sm:$0xff]
        %v1644 = vld [vmem:[%s476 + $0xc10] sm:$0xff]
        %v1645 = vld [vmem:[%s476 + $0xc18] sm:$0xff]
        %v1646 = vld [vmem:[%s476 + $0xc20] sm:$0xff]
        %v1647 = vld [vmem:[%s476 + $0xc28] sm:$0xff]
        %v1648 = vld [vmem:[%s476 + $0xc30] sm:$0xff]
        %v1649 = vld [vmem:[%s476 + $0xc38] sm:$0xff]
        %v1650 = vld [vmem:[%s476 + $0xc40] sm:$0xff]
        %v1651 = vld [vmem:[%s476 + $0xc48] sm:$0xff]
        %v1652 = vld [vmem:[%s476 + $0xc50] sm:$0xff]
        %v1653 = vld [vmem:[%s476 + $0xc58] sm:$0xff]
        %v1654 = vld [vmem:[%s476 + $0xc60] sm:$0xff]
        %v1655 = vld [vmem:[%s476 + $0xc68] sm:$0xff]
        %v1656 = vld [vmem:[%s476 + $0xc70] sm:$0xff]
        %v1657 = vld [vmem:[%s476 + $0xc78] sm:$0xff]
        %v1658 = vld [vmem:[%s476 + $0xc80] sm:$0xff]
        %v1659 = vld [vmem:[%s476 + $0xc88] sm:$0xff]
        %v1660 = vld [vmem:[%s476 + $0xc90] sm:$0xff]
        %v1661 = vld [vmem:[%s476 + $0xc98] sm:$0xff]
        %v1662 = vld [vmem:[%s476 + $0xca0] sm:$0xff]
        %v1663 = vld [vmem:[%s476 + $0xca8] sm:$0xff]
        %v1664 = vld [vmem:[%s476 + $0xcb0] sm:$0xff]
        %v1665 = vld [vmem:[%s476 + $0xcb8] sm:$0xff]
        %v1666 = vld [vmem:[%s476 + $0xcc0] sm:$0xff]
        %v1667 = vld [vmem:[%s476 + $0xcc8] sm:$0xff]
        %v1668 = vld [vmem:[%s476 + $0xcd0] sm:$0xff]
        %v1669 = vld [vmem:[%s476 + $0xcd8] sm:$0xff]
        %v1670 = vld [vmem:[%s476 + $0xce0] sm:$0xff]
        %v1671 = vld [vmem:[%s476 + $0xce8] sm:$0xff]
        %v1672 = vld [vmem:[%s476 + $0xcf0] sm:$0xff]
        %v1673 = vld [vmem:[%s476 + $0xcf8] sm:$0xff]
        %v1674 = vld [vmem:[%s476 + $0xd00] sm:$0xff]
        %v1675 = vld [vmem:[%s476 + $0xd08] sm:$0xff]
        %v1676 = vld [vmem:[%s476 + $0xd10] sm:$0xff]
        %v1677 = vld [vmem:[%s476 + $0xd18] sm:$0xff]
        %v1678 = vld [vmem:[%s476 + $0xd20] sm:$0xff]
        %v1679 = vld [vmem:[%s476 + $0xd28] sm:$0xff]
        %v1680 = vld [vmem:[%s476 + $0xd30] sm:$0xff]
        %v1681 = vld [vmem:[%s476 + $0xd38] sm:$0xff]
        %v1682 = vld [vmem:[%s476 + $0xd40] sm:$0xff]
        %v1683 = vld [vmem:[%s476 + $0xd48] sm:$0xff]
        %v1684 = vld [vmem:[%s476 + $0xd50] sm:$0xff]
        %v1685 = vld [vmem:[%s476 + $0xd58] sm:$0xff]
        %v1686 = vld [vmem:[%s476 + $0xd60] sm:$0xff]
        %v1687 = vld [vmem:[%s476 + $0xd68] sm:$0xff]
        %v1688 = vld [vmem:[%s476 + $0xd70] sm:$0xff]
        %v1689 = vld [vmem:[%s476 + $0xd78] sm:$0xff]
        %v1690 = vld [vmem:[%s476 + $0xd80] sm:$0xff]
        %v1691 = vld [vmem:[%s476 + $0xd88] sm:$0xff]
        %v1692 = vld [vmem:[%s476 + $0xd90] sm:$0xff]
        %v1693 = vld [vmem:[%s476 + $0xd98] sm:$0xff]
        %v1694 = vld [vmem:[%s476 + $0xda0] sm:$0xff]
        %v1695 = vld [vmem:[%s476 + $0xda8] sm:$0xff]
        %v1696 = vld [vmem:[%s476 + $0xdb0] sm:$0xff]
        %v1697 = vld [vmem:[%s476 + $0xdb8] sm:$0xff]
        %v1698 = vld [vmem:[%s476 + $0xdc0] sm:$0xff]
        %v1699 = vld [vmem:[%s476 + $0xdc8] sm:$0xff]
        %v1700 = vld [vmem:[%s476 + $0xdd0] sm:$0xff]
        %v1701 = vld [vmem:[%s476 + $0xdd8] sm:$0xff]
        %v1702 = vld [vmem:[%s476 + $0xde0] sm:$0xff]
        %v1703 = vld [vmem:[%s476 + $0xde8] sm:$0xff]
        %v1704 = vld [vmem:[%s476 + $0xdf0] sm:$0xff]
        %v1705 = vld [vmem:[%s476 + $0xdf8] sm:$0xff]
        %v1706 = vld [vmem:[%s476 + $0xe00] sm:$0xff]
        %v1707 = vld [vmem:[%s476 + $0xe08] sm:$0xff]
        %v1708 = vld [vmem:[%s476 + $0xe10] sm:$0xff]
        %v1709 = vld [vmem:[%s476 + $0xe18] sm:$0xff]
        %v1710 = vld [vmem:[%s476 + $0xe20] sm:$0xff]
        %v1711 = vld [vmem:[%s476 + $0xe28] sm:$0xff]
        %v1712 = vld [vmem:[%s476 + $0xe30] sm:$0xff]
        %v1713 = vld [vmem:[%s476 + $0xe38] sm:$0xff]
        %v1714 = vld [vmem:[%s476 + $0xe40] sm:$0xff]
        %v1715 = vld [vmem:[%s476 + $0xe48] sm:$0xff]
        %v1716 = vld [vmem:[%s476 + $0xe50] sm:$0xff]
        %v1717 = vld [vmem:[%s476 + $0xe58] sm:$0xff]
        %v1718 = vld [vmem:[%s476 + $0xe60] sm:$0xff]
        %v1719 = vld [vmem:[%s476 + $0xe68] sm:$0xff]
        %v1720 = vld [vmem:[%s476 + $0xe70] sm:$0xff]
        %v1721 = vld [vmem:[%s476 + $0xe78] sm:$0xff]
        %v1722 = vld [vmem:[%s476 + $0xe80] sm:$0xff]
        %v1723 = vld [vmem:[%s476 + $0xe88] sm:$0xff]
        %v1724 = vld [vmem:[%s476 + $0xe90] sm:$0xff]
        %v1725 = vld [vmem:[%s476 + $0xe98] sm:$0xff]
        %v1726 = vld [vmem:[%s476 + $0xea0] sm:$0xff]
        %v1727 = vld [vmem:[%s476 + $0xea8] sm:$0xff]
        %v1728 = vld [vmem:[%s476 + $0xeb0] sm:$0xff]
        %v1729 = vld [vmem:[%s476 + $0xeb8] sm:$0xff]
        %v1730 = vld [vmem:[%s476 + $0xec0] sm:$0xff]
        %v1731 = vld [vmem:[%s476 + $0xec8] sm:$0xff]
        %v1732 = vld [vmem:[%s476 + $0xed0] sm:$0xff]
        %v1733 = vld [vmem:[%s476 + $0xed8] sm:$0xff]
        %v1734 = vld [vmem:[%s476 + $0xee0] sm:$0xff]
        %v1735 = vld [vmem:[%s476 + $0xee8] sm:$0xff]
        %v1736 = vld [vmem:[%s476 + $0xef0] sm:$0xff]
        %v1737 = vld [vmem:[%s476 + $0xef8] sm:$0xff]
        %v1738 = vld [vmem:[%s476 + $0xf00] sm:$0xff]
        %v1739 = vld [vmem:[%s476 + $0xf08] sm:$0xff]
        %v1740 = vld [vmem:[%s476 + $0xf10] sm:$0xff]
        %v1741 = vld [vmem:[%s476 + $0xf18] sm:$0xff]
        %v1742 = vld [vmem:[%s476 + $0xf20] sm:$0xff]
        %v1743 = vld [vmem:[%s476 + $0xf28] sm:$0xff]
        %v1744 = vld [vmem:[%s476 + $0xf30] sm:$0xff]
        %v1745 = vld [vmem:[%s476 + $0xf38] sm:$0xff]
        %v1746 = vld [vmem:[%s476 + $0xf40] sm:$0xff]
        %v1747 = vld [vmem:[%s476 + $0xf48] sm:$0xff]
        %v1748 = vld [vmem:[%s476 + $0xf50] sm:$0xff]
        %v1749 = vld [vmem:[%s476 + $0xf58] sm:$0xff]
        %v1750 = vld [vmem:[%s476 + $0xf60] sm:$0xff]
        %v1751 = vld [vmem:[%s476 + $0xf68] sm:$0xff]
        %v1752 = vld [vmem:[%s476 + $0xf70] sm:$0xff]
        %v1753 = vld [vmem:[%s476 + $0xf78] sm:$0xff]
        %v1754 = vld [vmem:[%s476 + $0xf80] sm:$0xff]
        %v1755 = vld [vmem:[%s476 + $0xf88] sm:$0xff]
        %v1756 = vld [vmem:[%s476 + $0xf90] sm:$0xff]
        %v1757 = vld [vmem:[%s476 + $0xf98] sm:$0xff]
        %v1758 = vld [vmem:[%s476 + $0xfa0] sm:$0xff]
        %v1759 = vld [vmem:[%s476 + $0xfa8] sm:$0xff]
        %v1760 = vld [vmem:[%s476 + $0xfb0] sm:$0xff]
        %v1761 = vld [vmem:[%s476 + $0xfb8] sm:$0xff]
        %v1762 = vld [vmem:[%s476 + $0xfc0] sm:$0xff]
        %v1763 = vld [vmem:[%s476 + $0xfc8] sm:$0xff]
        %v1764 = vld [vmem:[%s476 + $0xfd0] sm:$0xff]
        %v1765 = vld [vmem:[%s476 + $0xfd8] sm:$0xff]
        %v1766 = vld [vmem:[%s476 + $0xfe0] sm:$0xff]
        %v1767 = vld [vmem:[%s476 + $0xfe8] sm:$0xff]
        %v1768 = vld [vmem:[%s476 + $0xff0] sm:$0xff]
        %v1769 = vld [vmem:[%s476 + $0xff8] sm:$0xff]
        %v1770 = vld [vmem:[#allocation3] sm:$0xff]
        %v1771 = vld [vmem:[%s486] sm:$0xff]
        %v1772 = vld [vmem:[%s486 + $0x8] sm:$0xff]
        %v1773 = vld [vmem:[%s486 + $0x10] sm:$0xff]
        %v1774 = vld [vmem:[%s486 + $0x18] sm:$0xff]
        %v1775 = vld [vmem:[%s486 + $0x20] sm:$0xff]
        %v1776 = vld [vmem:[%s486 + $0x28] sm:$0xff]
        %v1777 = vld [vmem:[%s486 + $0x30] sm:$0xff]
        %v1778 = vld [vmem:[%s486 + $0x38] sm:$0xff]
        %v1779 = vld [vmem:[%s486 + $0x40] sm:$0xff]
        %v1780 = vld [vmem:[%s486 + $0x48] sm:$0xff]
        %v1781 = vld [vmem:[%s486 + $0x50] sm:$0xff]
        %v1782 = vld [vmem:[%s486 + $0x58] sm:$0xff]
        %v1783 = vld [vmem:[%s486 + $0x60] sm:$0xff]
        %v1784 = vld [vmem:[%s486 + $0x68] sm:$0xff]
        %v1785 = vld [vmem:[%s486 + $0x70] sm:$0xff]
        %v1786 = vld [vmem:[%s486 + $0x78] sm:$0xff]
        %v1787 = vld [vmem:[%s486 + $0x80] sm:$0xff]
        %v1788 = vld [vmem:[%s486 + $0x88] sm:$0xff]
        %v1789 = vld [vmem:[%s486 + $0x90] sm:$0xff]
        %v1790 = vld [vmem:[%s486 + $0x98] sm:$0xff]
        %v1791 = vld [vmem:[%s486 + $0xa0] sm:$0xff]
        %v1792 = vld [vmem:[%s486 + $0xa8] sm:$0xff]
        %v1793 = vld [vmem:[%s486 + $0xb0] sm:$0xff]
        %v1794 = vld [vmem:[%s486 + $0xb8] sm:$0xff]
        %v1795 = vld [vmem:[%s486 + $0xc0] sm:$0xff]
        %v1796 = vld [vmem:[%s486 + $0xc8] sm:$0xff]
        %v1797 = vld [vmem:[%s486 + $0xd0] sm:$0xff]
        %v1798 = vld [vmem:[%s486 + $0xd8] sm:$0xff]
        %v1799 = vld [vmem:[%s486 + $0xe0] sm:$0xff]
        %v1800 = vld [vmem:[%s486 + $0xe8] sm:$0xff]
        %v1801 = vld [vmem:[%s486 + $0xf0] sm:$0xff]
        %v1802 = vld [vmem:[%s486 + $0xf8] sm:$0xff]
        %v1803 = vld [vmem:[%s486 + $0x100] sm:$0xff]
        %v1804 = vld [vmem:[%s486 + $0x108] sm:$0xff]
        %v1805 = vld [vmem:[%s486 + $0x110] sm:$0xff]
        %v1806 = vld [vmem:[%s486 + $0x118] sm:$0xff]
        %v1807 = vld [vmem:[%s486 + $0x120] sm:$0xff]
        %v1808 = vld [vmem:[%s486 + $0x128] sm:$0xff]
        %v1809 = vld [vmem:[%s486 + $0x130] sm:$0xff]
        %v1810 = vld [vmem:[%s486 + $0x138] sm:$0xff]
        %v1811 = vld [vmem:[%s486 + $0x140] sm:$0xff]
        %v1812 = vld [vmem:[%s486 + $0x148] sm:$0xff]
        %v1813 = vld [vmem:[%s486 + $0x150] sm:$0xff]
        %v1814 = vld [vmem:[%s486 + $0x158] sm:$0xff]
        %v1815 = vld [vmem:[%s486 + $0x160] sm:$0xff]
        %v1816 = vld [vmem:[%s486 + $0x168] sm:$0xff]
        %v1817 = vld [vmem:[%s486 + $0x170] sm:$0xff]
        %v1818 = vld [vmem:[%s486 + $0x178] sm:$0xff]
        %v1819 = vld [vmem:[%s486 + $0x180] sm:$0xff]
        %v1820 = vld [vmem:[%s486 + $0x188] sm:$0xff]
        %v1821 = vld [vmem:[%s486 + $0x190] sm:$0xff]
        %v1822 = vld [vmem:[%s486 + $0x198] sm:$0xff]
        %v1823 = vld [vmem:[%s486 + $0x1a0] sm:$0xff]
        %v1824 = vld [vmem:[%s486 + $0x1a8] sm:$0xff]
        %v1825 = vld [vmem:[%s486 + $0x1b0] sm:$0xff]
        %v1826 = vld [vmem:[%s486 + $0x1b8] sm:$0xff]
        %v1827 = vld [vmem:[%s486 + $0x1c0] sm:$0xff]
        %v1828 = vld [vmem:[%s486 + $0x1c8] sm:$0xff]
        %v1829 = vld [vmem:[%s486 + $0x1d0] sm:$0xff]
        %v1830 = vld [vmem:[%s486 + $0x1d8] sm:$0xff]
        %v1831 = vld [vmem:[%s486 + $0x1e0] sm:$0xff]
        %v1832 = vld [vmem:[%s486 + $0x1e8] sm:$0xff]
        %v1833 = vld [vmem:[%s486 + $0x1f0] sm:$0xff]
        %v1834 = vld [vmem:[%s486 + $0x1f8] sm:$0xff]
        %v1835 = vld [vmem:[%s486 + $0x200] sm:$0xff]
        %v1836 = vld [vmem:[%s486 + $0x208] sm:$0xff]
        %v1837 = vld [vmem:[%s486 + $0x210] sm:$0xff]
        %v1838 = vld [vmem:[%s486 + $0x218] sm:$0xff]
        %v1839 = vld [vmem:[%s486 + $0x220] sm:$0xff]
        %v1840 = vld [vmem:[%s486 + $0x228] sm:$0xff]
        %v1841 = vld [vmem:[%s486 + $0x230] sm:$0xff]
        %v1842 = vld [vmem:[%s486 + $0x238] sm:$0xff]
        %v1843 = vld [vmem:[%s486 + $0x240] sm:$0xff]
        %v1844 = vld [vmem:[%s486 + $0x248] sm:$0xff]
        %v1845 = vld [vmem:[%s486 + $0x250] sm:$0xff]
        %v1846 = vld [vmem:[%s486 + $0x258] sm:$0xff]
        %v1847 = vld [vmem:[%s486 + $0x260] sm:$0xff]
        %v1848 = vld [vmem:[%s486 + $0x268] sm:$0xff]
        %v1849 = vld [vmem:[%s486 + $0x270] sm:$0xff]
        %v1850 = vld [vmem:[%s486 + $0x278] sm:$0xff]
        %v1851 = vld [vmem:[%s486 + $0x280] sm:$0xff]
        %v1852 = vld [vmem:[%s486 + $0x288] sm:$0xff]
        %v1853 = vld [vmem:[%s486 + $0x290] sm:$0xff]
        %v1854 = vld [vmem:[%s486 + $0x298] sm:$0xff]
        %v1855 = vld [vmem:[%s486 + $0x2a0] sm:$0xff]
        %v1856 = vld [vmem:[%s486 + $0x2a8] sm:$0xff]
        %v1857 = vld [vmem:[%s486 + $0x2b0] sm:$0xff]
        %v1858 = vld [vmem:[%s486 + $0x2b8] sm:$0xff]
        %v1859 = vld [vmem:[%s486 + $0x2c0] sm:$0xff]
        %v1860 = vld [vmem:[%s486 + $0x2c8] sm:$0xff]
        %v1861 = vld [vmem:[%s486 + $0x2d0] sm:$0xff]
        %v1862 = vld [vmem:[%s486 + $0x2d8] sm:$0xff]
        %v1863 = vld [vmem:[%s486 + $0x2e0] sm:$0xff]
        %v1864 = vld [vmem:[%s486 + $0x2e8] sm:$0xff]
        %v1865 = vld [vmem:[%s486 + $0x2f0] sm:$0xff]
        %v1866 = vld [vmem:[%s486 + $0x2f8] sm:$0xff]
        %v1867 = vld [vmem:[%s486 + $0x300] sm:$0xff]
        %v1868 = vld [vmem:[%s486 + $0x308] sm:$0xff]
        %v1869 = vld [vmem:[%s486 + $0x310] sm:$0xff]
        %v1870 = vld [vmem:[%s486 + $0x318] sm:$0xff]
        %v1871 = vld [vmem:[%s486 + $0x320] sm:$0xff]
        %v1872 = vld [vmem:[%s486 + $0x328] sm:$0xff]
        %v1873 = vld [vmem:[%s486 + $0x330] sm:$0xff]
        %v1874 = vld [vmem:[%s486 + $0x338] sm:$0xff]
        %v1875 = vld [vmem:[%s486 + $0x340] sm:$0xff]
        %v1876 = vld [vmem:[%s486 + $0x348] sm:$0xff]
        %v1877 = vld [vmem:[%s486 + $0x350] sm:$0xff]
        %v1878 = vld [vmem:[%s486 + $0x358] sm:$0xff]
        %v1879 = vld [vmem:[%s486 + $0x360] sm:$0xff]
        %v1880 = vld [vmem:[%s486 + $0x368] sm:$0xff]
        %v1881 = vld [vmem:[%s486 + $0x370] sm:$0xff]
        %v1882 = vld [vmem:[%s486 + $0x378] sm:$0xff]
        %v1883 = vld [vmem:[%s486 + $0x380] sm:$0xff]
        %v1884 = vld [vmem:[%s486 + $0x388] sm:$0xff]
        %v1885 = vld [vmem:[%s486 + $0x390] sm:$0xff]
        %v1886 = vld [vmem:[%s486 + $0x398] sm:$0xff]
        %v1887 = vld [vmem:[%s486 + $0x3a0] sm:$0xff]
        %v1888 = vld [vmem:[%s486 + $0x3a8] sm:$0xff]
        %v1889 = vld [vmem:[%s486 + $0x3b0] sm:$0xff]
        %v1890 = vld [vmem:[%s486 + $0x3b8] sm:$0xff]
        %v1891 = vld [vmem:[%s486 + $0x3c0] sm:$0xff]
        %v1892 = vld [vmem:[%s486 + $0x3c8] sm:$0xff]
        %v1893 = vld [vmem:[%s486 + $0x3d0] sm:$0xff]
        %v1894 = vld [vmem:[%s486 + $0x3d8] sm:$0xff]
        %v1895 = vld [vmem:[%s486 + $0x3e0] sm:$0xff]
        %v1896 = vld [vmem:[%s486 + $0x3e8] sm:$0xff]
        %v1897 = vld [vmem:[%s486 + $0x3f0] sm:$0xff]
        %v1898 = vld [vmem:[%s486 + $0x3f8] sm:$0xff]
        %v1899 = vld [vmem:[%s486 + $0x400] sm:$0xff]
        %v1900 = vld [vmem:[%s486 + $0x408] sm:$0xff]
        %v1901 = vld [vmem:[%s486 + $0x410] sm:$0xff]
        %v1902 = vld [vmem:[%s486 + $0x418] sm:$0xff]
        %v1903 = vld [vmem:[%s486 + $0x420] sm:$0xff]
        %v1904 = vld [vmem:[%s486 + $0x428] sm:$0xff]
        %v1905 = vld [vmem:[%s486 + $0x430] sm:$0xff]
        %v1906 = vld [vmem:[%s486 + $0x438] sm:$0xff]
        %v1907 = vld [vmem:[%s486 + $0x440] sm:$0xff]
        %v1908 = vld [vmem:[%s486 + $0x448] sm:$0xff]
        %v1909 = vld [vmem:[%s486 + $0x450] sm:$0xff]
        %v1910 = vld [vmem:[%s486 + $0x458] sm:$0xff]
        %v1911 = vld [vmem:[%s486 + $0x460] sm:$0xff]
        %v1912 = vld [vmem:[%s486 + $0x468] sm:$0xff]
        %v1913 = vld [vmem:[%s486 + $0x470] sm:$0xff]
        %v1914 = vld [vmem:[%s486 + $0x478] sm:$0xff]
        %v1915 = vld [vmem:[%s486 + $0x480] sm:$0xff]
        %v1916 = vld [vmem:[%s486 + $0x488] sm:$0xff]
        %v1917 = vld [vmem:[%s486 + $0x490] sm:$0xff]
        %v1918 = vld [vmem:[%s486 + $0x498] sm:$0xff]
        %v1919 = vld [vmem:[%s486 + $0x4a0] sm:$0xff]
        %v1920 = vld [vmem:[%s486 + $0x4a8] sm:$0xff]
        %v1921 = vld [vmem:[%s486 + $0x4b0] sm:$0xff]
        %v1922 = vld [vmem:[%s486 + $0x4b8] sm:$0xff]
        %v1923 = vld [vmem:[%s486 + $0x4c0] sm:$0xff]
        %v1924 = vld [vmem:[%s486 + $0x4c8] sm:$0xff]
        %v1925 = vld [vmem:[%s486 + $0x4d0] sm:$0xff]
        %v1926 = vld [vmem:[%s486 + $0x4d8] sm:$0xff]
        %v1927 = vld [vmem:[%s486 + $0x4e0] sm:$0xff]
        %v1928 = vld [vmem:[%s486 + $0x4e8] sm:$0xff]
        %v1929 = vld [vmem:[%s486 + $0x4f0] sm:$0xff]
        %v1930 = vld [vmem:[%s486 + $0x4f8] sm:$0xff]
        %v1931 = vld [vmem:[%s486 + $0x500] sm:$0xff]
        %v1932 = vld [vmem:[%s486 + $0x508] sm:$0xff]
        %v1933 = vld [vmem:[%s486 + $0x510] sm:$0xff]
        %v1934 = vld [vmem:[%s486 + $0x518] sm:$0xff]
        %v1935 = vld [vmem:[%s486 + $0x520] sm:$0xff]
        %v1936 = vld [vmem:[%s486 + $0x528] sm:$0xff]
        %v1937 = vld [vmem:[%s486 + $0x530] sm:$0xff]
        %v1938 = vld [vmem:[%s486 + $0x538] sm:$0xff]
        %v1939 = vld [vmem:[%s486 + $0x540] sm:$0xff]
        %v1940 = vld [vmem:[%s486 + $0x548] sm:$0xff]
        %v1941 = vld [vmem:[%s486 + $0x550] sm:$0xff]
        %v1942 = vld [vmem:[%s486 + $0x558] sm:$0xff]
        %v1943 = vld [vmem:[%s486 + $0x560] sm:$0xff]
        %v1944 = vld [vmem:[%s486 + $0x568] sm:$0xff]
        %v1945 = vld [vmem:[%s486 + $0x570] sm:$0xff]
        %v1946 = vld [vmem:[%s486 + $0x578] sm:$0xff]
        %v1947 = vld [vmem:[%s486 + $0x580] sm:$0xff]
        %v1948 = vld [vmem:[%s486 + $0x588] sm:$0xff]
        %v1949 = vld [vmem:[%s486 + $0x590] sm:$0xff]
        %v1950 = vld [vmem:[%s486 + $0x598] sm:$0xff]
        %v1951 = vld [vmem:[%s486 + $0x5a0] sm:$0xff]
        %v1952 = vld [vmem:[%s486 + $0x5a8] sm:$0xff]
        %v1953 = vld [vmem:[%s486 + $0x5b0] sm:$0xff]
        %v1954 = vld [vmem:[%s486 + $0x5b8] sm:$0xff]
        %v1955 = vld [vmem:[%s486 + $0x5c0] sm:$0xff]
        %v1956 = vld [vmem:[%s486 + $0x5c8] sm:$0xff]
        %v1957 = vld [vmem:[%s486 + $0x5d0] sm:$0xff]
        %v1958 = vld [vmem:[%s486 + $0x5d8] sm:$0xff]
        %v1959 = vld [vmem:[%s486 + $0x5e0] sm:$0xff]
        %v1960 = vld [vmem:[%s486 + $0x5e8] sm:$0xff]
        %v1961 = vld [vmem:[%s486 + $0x5f0] sm:$0xff]
        %v1962 = vld [vmem:[%s486 + $0x5f8] sm:$0xff]
        %v1963 = vld [vmem:[%s486 + $0x600] sm:$0xff]
        %v1964 = vld [vmem:[%s486 + $0x608] sm:$0xff]
        %v1965 = vld [vmem:[%s486 + $0x610] sm:$0xff]
        %v1966 = vld [vmem:[%s486 + $0x618] sm:$0xff]
        %v1967 = vld [vmem:[%s486 + $0x620] sm:$0xff]
        %v1968 = vld [vmem:[%s486 + $0x628] sm:$0xff]
        %v1969 = vld [vmem:[%s486 + $0x630] sm:$0xff]
        %v1970 = vld [vmem:[%s486 + $0x638] sm:$0xff]
        %v1971 = vld [vmem:[%s486 + $0x640] sm:$0xff]
        %v1972 = vld [vmem:[%s486 + $0x648] sm:$0xff]
        %v1973 = vld [vmem:[%s486 + $0x650] sm:$0xff]
        %v1974 = vld [vmem:[%s486 + $0x658] sm:$0xff]
        %v1975 = vld [vmem:[%s486 + $0x660] sm:$0xff]
        %v1976 = vld [vmem:[%s486 + $0x668] sm:$0xff]
        %v1977 = vld [vmem:[%s486 + $0x670] sm:$0xff]
        %v1978 = vld [vmem:[%s486 + $0x678] sm:$0xff]
        %v1979 = vld [vmem:[%s486 + $0x680] sm:$0xff]
        %v1980 = vld [vmem:[%s486 + $0x688] sm:$0xff]
        %v1981 = vld [vmem:[%s486 + $0x690] sm:$0xff]
        %v1982 = vld [vmem:[%s486 + $0x698] sm:$0xff]
        %v1983 = vld [vmem:[%s486 + $0x6a0] sm:$0xff]
        %v1984 = vld [vmem:[%s486 + $0x6a8] sm:$0xff]
        %v1985 = vld [vmem:[%s486 + $0x6b0] sm:$0xff]
        %v1986 = vld [vmem:[%s486 + $0x6b8] sm:$0xff]
        %v1987 = vld [vmem:[%s486 + $0x6c0] sm:$0xff]
        %v1988 = vld [vmem:[%s486 + $0x6c8] sm:$0xff]
        %v1989 = vld [vmem:[%s486 + $0x6d0] sm:$0xff]
        %v1990 = vld [vmem:[%s486 + $0x6d8] sm:$0xff]
        %v1991 = vld [vmem:[%s486 + $0x6e0] sm:$0xff]
        %v1992 = vld [vmem:[%s486 + $0x6e8] sm:$0xff]
        %v1993 = vld [vmem:[%s486 + $0x6f0] sm:$0xff]
        %v1994 = vld [vmem:[%s486 + $0x6f8] sm:$0xff]
        %v1995 = vld [vmem:[%s486 + $0x700] sm:$0xff]
        %v1996 = vld [vmem:[%s486 + $0x708] sm:$0xff]
        %v1997 = vld [vmem:[%s486 + $0x710] sm:$0xff]
        %v1998 = vld [vmem:[%s486 + $0x718] sm:$0xff]
        %v1999 = vld [vmem:[%s486 + $0x720] sm:$0xff]
        %v2000 = vld [vmem:[%s486 + $0x728] sm:$0xff]
        %v2001 = vld [vmem:[%s486 + $0x730] sm:$0xff]
        %v2002 = vld [vmem:[%s486 + $0x738] sm:$0xff]
        %v2003 = vld [vmem:[%s486 + $0x740] sm:$0xff]
        %v2004 = vld [vmem:[%s486 + $0x748] sm:$0xff]
        %v2005 = vld [vmem:[%s486 + $0x750] sm:$0xff]
        %v2006 = vld [vmem:[%s486 + $0x758] sm:$0xff]
        %v2007 = vld [vmem:[%s486 + $0x760] sm:$0xff]
        %v2008 = vld [vmem:[%s486 + $0x768] sm:$0xff]
        %v2009 = vld [vmem:[%s486 + $0x770] sm:$0xff]
        %v2010 = vld [vmem:[%s486 + $0x778] sm:$0xff]
        %v2011 = vld [vmem:[%s486 + $0x780] sm:$0xff]
        %v2012 = vld [vmem:[%s486 + $0x788] sm:$0xff]
        %v2013 = vld [vmem:[%s486 + $0x790] sm:$0xff]
        %v2014 = vld [vmem:[%s486 + $0x798] sm:$0xff]
        %v2015 = vld [vmem:[%s486 + $0x7a0] sm:$0xff]
        %v2016 = vld [vmem:[%s486 + $0x7a8] sm:$0xff]
        %v2017 = vld [vmem:[%s486 + $0x7b0] sm:$0xff]
        %v2018 = vld [vmem:[%s486 + $0x7b8] sm:$0xff]
        %v2019 = vld [vmem:[%s486 + $0x7c0] sm:$0xff]
        %v2020 = vld [vmem:[%s486 + $0x7c8] sm:$0xff]
        %v2021 = vld [vmem:[%s486 + $0x7d0] sm:$0xff]
        %v2022 = vld [vmem:[%s486 + $0x7d8] sm:$0xff]
        %v2023 = vld [vmem:[%s486 + $0x7e0] sm:$0xff]
        %v2024 = vld [vmem:[%s486 + $0x7e8] sm:$0xff]
        %v2025 = vld [vmem:[%s486 + $0x7f0] sm:$0xff]
        %v2026 = vld [vmem:[%s486 + $0x7f8] sm:$0xff]
        %v2027 = vld [vmem:[%s486 + $0x800] sm:$0xff]
        %v2028 = vld [vmem:[%s486 + $0x808] sm:$0xff]
        %v2029 = vld [vmem:[%s486 + $0x810] sm:$0xff]
        %v2030 = vld [vmem:[%s486 + $0x818] sm:$0xff]
        %v2031 = vld [vmem:[%s486 + $0x820] sm:$0xff]
        %v2032 = vld [vmem:[%s486 + $0x828] sm:$0xff]
        %v2033 = vld [vmem:[%s486 + $0x830] sm:$0xff]
        %v2034 = vld [vmem:[%s486 + $0x838] sm:$0xff]
        %v2035 = vld [vmem:[%s486 + $0x840] sm:$0xff]
        %v2036 = vld [vmem:[%s486 + $0x848] sm:$0xff]
        %v2037 = vld [vmem:[%s486 + $0x850] sm:$0xff]
        %v2038 = vld [vmem:[%s486 + $0x858] sm:$0xff]
        %v2039 = vld [vmem:[%s486 + $0x860] sm:$0xff]
        %v2040 = vld [vmem:[%s486 + $0x868] sm:$0xff]
        %v2041 = vld [vmem:[%s486 + $0x870] sm:$0xff]
        %v2042 = vld [vmem:[%s486 + $0x878] sm:$0xff]
        %v2043 = vld [vmem:[%s486 + $0x880] sm:$0xff]
        %v2044 = vld [vmem:[%s486 + $0x888] sm:$0xff]
        %v2045 = vld [vmem:[%s486 + $0x890] sm:$0xff]
        %v2046 = vld [vmem:[%s486 + $0x898] sm:$0xff]
        %v2047 = vld [vmem:[%s486 + $0x8a0] sm:$0xff]
        %v2048 = vld [vmem:[%s486 + $0x8a8] sm:$0xff]
        %v2049 = vld [vmem:[%s486 + $0x8b0] sm:$0xff]
        %v2050 = vld [vmem:[%s486 + $0x8b8] sm:$0xff]
        %v2051 = vld [vmem:[%s486 + $0x8c0] sm:$0xff]
        %v2052 = vld [vmem:[%s486 + $0x8c8] sm:$0xff]
        %v2053 = vld [vmem:[%s486 + $0x8d0] sm:$0xff]
        %v2054 = vld [vmem:[%s486 + $0x8d8] sm:$0xff]
        %v2055 = vld [vmem:[%s486 + $0x8e0] sm:$0xff]
        %v2056 = vld [vmem:[%s486 + $0x8e8] sm:$0xff]
        %v2057 = vld [vmem:[%s486 + $0x8f0] sm:$0xff]
        %v2058 = vld [vmem:[%s486 + $0x8f8] sm:$0xff]
        %v2059 = vld [vmem:[%s486 + $0x900] sm:$0xff]
        %v2060 = vld [vmem:[%s486 + $0x908] sm:$0xff]
        %v2061 = vld [vmem:[%s486 + $0x910] sm:$0xff]
        %v2062 = vld [vmem:[%s486 + $0x918] sm:$0xff]
        %v2063 = vld [vmem:[%s486 + $0x920] sm:$0xff]
        %v2064 = vld [vmem:[%s486 + $0x928] sm:$0xff]
        %v2065 = vld [vmem:[%s486 + $0x930] sm:$0xff]
        %v2066 = vld [vmem:[%s486 + $0x938] sm:$0xff]
        %v2067 = vld [vmem:[%s486 + $0x940] sm:$0xff]
        %v2068 = vld [vmem:[%s486 + $0x948] sm:$0xff]
        %v2069 = vld [vmem:[%s486 + $0x950] sm:$0xff]
        %v2070 = vld [vmem:[%s486 + $0x958] sm:$0xff]
        %v2071 = vld [vmem:[%s486 + $0x960] sm:$0xff]
        %v2072 = vld [vmem:[%s486 + $0x968] sm:$0xff]
        %v2073 = vld [vmem:[%s486 + $0x970] sm:$0xff]
        %v2074 = vld [vmem:[%s486 + $0x978] sm:$0xff]
        %v2075 = vld [vmem:[%s486 + $0x980] sm:$0xff]
        %v2076 = vld [vmem:[%s486 + $0x988] sm:$0xff]
        %v2077 = vld [vmem:[%s486 + $0x990] sm:$0xff]
        %v2078 = vld [vmem:[%s486 + $0x998] sm:$0xff]
        %v2079 = vld [vmem:[%s486 + $0x9a0] sm:$0xff]
        %v2080 = vld [vmem:[%s486 + $0x9a8] sm:$0xff]
        %v2081 = vld [vmem:[%s486 + $0x9b0] sm:$0xff]
        %v2082 = vld [vmem:[%s486 + $0x9b8] sm:$0xff]
        %v2083 = vld [vmem:[%s486 + $0x9c0] sm:$0xff]
        %v2084 = vld [vmem:[%s486 + $0x9c8] sm:$0xff]
        %v2085 = vld [vmem:[%s486 + $0x9d0] sm:$0xff]
        %v2086 = vld [vmem:[%s486 + $0x9d8] sm:$0xff]
        %v2087 = vld [vmem:[%s486 + $0x9e0] sm:$0xff]
        %v2088 = vld [vmem:[%s486 + $0x9e8] sm:$0xff]
        %v2089 = vld [vmem:[%s486 + $0x9f0] sm:$0xff]
        %v2090 = vld [vmem:[%s486 + $0x9f8] sm:$0xff]
        %v2091 = vld [vmem:[%s486 + $0xa00] sm:$0xff]
        %v2092 = vld [vmem:[%s486 + $0xa08] sm:$0xff]
        %v2093 = vld [vmem:[%s486 + $0xa10] sm:$0xff]
        %v2094 = vld [vmem:[%s486 + $0xa18] sm:$0xff]
        %v2095 = vld [vmem:[%s486 + $0xa20] sm:$0xff]
        %v2096 = vld [vmem:[%s486 + $0xa28] sm:$0xff]
        %v2097 = vld [vmem:[%s486 + $0xa30] sm:$0xff]
        %v2098 = vld [vmem:[%s486 + $0xa38] sm:$0xff]
        %v2099 = vld [vmem:[%s486 + $0xa40] sm:$0xff]
        %v2100 = vld [vmem:[%s486 + $0xa48] sm:$0xff]
        %v2101 = vld [vmem:[%s486 + $0xa50] sm:$0xff]
        %v2102 = vld [vmem:[%s486 + $0xa58] sm:$0xff]
        %v2103 = vld [vmem:[%s486 + $0xa60] sm:$0xff]
        %v2104 = vld [vmem:[%s486 + $0xa68] sm:$0xff]
        %v2105 = vld [vmem:[%s486 + $0xa70] sm:$0xff]
        %v2106 = vld [vmem:[%s486 + $0xa78] sm:$0xff]
        %v2107 = vld [vmem:[%s486 + $0xa80] sm:$0xff]
        %v2108 = vld [vmem:[%s486 + $0xa88] sm:$0xff]
        %v2109 = vld [vmem:[%s486 + $0xa90] sm:$0xff]
        %v2110 = vld [vmem:[%s486 + $0xa98] sm:$0xff]
        %v2111 = vld [vmem:[%s486 + $0xaa0] sm:$0xff]
        %v2112 = vld [vmem:[%s486 + $0xaa8] sm:$0xff]
        %v2113 = vld [vmem:[%s486 + $0xab0] sm:$0xff]
        %v2114 = vld [vmem:[%s486 + $0xab8] sm:$0xff]
        %v2115 = vld [vmem:[%s486 + $0xac0] sm:$0xff]
        %v2116 = vld [vmem:[%s486 + $0xac8] sm:$0xff]
        %v2117 = vld [vmem:[%s486 + $0xad0] sm:$0xff]
        %v2118 = vld [vmem:[%s486 + $0xad8] sm:$0xff]
        %v2119 = vld [vmem:[%s486 + $0xae0] sm:$0xff]
        %v2120 = vld [vmem:[%s486 + $0xae8] sm:$0xff]
        %v2121 = vld [vmem:[%s486 + $0xaf0] sm:$0xff]
        %v2122 = vld [vmem:[%s486 + $0xaf8] sm:$0xff]
        %v2123 = vld [vmem:[%s486 + $0xb00] sm:$0xff]
        %v2124 = vld [vmem:[%s486 + $0xb08] sm:$0xff]
        %v2125 = vld [vmem:[%s486 + $0xb10] sm:$0xff]
        %v2126 = vld [vmem:[%s486 + $0xb18] sm:$0xff]
        %v2127 = vld [vmem:[%s486 + $0xb20] sm:$0xff]
        %v2128 = vld [vmem:[%s486 + $0xb28] sm:$0xff]
        %v2129 = vld [vmem:[%s486 + $0xb30] sm:$0xff]
        %v2130 = vld [vmem:[%s486 + $0xb38] sm:$0xff]
        %v2131 = vld [vmem:[%s486 + $0xb40] sm:$0xff]
        %v2132 = vld [vmem:[%s486 + $0xb48] sm:$0xff]
        %v2133 = vld [vmem:[%s486 + $0xb50] sm:$0xff]
        %v2134 = vld [vmem:[%s486 + $0xb58] sm:$0xff]
        %v2135 = vld [vmem:[%s486 + $0xb60] sm:$0xff]
        %v2136 = vld [vmem:[%s486 + $0xb68] sm:$0xff]
        %v2137 = vld [vmem:[%s486 + $0xb70] sm:$0xff]
        %v2138 = vld [vmem:[%s486 + $0xb78] sm:$0xff]
        %v2139 = vld [vmem:[%s486 + $0xb80] sm:$0xff]
        %v2140 = vld [vmem:[%s486 + $0xb88] sm:$0xff]
        %v2141 = vld [vmem:[%s486 + $0xb90] sm:$0xff]
        %v2142 = vld [vmem:[%s486 + $0xb98] sm:$0xff]
        %v2143 = vld [vmem:[%s486 + $0xba0] sm:$0xff]
        %v2144 = vld [vmem:[%s486 + $0xba8] sm:$0xff]
        %v2145 = vld [vmem:[%s486 + $0xbb0] sm:$0xff]
        %v2146 = vld [vmem:[%s486 + $0xbb8] sm:$0xff]
        %v2147 = vld [vmem:[%s486 + $0xbc0] sm:$0xff]
        %v2148 = vld [vmem:[%s486 + $0xbc8] sm:$0xff]
        %v2149 = vld [vmem:[%s486 + $0xbd0] sm:$0xff]
        %v2150 = vld [vmem:[%s486 + $0xbd8] sm:$0xff]
        %v2151 = vld [vmem:[%s486 + $0xbe0] sm:$0xff]
        %v2152 = vld [vmem:[%s486 + $0xbe8] sm:$0xff]
        %v2153 = vld [vmem:[%s486 + $0xbf0] sm:$0xff]
        %v2154 = vld [vmem:[%s486 + $0xbf8] sm:$0xff]
        %v2155 = vld [vmem:[%s486 + $0xc00] sm:$0xff]
        %v2156 = vld [vmem:[%s486 + $0xc08] sm:$0xff]
        %v2157 = vld [vmem:[%s486 + $0xc10] sm:$0xff]
        %v2158 = vld [vmem:[%s486 + $0xc18] sm:$0xff]
        %v2159 = vld [vmem:[%s486 + $0xc20] sm:$0xff]
        %v2160 = vld [vmem:[%s486 + $0xc28] sm:$0xff]
        %v2161 = vld [vmem:[%s486 + $0xc30] sm:$0xff]
        %v2162 = vld [vmem:[%s486 + $0xc38] sm:$0xff]
        %v2163 = vld [vmem:[%s486 + $0xc40] sm:$0xff]
        %v2164 = vld [vmem:[%s486 + $0xc48] sm:$0xff]
        %v2165 = vld [vmem:[%s486 + $0xc50] sm:$0xff]
        %v2166 = vld [vmem:[%s486 + $0xc58] sm:$0xff]
        %v2167 = vld [vmem:[%s486 + $0xc60] sm:$0xff]
        %v2168 = vld [vmem:[%s486 + $0xc68] sm:$0xff]
        %v2169 = vld [vmem:[%s486 + $0xc70] sm:$0xff]
        %v2170 = vld [vmem:[%s486 + $0xc78] sm:$0xff]
        %v2171 = vld [vmem:[%s486 + $0xc80] sm:$0xff]
        %v2172 = vld [vmem:[%s486 + $0xc88] sm:$0xff]
        %v2173 = vld [vmem:[%s486 + $0xc90] sm:$0xff]
        %v2174 = vld [vmem:[%s486 + $0xc98] sm:$0xff]
        %v2175 = vld [vmem:[%s486 + $0xca0] sm:$0xff]
        %v2176 = vld [vmem:[%s486 + $0xca8] sm:$0xff]
        %v2177 = vld [vmem:[%s486 + $0xcb0] sm:$0xff]
        %v2178 = vld [vmem:[%s486 + $0xcb8] sm:$0xff]
        %v2179 = vld [vmem:[%s486 + $0xcc0] sm:$0xff]
        %v2180 = vld [vmem:[%s486 + $0xcc8] sm:$0xff]
        %v2181 = vld [vmem:[%s486 + $0xcd0] sm:$0xff]
        %v2182 = vld [vmem:[%s486 + $0xcd8] sm:$0xff]
        %v2183 = vld [vmem:[%s486 + $0xce0] sm:$0xff]
        %v2184 = vld [vmem:[%s486 + $0xce8] sm:$0xff]
        %v2185 = vld [vmem:[%s486 + $0xcf0] sm:$0xff]
        %v2186 = vld [vmem:[%s486 + $0xcf8] sm:$0xff]
        %v2187 = vld [vmem:[%s486 + $0xd00] sm:$0xff]
        %v2188 = vld [vmem:[%s486 + $0xd08] sm:$0xff]
        %v2189 = vld [vmem:[%s486 + $0xd10] sm:$0xff]
        %v2190 = vld [vmem:[%s486 + $0xd18] sm:$0xff]
        %v2191 = vld [vmem:[%s486 + $0xd20] sm:$0xff]
        %v2192 = vld [vmem:[%s486 + $0xd28] sm:$0xff]
        %v2193 = vld [vmem:[%s486 + $0xd30] sm:$0xff]
        %v2194 = vld [vmem:[%s486 + $0xd38] sm:$0xff]
        %v2195 = vld [vmem:[%s486 + $0xd40] sm:$0xff]
        %v2196 = vld [vmem:[%s486 + $0xd48] sm:$0xff]
        %v2197 = vld [vmem:[%s486 + $0xd50] sm:$0xff]
        %v2198 = vld [vmem:[%s486 + $0xd58] sm:$0xff]
        %v2199 = vld [vmem:[%s486 + $0xd60] sm:$0xff]
        %v2200 = vld [vmem:[%s486 + $0xd68] sm:$0xff]
        %v2201 = vld [vmem:[%s486 + $0xd70] sm:$0xff]
        %v2202 = vld [vmem:[%s486 + $0xd78] sm:$0xff]
        %v2203 = vld [vmem:[%s486 + $0xd80] sm:$0xff]
        %v2204 = vld [vmem:[%s486 + $0xd88] sm:$0xff]
        %v2205 = vld [vmem:[%s486 + $0xd90] sm:$0xff]
        %v2206 = vld [vmem:[%s486 + $0xd98] sm:$0xff]
        %v2207 = vld [vmem:[%s486 + $0xda0] sm:$0xff]
        %v2208 = vld [vmem:[%s486 + $0xda8] sm:$0xff]
        %v2209 = vld [vmem:[%s486 + $0xdb0] sm:$0xff]
        %v2210 = vld [vmem:[%s486 + $0xdb8] sm:$0xff]
        %v2211 = vld [vmem:[%s486 + $0xdc0] sm:$0xff]
        %v2212 = vld [vmem:[%s486 + $0xdc8] sm:$0xff]
        %v2213 = vld [vmem:[%s486 + $0xdd0] sm:$0xff]
        %v2214 = vld [vmem:[%s486 + $0xdd8] sm:$0xff]
        %v2215 = vld [vmem:[%s486 + $0xde0] sm:$0xff]
        %v2216 = vld [vmem:[%s486 + $0xde8] sm:$0xff]
        %v2217 = vld [vmem:[%s486 + $0xdf0] sm:$0xff]
        %v2218 = vld [vmem:[%s486 + $0xdf8] sm:$0xff]
        %v2219 = vld [vmem:[%s486 + $0xe00] sm:$0xff]
        %v2220 = vld [vmem:[%s486 + $0xe08] sm:$0xff]
        %v2221 = vld [vmem:[%s486 + $0xe10] sm:$0xff]
        %v2222 = vld [vmem:[%s486 + $0xe18] sm:$0xff]
        %v2223 = vld [vmem:[%s486 + $0xe20] sm:$0xff]
        %v2224 = vld [vmem:[%s486 + $0xe28] sm:$0xff]
        %v2225 = vld [vmem:[%s486 + $0xe30] sm:$0xff]
        %v2226 = vld [vmem:[%s486 + $0xe38] sm:$0xff]
        %v2227 = vld [vmem:[%s486 + $0xe40] sm:$0xff]
        %v2228 = vld [vmem:[%s486 + $0xe48] sm:$0xff]
        %v2229 = vld [vmem:[%s486 + $0xe50] sm:$0xff]
        %v2230 = vld [vmem:[%s486 + $0xe58] sm:$0xff]
        %v2231 = vld [vmem:[%s486 + $0xe60] sm:$0xff]
        %v2232 = vld [vmem:[%s486 + $0xe68] sm:$0xff]
        %v2233 = vld [vmem:[%s486 + $0xe70] sm:$0xff]
        %v2234 = vld [vmem:[%s486 + $0xe78] sm:$0xff]
        %v2235 = vld [vmem:[%s486 + $0xe80] sm:$0xff]
        %v2236 = vld [vmem:[%s486 + $0xe88] sm:$0xff]
        %v2237 = vld [vmem:[%s486 + $0xe90] sm:$0xff]
        %v2238 = vld [vmem:[%s486 + $0xe98] sm:$0xff]
        %v2239 = vld [vmem:[%s486 + $0xea0] sm:$0xff]
        %v2240 = vld [vmem:[%s486 + $0xea8] sm:$0xff]
        %v2241 = vld [vmem:[%s486 + $0xeb0] sm:$0xff]
        %v2242 = vld [vmem:[%s486 + $0xeb8] sm:$0xff]
        %v2243 = vld [vmem:[%s486 + $0xec0] sm:$0xff]
        %v2244 = vld [vmem:[%s486 + $0xec8] sm:$0xff]
        %v2245 = vld [vmem:[%s486 + $0xed0] sm:$0xff]
        %v2246 = vld [vmem:[%s486 + $0xed8] sm:$0xff]
        %v2247 = vld [vmem:[%s486 + $0xee0] sm:$0xff]
        %v2248 = vld [vmem:[%s486 + $0xee8] sm:$0xff]
        %v2249 = vld [vmem:[%s486 + $0xef0] sm:$0xff]
        %v2250 = vld [vmem:[%s486 + $0xef8] sm:$0xff]
        %v2251 = vld [vmem:[%s486 + $0xf00] sm:$0xff]
        %v2252 = vld [vmem:[%s486 + $0xf08] sm:$0xff]
        %v2253 = vld [vmem:[%s486 + $0xf10] sm:$0xff]
        %v2254 = vld [vmem:[%s486 + $0xf18] sm:$0xff]
        %v2255 = vld [vmem:[%s486 + $0xf20] sm:$0xff]
        %v2256 = vld [vmem:[%s486 + $0xf28] sm:$0xff]
        %v2257 = vld [vmem:[%s486 + $0xf30] sm:$0xff]
        %v2258 = vld [vmem:[%s486 + $0xf38] sm:$0xff]
        %v2259 = vld [vmem:[%s486 + $0xf40] sm:$0xff]
        %v2260 = vld [vmem:[%s486 + $0xf48] sm:$0xff]
        %v2261 = vld [vmem:[%s486 + $0xf50] sm:$0xff]
        %v2262 = vld [vmem:[%s486 + $0xf58] sm:$0xff]
        %v2263 = vld [vmem:[%s486 + $0xf60] sm:$0xff]
        %v2264 = vld [vmem:[%s486 + $0xf68] sm:$0xff]
        %v2265 = vld [vmem:[%s486 + $0xf70] sm:$0xff]
        %v2266 = vld [vmem:[%s486 + $0xf78] sm:$0xff]
        %v2267 = vld [vmem:[%s486 + $0xf80] sm:$0xff]
        %v2268 = vld [vmem:[%s486 + $0xf88] sm:$0xff]
        %v2269 = vld [vmem:[%s486 + $0xf90] sm:$0xff]
        %v2270 = vld [vmem:[%s486 + $0xf98] sm:$0xff]
        %v2271 = vld [vmem:[%s486 + $0xfa0] sm:$0xff]
        %v2272 = vld [vmem:[%s486 + $0xfa8] sm:$0xff]
        %v2273 = vld [vmem:[%s486 + $0xfb0] sm:$0xff]
        %v2274 = vld [vmem:[%s486 + $0xfb8] sm:$0xff]
        %v2275 = vld [vmem:[%s486 + $0xfc0] sm:$0xff]
        %v2276 = vld [vmem:[%s486 + $0xfc8] sm:$0xff]
        %v2277 = vld [vmem:[%s486 + $0xfd0] sm:$0xff]
        %v2278 = vld [vmem:[%s486 + $0xfd8] sm:$0xff]
        %v2279 = vld [vmem:[%s486 + $0xfe0] sm:$0xff]
        %v2280 = vld [vmem:[%s486 + $0xfe8] sm:$0xff]
        %v2281 = vld [vmem:[%s486 + $0xff0] sm:$0xff]
        %v2282 = vld [vmem:[%s486 + $0xff8] sm:$0xff]
        %2284 = vst [vmem:[#allocation1] ss:$9 sm:$0xff] %v1770
        %v2285 = vld [vmem:[#allocation1] sm:$0xff]
        %v2286 = vld [vmem:[#allocation1 + $0x9] sm:$0xff]
        %v2287 = vld [vmem:[#allocation1 + $0x12] sm:$0xff]
        %v2288 = vld [vmem:[#allocation1 + $0x1b] sm:$0xff]
        %v2289 = vld [vmem:[#allocation1 + $0x24] sm:$0xff]
        %v2290 = vld [vmem:[#allocation1 + $0x2d] sm:$0xff]
        %v2291 = vld [vmem:[#allocation1 + $0x36] sm:$0xff]
        %v2292 = vld [vmem:[#allocation1 + $0x3f] sm:$0xff]
        %v2813 = vunpack.c.l.b16 %v1771
        %v2814 = vunpack.c.h.b16 %v1771
        %v2815 = vunpack.c.l.b16 %v1772
        %v2816 = vunpack.c.h.b16 %v1772
        %v2817 = vunpack.c.l.b16 %v1773
        %v2818 = vunpack.c.h.b16 %v1773
        %v2819 = vunpack.c.l.b16 %v1774
        %v2820 = vunpack.c.h.b16 %v1774
        %v2821 = vunpack.c.l.b16 %v1775
        %v2822 = vunpack.c.h.b16 %v1775
        %v2823 = vunpack.c.l.b16 %v1776
        %v2824 = vunpack.c.h.b16 %v1776
        %v2825 = vunpack.c.l.b16 %v1777
        %v2826 = vunpack.c.h.b16 %v1777
        %v2827 = vunpack.c.l.b16 %v1778
        %v2828 = vunpack.c.h.b16 %v1778
        %v2829 = vunpack.c.l.b16 %v1779
        %v2830 = vunpack.c.h.b16 %v1779
        %v2831 = vunpack.c.l.b16 %v1780
        %v2832 = vunpack.c.h.b16 %v1780
        %v2833 = vunpack.c.l.b16 %v1781
        %v2834 = vunpack.c.h.b16 %v1781
        %v2835 = vunpack.c.l.b16 %v1782
        %v2836 = vunpack.c.h.b16 %v1782
        %v2837 = vunpack.c.l.b16 %v1783
        %v2838 = vunpack.c.h.b16 %v1783
        %v2839 = vunpack.c.l.b16 %v1784
        %v2840 = vunpack.c.h.b16 %v1784
        %v2841 = vunpack.c.l.b16 %v1785
        %v2842 = vunpack.c.h.b16 %v1785
        %v2843 = vunpack.c.l.b16 %v1786
        %v2844 = vunpack.c.h.b16 %v1786
        %v2845 = vunpack.c.l.b16 %v1787
        %v2846 = vunpack.c.h.b16 %v1787
        %v2847 = vunpack.c.l.b16 %v1788
        %v2848 = vunpack.c.h.b16 %v1788
        %v2849 = vunpack.c.l.b16 %v1789
        %v2850 = vunpack.c.h.b16 %v1789
        %v2851 = vunpack.c.l.b16 %v1790
        %v2852 = vunpack.c.h.b16 %v1790
        %v2853 = vunpack.c.l.b16 %v1791
        %v2854 = vunpack.c.h.b16 %v1791
        %v2855 = vunpack.c.l.b16 %v1792
        %v2856 = vunpack.c.h.b16 %v1792
        %v2857 = vunpack.c.l.b16 %v1793
        %v2858 = vunpack.c.h.b16 %v1793
        %v2859 = vunpack.c.l.b16 %v1794
        %v2860 = vunpack.c.h.b16 %v1794
        %v2861 = vunpack.c.l.b16 %v1795
        %v2862 = vunpack.c.h.b16 %v1795
        %v2863 = vunpack.c.l.b16 %v1796
        %v2864 = vunpack.c.h.b16 %v1796
        %v2865 = vunpack.c.l.b16 %v1797
        %v2866 = vunpack.c.h.b16 %v1797
        %v2867 = vunpack.c.l.b16 %v1798
        %v2868 = vunpack.c.h.b16 %v1798
        %v2869 = vunpack.c.l.b16 %v1799
        %v2870 = vunpack.c.h.b16 %v1799
        %v2871 = vunpack.c.l.b16 %v1800
        %v2872 = vunpack.c.h.b16 %v1800
        %v2873 = vunpack.c.l.b16 %v1801
        %v2874 = vunpack.c.h.b16 %v1801
        %v2875 = vunpack.c.l.b16 %v1802
        %v2876 = vunpack.c.h.b16 %v1802
        %v2877 = vunpack.c.l.b16 %v1803
        %v2878 = vunpack.c.h.b16 %v1803
        %v2879 = vunpack.c.l.b16 %v1804
        %v2880 = vunpack.c.h.b16 %v1804
        %v2881 = vunpack.c.l.b16 %v1805
        %v2882 = vunpack.c.h.b16 %v1805
        %v2883 = vunpack.c.l.b16 %v1806
        %v2884 = vunpack.c.h.b16 %v1806
        %v2885 = vunpack.c.l.b16 %v1807
        %v2886 = vunpack.c.h.b16 %v1807
        %v2887 = vunpack.c.l.b16 %v1808
        %v2888 = vunpack.c.h.b16 %v1808
        %v2889 = vunpack.c.l.b16 %v1809
        %v2890 = vunpack.c.h.b16 %v1809
        %v2891 = vunpack.c.l.b16 %v1810
        %v2892 = vunpack.c.h.b16 %v1810
        %v2893 = vunpack.c.l.b16 %v1811
        %v2894 = vunpack.c.h.b16 %v1811
        %v2895 = vunpack.c.l.b16 %v1812
        %v2896 = vunpack.c.h.b16 %v1812
        %v2897 = vunpack.c.l.b16 %v1813
        %v2898 = vunpack.c.h.b16 %v1813
        %v2899 = vunpack.c.l.b16 %v1814
        %v2900 = vunpack.c.h.b16 %v1814
        %v2901 = vunpack.c.l.b16 %v1815
        %v2902 = vunpack.c.h.b16 %v1815
        %v2903 = vunpack.c.l.b16 %v1816
        %v2904 = vunpack.c.h.b16 %v1816
        %v2905 = vunpack.c.l.b16 %v1817
        %v2906 = vunpack.c.h.b16 %v1817
        %v2907 = vunpack.c.l.b16 %v1818
        %v2908 = vunpack.c.h.b16 %v1818
        %v2909 = vunpack.c.l.b16 %v1819
        %v2910 = vunpack.c.h.b16 %v1819
        %v2911 = vunpack.c.l.b16 %v1820
        %v2912 = vunpack.c.h.b16 %v1820
        %v2913 = vunpack.c.l.b16 %v1821
        %v2914 = vunpack.c.h.b16 %v1821
        %v2915 = vunpack.c.l.b16 %v1822
        %v2916 = vunpack.c.h.b16 %v1822
        %v2917 = vunpack.c.l.b16 %v1823
        %v2918 = vunpack.c.h.b16 %v1823
        %v2919 = vunpack.c.l.b16 %v1824
        %v2920 = vunpack.c.h.b16 %v1824
        %v2921 = vunpack.c.l.b16 %v1825
        %v2922 = vunpack.c.h.b16 %v1825
        %v2923 = vunpack.c.l.b16 %v1826
        %v2924 = vunpack.c.h.b16 %v1826
        %v2925 = vunpack.c.l.b16 %v1827
        %v2926 = vunpack.c.h.b16 %v1827
        %v2927 = vunpack.c.l.b16 %v1828
        %v2928 = vunpack.c.h.b16 %v1828
        %v2929 = vunpack.c.l.b16 %v1829
        %v2930 = vunpack.c.h.b16 %v1829
        %v2931 = vunpack.c.l.b16 %v1830
        %v2932 = vunpack.c.h.b16 %v1830
        %v2933 = vunpack.c.l.b16 %v1831
        %v2934 = vunpack.c.h.b16 %v1831
        %v2935 = vunpack.c.l.b16 %v1832
        %v2936 = vunpack.c.h.b16 %v1832
        %v2937 = vunpack.c.l.b16 %v1833
        %v2938 = vunpack.c.h.b16 %v1833
        %v2939 = vunpack.c.l.b16 %v1834
        %v2940 = vunpack.c.h.b16 %v1834
        %v2941 = vunpack.c.l.b16 %v1835
        %v2942 = vunpack.c.h.b16 %v1835
        %v2943 = vunpack.c.l.b16 %v1836
        %v2944 = vunpack.c.h.b16 %v1836
        %v2945 = vunpack.c.l.b16 %v1837
        %v2946 = vunpack.c.h.b16 %v1837
        %v2947 = vunpack.c.l.b16 %v1838
        %v2948 = vunpack.c.h.b16 %v1838
        %v2949 = vunpack.c.l.b16 %v1839
        %v2950 = vunpack.c.h.b16 %v1839
        %v2951 = vunpack.c.l.b16 %v1840
        %v2952 = vunpack.c.h.b16 %v1840
        %v2953 = vunpack.c.l.b16 %v1841
        %v2954 = vunpack.c.h.b16 %v1841
        %v2955 = vunpack.c.l.b16 %v1842
        %v2956 = vunpack.c.h.b16 %v1842
        %v2957 = vunpack.c.l.b16 %v1843
        %v2958 = vunpack.c.h.b16 %v1843
        %v2959 = vunpack.c.l.b16 %v1844
        %v2960 = vunpack.c.h.b16 %v1844
        %v2961 = vunpack.c.l.b16 %v1845
        %v2962 = vunpack.c.h.b16 %v1845
        %v2963 = vunpack.c.l.b16 %v1846
        %v2964 = vunpack.c.h.b16 %v1846
        %v2965 = vunpack.c.l.b16 %v1847
        %v2966 = vunpack.c.h.b16 %v1847
        %v2967 = vunpack.c.l.b16 %v1848
        %v2968 = vunpack.c.h.b16 %v1848
        %v2969 = vunpack.c.l.b16 %v1849
        %v2970 = vunpack.c.h.b16 %v1849
        %v2971 = vunpack.c.l.b16 %v1850
        %v2972 = vunpack.c.h.b16 %v1850
        %v2973 = vunpack.c.l.b16 %v1851
        %v2974 = vunpack.c.h.b16 %v1851
        %v2975 = vunpack.c.l.b16 %v1852
        %v2976 = vunpack.c.h.b16 %v1852
        %v2977 = vunpack.c.l.b16 %v1853
        %v2978 = vunpack.c.h.b16 %v1853
        %v2979 = vunpack.c.l.b16 %v1854
        %v2980 = vunpack.c.h.b16 %v1854
        %v2981 = vunpack.c.l.b16 %v1855
        %v2982 = vunpack.c.h.b16 %v1855
        %v2983 = vunpack.c.l.b16 %v1856
        %v2984 = vunpack.c.h.b16 %v1856
        %v2985 = vunpack.c.l.b16 %v1857
        %v2986 = vunpack.c.h.b16 %v1857
        %v2987 = vunpack.c.l.b16 %v1858
        %v2988 = vunpack.c.h.b16 %v1858
        %v2989 = vunpack.c.l.b16 %v1859
        %v2990 = vunpack.c.h.b16 %v1859
        %v2991 = vunpack.c.l.b16 %v1860
        %v2992 = vunpack.c.h.b16 %v1860
        %v2993 = vunpack.c.l.b16 %v1861
        %v2994 = vunpack.c.h.b16 %v1861
        %v2995 = vunpack.c.l.b16 %v1862
        %v2996 = vunpack.c.h.b16 %v1862
        %v2997 = vunpack.c.l.b16 %v1863
        %v2998 = vunpack.c.h.b16 %v1863
        %v2999 = vunpack.c.l.b16 %v1864
        %v3000 = vunpack.c.h.b16 %v1864
        %v3001 = vunpack.c.l.b16 %v1865
        %v3002 = vunpack.c.h.b16 %v1865
        %v3003 = vunpack.c.l.b16 %v1866
        %v3004 = vunpack.c.h.b16 %v1866
        %v3005 = vunpack.c.l.b16 %v1867
        %v3006 = vunpack.c.h.b16 %v1867
        %v3007 = vunpack.c.l.b16 %v1868
        %v3008 = vunpack.c.h.b16 %v1868
        %v3009 = vunpack.c.l.b16 %v1869
        %v3010 = vunpack.c.h.b16 %v1869
        %v3011 = vunpack.c.l.b16 %v1870
        %v3012 = vunpack.c.h.b16 %v1870
        %v3013 = vunpack.c.l.b16 %v1871
        %v3014 = vunpack.c.h.b16 %v1871
        %v3015 = vunpack.c.l.b16 %v1872
        %v3016 = vunpack.c.h.b16 %v1872
        %v3017 = vunpack.c.l.b16 %v1873
        %v3018 = vunpack.c.h.b16 %v1873
        %v3019 = vunpack.c.l.b16 %v1874
        %v3020 = vunpack.c.h.b16 %v1874
        %v3021 = vunpack.c.l.b16 %v1875
        %v3022 = vunpack.c.h.b16 %v1875
        %v3023 = vunpack.c.l.b16 %v1876
        %v3024 = vunpack.c.h.b16 %v1876
        %v3025 = vunpack.c.l.b16 %v1877
        %v3026 = vunpack.c.h.b16 %v1877
        %v3027 = vunpack.c.l.b16 %v1878
        %v3028 = vunpack.c.h.b16 %v1878
        %v3029 = vunpack.c.l.b16 %v1879
        %v3030 = vunpack.c.h.b16 %v1879
        %v3031 = vunpack.c.l.b16 %v1880
        %v3032 = vunpack.c.h.b16 %v1880
        %v3033 = vunpack.c.l.b16 %v1881
        %v3034 = vunpack.c.h.b16 %v1881
        %v3035 = vunpack.c.l.b16 %v1882
        %v3036 = vunpack.c.h.b16 %v1882
        %v3037 = vunpack.c.l.b16 %v1883
        %v3038 = vunpack.c.h.b16 %v1883
        %v3039 = vunpack.c.l.b16 %v1884
        %v3040 = vunpack.c.h.b16 %v1884
        %v3041 = vunpack.c.l.b16 %v1885
        %v3042 = vunpack.c.h.b16 %v1885
        %v3043 = vunpack.c.l.b16 %v1886
        %v3044 = vunpack.c.h.b16 %v1886
        %v3045 = vunpack.c.l.b16 %v1887
        %v3046 = vunpack.c.h.b16 %v1887
        %v3047 = vunpack.c.l.b16 %v1888
        %v3048 = vunpack.c.h.b16 %v1888
        %v3049 = vunpack.c.l.b16 %v1889
        %v3050 = vunpack.c.h.b16 %v1889
        %v3051 = vunpack.c.l.b16 %v1890
        %v3052 = vunpack.c.h.b16 %v1890
        %v3053 = vunpack.c.l.b16 %v1891
        %v3054 = vunpack.c.h.b16 %v1891
        %v3055 = vunpack.c.l.b16 %v1892
        %v3056 = vunpack.c.h.b16 %v1892
        %v3057 = vunpack.c.l.b16 %v1893
        %v3058 = vunpack.c.h.b16 %v1893
        %v3059 = vunpack.c.l.b16 %v1894
        %v3060 = vunpack.c.h.b16 %v1894
        %v3061 = vunpack.c.l.b16 %v1895
        %v3062 = vunpack.c.h.b16 %v1895
        %v3063 = vunpack.c.l.b16 %v1896
        %v3064 = vunpack.c.h.b16 %v1896
        %v3065 = vunpack.c.l.b16 %v1897
        %v3066 = vunpack.c.h.b16 %v1897
        %v3067 = vunpack.c.l.b16 %v1898
        %v3068 = vunpack.c.h.b16 %v1898
        %v3069 = vunpack.c.l.b16 %v1899
        %v3070 = vunpack.c.h.b16 %v1899
        %v3071 = vunpack.c.l.b16 %v1900
        %v3072 = vunpack.c.h.b16 %v1900
        %v3073 = vunpack.c.l.b16 %v1901
        %v3074 = vunpack.c.h.b16 %v1901
        %v3075 = vunpack.c.l.b16 %v1902
        %v3076 = vunpack.c.h.b16 %v1902
        %v3077 = vunpack.c.l.b16 %v1903
        %v3078 = vunpack.c.h.b16 %v1903
        %v3079 = vunpack.c.l.b16 %v1904
        %v3080 = vunpack.c.h.b16 %v1904
        %v3081 = vunpack.c.l.b16 %v1905
        %v3082 = vunpack.c.h.b16 %v1905
        %v3083 = vunpack.c.l.b16 %v1906
        %v3084 = vunpack.c.h.b16 %v1906
        %v3085 = vunpack.c.l.b16 %v1907
        %v3086 = vunpack.c.h.b16 %v1907
        %v3087 = vunpack.c.l.b16 %v1908
        %v3088 = vunpack.c.h.b16 %v1908
        %v3089 = vunpack.c.l.b16 %v1909
        %v3090 = vunpack.c.h.b16 %v1909
        %v3091 = vunpack.c.l.b16 %v1910
        %v3092 = vunpack.c.h.b16 %v1910
        %v3093 = vunpack.c.l.b16 %v1911
        %v3094 = vunpack.c.h.b16 %v1911
        %v3095 = vunpack.c.l.b16 %v1912
        %v3096 = vunpack.c.h.b16 %v1912
        %v3097 = vunpack.c.l.b16 %v1913
        %v3098 = vunpack.c.h.b16 %v1913
        %v3099 = vunpack.c.l.b16 %v1914
        %v3100 = vunpack.c.h.b16 %v1914
        %v3101 = vunpack.c.l.b16 %v1915
        %v3102 = vunpack.c.h.b16 %v1915
        %v3103 = vunpack.c.l.b16 %v1916
        %v3104 = vunpack.c.h.b16 %v1916
        %v3105 = vunpack.c.l.b16 %v1917
        %v3106 = vunpack.c.h.b16 %v1917
        %v3107 = vunpack.c.l.b16 %v1918
        %v3108 = vunpack.c.h.b16 %v1918
        %v3109 = vunpack.c.l.b16 %v1919
        %v3110 = vunpack.c.h.b16 %v1919
        %v3111 = vunpack.c.l.b16 %v1920
        %v3112 = vunpack.c.h.b16 %v1920
        %v3113 = vunpack.c.l.b16 %v1921
        %v3114 = vunpack.c.h.b16 %v1921
        %v3115 = vunpack.c.l.b16 %v1922
        %v3116 = vunpack.c.h.b16 %v1922
        %v3117 = vunpack.c.l.b16 %v1923
        %v3118 = vunpack.c.h.b16 %v1923
        %v3119 = vunpack.c.l.b16 %v1924
        %v3120 = vunpack.c.h.b16 %v1924
        %v3121 = vunpack.c.l.b16 %v1925
        %v3122 = vunpack.c.h.b16 %v1925
        %v3123 = vunpack.c.l.b16 %v1926
        %v3124 = vunpack.c.h.b16 %v1926
        %v3125 = vunpack.c.l.b16 %v1927
        %v3126 = vunpack.c.h.b16 %v1927
        %v3127 = vunpack.c.l.b16 %v1928
        %v3128 = vunpack.c.h.b16 %v1928
        %v3129 = vunpack.c.l.b16 %v1929
        %v3130 = vunpack.c.h.b16 %v1929
        %v3131 = vunpack.c.l.b16 %v1930
        %v3132 = vunpack.c.h.b16 %v1930
        %v3133 = vunpack.c.l.b16 %v1931
        %v3134 = vunpack.c.h.b16 %v1931
        %v3135 = vunpack.c.l.b16 %v1932
        %v3136 = vunpack.c.h.b16 %v1932
        %v3137 = vunpack.c.l.b16 %v1933
        %v3138 = vunpack.c.h.b16 %v1933
        %v3139 = vunpack.c.l.b16 %v1934
        %v3140 = vunpack.c.h.b16 %v1934
        %v3141 = vunpack.c.l.b16 %v1935
        %v3142 = vunpack.c.h.b16 %v1935
        %v3143 = vunpack.c.l.b16 %v1936
        %v3144 = vunpack.c.h.b16 %v1936
        %v3145 = vunpack.c.l.b16 %v1937
        %v3146 = vunpack.c.h.b16 %v1937
        %v3147 = vunpack.c.l.b16 %v1938
        %v3148 = vunpack.c.h.b16 %v1938
        %v3149 = vunpack.c.l.b16 %v1939
        %v3150 = vunpack.c.h.b16 %v1939
        %v3151 = vunpack.c.l.b16 %v1940
        %v3152 = vunpack.c.h.b16 %v1940
        %v3153 = vunpack.c.l.b16 %v1941
        %v3154 = vunpack.c.h.b16 %v1941
        %v3155 = vunpack.c.l.b16 %v1942
        %v3156 = vunpack.c.h.b16 %v1942
        %v3157 = vunpack.c.l.b16 %v1943
        %v3158 = vunpack.c.h.b16 %v1943
        %v3159 = vunpack.c.l.b16 %v1944
        %v3160 = vunpack.c.h.b16 %v1944
        %v3161 = vunpack.c.l.b16 %v1945
        %v3162 = vunpack.c.h.b16 %v1945
        %v3163 = vunpack.c.l.b16 %v1946
        %v3164 = vunpack.c.h.b16 %v1946
        %v3165 = vunpack.c.l.b16 %v1947
        %v3166 = vunpack.c.h.b16 %v1947
        %v3167 = vunpack.c.l.b16 %v1948
        %v3168 = vunpack.c.h.b16 %v1948
        %v3169 = vunpack.c.l.b16 %v1949
        %v3170 = vunpack.c.h.b16 %v1949
        %v3171 = vunpack.c.l.b16 %v1950
        %v3172 = vunpack.c.h.b16 %v1950
        %v3173 = vunpack.c.l.b16 %v1951
        %v3174 = vunpack.c.h.b16 %v1951
        %v3175 = vunpack.c.l.b16 %v1952
        %v3176 = vunpack.c.h.b16 %v1952
        %v3177 = vunpack.c.l.b16 %v1953
        %v3178 = vunpack.c.h.b16 %v1953
        %v3179 = vunpack.c.l.b16 %v1954
        %v3180 = vunpack.c.h.b16 %v1954
        %v3181 = vunpack.c.l.b16 %v1955
        %v3182 = vunpack.c.h.b16 %v1955
        %v3183 = vunpack.c.l.b16 %v1956
        %v3184 = vunpack.c.h.b16 %v1956
        %v3185 = vunpack.c.l.b16 %v1957
        %v3186 = vunpack.c.h.b16 %v1957
        %v3187 = vunpack.c.l.b16 %v1958
        %v3188 = vunpack.c.h.b16 %v1958
        %v3189 = vunpack.c.l.b16 %v1959
        %v3190 = vunpack.c.h.b16 %v1959
        %v3191 = vunpack.c.l.b16 %v1960
        %v3192 = vunpack.c.h.b16 %v1960
        %v3193 = vunpack.c.l.b16 %v1961
        %v3194 = vunpack.c.h.b16 %v1961
        %v3195 = vunpack.c.l.b16 %v1962
        %v3196 = vunpack.c.h.b16 %v1962
        %v3197 = vunpack.c.l.b16 %v1963
        %v3198 = vunpack.c.h.b16 %v1963
        %v3199 = vunpack.c.l.b16 %v1964
        %v3200 = vunpack.c.h.b16 %v1964
        %v3201 = vunpack.c.l.b16 %v1965
        %v3202 = vunpack.c.h.b16 %v1965
        %v3203 = vunpack.c.l.b16 %v1966
        %v3204 = vunpack.c.h.b16 %v1966
        %v3205 = vunpack.c.l.b16 %v1967
        %v3206 = vunpack.c.h.b16 %v1967
        %v3207 = vunpack.c.l.b16 %v1968
        %v3208 = vunpack.c.h.b16 %v1968
        %v3209 = vunpack.c.l.b16 %v1969
        %v3210 = vunpack.c.h.b16 %v1969
        %v3211 = vunpack.c.l.b16 %v1970
        %v3212 = vunpack.c.h.b16 %v1970
        %v3213 = vunpack.c.l.b16 %v1971
        %v3214 = vunpack.c.h.b16 %v1971
        %v3215 = vunpack.c.l.b16 %v1972
        %v3216 = vunpack.c.h.b16 %v1972
        %v3217 = vunpack.c.l.b16 %v1973
        %v3218 = vunpack.c.h.b16 %v1973
        %v3219 = vunpack.c.l.b16 %v1974
        %v3220 = vunpack.c.h.b16 %v1974
        %v3221 = vunpack.c.l.b16 %v1975
        %v3222 = vunpack.c.h.b16 %v1975
        %v3223 = vunpack.c.l.b16 %v1976
        %v3224 = vunpack.c.h.b16 %v1976
        %v3225 = vunpack.c.l.b16 %v1977
        %v3226 = vunpack.c.h.b16 %v1977
        %v3227 = vunpack.c.l.b16 %v1978
        %v3228 = vunpack.c.h.b16 %v1978
        %v3229 = vunpack.c.l.b16 %v1979
        %v3230 = vunpack.c.h.b16 %v1979
        %v3231 = vunpack.c.l.b16 %v1980
        %v3232 = vunpack.c.h.b16 %v1980
        %v3233 = vunpack.c.l.b16 %v1981
        %v3234 = vunpack.c.h.b16 %v1981
        %v3235 = vunpack.c.l.b16 %v1982
        %v3236 = vunpack.c.h.b16 %v1982
        %v3237 = vunpack.c.l.b16 %v1983
        %v3238 = vunpack.c.h.b16 %v1983
        %v3239 = vunpack.c.l.b16 %v1984
        %v3240 = vunpack.c.h.b16 %v1984
        %v3241 = vunpack.c.l.b16 %v1985
        %v3242 = vunpack.c.h.b16 %v1985
        %v3243 = vunpack.c.l.b16 %v1986
        %v3244 = vunpack.c.h.b16 %v1986
        %v3245 = vunpack.c.l.b16 %v1987
        %v3246 = vunpack.c.h.b16 %v1987
        %v3247 = vunpack.c.l.b16 %v1988
        %v3248 = vunpack.c.h.b16 %v1988
        %v3249 = vunpack.c.l.b16 %v1989
        %v3250 = vunpack.c.h.b16 %v1989
        %v3251 = vunpack.c.l.b16 %v1990
        %v3252 = vunpack.c.h.b16 %v1990
        %v3253 = vunpack.c.l.b16 %v1991
        %v3254 = vunpack.c.h.b16 %v1991
        %v3255 = vunpack.c.l.b16 %v1992
        %v3256 = vunpack.c.h.b16 %v1992
        %v3257 = vunpack.c.l.b16 %v1993
        %v3258 = vunpack.c.h.b16 %v1993
        %v3259 = vunpack.c.l.b16 %v1994
        %v3260 = vunpack.c.h.b16 %v1994
        %v3261 = vunpack.c.l.b16 %v1995
        %v3262 = vunpack.c.h.b16 %v1995
        %v3263 = vunpack.c.l.b16 %v1996
        %v3264 = vunpack.c.h.b16 %v1996
        %v3265 = vunpack.c.l.b16 %v1997
        %v3266 = vunpack.c.h.b16 %v1997
        %v3267 = vunpack.c.l.b16 %v1998
        %v3268 = vunpack.c.h.b16 %v1998
        %v3269 = vunpack.c.l.b16 %v1999
        %v3270 = vunpack.c.h.b16 %v1999
        %v3271 = vunpack.c.l.b16 %v2000
        %v3272 = vunpack.c.h.b16 %v2000
        %v3273 = vunpack.c.l.b16 %v2001
        %v3274 = vunpack.c.h.b16 %v2001
        %v3275 = vunpack.c.l.b16 %v2002
        %v3276 = vunpack.c.h.b16 %v2002
        %v3277 = vunpack.c.l.b16 %v2003
        %v3278 = vunpack.c.h.b16 %v2003
        %v3279 = vunpack.c.l.b16 %v2004
        %v3280 = vunpack.c.h.b16 %v2004
        %v3281 = vunpack.c.l.b16 %v2005
        %v3282 = vunpack.c.h.b16 %v2005
        %v3283 = vunpack.c.l.b16 %v2006
        %v3284 = vunpack.c.h.b16 %v2006
        %v3285 = vunpack.c.l.b16 %v2007
        %v3286 = vunpack.c.h.b16 %v2007
        %v3287 = vunpack.c.l.b16 %v2008
        %v3288 = vunpack.c.h.b16 %v2008
        %v3289 = vunpack.c.l.b16 %v2009
        %v3290 = vunpack.c.h.b16 %v2009
        %v3291 = vunpack.c.l.b16 %v2010
        %v3292 = vunpack.c.h.b16 %v2010
        %v3293 = vunpack.c.l.b16 %v2011
        %v3294 = vunpack.c.h.b16 %v2011
        %v3295 = vunpack.c.l.b16 %v2012
        %v3296 = vunpack.c.h.b16 %v2012
        %v3297 = vunpack.c.l.b16 %v2013
        %v3298 = vunpack.c.h.b16 %v2013
        %v3299 = vunpack.c.l.b16 %v2014
        %v3300 = vunpack.c.h.b16 %v2014
        %v3301 = vunpack.c.l.b16 %v2015
        %v3302 = vunpack.c.h.b16 %v2015
        %v3303 = vunpack.c.l.b16 %v2016
        %v3304 = vunpack.c.h.b16 %v2016
        %v3305 = vunpack.c.l.b16 %v2017
        %v3306 = vunpack.c.h.b16 %v2017
        %v3307 = vunpack.c.l.b16 %v2018
        %v3308 = vunpack.c.h.b16 %v2018
        %v3309 = vunpack.c.l.b16 %v2019
        %v3310 = vunpack.c.h.b16 %v2019
        %v3311 = vunpack.c.l.b16 %v2020
        %v3312 = vunpack.c.h.b16 %v2020
        %v3313 = vunpack.c.l.b16 %v2021
        %v3314 = vunpack.c.h.b16 %v2021
        %v3315 = vunpack.c.l.b16 %v2022
        %v3316 = vunpack.c.h.b16 %v2022
        %v3317 = vunpack.c.l.b16 %v2023
        %v3318 = vunpack.c.h.b16 %v2023
        %v3319 = vunpack.c.l.b16 %v2024
        %v3320 = vunpack.c.h.b16 %v2024
        %v3321 = vunpack.c.l.b16 %v2025
        %v3322 = vunpack.c.h.b16 %v2025
        %v3323 = vunpack.c.l.b16 %v2026
        %v3324 = vunpack.c.h.b16 %v2026
        %v3325 = vunpack.c.l.b16 %v2027
        %v3326 = vunpack.c.h.b16 %v2027
        %v3327 = vunpack.c.l.b16 %v2028
        %v3328 = vunpack.c.h.b16 %v2028
        %v3329 = vunpack.c.l.b16 %v2029
        %v3330 = vunpack.c.h.b16 %v2029
        %v3331 = vunpack.c.l.b16 %v2030
        %v3332 = vunpack.c.h.b16 %v2030
        %v3333 = vunpack.c.l.b16 %v2031
        %v3334 = vunpack.c.h.b16 %v2031
        %v3335 = vunpack.c.l.b16 %v2032
        %v3336 = vunpack.c.h.b16 %v2032
        %v3337 = vunpack.c.l.b16 %v2033
        %v3338 = vunpack.c.h.b16 %v2033
        %v3339 = vunpack.c.l.b16 %v2034
        %v3340 = vunpack.c.h.b16 %v2034
        %v3341 = vunpack.c.l.b16 %v2035
        %v3342 = vunpack.c.h.b16 %v2035
        %v3343 = vunpack.c.l.b16 %v2036
        %v3344 = vunpack.c.h.b16 %v2036
        %v3345 = vunpack.c.l.b16 %v2037
        %v3346 = vunpack.c.h.b16 %v2037
        %v3347 = vunpack.c.l.b16 %v2038
        %v3348 = vunpack.c.h.b16 %v2038
        %v3349 = vunpack.c.l.b16 %v2039
        %v3350 = vunpack.c.h.b16 %v2039
        %v3351 = vunpack.c.l.b16 %v2040
        %v3352 = vunpack.c.h.b16 %v2040
        %v3353 = vunpack.c.l.b16 %v2041
        %v3354 = vunpack.c.h.b16 %v2041
        %v3355 = vunpack.c.l.b16 %v2042
        %v3356 = vunpack.c.h.b16 %v2042
        %v3357 = vunpack.c.l.b16 %v2043
        %v3358 = vunpack.c.h.b16 %v2043
        %v3359 = vunpack.c.l.b16 %v2044
        %v3360 = vunpack.c.h.b16 %v2044
        %v3361 = vunpack.c.l.b16 %v2045
        %v3362 = vunpack.c.h.b16 %v2045
        %v3363 = vunpack.c.l.b16 %v2046
        %v3364 = vunpack.c.h.b16 %v2046
        %v3365 = vunpack.c.l.b16 %v2047
        %v3366 = vunpack.c.h.b16 %v2047
        %v3367 = vunpack.c.l.b16 %v2048
        %v3368 = vunpack.c.h.b16 %v2048
        %v3369 = vunpack.c.l.b16 %v2049
        %v3370 = vunpack.c.h.b16 %v2049
        %v3371 = vunpack.c.l.b16 %v2050
        %v3372 = vunpack.c.h.b16 %v2050
        %v3373 = vunpack.c.l.b16 %v2051
        %v3374 = vunpack.c.h.b16 %v2051
        %v3375 = vunpack.c.l.b16 %v2052
        %v3376 = vunpack.c.h.b16 %v2052
        %v3377 = vunpack.c.l.b16 %v2053
        %v3378 = vunpack.c.h.b16 %v2053
        %v3379 = vunpack.c.l.b16 %v2054
        %v3380 = vunpack.c.h.b16 %v2054
        %v3381 = vunpack.c.l.b16 %v2055
        %v3382 = vunpack.c.h.b16 %v2055
        %v3383 = vunpack.c.l.b16 %v2056
        %v3384 = vunpack.c.h.b16 %v2056
        %v3385 = vunpack.c.l.b16 %v2057
        %v3386 = vunpack.c.h.b16 %v2057
        %v3387 = vunpack.c.l.b16 %v2058
        %v3388 = vunpack.c.h.b16 %v2058
        %v3389 = vunpack.c.l.b16 %v2059
        %v3390 = vunpack.c.h.b16 %v2059
        %v3391 = vunpack.c.l.b16 %v2060
        %v3392 = vunpack.c.h.b16 %v2060
        %v3393 = vunpack.c.l.b16 %v2061
        %v3394 = vunpack.c.h.b16 %v2061
        %v3395 = vunpack.c.l.b16 %v2062
        %v3396 = vunpack.c.h.b16 %v2062
        %v3397 = vunpack.c.l.b16 %v2063
        %v3398 = vunpack.c.h.b16 %v2063
        %v3399 = vunpack.c.l.b16 %v2064
        %v3400 = vunpack.c.h.b16 %v2064
        %v3401 = vunpack.c.l.b16 %v2065
        %v3402 = vunpack.c.h.b16 %v2065
        %v3403 = vunpack.c.l.b16 %v2066
        %v3404 = vunpack.c.h.b16 %v2066
        %v3405 = vunpack.c.l.b16 %v2067
        %v3406 = vunpack.c.h.b16 %v2067
        %v3407 = vunpack.c.l.b16 %v2068
        %v3408 = vunpack.c.h.b16 %v2068
        %v3409 = vunpack.c.l.b16 %v2069
        %v3410 = vunpack.c.h.b16 %v2069
        %v3411 = vunpack.c.l.b16 %v2070
        %v3412 = vunpack.c.h.b16 %v2070
        %v3413 = vunpack.c.l.b16 %v2071
        %v3414 = vunpack.c.h.b16 %v2071
        %v3415 = vunpack.c.l.b16 %v2072
        %v3416 = vunpack.c.h.b16 %v2072
        %v3417 = vunpack.c.l.b16 %v2073
        %v3418 = vunpack.c.h.b16 %v2073
        %v3419 = vunpack.c.l.b16 %v2074
        %v3420 = vunpack.c.h.b16 %v2074
        %v3421 = vunpack.c.l.b16 %v2075
        %v3422 = vunpack.c.h.b16 %v2075
        %v3423 = vunpack.c.l.b16 %v2076
        %v3424 = vunpack.c.h.b16 %v2076
        %v3425 = vunpack.c.l.b16 %v2077
        %v3426 = vunpack.c.h.b16 %v2077
        %v3427 = vunpack.c.l.b16 %v2078
        %v3428 = vunpack.c.h.b16 %v2078
        %v3429 = vunpack.c.l.b16 %v2079
        %v3430 = vunpack.c.h.b16 %v2079
        %v3431 = vunpack.c.l.b16 %v2080
        %v3432 = vunpack.c.h.b16 %v2080
        %v3433 = vunpack.c.l.b16 %v2081
        %v3434 = vunpack.c.h.b16 %v2081
        %v3435 = vunpack.c.l.b16 %v2082
        %v3436 = vunpack.c.h.b16 %v2082
        %v3437 = vunpack.c.l.b16 %v2083
        %v3438 = vunpack.c.h.b16 %v2083
        %v3439 = vunpack.c.l.b16 %v2084
        %v3440 = vunpack.c.h.b16 %v2084
        %v3441 = vunpack.c.l.b16 %v2085
        %v3442 = vunpack.c.h.b16 %v2085
        %v3443 = vunpack.c.l.b16 %v2086
        %v3444 = vunpack.c.h.b16 %v2086
        %v3445 = vunpack.c.l.b16 %v2087
        %v3446 = vunpack.c.h.b16 %v2087
        %v3447 = vunpack.c.l.b16 %v2088
        %v3448 = vunpack.c.h.b16 %v2088
        %v3449 = vunpack.c.l.b16 %v2089
        %v3450 = vunpack.c.h.b16 %v2089
        %v3451 = vunpack.c.l.b16 %v2090
        %v3452 = vunpack.c.h.b16 %v2090
        %v3453 = vunpack.c.l.b16 %v2091
        %v3454 = vunpack.c.h.b16 %v2091
        %v3455 = vunpack.c.l.b16 %v2092
        %v3456 = vunpack.c.h.b16 %v2092
        %v3457 = vunpack.c.l.b16 %v2093
        %v3458 = vunpack.c.h.b16 %v2093
        %v3459 = vunpack.c.l.b16 %v2094
        %v3460 = vunpack.c.h.b16 %v2094
        %v3461 = vunpack.c.l.b16 %v2095
        %v3462 = vunpack.c.h.b16 %v2095
        %v3463 = vunpack.c.l.b16 %v2096
        %v3464 = vunpack.c.h.b16 %v2096
        %v3465 = vunpack.c.l.b16 %v2097
        %v3466 = vunpack.c.h.b16 %v2097
        %v3467 = vunpack.c.l.b16 %v2098
        %v3468 = vunpack.c.h.b16 %v2098
        %v3469 = vunpack.c.l.b16 %v2099
        %v3470 = vunpack.c.h.b16 %v2099
        %v3471 = vunpack.c.l.b16 %v2100
        %v3472 = vunpack.c.h.b16 %v2100
        %v3473 = vunpack.c.l.b16 %v2101
        %v3474 = vunpack.c.h.b16 %v2101
        %v3475 = vunpack.c.l.b16 %v2102
        %v3476 = vunpack.c.h.b16 %v2102
        %v3477 = vunpack.c.l.b16 %v2103
        %v3478 = vunpack.c.h.b16 %v2103
        %v3479 = vunpack.c.l.b16 %v2104
        %v3480 = vunpack.c.h.b16 %v2104
        %v3481 = vunpack.c.l.b16 %v2105
        %v3482 = vunpack.c.h.b16 %v2105
        %v3483 = vunpack.c.l.b16 %v2106
        %v3484 = vunpack.c.h.b16 %v2106
        %v3485 = vunpack.c.l.b16 %v2107
        %v3486 = vunpack.c.h.b16 %v2107
        %v3487 = vunpack.c.l.b16 %v2108
        %v3488 = vunpack.c.h.b16 %v2108
        %v3489 = vunpack.c.l.b16 %v2109
        %v3490 = vunpack.c.h.b16 %v2109
        %v3491 = vunpack.c.l.b16 %v2110
        %v3492 = vunpack.c.h.b16 %v2110
        %v3493 = vunpack.c.l.b16 %v2111
        %v3494 = vunpack.c.h.b16 %v2111
        %v3495 = vunpack.c.l.b16 %v2112
        %v3496 = vunpack.c.h.b16 %v2112
        %v3497 = vunpack.c.l.b16 %v2113
        %v3498 = vunpack.c.h.b16 %v2113
        %v3499 = vunpack.c.l.b16 %v2114
        %v3500 = vunpack.c.h.b16 %v2114
        %v3501 = vunpack.c.l.b16 %v2115
        %v3502 = vunpack.c.h.b16 %v2115
        %v3503 = vunpack.c.l.b16 %v2116
        %v3504 = vunpack.c.h.b16 %v2116
        %v3505 = vunpack.c.l.b16 %v2117
        %v3506 = vunpack.c.h.b16 %v2117
        %v3507 = vunpack.c.l.b16 %v2118
        %v3508 = vunpack.c.h.b16 %v2118
        %v3509 = vunpack.c.l.b16 %v2119
        %v3510 = vunpack.c.h.b16 %v2119
        %v3511 = vunpack.c.l.b16 %v2120
        %v3512 = vunpack.c.h.b16 %v2120
        %v3513 = vunpack.c.l.b16 %v2121
        %v3514 = vunpack.c.h.b16 %v2121
        %v3515 = vunpack.c.l.b16 %v2122
        %v3516 = vunpack.c.h.b16 %v2122
        %v3517 = vunpack.c.l.b16 %v2123
        %v3518 = vunpack.c.h.b16 %v2123
        %v3519 = vunpack.c.l.b16 %v2124
        %v3520 = vunpack.c.h.b16 %v2124
        %v3521 = vunpack.c.l.b16 %v2125
        %v3522 = vunpack.c.h.b16 %v2125
        %v3523 = vunpack.c.l.b16 %v2126
        %v3524 = vunpack.c.h.b16 %v2126
        %v3525 = vunpack.c.l.b16 %v2127
        %v3526 = vunpack.c.h.b16 %v2127
        %v3527 = vunpack.c.l.b16 %v2128
        %v3528 = vunpack.c.h.b16 %v2128
        %v3529 = vunpack.c.l.b16 %v2129
        %v3530 = vunpack.c.h.b16 %v2129
        %v3531 = vunpack.c.l.b16 %v2130
        %v3532 = vunpack.c.h.b16 %v2130
        %v3533 = vunpack.c.l.b16 %v2131
        %v3534 = vunpack.c.h.b16 %v2131
        %v3535 = vunpack.c.l.b16 %v2132
        %v3536 = vunpack.c.h.b16 %v2132
        %v3537 = vunpack.c.l.b16 %v2133
        %v3538 = vunpack.c.h.b16 %v2133
        %v3539 = vunpack.c.l.b16 %v2134
        %v3540 = vunpack.c.h.b16 %v2134
        %v3541 = vunpack.c.l.b16 %v2135
        %v3542 = vunpack.c.h.b16 %v2135
        %v3543 = vunpack.c.l.b16 %v2136
        %v3544 = vunpack.c.h.b16 %v2136
        %v3545 = vunpack.c.l.b16 %v2137
        %v3546 = vunpack.c.h.b16 %v2137
        %v3547 = vunpack.c.l.b16 %v2138
        %v3548 = vunpack.c.h.b16 %v2138
        %v3549 = vunpack.c.l.b16 %v2139
        %v3550 = vunpack.c.h.b16 %v2139
        %v3551 = vunpack.c.l.b16 %v2140
        %v3552 = vunpack.c.h.b16 %v2140
        %v3553 = vunpack.c.l.b16 %v2141
        %v3554 = vunpack.c.h.b16 %v2141
        %v3555 = vunpack.c.l.b16 %v2142
        %v3556 = vunpack.c.h.b16 %v2142
        %v3557 = vunpack.c.l.b16 %v2143
        %v3558 = vunpack.c.h.b16 %v2143
        %v3559 = vunpack.c.l.b16 %v2144
        %v3560 = vunpack.c.h.b16 %v2144
        %v3561 = vunpack.c.l.b16 %v2145
        %v3562 = vunpack.c.h.b16 %v2145
        %v3563 = vunpack.c.l.b16 %v2146
        %v3564 = vunpack.c.h.b16 %v2146
        %v3565 = vunpack.c.l.b16 %v2147
        %v3566 = vunpack.c.h.b16 %v2147
        %v3567 = vunpack.c.l.b16 %v2148
        %v3568 = vunpack.c.h.b16 %v2148
        %v3569 = vunpack.c.l.b16 %v2149
        %v3570 = vunpack.c.h.b16 %v2149
        %v3571 = vunpack.c.l.b16 %v2150
        %v3572 = vunpack.c.h.b16 %v2150
        %v3573 = vunpack.c.l.b16 %v2151
        %v3574 = vunpack.c.h.b16 %v2151
        %v3575 = vunpack.c.l.b16 %v2152
        %v3576 = vunpack.c.h.b16 %v2152
        %v3577 = vunpack.c.l.b16 %v2153
        %v3578 = vunpack.c.h.b16 %v2153
        %v3579 = vunpack.c.l.b16 %v2154
        %v3580 = vunpack.c.h.b16 %v2154
        %v3581 = vunpack.c.l.b16 %v2155
        %v3582 = vunpack.c.h.b16 %v2155
        %v3583 = vunpack.c.l.b16 %v2156
        %v3584 = vunpack.c.h.b16 %v2156
        %v3585 = vunpack.c.l.b16 %v2157
        %v3586 = vunpack.c.h.b16 %v2157
        %v3587 = vunpack.c.l.b16 %v2158
        %v3588 = vunpack.c.h.b16 %v2158
        %v3589 = vunpack.c.l.b16 %v2159
        %v3590 = vunpack.c.h.b16 %v2159
        %v3591 = vunpack.c.l.b16 %v2160
        %v3592 = vunpack.c.h.b16 %v2160
        %v3593 = vunpack.c.l.b16 %v2161
        %v3594 = vunpack.c.h.b16 %v2161
        %v3595 = vunpack.c.l.b16 %v2162
        %v3596 = vunpack.c.h.b16 %v2162
        %v3597 = vunpack.c.l.b16 %v2163
        %v3598 = vunpack.c.h.b16 %v2163
        %v3599 = vunpack.c.l.b16 %v2164
        %v3600 = vunpack.c.h.b16 %v2164
        %v3601 = vunpack.c.l.b16 %v2165
        %v3602 = vunpack.c.h.b16 %v2165
        %v3603 = vunpack.c.l.b16 %v2166
        %v3604 = vunpack.c.h.b16 %v2166
        %v3605 = vunpack.c.l.b16 %v2167
        %v3606 = vunpack.c.h.b16 %v2167
        %v3607 = vunpack.c.l.b16 %v2168
        %v3608 = vunpack.c.h.b16 %v2168
        %v3609 = vunpack.c.l.b16 %v2169
        %v3610 = vunpack.c.h.b16 %v2169
        %v3611 = vunpack.c.l.b16 %v2170
        %v3612 = vunpack.c.h.b16 %v2170
        %v3613 = vunpack.c.l.b16 %v2171
        %v3614 = vunpack.c.h.b16 %v2171
        %v3615 = vunpack.c.l.b16 %v2172
        %v3616 = vunpack.c.h.b16 %v2172
        %v3617 = vunpack.c.l.b16 %v2173
        %v3618 = vunpack.c.h.b16 %v2173
        %v3619 = vunpack.c.l.b16 %v2174
        %v3620 = vunpack.c.h.b16 %v2174
        %v3621 = vunpack.c.l.b16 %v2175
        %v3622 = vunpack.c.h.b16 %v2175
        %v3623 = vunpack.c.l.b16 %v2176
        %v3624 = vunpack.c.h.b16 %v2176
        %v3625 = vunpack.c.l.b16 %v2177
        %v3626 = vunpack.c.h.b16 %v2177
        %v3627 = vunpack.c.l.b16 %v2178
        %v3628 = vunpack.c.h.b16 %v2178
        %v3629 = vunpack.c.l.b16 %v2179
        %v3630 = vunpack.c.h.b16 %v2179
        %v3631 = vunpack.c.l.b16 %v2180
        %v3632 = vunpack.c.h.b16 %v2180
        %v3633 = vunpack.c.l.b16 %v2181
        %v3634 = vunpack.c.h.b16 %v2181
        %v3635 = vunpack.c.l.b16 %v2182
        %v3636 = vunpack.c.h.b16 %v2182
        %v3637 = vunpack.c.l.b16 %v2183
        %v3638 = vunpack.c.h.b16 %v2183
        %v3639 = vunpack.c.l.b16 %v2184
        %v3640 = vunpack.c.h.b16 %v2184
        %v3641 = vunpack.c.l.b16 %v2185
        %v3642 = vunpack.c.h.b16 %v2185
        %v3643 = vunpack.c.l.b16 %v2186
        %v3644 = vunpack.c.h.b16 %v2186
        %v3645 = vunpack.c.l.b16 %v2187
        %v3646 = vunpack.c.h.b16 %v2187
        %v3647 = vunpack.c.l.b16 %v2188
        %v3648 = vunpack.c.h.b16 %v2188
        %v3649 = vunpack.c.l.b16 %v2189
        %v3650 = vunpack.c.h.b16 %v2189
        %v3651 = vunpack.c.l.b16 %v2190
        %v3652 = vunpack.c.h.b16 %v2190
        %v3653 = vunpack.c.l.b16 %v2191
        %v3654 = vunpack.c.h.b16 %v2191
        %v3655 = vunpack.c.l.b16 %v2192
        %v3656 = vunpack.c.h.b16 %v2192
        %v3657 = vunpack.c.l.b16 %v2193
        %v3658 = vunpack.c.h.b16 %v2193
        %v3659 = vunpack.c.l.b16 %v2194
        %v3660 = vunpack.c.h.b16 %v2194
        %v3661 = vunpack.c.l.b16 %v2195
        %v3662 = vunpack.c.h.b16 %v2195
        %v3663 = vunpack.c.l.b16 %v2196
        %v3664 = vunpack.c.h.b16 %v2196
        %v3665 = vunpack.c.l.b16 %v2197
        %v3666 = vunpack.c.h.b16 %v2197
        %v3667 = vunpack.c.l.b16 %v2198
        %v3668 = vunpack.c.h.b16 %v2198
        %v3669 = vunpack.c.l.b16 %v2199
        %v3670 = vunpack.c.h.b16 %v2199
        %v3671 = vunpack.c.l.b16 %v2200
        %v3672 = vunpack.c.h.b16 %v2200
        %v3673 = vunpack.c.l.b16 %v2201
        %v3674 = vunpack.c.h.b16 %v2201
        %v3675 = vunpack.c.l.b16 %v2202
        %v3676 = vunpack.c.h.b16 %v2202
        %v3677 = vunpack.c.l.b16 %v2203
        %v3678 = vunpack.c.h.b16 %v2203
        %v3679 = vunpack.c.l.b16 %v2204
        %v3680 = vunpack.c.h.b16 %v2204
        %v3681 = vunpack.c.l.b16 %v2205
        %v3682 = vunpack.c.h.b16 %v2205
        %v3683 = vunpack.c.l.b16 %v2206
        %v3684 = vunpack.c.h.b16 %v2206
        %v3685 = vunpack.c.l.b16 %v2207
        %v3686 = vunpack.c.h.b16 %v2207
        %v3687 = vunpack.c.l.b16 %v2208
        %v3688 = vunpack.c.h.b16 %v2208
        %v3689 = vunpack.c.l.b16 %v2209
        %v3690 = vunpack.c.h.b16 %v2209
        %v3691 = vunpack.c.l.b16 %v2210
        %v3692 = vunpack.c.h.b16 %v2210
        %v3693 = vunpack.c.l.b16 %v2211
        %v3694 = vunpack.c.h.b16 %v2211
        %v3695 = vunpack.c.l.b16 %v2212
        %v3696 = vunpack.c.h.b16 %v2212
        %v3697 = vunpack.c.l.b16 %v2213
        %v3698 = vunpack.c.h.b16 %v2213
        %v3699 = vunpack.c.l.b16 %v2214
        %v3700 = vunpack.c.h.b16 %v2214
        %v3701 = vunpack.c.l.b16 %v2215
        %v3702 = vunpack.c.h.b16 %v2215
        %v3703 = vunpack.c.l.b16 %v2216
        %v3704 = vunpack.c.h.b16 %v2216
        %v3705 = vunpack.c.l.b16 %v2217
        %v3706 = vunpack.c.h.b16 %v2217
        %v3707 = vunpack.c.l.b16 %v2218
        %v3708 = vunpack.c.h.b16 %v2218
        %v3709 = vunpack.c.l.b16 %v2219
        %v3710 = vunpack.c.h.b16 %v2219
        %v3711 = vunpack.c.l.b16 %v2220
        %v3712 = vunpack.c.h.b16 %v2220
        %v3713 = vunpack.c.l.b16 %v2221
        %v3714 = vunpack.c.h.b16 %v2221
        %v3715 = vunpack.c.l.b16 %v2222
        %v3716 = vunpack.c.h.b16 %v2222
        %v3717 = vunpack.c.l.b16 %v2223
        %v3718 = vunpack.c.h.b16 %v2223
        %v3719 = vunpack.c.l.b16 %v2224
        %v3720 = vunpack.c.h.b16 %v2224
        %v3721 = vunpack.c.l.b16 %v2225
        %v3722 = vunpack.c.h.b16 %v2225
        %v3723 = vunpack.c.l.b16 %v2226
        %v3724 = vunpack.c.h.b16 %v2226
        %v3725 = vunpack.c.l.b16 %v2227
        %v3726 = vunpack.c.h.b16 %v2227
        %v3727 = vunpack.c.l.b16 %v2228
        %v3728 = vunpack.c.h.b16 %v2228
        %v3729 = vunpack.c.l.b16 %v2229
        %v3730 = vunpack.c.h.b16 %v2229
        %v3731 = vunpack.c.l.b16 %v2230
        %v3732 = vunpack.c.h.b16 %v2230
        %v3733 = vunpack.c.l.b16 %v2231
        %v3734 = vunpack.c.h.b16 %v2231
        %v3735 = vunpack.c.l.b16 %v2232
        %v3736 = vunpack.c.h.b16 %v2232
        %v3737 = vunpack.c.l.b16 %v2233
        %v3738 = vunpack.c.h.b16 %v2233
        %v3739 = vunpack.c.l.b16 %v2234
        %v3740 = vunpack.c.h.b16 %v2234
        %v3741 = vunpack.c.l.b16 %v2235
        %v3742 = vunpack.c.h.b16 %v2235
        %v3743 = vunpack.c.l.b16 %v2236
        %v3744 = vunpack.c.h.b16 %v2236
        %v3745 = vunpack.c.l.b16 %v2237
        %v3746 = vunpack.c.h.b16 %v2237
        %v3747 = vunpack.c.l.b16 %v2238
        %v3748 = vunpack.c.h.b16 %v2238
        %v3749 = vunpack.c.l.b16 %v2239
        %v3750 = vunpack.c.h.b16 %v2239
        %v3751 = vunpack.c.l.b16 %v2240
        %v3752 = vunpack.c.h.b16 %v2240
        %v3753 = vunpack.c.l.b16 %v2241
        %v3754 = vunpack.c.h.b16 %v2241
        %v3755 = vunpack.c.l.b16 %v2242
        %v3756 = vunpack.c.h.b16 %v2242
        %v3757 = vunpack.c.l.b16 %v2243
        %v3758 = vunpack.c.h.b16 %v2243
        %v3759 = vunpack.c.l.b16 %v2244
        %v3760 = vunpack.c.h.b16 %v2244
        %v3761 = vunpack.c.l.b16 %v2245
        %v3762 = vunpack.c.h.b16 %v2245
        %v3763 = vunpack.c.l.b16 %v2246
        %v3764 = vunpack.c.h.b16 %v2246
        %v3765 = vunpack.c.l.b16 %v2247
        %v3766 = vunpack.c.h.b16 %v2247
        %v3767 = vunpack.c.l.b16 %v2248
        %v3768 = vunpack.c.h.b16 %v2248
        %v3769 = vunpack.c.l.b16 %v2249
        %v3770 = vunpack.c.h.b16 %v2249
        %v3771 = vunpack.c.l.b16 %v2250
        %v3772 = vunpack.c.h.b16 %v2250
        %v3773 = vunpack.c.l.b16 %v2251
        %v3774 = vunpack.c.h.b16 %v2251
        %v3775 = vunpack.c.l.b16 %v2252
        %v3776 = vunpack.c.h.b16 %v2252
        %v3777 = vunpack.c.l.b16 %v2253
        %v3778 = vunpack.c.h.b16 %v2253
        %v3779 = vunpack.c.l.b16 %v2254
        %v3780 = vunpack.c.h.b16 %v2254
        %v3781 = vunpack.c.l.b16 %v2255
        %v3782 = vunpack.c.h.b16 %v2255
        %v3783 = vunpack.c.l.b16 %v2256
        %v3784 = vunpack.c.h.b16 %v2256
        %v3785 = vunpack.c.l.b16 %v2257
        %v3786 = vunpack.c.h.b16 %v2257
        %v3787 = vunpack.c.l.b16 %v2258
        %v3788 = vunpack.c.h.b16 %v2258
        %v3789 = vunpack.c.l.b16 %v2259
        %v3790 = vunpack.c.h.b16 %v2259
        %v3791 = vunpack.c.l.b16 %v2260
        %v3792 = vunpack.c.h.b16 %v2260
        %v3793 = vunpack.c.l.b16 %v2261
        %v3794 = vunpack.c.h.b16 %v2261
        %v3795 = vunpack.c.l.b16 %v2262
        %v3796 = vunpack.c.h.b16 %v2262
        %v3797 = vunpack.c.l.b16 %v2263
        %v3798 = vunpack.c.h.b16 %v2263
        %v3799 = vunpack.c.l.b16 %v2264
        %v3800 = vunpack.c.h.b16 %v2264
        %v3801 = vunpack.c.l.b16 %v2265
        %v3802 = vunpack.c.h.b16 %v2265
        %v3803 = vunpack.c.l.b16 %v2266
        %v3804 = vunpack.c.h.b16 %v2266
        %v3805 = vunpack.c.l.b16 %v2267
        %v3806 = vunpack.c.h.b16 %v2267
        %v3807 = vunpack.c.l.b16 %v2268
        %v3808 = vunpack.c.h.b16 %v2268
        %v3809 = vunpack.c.l.b16 %v2269
        %v3810 = vunpack.c.h.b16 %v2269
        %v3811 = vunpack.c.l.b16 %v2270
        %v3812 = vunpack.c.h.b16 %v2270
        %v3813 = vunpack.c.l.b16 %v2271
        %v3814 = vunpack.c.h.b16 %v2271
        %v3815 = vunpack.c.l.b16 %v2272
        %v3816 = vunpack.c.h.b16 %v2272
        %v3817 = vunpack.c.l.b16 %v2273
        %v3818 = vunpack.c.h.b16 %v2273
        %v3819 = vunpack.c.l.b16 %v2274
        %v3820 = vunpack.c.h.b16 %v2274
        %v3821 = vunpack.c.l.b16 %v2275
        %v3822 = vunpack.c.h.b16 %v2275
        %v3823 = vunpack.c.l.b16 %v2276
        %v3824 = vunpack.c.h.b16 %v2276
        %v3825 = vunpack.c.l.b16 %v2277
        %v3826 = vunpack.c.h.b16 %v2277
        %v3827 = vunpack.c.l.b16 %v2278
        %v3828 = vunpack.c.h.b16 %v2278
        %v3829 = vunpack.c.l.b16 %v2279
        %v3830 = vunpack.c.h.b16 %v2279
        %v3831 = vunpack.c.l.b16 %v2280
        %v3832 = vunpack.c.h.b16 %v2280
        %v3833 = vunpack.c.l.b16 %v2281
        %v3834 = vunpack.c.h.b16 %v2281
        %v3835 = vunpack.c.l.b16 %v2282
        %v3836 = vunpack.c.h.b16 %v2282
        %v3837 = vpack.c.b16 %v2821, %v2813
        %v3838 = vpack.c.b16 %v2822, %v2814
        %v3839 = vpack.c.b16 %v2823, %v2815
        %v3840 = vpack.c.b16 %v2824, %v2816
        %v3841 = vpack.c.b16 %v2825, %v2817
        %v3842 = vpack.c.b16 %v2826, %v2818
        %v3843 = vpack.c.b16 %v2827, %v2819
        %v3844 = vpack.c.b16 %v2828, %v2820
        %v3845 = vpack.c.b16 %v2837, %v2829
        %v3846 = vpack.c.b16 %v2838, %v2830
        %v3847 = vpack.c.b16 %v2839, %v2831
        %v3848 = vpack.c.b16 %v2840, %v2832
        %v3849 = vpack.c.b16 %v2841, %v2833
        %v3850 = vpack.c.b16 %v2842, %v2834
        %v3851 = vpack.c.b16 %v2843, %v2835
        %v3852 = vpack.c.b16 %v2844, %v2836
        %v3853 = vpack.c.b16 %v2853, %v2845
        %v3854 = vpack.c.b16 %v2854, %v2846
        %v3855 = vpack.c.b16 %v2855, %v2847
        %v3856 = vpack.c.b16 %v2856, %v2848
        %v3857 = vpack.c.b16 %v2857, %v2849
        %v3858 = vpack.c.b16 %v2858, %v2850
        %v3859 = vpack.c.b16 %v2859, %v2851
        %v3860 = vpack.c.b16 %v2860, %v2852
        %v3861 = vpack.c.b16 %v2869, %v2861
        %v3862 = vpack.c.b16 %v2870, %v2862
        %v3863 = vpack.c.b16 %v2871, %v2863
        %v3864 = vpack.c.b16 %v2872, %v2864
        %v3865 = vpack.c.b16 %v2873, %v2865
        %v3866 = vpack.c.b16 %v2874, %v2866
        %v3867 = vpack.c.b16 %v2875, %v2867
        %v3868 = vpack.c.b16 %v2876, %v2868
        %v3869 = vpack.c.b16 %v2885, %v2877
        %v3870 = vpack.c.b16 %v2886, %v2878
        %v3871 = vpack.c.b16 %v2887, %v2879
        %v3872 = vpack.c.b16 %v2888, %v2880
        %v3873 = vpack.c.b16 %v2889, %v2881
        %v3874 = vpack.c.b16 %v2890, %v2882
        %v3875 = vpack.c.b16 %v2891, %v2883
        %v3876 = vpack.c.b16 %v2892, %v2884
        %v3877 = vpack.c.b16 %v2901, %v2893
        %v3878 = vpack.c.b16 %v2902, %v2894
        %v3879 = vpack.c.b16 %v2903, %v2895
        %v3880 = vpack.c.b16 %v2904, %v2896
        %v3881 = vpack.c.b16 %v2905, %v2897
        %v3882 = vpack.c.b16 %v2906, %v2898
        %v3883 = vpack.c.b16 %v2907, %v2899
        %v3884 = vpack.c.b16 %v2908, %v2900
        %v3885 = vpack.c.b16 %v2917, %v2909
        %v3886 = vpack.c.b16 %v2918, %v2910
        %v3887 = vpack.c.b16 %v2919, %v2911
        %v3888 = vpack.c.b16 %v2920, %v2912
        %v3889 = vpack.c.b16 %v2921, %v2913
        %v3890 = vpack.c.b16 %v2922, %v2914
        %v3891 = vpack.c.b16 %v2923, %v2915
        %v3892 = vpack.c.b16 %v2924, %v2916
        %v3893 = vpack.c.b16 %v2933, %v2925
        %v3894 = vpack.c.b16 %v2934, %v2926
        %v3895 = vpack.c.b16 %v2935, %v2927
        %v3896 = vpack.c.b16 %v2936, %v2928
        %v3897 = vpack.c.b16 %v2937, %v2929
        %v3898 = vpack.c.b16 %v2938, %v2930
        %v3899 = vpack.c.b16 %v2939, %v2931
        %v3900 = vpack.c.b16 %v2940, %v2932
        %v3901 = vpack.c.b16 %v2949, %v2941
        %v3902 = vpack.c.b16 %v2950, %v2942
        %v3903 = vpack.c.b16 %v2951, %v2943
        %v3904 = vpack.c.b16 %v2952, %v2944
        %v3905 = vpack.c.b16 %v2953, %v2945
        %v3906 = vpack.c.b16 %v2954, %v2946
        %v3907 = vpack.c.b16 %v2955, %v2947
        %v3908 = vpack.c.b16 %v2956, %v2948
        %v3909 = vpack.c.b16 %v2965, %v2957
        %v3910 = vpack.c.b16 %v2966, %v2958
        %v3911 = vpack.c.b16 %v2967, %v2959
        %v3912 = vpack.c.b16 %v2968, %v2960
        %v3913 = vpack.c.b16 %v2969, %v2961
        %v3914 = vpack.c.b16 %v2970, %v2962
        %v3915 = vpack.c.b16 %v2971, %v2963
        %v3916 = vpack.c.b16 %v2972, %v2964
        %v3917 = vpack.c.b16 %v2981, %v2973
        %v3918 = vpack.c.b16 %v2982, %v2974
        %v3919 = vpack.c.b16 %v2983, %v2975
        %v3920 = vpack.c.b16 %v2984, %v2976
        %v3921 = vpack.c.b16 %v2985, %v2977
        %v3922 = vpack.c.b16 %v2986, %v2978
        %v3923 = vpack.c.b16 %v2987, %v2979
        %v3924 = vpack.c.b16 %v2988, %v2980
        %v3925 = vpack.c.b16 %v2997, %v2989
        %v3926 = vpack.c.b16 %v2998, %v2990
        %v3927 = vpack.c.b16 %v2999, %v2991
        %v3928 = vpack.c.b16 %v3000, %v2992
        %v3929 = vpack.c.b16 %v3001, %v2993
        %v3930 = vpack.c.b16 %v3002, %v2994
        %v3931 = vpack.c.b16 %v3003, %v2995
        %v3932 = vpack.c.b16 %v3004, %v2996
        %v3933 = vpack.c.b16 %v3013, %v3005
        %v3934 = vpack.c.b16 %v3014, %v3006
        %v3935 = vpack.c.b16 %v3015, %v3007
        %v3936 = vpack.c.b16 %v3016, %v3008
        %v3937 = vpack.c.b16 %v3017, %v3009
        %v3938 = vpack.c.b16 %v3018, %v3010
        %v3939 = vpack.c.b16 %v3019, %v3011
        %v3940 = vpack.c.b16 %v3020, %v3012
        %v3941 = vpack.c.b16 %v3029, %v3021
        %v3942 = vpack.c.b16 %v3030, %v3022
        %v3943 = vpack.c.b16 %v3031, %v3023
        %v3944 = vpack.c.b16 %v3032, %v3024
        %v3945 = vpack.c.b16 %v3033, %v3025
        %v3946 = vpack.c.b16 %v3034, %v3026
        %v3947 = vpack.c.b16 %v3035, %v3027
        %v3948 = vpack.c.b16 %v3036, %v3028
        %v3949 = vpack.c.b16 %v3045, %v3037
        %v3950 = vpack.c.b16 %v3046, %v3038
        %v3951 = vpack.c.b16 %v3047, %v3039
        %v3952 = vpack.c.b16 %v3048, %v3040
        %v3953 = vpack.c.b16 %v3049, %v3041
        %v3954 = vpack.c.b16 %v3050, %v3042
        %v3955 = vpack.c.b16 %v3051, %v3043
        %v3956 = vpack.c.b16 %v3052, %v3044
        %v3957 = vpack.c.b16 %v3061, %v3053
        %v3958 = vpack.c.b16 %v3062, %v3054
        %v3959 = vpack.c.b16 %v3063, %v3055
        %v3960 = vpack.c.b16 %v3064, %v3056
        %v3961 = vpack.c.b16 %v3065, %v3057
        %v3962 = vpack.c.b16 %v3066, %v3058
        %v3963 = vpack.c.b16 %v3067, %v3059
        %v3964 = vpack.c.b16 %v3068, %v3060
        %v3965 = vpack.c.b16 %v3077, %v3069
        %v3966 = vpack.c.b16 %v3078, %v3070
        %v3967 = vpack.c.b16 %v3079, %v3071
        %v3968 = vpack.c.b16 %v3080, %v3072
        %v3969 = vpack.c.b16 %v3081, %v3073
        %v3970 = vpack.c.b16 %v3082, %v3074
        %v3971 = vpack.c.b16 %v3083, %v3075
        %v3972 = vpack.c.b16 %v3084, %v3076
        %v3973 = vpack.c.b16 %v3093, %v3085
        %v3974 = vpack.c.b16 %v3094, %v3086
        %v3975 = vpack.c.b16 %v3095, %v3087
        %v3976 = vpack.c.b16 %v3096, %v3088
        %v3977 = vpack.c.b16 %v3097, %v3089
        %v3978 = vpack.c.b16 %v3098, %v3090
        %v3979 = vpack.c.b16 %v3099, %v3091
        %v3980 = vpack.c.b16 %v3100, %v3092
        %v3981 = vpack.c.b16 %v3109, %v3101
        %v3982 = vpack.c.b16 %v3110, %v3102
        %v3983 = vpack.c.b16 %v3111, %v3103
        %v3984 = vpack.c.b16 %v3112, %v3104
        %v3985 = vpack.c.b16 %v3113, %v3105
        %v3986 = vpack.c.b16 %v3114, %v3106
        %v3987 = vpack.c.b16 %v3115, %v3107
        %v3988 = vpack.c.b16 %v3116, %v3108
        %v3989 = vpack.c.b16 %v3125, %v3117
        %v3990 = vpack.c.b16 %v3126, %v3118
        %v3991 = vpack.c.b16 %v3127, %v3119
        %v3992 = vpack.c.b16 %v3128, %v3120
        %v3993 = vpack.c.b16 %v3129, %v3121
        %v3994 = vpack.c.b16 %v3130, %v3122
        %v3995 = vpack.c.b16 %v3131, %v3123
        %v3996 = vpack.c.b16 %v3132, %v3124
        %v3997 = vpack.c.b16 %v3141, %v3133
        %v3998 = vpack.c.b16 %v3142, %v3134
        %v3999 = vpack.c.b16 %v3143, %v3135
        %v4000 = vpack.c.b16 %v3144, %v3136
        %v4001 = vpack.c.b16 %v3145, %v3137
        %v4002 = vpack.c.b16 %v3146, %v3138
        %v4003 = vpack.c.b16 %v3147, %v3139
        %v4004 = vpack.c.b16 %v3148, %v3140
        %v4005 = vpack.c.b16 %v3157, %v3149
        %v4006 = vpack.c.b16 %v3158, %v3150
        %v4007 = vpack.c.b16 %v3159, %v3151
        %v4008 = vpack.c.b16 %v3160, %v3152
        %v4009 = vpack.c.b16 %v3161, %v3153
        %v4010 = vpack.c.b16 %v3162, %v3154
        %v4011 = vpack.c.b16 %v3163, %v3155
        %v4012 = vpack.c.b16 %v3164, %v3156
        %v4013 = vpack.c.b16 %v3173, %v3165
        %v4014 = vpack.c.b16 %v3174, %v3166
        %v4015 = vpack.c.b16 %v3175, %v3167
        %v4016 = vpack.c.b16 %v3176, %v3168
        %v4017 = vpack.c.b16 %v3177, %v3169
        %v4018 = vpack.c.b16 %v3178, %v3170
        %v4019 = vpack.c.b16 %v3179, %v3171
        %v4020 = vpack.c.b16 %v3180, %v3172
        %v4021 = vpack.c.b16 %v3189, %v3181
        %v4022 = vpack.c.b16 %v3190, %v3182
        %v4023 = vpack.c.b16 %v3191, %v3183
        %v4024 = vpack.c.b16 %v3192, %v3184
        %v4025 = vpack.c.b16 %v3193, %v3185
        %v4026 = vpack.c.b16 %v3194, %v3186
        %v4027 = vpack.c.b16 %v3195, %v3187
        %v4028 = vpack.c.b16 %v3196, %v3188
        %v4029 = vpack.c.b16 %v3205, %v3197
        %v4030 = vpack.c.b16 %v3206, %v3198
        %v4031 = vpack.c.b16 %v3207, %v3199
        %v4032 = vpack.c.b16 %v3208, %v3200
        %v4033 = vpack.c.b16 %v3209, %v3201
        %v4034 = vpack.c.b16 %v3210, %v3202
        %v4035 = vpack.c.b16 %v3211, %v3203
        %v4036 = vpack.c.b16 %v3212, %v3204
        %v4037 = vpack.c.b16 %v3221, %v3213
        %v4038 = vpack.c.b16 %v3222, %v3214
        %v4039 = vpack.c.b16 %v3223, %v3215
        %v4040 = vpack.c.b16 %v3224, %v3216
        %v4041 = vpack.c.b16 %v3225, %v3217
        %v4042 = vpack.c.b16 %v3226, %v3218
        %v4043 = vpack.c.b16 %v3227, %v3219
        %v4044 = vpack.c.b16 %v3228, %v3220
        %v4045 = vpack.c.b16 %v3237, %v3229
        %v4046 = vpack.c.b16 %v3238, %v3230
        %v4047 = vpack.c.b16 %v3239, %v3231
        %v4048 = vpack.c.b16 %v3240, %v3232
        %v4049 = vpack.c.b16 %v3241, %v3233
        %v4050 = vpack.c.b16 %v3242, %v3234
        %v4051 = vpack.c.b16 %v3243, %v3235
        %v4052 = vpack.c.b16 %v3244, %v3236
        %v4053 = vpack.c.b16 %v3253, %v3245
        %v4054 = vpack.c.b16 %v3254, %v3246
        %v4055 = vpack.c.b16 %v3255, %v3247
        %v4056 = vpack.c.b16 %v3256, %v3248
        %v4057 = vpack.c.b16 %v3257, %v3249
        %v4058 = vpack.c.b16 %v3258, %v3250
        %v4059 = vpack.c.b16 %v3259, %v3251
        %v4060 = vpack.c.b16 %v3260, %v3252
        %v4061 = vpack.c.b16 %v3269, %v3261
        %v4062 = vpack.c.b16 %v3270, %v3262
        %v4063 = vpack.c.b16 %v3271, %v3263
        %v4064 = vpack.c.b16 %v3272, %v3264
        %v4065 = vpack.c.b16 %v3273, %v3265
        %v4066 = vpack.c.b16 %v3274, %v3266
        %v4067 = vpack.c.b16 %v3275, %v3267
        %v4068 = vpack.c.b16 %v3276, %v3268
        %v4069 = vpack.c.b16 %v3285, %v3277
        %v4070 = vpack.c.b16 %v3286, %v3278
        %v4071 = vpack.c.b16 %v3287, %v3279
        %v4072 = vpack.c.b16 %v3288, %v3280
        %v4073 = vpack.c.b16 %v3289, %v3281
        %v4074 = vpack.c.b16 %v3290, %v3282
        %v4075 = vpack.c.b16 %v3291, %v3283
        %v4076 = vpack.c.b16 %v3292, %v3284
        %v4077 = vpack.c.b16 %v3301, %v3293
        %v4078 = vpack.c.b16 %v3302, %v3294
        %v4079 = vpack.c.b16 %v3303, %v3295
        %v4080 = vpack.c.b16 %v3304, %v3296
        %v4081 = vpack.c.b16 %v3305, %v3297
        %v4082 = vpack.c.b16 %v3306, %v3298
        %v4083 = vpack.c.b16 %v3307, %v3299
        %v4084 = vpack.c.b16 %v3308, %v3300
        %v4085 = vpack.c.b16 %v3317, %v3309
        %v4086 = vpack.c.b16 %v3318, %v3310
        %v4087 = vpack.c.b16 %v3319, %v3311
        %v4088 = vpack.c.b16 %v3320, %v3312
        %v4089 = vpack.c.b16 %v3321, %v3313
        %v4090 = vpack.c.b16 %v3322, %v3314
        %v4091 = vpack.c.b16 %v3323, %v3315
        %v4092 = vpack.c.b16 %v3324, %v3316
        %v4093 = vpack.c.b16 %v3333, %v3325
        %v4094 = vpack.c.b16 %v3334, %v3326
        %v4095 = vpack.c.b16 %v3335, %v3327
        %v4096 = vpack.c.b16 %v3336, %v3328
        %v4097 = vpack.c.b16 %v3337, %v3329
        %v4098 = vpack.c.b16 %v3338, %v3330
        %v4099 = vpack.c.b16 %v3339, %v3331
        %v4100 = vpack.c.b16 %v3340, %v3332
        %v4101 = vpack.c.b16 %v3349, %v3341
        %v4102 = vpack.c.b16 %v3350, %v3342
        %v4103 = vpack.c.b16 %v3351, %v3343
        %v4104 = vpack.c.b16 %v3352, %v3344
        %v4105 = vpack.c.b16 %v3353, %v3345
        %v4106 = vpack.c.b16 %v3354, %v3346
        %v4107 = vpack.c.b16 %v3355, %v3347
        %v4108 = vpack.c.b16 %v3356, %v3348
        %v4109 = vpack.c.b16 %v3365, %v3357
        %v4110 = vpack.c.b16 %v3366, %v3358
        %v4111 = vpack.c.b16 %v3367, %v3359
        %v4112 = vpack.c.b16 %v3368, %v3360
        %v4113 = vpack.c.b16 %v3369, %v3361
        %v4114 = vpack.c.b16 %v3370, %v3362
        %v4115 = vpack.c.b16 %v3371, %v3363
        %v4116 = vpack.c.b16 %v3372, %v3364
        %v4117 = vpack.c.b16 %v3381, %v3373
        %v4118 = vpack.c.b16 %v3382, %v3374
        %v4119 = vpack.c.b16 %v3383, %v3375
        %v4120 = vpack.c.b16 %v3384, %v3376
        %v4121 = vpack.c.b16 %v3385, %v3377
        %v4122 = vpack.c.b16 %v3386, %v3378
        %v4123 = vpack.c.b16 %v3387, %v3379
        %v4124 = vpack.c.b16 %v3388, %v3380
        %v4125 = vpack.c.b16 %v3397, %v3389
        %v4126 = vpack.c.b16 %v3398, %v3390
        %v4127 = vpack.c.b16 %v3399, %v3391
        %v4128 = vpack.c.b16 %v3400, %v3392
        %v4129 = vpack.c.b16 %v3401, %v3393
        %v4130 = vpack.c.b16 %v3402, %v3394
        %v4131 = vpack.c.b16 %v3403, %v3395
        %v4132 = vpack.c.b16 %v3404, %v3396
        %v4133 = vpack.c.b16 %v3413, %v3405
        %v4134 = vpack.c.b16 %v3414, %v3406
        %v4135 = vpack.c.b16 %v3415, %v3407
        %v4136 = vpack.c.b16 %v3416, %v3408
        %v4137 = vpack.c.b16 %v3417, %v3409
        %v4138 = vpack.c.b16 %v3418, %v3410
        %v4139 = vpack.c.b16 %v3419, %v3411
        %v4140 = vpack.c.b16 %v3420, %v3412
        %v4141 = vpack.c.b16 %v3429, %v3421
        %v4142 = vpack.c.b16 %v3430, %v3422
        %v4143 = vpack.c.b16 %v3431, %v3423
        %v4144 = vpack.c.b16 %v3432, %v3424
        %v4145 = vpack.c.b16 %v3433, %v3425
        %v4146 = vpack.c.b16 %v3434, %v3426
        %v4147 = vpack.c.b16 %v3435, %v3427
        %v4148 = vpack.c.b16 %v3436, %v3428
        %v4149 = vpack.c.b16 %v3445, %v3437
        %v4150 = vpack.c.b16 %v3446, %v3438
        %v4151 = vpack.c.b16 %v3447, %v3439
        %v4152 = vpack.c.b16 %v3448, %v3440
        %v4153 = vpack.c.b16 %v3449, %v3441
        %v4154 = vpack.c.b16 %v3450, %v3442
        %v4155 = vpack.c.b16 %v3451, %v3443
        %v4156 = vpack.c.b16 %v3452, %v3444
        %v4157 = vpack.c.b16 %v3461, %v3453
        %v4158 = vpack.c.b16 %v3462, %v3454
        %v4159 = vpack.c.b16 %v3463, %v3455
        %v4160 = vpack.c.b16 %v3464, %v3456
        %v4161 = vpack.c.b16 %v3465, %v3457
        %v4162 = vpack.c.b16 %v3466, %v3458
        %v4163 = vpack.c.b16 %v3467, %v3459
        %v4164 = vpack.c.b16 %v3468, %v3460
        %v4165 = vpack.c.b16 %v3477, %v3469
        %v4166 = vpack.c.b16 %v3478, %v3470
        %v4167 = vpack.c.b16 %v3479, %v3471
        %v4168 = vpack.c.b16 %v3480, %v3472
        %v4169 = vpack.c.b16 %v3481, %v3473
        %v4170 = vpack.c.b16 %v3482, %v3474
        %v4171 = vpack.c.b16 %v3483, %v3475
        %v4172 = vpack.c.b16 %v3484, %v3476
        %v4173 = vpack.c.b16 %v3493, %v3485
        %v4174 = vpack.c.b16 %v3494, %v3486
        %v4175 = vpack.c.b16 %v3495, %v3487
        %v4176 = vpack.c.b16 %v3496, %v3488
        %v4177 = vpack.c.b16 %v3497, %v3489
        %v4178 = vpack.c.b16 %v3498, %v3490
        %v4179 = vpack.c.b16 %v3499, %v3491
        %v4180 = vpack.c.b16 %v3500, %v3492
        %v4181 = vpack.c.b16 %v3509, %v3501
        %v4182 = vpack.c.b16 %v3510, %v3502
        %v4183 = vpack.c.b16 %v3511, %v3503
        %v4184 = vpack.c.b16 %v3512, %v3504
        %v4185 = vpack.c.b16 %v3513, %v3505
        %v4186 = vpack.c.b16 %v3514, %v3506
        %v4187 = vpack.c.b16 %v3515, %v3507
        %v4188 = vpack.c.b16 %v3516, %v3508
        %v4189 = vpack.c.b16 %v3525, %v3517
        %v4190 = vpack.c.b16 %v3526, %v3518
        %v4191 = vpack.c.b16 %v3527, %v3519
        %v4192 = vpack.c.b16 %v3528, %v3520
        %v4193 = vpack.c.b16 %v3529, %v3521
        %v4194 = vpack.c.b16 %v3530, %v3522
        %v4195 = vpack.c.b16 %v3531, %v3523
        %v4196 = vpack.c.b16 %v3532, %v3524
        %v4197 = vpack.c.b16 %v3541, %v3533
        %v4198 = vpack.c.b16 %v3542, %v3534
        %v4199 = vpack.c.b16 %v3543, %v3535
        %v4200 = vpack.c.b16 %v3544, %v3536
        %v4201 = vpack.c.b16 %v3545, %v3537
        %v4202 = vpack.c.b16 %v3546, %v3538
        %v4203 = vpack.c.b16 %v3547, %v3539
        %v4204 = vpack.c.b16 %v3548, %v3540
        %v4205 = vpack.c.b16 %v3557, %v3549
        %v4206 = vpack.c.b16 %v3558, %v3550
        %v4207 = vpack.c.b16 %v3559, %v3551
        %v4208 = vpack.c.b16 %v3560, %v3552
        %v4209 = vpack.c.b16 %v3561, %v3553
        %v4210 = vpack.c.b16 %v3562, %v3554
        %v4211 = vpack.c.b16 %v3563, %v3555
        %v4212 = vpack.c.b16 %v3564, %v3556
        %v4213 = vpack.c.b16 %v3573, %v3565
        %v4214 = vpack.c.b16 %v3574, %v3566
        %v4215 = vpack.c.b16 %v3575, %v3567
        %v4216 = vpack.c.b16 %v3576, %v3568
        %v4217 = vpack.c.b16 %v3577, %v3569
        %v4218 = vpack.c.b16 %v3578, %v3570
        %v4219 = vpack.c.b16 %v3579, %v3571
        %v4220 = vpack.c.b16 %v3580, %v3572
        %v4221 = vpack.c.b16 %v3589, %v3581
        %v4222 = vpack.c.b16 %v3590, %v3582
        %v4223 = vpack.c.b16 %v3591, %v3583
        %v4224 = vpack.c.b16 %v3592, %v3584
        %v4225 = vpack.c.b16 %v3593, %v3585
        %v4226 = vpack.c.b16 %v3594, %v3586
        %v4227 = vpack.c.b16 %v3595, %v3587
        %v4228 = vpack.c.b16 %v3596, %v3588
        %v4229 = vpack.c.b16 %v3605, %v3597
        %v4230 = vpack.c.b16 %v3606, %v3598
        %v4231 = vpack.c.b16 %v3607, %v3599
        %v4232 = vpack.c.b16 %v3608, %v3600
        %v4233 = vpack.c.b16 %v3609, %v3601
        %v4234 = vpack.c.b16 %v3610, %v3602
        %v4235 = vpack.c.b16 %v3611, %v3603
        %v4236 = vpack.c.b16 %v3612, %v3604
        %v4237 = vpack.c.b16 %v3621, %v3613
        %v4238 = vpack.c.b16 %v3622, %v3614
        %v4239 = vpack.c.b16 %v3623, %v3615
        %v4240 = vpack.c.b16 %v3624, %v3616
        %v4241 = vpack.c.b16 %v3625, %v3617
        %v4242 = vpack.c.b16 %v3626, %v3618
        %v4243 = vpack.c.b16 %v3627, %v3619
        %v4244 = vpack.c.b16 %v3628, %v3620
        %v4245 = vpack.c.b16 %v3637, %v3629
        %v4246 = vpack.c.b16 %v3638, %v3630
        %v4247 = vpack.c.b16 %v3639, %v3631
        %v4248 = vpack.c.b16 %v3640, %v3632
        %v4249 = vpack.c.b16 %v3641, %v3633
        %v4250 = vpack.c.b16 %v3642, %v3634
        %v4251 = vpack.c.b16 %v3643, %v3635
        %v4252 = vpack.c.b16 %v3644, %v3636
        %v4253 = vpack.c.b16 %v3653, %v3645
        %v4254 = vpack.c.b16 %v3654, %v3646
        %v4255 = vpack.c.b16 %v3655, %v3647
        %v4256 = vpack.c.b16 %v3656, %v3648
        %v4257 = vpack.c.b16 %v3657, %v3649
        %v4258 = vpack.c.b16 %v3658, %v3650
        %v4259 = vpack.c.b16 %v3659, %v3651
        %v4260 = vpack.c.b16 %v3660, %v3652
        %v4261 = vpack.c.b16 %v3669, %v3661
        %v4262 = vpack.c.b16 %v3670, %v3662
        %v4263 = vpack.c.b16 %v3671, %v3663
        %v4264 = vpack.c.b16 %v3672, %v3664
        %v4265 = vpack.c.b16 %v3673, %v3665
        %v4266 = vpack.c.b16 %v3674, %v3666
        %v4267 = vpack.c.b16 %v3675, %v3667
        %v4268 = vpack.c.b16 %v3676, %v3668
        %v4269 = vpack.c.b16 %v3685, %v3677
        %v4270 = vpack.c.b16 %v3686, %v3678
        %v4271 = vpack.c.b16 %v3687, %v3679
        %v4272 = vpack.c.b16 %v3688, %v3680
        %v4273 = vpack.c.b16 %v3689, %v3681
        %v4274 = vpack.c.b16 %v3690, %v3682
        %v4275 = vpack.c.b16 %v3691, %v3683
        %v4276 = vpack.c.b16 %v3692, %v3684
        %v4277 = vpack.c.b16 %v3701, %v3693
        %v4278 = vpack.c.b16 %v3702, %v3694
        %v4279 = vpack.c.b16 %v3703, %v3695
        %v4280 = vpack.c.b16 %v3704, %v3696
        %v4281 = vpack.c.b16 %v3705, %v3697
        %v4282 = vpack.c.b16 %v3706, %v3698
        %v4283 = vpack.c.b16 %v3707, %v3699
        %v4284 = vpack.c.b16 %v3708, %v3700
        %v4285 = vpack.c.b16 %v3717, %v3709
        %v4286 = vpack.c.b16 %v3718, %v3710
        %v4287 = vpack.c.b16 %v3719, %v3711
        %v4288 = vpack.c.b16 %v3720, %v3712
        %v4289 = vpack.c.b16 %v3721, %v3713
        %v4290 = vpack.c.b16 %v3722, %v3714
        %v4291 = vpack.c.b16 %v3723, %v3715
        %v4292 = vpack.c.b16 %v3724, %v3716
        %v4293 = vpack.c.b16 %v3733, %v3725
        %v4294 = vpack.c.b16 %v3734, %v3726
        %v4295 = vpack.c.b16 %v3735, %v3727
        %v4296 = vpack.c.b16 %v3736, %v3728
        %v4297 = vpack.c.b16 %v3737, %v3729
        %v4298 = vpack.c.b16 %v3738, %v3730
        %v4299 = vpack.c.b16 %v3739, %v3731
        %v4300 = vpack.c.b16 %v3740, %v3732
        %v4301 = vpack.c.b16 %v3749, %v3741
        %v4302 = vpack.c.b16 %v3750, %v3742
        %v4303 = vpack.c.b16 %v3751, %v3743
        %v4304 = vpack.c.b16 %v3752, %v3744
        %v4305 = vpack.c.b16 %v3753, %v3745
        %v4306 = vpack.c.b16 %v3754, %v3746
        %v4307 = vpack.c.b16 %v3755, %v3747
        %v4308 = vpack.c.b16 %v3756, %v3748
        %v4309 = vpack.c.b16 %v3765, %v3757
        %v4310 = vpack.c.b16 %v3766, %v3758
        %v4311 = vpack.c.b16 %v3767, %v3759
        %v4312 = vpack.c.b16 %v3768, %v3760
        %v4313 = vpack.c.b16 %v3769, %v3761
        %v4314 = vpack.c.b16 %v3770, %v3762
        %v4315 = vpack.c.b16 %v3771, %v3763
        %v4316 = vpack.c.b16 %v3772, %v3764
        %v4317 = vpack.c.b16 %v3781, %v3773
        %v4318 = vpack.c.b16 %v3782, %v3774
        %v4319 = vpack.c.b16 %v3783, %v3775
        %v4320 = vpack.c.b16 %v3784, %v3776
        %v4321 = vpack.c.b16 %v3785, %v3777
        %v4322 = vpack.c.b16 %v3786, %v3778
        %v4323 = vpack.c.b16 %v3787, %v3779
        %v4324 = vpack.c.b16 %v3788, %v3780
        %v4325 = vpack.c.b16 %v3797, %v3789
        %v4326 = vpack.c.b16 %v3798, %v3790
        %v4327 = vpack.c.b16 %v3799, %v3791
        %v4328 = vpack.c.b16 %v3800, %v3792
        %v4329 = vpack.c.b16 %v3801, %v3793
        %v4330 = vpack.c.b16 %v3802, %v3794
        %v4331 = vpack.c.b16 %v3803, %v3795
        %v4332 = vpack.c.b16 %v3804, %v3796
        %v4333 = vpack.c.b16 %v3813, %v3805
        %v4334 = vpack.c.b16 %v3814, %v3806
        %v4335 = vpack.c.b16 %v3815, %v3807
        %v4336 = vpack.c.b16 %v3816, %v3808
        %v4337 = vpack.c.b16 %v3817, %v3809
        %v4338 = vpack.c.b16 %v3818, %v3810
        %v4339 = vpack.c.b16 %v3819, %v3811
        %v4340 = vpack.c.b16 %v3820, %v3812
        %v4341 = vpack.c.b16 %v3829, %v3821
        %v4342 = vpack.c.b16 %v3830, %v3822
        %v4343 = vpack.c.b16 %v3831, %v3823
        %v4344 = vpack.c.b16 %v3832, %v3824
        %v4345 = vpack.c.b16 %v3833, %v3825
        %v4346 = vpack.c.b16 %v3834, %v3826
        %v4347 = vpack.c.b16 %v3835, %v3827
        %v4348 = vpack.c.b16 %v3836, %v3828
        %4861 = vmatpush.bf16.msra.mxu0 %v3893
        %4862 = vmatpush.bf16.msra.mxu0 %v3885
        %4863 = vmatpush.bf16.msra.mxu0 %v3877
        %4864 = vmatpush.bf16.msra.mxu0 %v3869
        %4865 = vmatpush.bf16.msra.mxu0 %v3861
        %4866 = vmatpush.bf16.msra.mxu0 %v3853
        %4867 = vmatpush.bf16.msra.mxu0 %v3845
        %4868 = vmatpush.bf16.msra.mxu0 %v3837
        %4869 = vmatmul.bf16.gmra.mxu0 %v2285
        %v4870 = vpop.f32.mrf.mxu0
        %v4871 = vadd.f32 0.0, %v4870
        %v4872 = vpop.f32.mrf.mxu0
        %4873 = vdwg.mxu0
        %4874 = vmatpush.bf16.msra.mxu0 %v3957
        %4875 = vmatpush.bf16.msra.mxu0 %v3949
        %4876 = vmatpush.bf16.msra.mxu0 %v3941
        %4877 = vmatpush.bf16.msra.mxu0 %v3933
        %4878 = vmatpush.bf16.msra.mxu0 %v3925
        %4879 = vmatpush.bf16.msra.mxu0 %v3917
        %4880 = vmatpush.bf16.msra.mxu0 %v3909
        %4881 = vmatpush.bf16.msra.mxu0 %v3901
        %4882 = vmatmul.bf16.gmra.mxu0 %v2286
        %v4883 = vpop.f32.mrf.mxu0
        %v4884 = vadd.f32 %v4871, %v4883
        %v4885 = vpop.f32.mrf.mxu0
        %4886 = vdwg.mxu0
        %4887 = vmatpush.bf16.msra.mxu0 %v4021
        %4888 = vmatpush.bf16.msra.mxu0 %v4013
        %4889 = vmatpush.bf16.msra.mxu0 %v4005
        %4890 = vmatpush.bf16.msra.mxu0 %v3997
        %4891 = vmatpush.bf16.msra.mxu0 %v3989
        %4892 = vmatpush.bf16.msra.mxu0 %v3981
        %4893 = vmatpush.bf16.msra.mxu0 %v3973
        %4894 = vmatpush.bf16.msra.mxu0 %v3965
        %4895 = vmatmul.bf16.gmra.mxu0 %v2287
        %v4896 = vpop.f32.mrf.mxu0
        %v4897 = vadd.f32 %v4884, %v4896
        %v4898 = vpop.f32.mrf.mxu0
        %4899 = vdwg.mxu0
        %4900 = vmatpush.bf16.msra.mxu0 %v4085
        %4901 = vmatpush.bf16.msra.mxu0 %v4077
        %4902 = vmatpush.bf16.msra.mxu0 %v4069
        %4903 = vmatpush.bf16.msra.mxu0 %v4061
        %4904 = vmatpush.bf16.msra.mxu0 %v4053
        %4905 = vmatpush.bf16.msra.mxu0 %v4045
        %4906 = vmatpush.bf16.msra.mxu0 %v4037
        %4907 = vmatpush.bf16.msra.mxu0 %v4029
        %4908 = vmatmul.bf16.gmra.mxu0 %v2288
        %v4909 = vpop.f32.mrf.mxu0
        %v4910 = vadd.f32 %v4897, %v4909
        %v4911 = vpop.f32.mrf.mxu0
        %4912 = vdwg.mxu0
        %4913 = vmatpush.bf16.msra.mxu0 %v4149
        %4914 = vmatpush.bf16.msra.mxu0 %v4141
        %4915 = vmatpush.bf16.msra.mxu0 %v4133
        %4916 = vmatpush.bf16.msra.mxu0 %v4125
        %4917 = vmatpush.bf16.msra.mxu0 %v4117
        %4918 = vmatpush.bf16.msra.mxu0 %v4109
        %4919 = vmatpush.bf16.msra.mxu0 %v4101
        %4920 = vmatpush.bf16.msra.mxu0 %v4093
        %4921 = vmatmul.bf16.gmra.mxu0 %v2289
        %v4922 = vpop.f32.mrf.mxu0
        %v4923 = vadd.f32 %v4910, %v4922
        %v4924 = vpop.f32.mrf.mxu0
        %4925 = vdwg.mxu0
        %4926 = vmatpush.bf16.msra.mxu0 %v4213
        %4927 = vmatpush.bf16.msra.mxu0 %v4205
        %4928 = vmatpush.bf16.msra.mxu0 %v4197
        %4929 = vmatpush.bf16.msra.mxu0 %v4189
        %4930 = vmatpush.bf16.msra.mxu0 %v4181
        %4931 = vmatpush.bf16.msra.mxu0 %v4173
        %4932 = vmatpush.bf16.msra.mxu0 %v4165
        %4933 = vmatpush.bf16.msra.mxu0 %v4157
        %4934 = vmatmul.bf16.gmra.mxu0 %v2290
        %v4935 = vpop.f32.mrf.mxu0
        %v4936 = vadd.f32 %v4923, %v4935
        %v4937 = vpop.f32.mrf.mxu0
        %4938 = vdwg.mxu0
        %4939 = vmatpush.bf16.msra.mxu0 %v4277
        %4940 = vmatpush.bf16.msra.mxu0 %v4269
        %4941 = vmatpush.bf16.msra.mxu0 %v4261
        %4942 = vmatpush.bf16.msra.mxu0 %v4253
        %4943 = vmatpush.bf16.msra.mxu0 %v4245
        %4944 = vmatpush.bf16.msra.mxu0 %v4237
        %4945 = vmatpush.bf16.msra.mxu0 %v4229
        %4946 = vmatpush.bf16.msra.mxu0 %v4221
        %4947 = vmatmul.bf16.gmra.mxu0 %v2291
        %v4948 = vpop.f32.mrf.mxu0
        %v4949 = vadd.f32 %v4936, %v4948
        %v4950 = vpop.f32.mrf.mxu0
        %4951 = vdwg.mxu0
        %4952 = vmatpush.bf16.msra.mxu0 %v4341
        %4953 = vmatpush.bf16.msra.mxu0 %v4333
        %4954 = vmatpush.bf16.msra.mxu0 %v4325
        %4955 = vmatpush.bf16.msra.mxu0 %v4317
        %4956 = vmatpush.bf16.msra.mxu0 %v4309
        %4957 = vmatpush.bf16.msra.mxu0 %v4301
        %4958 = vmatpush.bf16.msra.mxu0 %v4293
        %4959 = vmatpush.bf16.msra.mxu0 %v4285
        %4960 = vmatmul.bf16.gmra.mxu0 %v2292
        %v4961 = vpop.f32.mrf.mxu0
        %v4962 = vadd.f32 %v4949, %v4961
        %v4963 = vpop.f32.mrf.mxu0
        %4964 = vdwg.mxu0
        %4965 = vmatpush.bf16.msra.mxu0 %v3894
        %4966 = vmatpush.bf16.msra.mxu0 %v3886
        %4967 = vmatpush.bf16.msra.mxu0 %v3878
        %4968 = vmatpush.bf16.msra.mxu0 %v3870
        %4969 = vmatpush.bf16.msra.mxu0 %v3862
        %4970 = vmatpush.bf16.msra.mxu0 %v3854
        %4971 = vmatpush.bf16.msra.mxu0 %v3846
        %4972 = vmatpush.bf16.msra.mxu0 %v3838
        %4973 = vmatmul.bf16.gmra.mxu0 %v2285
        %v4974 = vpop.f32.mrf.mxu0
        %v4975 = vadd.f32 0.0, %v4974
        %v4976 = vpop.f32.mrf.mxu0
        %4977 = vdwg.mxu0
        %4978 = vmatpush.bf16.msra.mxu0 %v3958
        %4979 = vmatpush.bf16.msra.mxu0 %v3950
        %4980 = vmatpush.bf16.msra.mxu0 %v3942
        %4981 = vmatpush.bf16.msra.mxu0 %v3934
        %4982 = vmatpush.bf16.msra.mxu0 %v3926
        %4983 = vmatpush.bf16.msra.mxu0 %v3918
        %4984 = vmatpush.bf16.msra.mxu0 %v3910
        %4985 = vmatpush.bf16.msra.mxu0 %v3902
        %4986 = vmatmul.bf16.gmra.mxu0 %v2286
        %v4987 = vpop.f32.mrf.mxu0
        %v4988 = vadd.f32 %v4975, %v4987
        %v4989 = vpop.f32.mrf.mxu0
        %4990 = vdwg.mxu0
        %4991 = vmatpush.bf16.msra.mxu0 %v4022
        %4992 = vmatpush.bf16.msra.mxu0 %v4014
        %4993 = vmatpush.bf16.msra.mxu0 %v4006
        %4994 = vmatpush.bf16.msra.mxu0 %v3998
        %4995 = vmatpush.bf16.msra.mxu0 %v3990
        %4996 = vmatpush.bf16.msra.mxu0 %v3982
        %4997 = vmatpush.bf16.msra.mxu0 %v3974
        %4998 = vmatpush.bf16.msra.mxu0 %v3966
        %4999 = vmatmul.bf16.gmra.mxu0 %v2287
        %v5000 = vpop.f32.mrf.mxu0
        %v5001 = vadd.f32 %v4988, %v5000
        %v5002 = vpop.f32.mrf.mxu0
        %5003 = vdwg.mxu0
        %5004 = vmatpush.bf16.msra.mxu0 %v4086
        %5005 = vmatpush.bf16.msra.mxu0 %v4078
        %5006 = vmatpush.bf16.msra.mxu0 %v4070
        %5007 = vmatpush.bf16.msra.mxu0 %v4062
        %5008 = vmatpush.bf16.msra.mxu0 %v4054
        %5009 = vmatpush.bf16.msra.mxu0 %v4046
        %5010 = vmatpush.bf16.msra.mxu0 %v4038
        %5011 = vmatpush.bf16.msra.mxu0 %v4030
        %5012 = vmatmul.bf16.gmra.mxu0 %v2288
        %v5013 = vpop.f32.mrf.mxu0
        %v5014 = vadd.f32 %v5001, %v5013
        %v5015 = vpop.f32.mrf.mxu0
        %5016 = vdwg.mxu0
        %5017 = vmatpush.bf16.msra.mxu0 %v4150
        %5018 = vmatpush.bf16.msra.mxu0 %v4142
        %5019 = vmatpush.bf16.msra.mxu0 %v4134
        %5020 = vmatpush.bf16.msra.mxu0 %v4126
        %5021 = vmatpush.bf16.msra.mxu0 %v4118
        %5022 = vmatpush.bf16.msra.mxu0 %v4110
        %5023 = vmatpush.bf16.msra.mxu0 %v4102
        %5024 = vmatpush.bf16.msra.mxu0 %v4094
        %5025 = vmatmul.bf16.gmra.mxu0 %v2289
        %v5026 = vpop.f32.mrf.mxu0
        %v5027 = vadd.f32 %v5014, %v5026
        %v5028 = vpop.f32.mrf.mxu0
        %5029 = vdwg.mxu0
        %5030 = vmatpush.bf16.msra.mxu0 %v4214
        %5031 = vmatpush.bf16.msra.mxu0 %v4206
        %5032 = vmatpush.bf16.msra.mxu0 %v4198
        %5033 = vmatpush.bf16.msra.mxu0 %v4190
        %5034 = vmatpush.bf16.msra.mxu0 %v4182
        %5035 = vmatpush.bf16.msra.mxu0 %v4174
        %5036 = vmatpush.bf16.msra.mxu0 %v4166
        %5037 = vmatpush.bf16.msra.mxu0 %v4158
        %5038 = vmatmul.bf16.gmra.mxu0 %v2290
        %v5039 = vpop.f32.mrf.mxu0
        %v5040 = vadd.f32 %v5027, %v5039
        %v5041 = vpop.f32.mrf.mxu0
        %5042 = vdwg.mxu0
        %5043 = vmatpush.bf16.msra.mxu0 %v4278
        %5044 = vmatpush.bf16.msra.mxu0 %v4270
        %5045 = vmatpush.bf16.msra.mxu0 %v4262
        %5046 = vmatpush.bf16.msra.mxu0 %v4254
        %5047 = vmatpush.bf16.msra.mxu0 %v4246
        %5048 = vmatpush.bf16.msra.mxu0 %v4238
        %5049 = vmatpush.bf16.msra.mxu0 %v4230
        %5050 = vmatpush.bf16.msra.mxu0 %v4222
        %5051 = vmatmul.bf16.gmra.mxu0 %v2291
        %v5052 = vpop.f32.mrf.mxu0
        %v5053 = vadd.f32 %v5040, %v5052
        %v5054 = vpop.f32.mrf.mxu0
        %5055 = vdwg.mxu0
        %5056 = vmatpush.bf16.msra.mxu0 %v4342
        %5057 = vmatpush.bf16.msra.mxu0 %v4334
        %5058 = vmatpush.bf16.msra.mxu0 %v4326
        %5059 = vmatpush.bf16.msra.mxu0 %v4318
        %5060 = vmatpush.bf16.msra.mxu0 %v4310
        %5061 = vmatpush.bf16.msra.mxu0 %v4302
        %5062 = vmatpush.bf16.msra.mxu0 %v4294
        %5063 = vmatpush.bf16.msra.mxu0 %v4286
        %5064 = vmatmul.bf16.gmra.mxu0 %v2292
        %v5065 = vpop.f32.mrf.mxu0
        %v5066 = vadd.f32 %v5053, %v5065
        %v5067 = vpop.f32.mrf.mxu0
        %5068 = vdwg.mxu0
        %5069 = vmatpush.bf16.msra.mxu0 %v3895
        %5070 = vmatpush.bf16.msra.mxu0 %v3887
        %5071 = vmatpush.bf16.msra.mxu0 %v3879
        %5072 = vmatpush.bf16.msra.mxu0 %v3871
        %5073 = vmatpush.bf16.msra.mxu0 %v3863
        %5074 = vmatpush.bf16.msra.mxu0 %v3855
        %5075 = vmatpush.bf16.msra.mxu0 %v3847
        %5076 = vmatpush.bf16.msra.mxu0 %v3839
        %5077 = vmatmul.bf16.gmra.mxu0 %v2285
        %v5078 = vpop.f32.mrf.mxu0
        %v5079 = vadd.f32 0.0, %v5078
        %v5080 = vpop.f32.mrf.mxu0
        %5081 = vdwg.mxu0
        %5082 = vmatpush.bf16.msra.mxu0 %v3959
        %5083 = vmatpush.bf16.msra.mxu0 %v3951
        %5084 = vmatpush.bf16.msra.mxu0 %v3943
        %5085 = vmatpush.bf16.msra.mxu0 %v3935
        %5086 = vmatpush.bf16.msra.mxu0 %v3927
        %5087 = vmatpush.bf16.msra.mxu0 %v3919
        %5088 = vmatpush.bf16.msra.mxu0 %v3911
        %5089 = vmatpush.bf16.msra.mxu0 %v3903
        %5090 = vmatmul.bf16.gmra.mxu0 %v2286
        %v5091 = vpop.f32.mrf.mxu0
        %v5092 = vadd.f32 %v5079, %v5091
        %v5093 = vpop.f32.mrf.mxu0
        %5094 = vdwg.mxu0
        %5095 = vmatpush.bf16.msra.mxu0 %v4023
        %5096 = vmatpush.bf16.msra.mxu0 %v4015
        %5097 = vmatpush.bf16.msra.mxu0 %v4007
        %5098 = vmatpush.bf16.msra.mxu0 %v3999
        %5099 = vmatpush.bf16.msra.mxu0 %v3991
        %5100 = vmatpush.bf16.msra.mxu0 %v3983
        %5101 = vmatpush.bf16.msra.mxu0 %v3975
        %5102 = vmatpush.bf16.msra.mxu0 %v3967
        %5103 = vmatmul.bf16.gmra.mxu0 %v2287
        %v5104 = vpop.f32.mrf.mxu0
        %v5105 = vadd.f32 %v5092, %v5104
        %v5106 = vpop.f32.mrf.mxu0
        %5107 = vdwg.mxu0
        %5108 = vmatpush.bf16.msra.mxu0 %v4087
        %5109 = vmatpush.bf16.msra.mxu0 %v4079
        %5110 = vmatpush.bf16.msra.mxu0 %v4071
        %5111 = vmatpush.bf16.msra.mxu0 %v4063
        %5112 = vmatpush.bf16.msra.mxu0 %v4055
        %5113 = vmatpush.bf16.msra.mxu0 %v4047
        %5114 = vmatpush.bf16.msra.mxu0 %v4039
        %5115 = vmatpush.bf16.msra.mxu0 %v4031
        %5116 = vmatmul.bf16.gmra.mxu0 %v2288
        %v5117 = vpop.f32.mrf.mxu0
        %v5118 = vadd.f32 %v5105, %v5117
        %v5119 = vpop.f32.mrf.mxu0
        %5120 = vdwg.mxu0
        %5121 = vmatpush.bf16.msra.mxu0 %v4151
        %5122 = vmatpush.bf16.msra.mxu0 %v4143
        %5123 = vmatpush.bf16.msra.mxu0 %v4135
        %5124 = vmatpush.bf16.msra.mxu0 %v4127
        %5125 = vmatpush.bf16.msra.mxu0 %v4119
        %5126 = vmatpush.bf16.msra.mxu0 %v4111
        %5127 = vmatpush.bf16.msra.mxu0 %v4103
        %5128 = vmatpush.bf16.msra.mxu0 %v4095
        %5129 = vmatmul.bf16.gmra.mxu0 %v2289
        %v5130 = vpop.f32.mrf.mxu0
        %v5131 = vadd.f32 %v5118, %v5130
        %v5132 = vpop.f32.mrf.mxu0
        %5133 = vdwg.mxu0
        %5134 = vmatpush.bf16.msra.mxu0 %v4215
        %5135 = vmatpush.bf16.msra.mxu0 %v4207
        %5136 = vmatpush.bf16.msra.mxu0 %v4199
        %5137 = vmatpush.bf16.msra.mxu0 %v4191
        %5138 = vmatpush.bf16.msra.mxu0 %v4183
        %5139 = vmatpush.bf16.msra.mxu0 %v4175
        %5140 = vmatpush.bf16.msra.mxu0 %v4167
        %5141 = vmatpush.bf16.msra.mxu0 %v4159
        %5142 = vmatmul.bf16.gmra.mxu0 %v2290
        %v5143 = vpop.f32.mrf.mxu0
        %v5144 = vadd.f32 %v5131, %v5143
        %v5145 = vpop.f32.mrf.mxu0
        %5146 = vdwg.mxu0
        %5147 = vmatpush.bf16.msra.mxu0 %v4279
        %5148 = vmatpush.bf16.msra.mxu0 %v4271
        %5149 = vmatpush.bf16.msra.mxu0 %v4263
        %5150 = vmatpush.bf16.msra.mxu0 %v4255
        %5151 = vmatpush.bf16.msra.mxu0 %v4247
        %5152 = vmatpush.bf16.msra.mxu0 %v4239
        %5153 = vmatpush.bf16.msra.mxu0 %v4231
        %5154 = vmatpush.bf16.msra.mxu0 %v4223
        %5155 = vmatmul.bf16.gmra.mxu0 %v2291
        %v5156 = vpop.f32.mrf.mxu0
        %v5157 = vadd.f32 %v5144, %v5156
        %v5158 = vpop.f32.mrf.mxu0
        %5159 = vdwg.mxu0
        %5160 = vmatpush.bf16.msra.mxu0 %v4343
        %5161 = vmatpush.bf16.msra.mxu0 %v4335
        %5162 = vmatpush.bf16.msra.mxu0 %v4327
        %5163 = vmatpush.bf16.msra.mxu0 %v4319
        %5164 = vmatpush.bf16.msra.mxu0 %v4311
        %5165 = vmatpush.bf16.msra.mxu0 %v4303
        %5166 = vmatpush.bf16.msra.mxu0 %v4295
        %5167 = vmatpush.bf16.msra.mxu0 %v4287
        %5168 = vmatmul.bf16.gmra.mxu0 %v2292
        %v5169 = vpop.f32.mrf.mxu0
        %v5170 = vadd.f32 %v5157, %v5169
        %v5171 = vpop.f32.mrf.mxu0
        %5172 = vdwg.mxu0
        %5173 = vmatpush.bf16.msra.mxu0 %v3896
        %5174 = vmatpush.bf16.msra.mxu0 %v3888
        %5175 = vmatpush.bf16.msra.mxu0 %v3880
        %5176 = vmatpush.bf16.msra.mxu0 %v3872
        %5177 = vmatpush.bf16.msra.mxu0 %v3864
        %5178 = vmatpush.bf16.msra.mxu0 %v3856
        %5179 = vmatpush.bf16.msra.mxu0 %v3848
        %5180 = vmatpush.bf16.msra.mxu0 %v3840
        %5181 = vmatmul.bf16.gmra.mxu0 %v2285
        %v5182 = vpop.f32.mrf.mxu0
        %v5183 = vadd.f32 0.0, %v5182
        %v5184 = vpop.f32.mrf.mxu0
        %5185 = vdwg.mxu0
        %5186 = vmatpush.bf16.msra.mxu0 %v3960
        %5187 = vmatpush.bf16.msra.mxu0 %v3952
        %5188 = vmatpush.bf16.msra.mxu0 %v3944
        %5189 = vmatpush.bf16.msra.mxu0 %v3936
        %5190 = vmatpush.bf16.msra.mxu0 %v3928
        %5191 = vmatpush.bf16.msra.mxu0 %v3920
        %5192 = vmatpush.bf16.msra.mxu0 %v3912
        %5193 = vmatpush.bf16.msra.mxu0 %v3904
        %5194 = vmatmul.bf16.gmra.mxu0 %v2286
        %v5195 = vpop.f32.mrf.mxu0
        %v5196 = vadd.f32 %v5183, %v5195
        %v5197 = vpop.f32.mrf.mxu0
        %5198 = vdwg.mxu0
        %5199 = vmatpush.bf16.msra.mxu0 %v4024
        %5200 = vmatpush.bf16.msra.mxu0 %v4016
        %5201 = vmatpush.bf16.msra.mxu0 %v4008
        %5202 = vmatpush.bf16.msra.mxu0 %v4000
        %5203 = vmatpush.bf16.msra.mxu0 %v3992
        %5204 = vmatpush.bf16.msra.mxu0 %v3984
        %5205 = vmatpush.bf16.msra.mxu0 %v3976
        %5206 = vmatpush.bf16.msra.mxu0 %v3968
        %5207 = vmatmul.bf16.gmra.mxu0 %v2287
        %v5208 = vpop.f32.mrf.mxu0
        %v5209 = vadd.f32 %v5196, %v5208
        %v5210 = vpop.f32.mrf.mxu0
        %5211 = vdwg.mxu0
        %5212 = vmatpush.bf16.msra.mxu0 %v4088
        %5213 = vmatpush.bf16.msra.mxu0 %v4080
        %5214 = vmatpush.bf16.msra.mxu0 %v4072
        %5215 = vmatpush.bf16.msra.mxu0 %v4064
        %5216 = vmatpush.bf16.msra.mxu0 %v4056
        %5217 = vmatpush.bf16.msra.mxu0 %v4048
        %5218 = vmatpush.bf16.msra.mxu0 %v4040
        %5219 = vmatpush.bf16.msra.mxu0 %v4032
        %5220 = vmatmul.bf16.gmra.mxu0 %v2288
        %v5221 = vpop.f32.mrf.mxu0
        %v5222 = vadd.f32 %v5209, %v5221
        %v5223 = vpop.f32.mrf.mxu0
        %5224 = vdwg.mxu0
        %5225 = vmatpush.bf16.msra.mxu0 %v4152
        %5226 = vmatpush.bf16.msra.mxu0 %v4144
        %5227 = vmatpush.bf16.msra.mxu0 %v4136
        %5228 = vmatpush.bf16.msra.mxu0 %v4128
        %5229 = vmatpush.bf16.msra.mxu0 %v4120
        %5230 = vmatpush.bf16.msra.mxu0 %v4112
        %5231 = vmatpush.bf16.msra.mxu0 %v4104
        %5232 = vmatpush.bf16.msra.mxu0 %v4096
        %5233 = vmatmul.bf16.gmra.mxu0 %v2289
        %v5234 = vpop.f32.mrf.mxu0
        %v5235 = vadd.f32 %v5222, %v5234
        %v5236 = vpop.f32.mrf.mxu0
        %5237 = vdwg.mxu0
        %5238 = vmatpush.bf16.msra.mxu0 %v4216
        %5239 = vmatpush.bf16.msra.mxu0 %v4208
        %5240 = vmatpush.bf16.msra.mxu0 %v4200
        %5241 = vmatpush.bf16.msra.mxu0 %v4192
        %5242 = vmatpush.bf16.msra.mxu0 %v4184
        %5243 = vmatpush.bf16.msra.mxu0 %v4176
        %5244 = vmatpush.bf16.msra.mxu0 %v4168
        %5245 = vmatpush.bf16.msra.mxu0 %v4160
        %5246 = vmatmul.bf16.gmra.mxu0 %v2290
        %v5247 = vpop.f32.mrf.mxu0
        %v5248 = vadd.f32 %v5235, %v5247
        %v5249 = vpop.f32.mrf.mxu0
        %5250 = vdwg.mxu0
        %5251 = vmatpush.bf16.msra.mxu0 %v4280
        %5252 = vmatpush.bf16.msra.mxu0 %v4272
        %5253 = vmatpush.bf16.msra.mxu0 %v4264
        %5254 = vmatpush.bf16.msra.mxu0 %v4256
        %5255 = vmatpush.bf16.msra.mxu0 %v4248
        %5256 = vmatpush.bf16.msra.mxu0 %v4240
        %5257 = vmatpush.bf16.msra.mxu0 %v4232
        %5258 = vmatpush.bf16.msra.mxu0 %v4224
        %5259 = vmatmul.bf16.gmra.mxu0 %v2291
        %v5260 = vpop.f32.mrf.mxu0
        %v5261 = vadd.f32 %v5248, %v5260
        %v5262 = vpop.f32.mrf.mxu0
        %5263 = vdwg.mxu0
        %5264 = vmatpush.bf16.msra.mxu0 %v4344
        %5265 = vmatpush.bf16.msra.mxu0 %v4336
        %5266 = vmatpush.bf16.msra.mxu0 %v4328
        %5267 = vmatpush.bf16.msra.mxu0 %v4320
        %5268 = vmatpush.bf16.msra.mxu0 %v4312
        %5269 = vmatpush.bf16.msra.mxu0 %v4304
        %5270 = vmatpush.bf16.msra.mxu0 %v4296
        %5271 = vmatpush.bf16.msra.mxu0 %v4288
        %5272 = vmatmul.bf16.gmra.mxu0 %v2292
        %v5273 = vpop.f32.mrf.mxu0
        %v5274 = vadd.f32 %v5261, %v5273
        %v5275 = vpop.f32.mrf.mxu0
        %5276 = vdwg.mxu0
        %5277 = vmatpush.bf16.msra.mxu0 %v3897
        %5278 = vmatpush.bf16.msra.mxu0 %v3889
        %5279 = vmatpush.bf16.msra.mxu0 %v3881
        %5280 = vmatpush.bf16.msra.mxu0 %v3873
        %5281 = vmatpush.bf16.msra.mxu0 %v3865
        %5282 = vmatpush.bf16.msra.mxu0 %v3857
        %5283 = vmatpush.bf16.msra.mxu0 %v3849
        %5284 = vmatpush.bf16.msra.mxu0 %v3841
        %5285 = vmatmul.bf16.gmra.mxu0 %v2285
        %v5286 = vpop.f32.mrf.mxu0
        %v5287 = vadd.f32 0.0, %v5286
        %v5288 = vpop.f32.mrf.mxu0
        %5289 = vdwg.mxu0
        %5290 = vmatpush.bf16.msra.mxu0 %v3961
        %5291 = vmatpush.bf16.msra.mxu0 %v3953
        %5292 = vmatpush.bf16.msra.mxu0 %v3945
        %5293 = vmatpush.bf16.msra.mxu0 %v3937
        %5294 = vmatpush.bf16.msra.mxu0 %v3929
        %5295 = vmatpush.bf16.msra.mxu0 %v3921
        %5296 = vmatpush.bf16.msra.mxu0 %v3913
        %5297 = vmatpush.bf16.msra.mxu0 %v3905
        %5298 = vmatmul.bf16.gmra.mxu0 %v2286
        %v5299 = vpop.f32.mrf.mxu0
        %v5300 = vadd.f32 %v5287, %v5299
        %v5301 = vpop.f32.mrf.mxu0
        %5302 = vdwg.mxu0
        %5303 = vmatpush.bf16.msra.mxu0 %v4025
        %5304 = vmatpush.bf16.msra.mxu0 %v4017
        %5305 = vmatpush.bf16.msra.mxu0 %v4009
        %5306 = vmatpush.bf16.msra.mxu0 %v4001
        %5307 = vmatpush.bf16.msra.mxu0 %v3993
        %5308 = vmatpush.bf16.msra.mxu0 %v3985
        %5309 = vmatpush.bf16.msra.mxu0 %v3977
        %5310 = vmatpush.bf16.msra.mxu0 %v3969
        %5311 = vmatmul.bf16.gmra.mxu0 %v2287
        %v5312 = vpop.f32.mrf.mxu0
        %v5313 = vadd.f32 %v5300, %v5312
        %v5314 = vpop.f32.mrf.mxu0
        %5315 = vdwg.mxu0
        %5316 = vmatpush.bf16.msra.mxu0 %v4089
        %5317 = vmatpush.bf16.msra.mxu0 %v4081
        %5318 = vmatpush.bf16.msra.mxu0 %v4073
        %5319 = vmatpush.bf16.msra.mxu0 %v4065
        %5320 = vmatpush.bf16.msra.mxu0 %v4057
        %5321 = vmatpush.bf16.msra.mxu0 %v4049
        %5322 = vmatpush.bf16.msra.mxu0 %v4041
        %5323 = vmatpush.bf16.msra.mxu0 %v4033
        %5324 = vmatmul.bf16.gmra.mxu0 %v2288
        %v5325 = vpop.f32.mrf.mxu0
        %v5326 = vadd.f32 %v5313, %v5325
        %v5327 = vpop.f32.mrf.mxu0
        %5328 = vdwg.mxu0
        %5329 = vmatpush.bf16.msra.mxu0 %v4153
        %5330 = vmatpush.bf16.msra.mxu0 %v4145
        %5331 = vmatpush.bf16.msra.mxu0 %v4137
        %5332 = vmatpush.bf16.msra.mxu0 %v4129
        %5333 = vmatpush.bf16.msra.mxu0 %v4121
        %5334 = vmatpush.bf16.msra.mxu0 %v4113
        %5335 = vmatpush.bf16.msra.mxu0 %v4105
        %5336 = vmatpush.bf16.msra.mxu0 %v4097
        %5337 = vmatmul.bf16.gmra.mxu0 %v2289
        %v5338 = vpop.f32.mrf.mxu0
        %v5339 = vadd.f32 %v5326, %v5338
        %v5340 = vpop.f32.mrf.mxu0
        %5341 = vdwg.mxu0
        %5342 = vmatpush.bf16.msra.mxu0 %v4217
        %5343 = vmatpush.bf16.msra.mxu0 %v4209
        %5344 = vmatpush.bf16.msra.mxu0 %v4201
        %5345 = vmatpush.bf16.msra.mxu0 %v4193
        %5346 = vmatpush.bf16.msra.mxu0 %v4185
        %5347 = vmatpush.bf16.msra.mxu0 %v4177
        %5348 = vmatpush.bf16.msra.mxu0 %v4169
        %5349 = vmatpush.bf16.msra.mxu0 %v4161
        %5350 = vmatmul.bf16.gmra.mxu0 %v2290
        %v5351 = vpop.f32.mrf.mxu0
        %v5352 = vadd.f32 %v5339, %v5351
        %v5353 = vpop.f32.mrf.mxu0
        %5354 = vdwg.mxu0
        %5355 = vmatpush.bf16.msra.mxu0 %v4281
        %5356 = vmatpush.bf16.msra.mxu0 %v4273
        %5357 = vmatpush.bf16.msra.mxu0 %v4265
        %5358 = vmatpush.bf16.msra.mxu0 %v4257
        %5359 = vmatpush.bf16.msra.mxu0 %v4249
        %5360 = vmatpush.bf16.msra.mxu0 %v4241
        %5361 = vmatpush.bf16.msra.mxu0 %v4233
        %5362 = vmatpush.bf16.msra.mxu0 %v4225
        %5363 = vmatmul.bf16.gmra.mxu0 %v2291
        %v5364 = vpop.f32.mrf.mxu0
        %v5365 = vadd.f32 %v5352, %v5364
        %v5366 = vpop.f32.mrf.mxu0
        %5367 = vdwg.mxu0
        %5368 = vmatpush.bf16.msra.mxu0 %v4345
        %5369 = vmatpush.bf16.msra.mxu0 %v4337
        %5370 = vmatpush.bf16.msra.mxu0 %v4329
        %5371 = vmatpush.bf16.msra.mxu0 %v4321
        %5372 = vmatpush.bf16.msra.mxu0 %v4313
        %5373 = vmatpush.bf16.msra.mxu0 %v4305
        %5374 = vmatpush.bf16.msra.mxu0 %v4297
        %5375 = vmatpush.bf16.msra.mxu0 %v4289
        %5376 = vmatmul.bf16.gmra.mxu0 %v2292
        %v5377 = vpop.f32.mrf.mxu0
        %v5378 = vadd.f32 %v5365, %v5377
        %v5379 = vpop.f32.mrf.mxu0
        %5380 = vdwg.mxu0
        %5381 = vmatpush.bf16.msra.mxu0 %v3898
        %5382 = vmatpush.bf16.msra.mxu0 %v3890
        %5383 = vmatpush.bf16.msra.mxu0 %v3882
        %5384 = vmatpush.bf16.msra.mxu0 %v3874
        %5385 = vmatpush.bf16.msra.mxu0 %v3866
        %5386 = vmatpush.bf16.msra.mxu0 %v3858
        %5387 = vmatpush.bf16.msra.mxu0 %v3850
        %5388 = vmatpush.bf16.msra.mxu0 %v3842
        %5389 = vmatmul.bf16.gmra.mxu0 %v2285
        %v5390 = vpop.f32.mrf.mxu0
        %v5391 = vadd.f32 0.0, %v5390
        %v5392 = vpop.f32.mrf.mxu0
        %5393 = vdwg.mxu0
        %5394 = vmatpush.bf16.msra.mxu0 %v3962
        %5395 = vmatpush.bf16.msra.mxu0 %v3954
        %5396 = vmatpush.bf16.msra.mxu0 %v3946
        %5397 = vmatpush.bf16.msra.mxu0 %v3938
        %5398 = vmatpush.bf16.msra.mxu0 %v3930
        %5399 = vmatpush.bf16.msra.mxu0 %v3922
        %5400 = vmatpush.bf16.msra.mxu0 %v3914
        %5401 = vmatpush.bf16.msra.mxu0 %v3906
        %5402 = vmatmul.bf16.gmra.mxu0 %v2286
        %v5403 = vpop.f32.mrf.mxu0
        %v5404 = vadd.f32 %v5391, %v5403
        %v5405 = vpop.f32.mrf.mxu0
        %5406 = vdwg.mxu0
        %5407 = vmatpush.bf16.msra.mxu0 %v4026
        %5408 = vmatpush.bf16.msra.mxu0 %v4018
        %5409 = vmatpush.bf16.msra.mxu0 %v4010
        %5410 = vmatpush.bf16.msra.mxu0 %v4002
        %5411 = vmatpush.bf16.msra.mxu0 %v3994
        %5412 = vmatpush.bf16.msra.mxu0 %v3986
        %5413 = vmatpush.bf16.msra.mxu0 %v3978
        %5414 = vmatpush.bf16.msra.mxu0 %v3970
        %5415 = vmatmul.bf16.gmra.mxu0 %v2287
        %v5416 = vpop.f32.mrf.mxu0
        %v5417 = vadd.f32 %v5404, %v5416
        %v5418 = vpop.f32.mrf.mxu0
        %5419 = vdwg.mxu0
        %5420 = vmatpush.bf16.msra.mxu0 %v4090
        %5421 = vmatpush.bf16.msra.mxu0 %v4082
        %5422 = vmatpush.bf16.msra.mxu0 %v4074
        %5423 = vmatpush.bf16.msra.mxu0 %v4066
        %5424 = vmatpush.bf16.msra.mxu0 %v4058
        %5425 = vmatpush.bf16.msra.mxu0 %v4050
        %5426 = vmatpush.bf16.msra.mxu0 %v4042
        %5427 = vmatpush.bf16.msra.mxu0 %v4034
        %5428 = vmatmul.bf16.gmra.mxu0 %v2288
        %v5429 = vpop.f32.mrf.mxu0
        %v5430 = vadd.f32 %v5417, %v5429
        %v5431 = vpop.f32.mrf.mxu0
        %5432 = vdwg.mxu0
        %5433 = vmatpush.bf16.msra.mxu0 %v4154
        %5434 = vmatpush.bf16.msra.mxu0 %v4146
        %5435 = vmatpush.bf16.msra.mxu0 %v4138
        %5436 = vmatpush.bf16.msra.mxu0 %v4130
        %5437 = vmatpush.bf16.msra.mxu0 %v4122
        %5438 = vmatpush.bf16.msra.mxu0 %v4114
        %5439 = vmatpush.bf16.msra.mxu0 %v4106
        %5440 = vmatpush.bf16.msra.mxu0 %v4098
        %5441 = vmatmul.bf16.gmra.mxu0 %v2289
        %v5442 = vpop.f32.mrf.mxu0
        %v5443 = vadd.f32 %v5430, %v5442
        %v5444 = vpop.f32.mrf.mxu0
        %5445 = vdwg.mxu0
        %5446 = vmatpush.bf16.msra.mxu0 %v4218
        %5447 = vmatpush.bf16.msra.mxu0 %v4210
        %5448 = vmatpush.bf16.msra.mxu0 %v4202
        %5449 = vmatpush.bf16.msra.mxu0 %v4194
        %5450 = vmatpush.bf16.msra.mxu0 %v4186
        %5451 = vmatpush.bf16.msra.mxu0 %v4178
        %5452 = vmatpush.bf16.msra.mxu0 %v4170
        %5453 = vmatpush.bf16.msra.mxu0 %v4162
        %5454 = vmatmul.bf16.gmra.mxu0 %v2290
        %v5455 = vpop.f32.mrf.mxu0
        %v5456 = vadd.f32 %v5443, %v5455
        %v5457 = vpop.f32.mrf.mxu0
        %5458 = vdwg.mxu0
        %5459 = vmatpush.bf16.msra.mxu0 %v4282
        %5460 = vmatpush.bf16.msra.mxu0 %v4274
        %5461 = vmatpush.bf16.msra.mxu0 %v4266
        %5462 = vmatpush.bf16.msra.mxu0 %v4258
        %5463 = vmatpush.bf16.msra.mxu0 %v4250
        %5464 = vmatpush.bf16.msra.mxu0 %v4242
        %5465 = vmatpush.bf16.msra.mxu0 %v4234
        %5466 = vmatpush.bf16.msra.mxu0 %v4226
        %5467 = vmatmul.bf16.gmra.mxu0 %v2291
        %v5468 = vpop.f32.mrf.mxu0
        %v5469 = vadd.f32 %v5456, %v5468
        %v5470 = vpop.f32.mrf.mxu0
        %5471 = vdwg.mxu0
        %5472 = vmatpush.bf16.msra.mxu0 %v4346
        %5473 = vmatpush.bf16.msra.mxu0 %v4338
        %5474 = vmatpush.bf16.msra.mxu0 %v4330
        %5475 = vmatpush.bf16.msra.mxu0 %v4322
        %5476 = vmatpush.bf16.msra.mxu0 %v4314
        %5477 = vmatpush.bf16.msra.mxu0 %v4306
        %5478 = vmatpush.bf16.msra.mxu0 %v4298
        %5479 = vmatpush.bf16.msra.mxu0 %v4290
        %5480 = vmatmul.bf16.gmra.mxu0 %v2292
        %v5481 = vpop.f32.mrf.mxu0
        %v5482 = vadd.f32 %v5469, %v5481
        %v5483 = vpop.f32.mrf.mxu0
        %5484 = vdwg.mxu0
        %5485 = vmatpush.bf16.msra.mxu0 %v3899
        %5486 = vmatpush.bf16.msra.mxu0 %v3891
        %5487 = vmatpush.bf16.msra.mxu0 %v3883
        %5488 = vmatpush.bf16.msra.mxu0 %v3875
        %5489 = vmatpush.bf16.msra.mxu0 %v3867
        %5490 = vmatpush.bf16.msra.mxu0 %v3859
        %5491 = vmatpush.bf16.msra.mxu0 %v3851
        %5492 = vmatpush.bf16.msra.mxu0 %v3843
        %5493 = vmatmul.bf16.gmra.mxu0 %v2285
        %v5494 = vpop.f32.mrf.mxu0
        %v5495 = vadd.f32 0.0, %v5494
        %v5496 = vpop.f32.mrf.mxu0
        %5497 = vdwg.mxu0
        %5498 = vmatpush.bf16.msra.mxu0 %v3963
        %5499 = vmatpush.bf16.msra.mxu0 %v3955
        %5500 = vmatpush.bf16.msra.mxu0 %v3947
        %5501 = vmatpush.bf16.msra.mxu0 %v3939
        %5502 = vmatpush.bf16.msra.mxu0 %v3931
        %5503 = vmatpush.bf16.msra.mxu0 %v3923
        %5504 = vmatpush.bf16.msra.mxu0 %v3915
        %5505 = vmatpush.bf16.msra.mxu0 %v3907
        %5506 = vmatmul.bf16.gmra.mxu0 %v2286
        %v5507 = vpop.f32.mrf.mxu0
        %v5508 = vadd.f32 %v5495, %v5507
        %v5509 = vpop.f32.mrf.mxu0
        %5510 = vdwg.mxu0
        %5511 = vmatpush.bf16.msra.mxu0 %v4027
        %5512 = vmatpush.bf16.msra.mxu0 %v4019
        %5513 = vmatpush.bf16.msra.mxu0 %v4011
        %5514 = vmatpush.bf16.msra.mxu0 %v4003
        %5515 = vmatpush.bf16.msra.mxu0 %v3995
        %5516 = vmatpush.bf16.msra.mxu0 %v3987
        %5517 = vmatpush.bf16.msra.mxu0 %v3979
        %5518 = vmatpush.bf16.msra.mxu0 %v3971
        %5519 = vmatmul.bf16.gmra.mxu0 %v2287
        %v5520 = vpop.f32.mrf.mxu0
        %v5521 = vadd.f32 %v5508, %v5520
        %v5522 = vpop.f32.mrf.mxu0
        %5523 = vdwg.mxu0
        %5524 = vmatpush.bf16.msra.mxu0 %v4091
        %5525 = vmatpush.bf16.msra.mxu0 %v4083
        %5526 = vmatpush.bf16.msra.mxu0 %v4075
        %5527 = vmatpush.bf16.msra.mxu0 %v4067
        %5528 = vmatpush.bf16.msra.mxu0 %v4059
        %5529 = vmatpush.bf16.msra.mxu0 %v4051
        %5530 = vmatpush.bf16.msra.mxu0 %v4043
        %5531 = vmatpush.bf16.msra.mxu0 %v4035
        %5532 = vmatmul.bf16.gmra.mxu0 %v2288
        %v5533 = vpop.f32.mrf.mxu0
        %v5534 = vadd.f32 %v5521, %v5533
        %v5535 = vpop.f32.mrf.mxu0
        %5536 = vdwg.mxu0
        %5537 = vmatpush.bf16.msra.mxu0 %v4155
        %5538 = vmatpush.bf16.msra.mxu0 %v4147
        %5539 = vmatpush.bf16.msra.mxu0 %v4139
        %5540 = vmatpush.bf16.msra.mxu0 %v4131
        %5541 = vmatpush.bf16.msra.mxu0 %v4123
        %5542 = vmatpush.bf16.msra.mxu0 %v4115
        %5543 = vmatpush.bf16.msra.mxu0 %v4107
        %5544 = vmatpush.bf16.msra.mxu0 %v4099
        %5545 = vmatmul.bf16.gmra.mxu0 %v2289
        %v5546 = vpop.f32.mrf.mxu0
        %v5547 = vadd.f32 %v5534, %v5546
        %v5548 = vpop.f32.mrf.mxu0
        %5549 = vdwg.mxu0
        %5550 = vmatpush.bf16.msra.mxu0 %v4219
        %5551 = vmatpush.bf16.msra.mxu0 %v4211
        %5552 = vmatpush.bf16.msra.mxu0 %v4203
        %5553 = vmatpush.bf16.msra.mxu0 %v4195
        %5554 = vmatpush.bf16.msra.mxu0 %v4187
        %5555 = vmatpush.bf16.msra.mxu0 %v4179
        %5556 = vmatpush.bf16.msra.mxu0 %v4171
        %5557 = vmatpush.bf16.msra.mxu0 %v4163
        %5558 = vmatmul.bf16.gmra.mxu0 %v2290
        %v5559 = vpop.f32.mrf.mxu0
        %v5560 = vadd.f32 %v5547, %v5559
        %v5561 = vpop.f32.mrf.mxu0
        %5562 = vdwg.mxu0
        %5563 = vmatpush.bf16.msra.mxu0 %v4283
        %5564 = vmatpush.bf16.msra.mxu0 %v4275
        %5565 = vmatpush.bf16.msra.mxu0 %v4267
        %5566 = vmatpush.bf16.msra.mxu0 %v4259
        %5567 = vmatpush.bf16.msra.mxu0 %v4251
        %5568 = vmatpush.bf16.msra.mxu0 %v4243
        %5569 = vmatpush.bf16.msra.mxu0 %v4235
        %5570 = vmatpush.bf16.msra.mxu0 %v4227
        %5571 = vmatmul.bf16.gmra.mxu0 %v2291
        %v5572 = vpop.f32.mrf.mxu0
        %v5573 = vadd.f32 %v5560, %v5572
        %v5574 = vpop.f32.mrf.mxu0
        %5575 = vdwg.mxu0
        %5576 = vmatpush.bf16.msra.mxu0 %v4347
        %5577 = vmatpush.bf16.msra.mxu0 %v4339
        %5578 = vmatpush.bf16.msra.mxu0 %v4331
        %5579 = vmatpush.bf16.msra.mxu0 %v4323
        %5580 = vmatpush.bf16.msra.mxu0 %v4315
        %5581 = vmatpush.bf16.msra.mxu0 %v4307
        %5582 = vmatpush.bf16.msra.mxu0 %v4299
        %5583 = vmatpush.bf16.msra.mxu0 %v4291
        %5584 = vmatmul.bf16.gmra.mxu0 %v2292
        %v5585 = vpop.f32.mrf.mxu0
        %v5586 = vadd.f32 %v5573, %v5585
        %v5587 = vpop.f32.mrf.mxu0
        %5588 = vdwg.mxu0
        %5589 = vmatpush.bf16.msra.mxu0 %v3900
        %5590 = vmatpush.bf16.msra.mxu0 %v3892
        %5591 = vmatpush.bf16.msra.mxu0 %v3884
        %5592 = vmatpush.bf16.msra.mxu0 %v3876
        %5593 = vmatpush.bf16.msra.mxu0 %v3868
        %5594 = vmatpush.bf16.msra.mxu0 %v3860
        %5595 = vmatpush.bf16.msra.mxu0 %v3852
        %5596 = vmatpush.bf16.msra.mxu0 %v3844
        %5597 = vmatmul.bf16.gmra.mxu0 %v2285
        %v5598 = vpop.f32.mrf.mxu0
        %v5599 = vadd.f32 0.0, %v5598
        %v5600 = vpop.f32.mrf.mxu0
        %5601 = vdwg.mxu0
        %5602 = vmatpush.bf16.msra.mxu0 %v3964
        %5603 = vmatpush.bf16.msra.mxu0 %v3956
        %5604 = vmatpush.bf16.msra.mxu0 %v3948
        %5605 = vmatpush.bf16.msra.mxu0 %v3940
        %5606 = vmatpush.bf16.msra.mxu0 %v3932
        %5607 = vmatpush.bf16.msra.mxu0 %v3924
        %5608 = vmatpush.bf16.msra.mxu0 %v3916
        %5609 = vmatpush.bf16.msra.mxu0 %v3908
        %5610 = vmatmul.bf16.gmra.mxu0 %v2286
        %v5611 = vpop.f32.mrf.mxu0
        %v5612 = vadd.f32 %v5599, %v5611
        %v5613 = vpop.f32.mrf.mxu0
        %5614 = vdwg.mxu0
        %5615 = vmatpush.bf16.msra.mxu0 %v4028
        %5616 = vmatpush.bf16.msra.mxu0 %v4020
        %5617 = vmatpush.bf16.msra.mxu0 %v4012
        %5618 = vmatpush.bf16.msra.mxu0 %v4004
        %5619 = vmatpush.bf16.msra.mxu0 %v3996
        %5620 = vmatpush.bf16.msra.mxu0 %v3988
        %5621 = vmatpush.bf16.msra.mxu0 %v3980
        %5622 = vmatpush.bf16.msra.mxu0 %v3972
        %5623 = vmatmul.bf16.gmra.mxu0 %v2287
        %v5624 = vpop.f32.mrf.mxu0
        %v5625 = vadd.f32 %v5612, %v5624
        %v5626 = vpop.f32.mrf.mxu0
        %5627 = vdwg.mxu0
        %5628 = vmatpush.bf16.msra.mxu0 %v4092
        %5629 = vmatpush.bf16.msra.mxu0 %v4084
        %5630 = vmatpush.bf16.msra.mxu0 %v4076
        %5631 = vmatpush.bf16.msra.mxu0 %v4068
        %5632 = vmatpush.bf16.msra.mxu0 %v4060
        %5633 = vmatpush.bf16.msra.mxu0 %v4052
        %5634 = vmatpush.bf16.msra.mxu0 %v4044
        %5635 = vmatpush.bf16.msra.mxu0 %v4036
        %5636 = vmatmul.bf16.gmra.mxu0 %v2288
        %v5637 = vpop.f32.mrf.mxu0
        %v5638 = vadd.f32 %v5625, %v5637
        %v5639 = vpop.f32.mrf.mxu0
        %5640 = vdwg.mxu0
        %5641 = vmatpush.bf16.msra.mxu0 %v4156
        %5642 = vmatpush.bf16.msra.mxu0 %v4148
        %5643 = vmatpush.bf16.msra.mxu0 %v4140
        %5644 = vmatpush.bf16.msra.mxu0 %v4132
        %5645 = vmatpush.bf16.msra.mxu0 %v4124
        %5646 = vmatpush.bf16.msra.mxu0 %v4116
        %5647 = vmatpush.bf16.msra.mxu0 %v4108
        %5648 = vmatpush.bf16.msra.mxu0 %v4100
        %5649 = vmatmul.bf16.gmra.mxu0 %v2289
        %v5650 = vpop.f32.mrf.mxu0
        %v5651 = vadd.f32 %v5638, %v5650
        %v5652 = vpop.f32.mrf.mxu0
        %5653 = vdwg.mxu0
        %5654 = vmatpush.bf16.msra.mxu0 %v4220
        %5655 = vmatpush.bf16.msra.mxu0 %v4212
        %5656 = vmatpush.bf16.msra.mxu0 %v4204
        %5657 = vmatpush.bf16.msra.mxu0 %v4196
        %5658 = vmatpush.bf16.msra.mxu0 %v4188
        %5659 = vmatpush.bf16.msra.mxu0 %v4180
        %5660 = vmatpush.bf16.msra.mxu0 %v4172
        %5661 = vmatpush.bf16.msra.mxu0 %v4164
        %5662 = vmatmul.bf16.gmra.mxu0 %v2290
        %v5663 = vpop.f32.mrf.mxu0
        %v5664 = vadd.f32 %v5651, %v5663
        %v5665 = vpop.f32.mrf.mxu0
        %5666 = vdwg.mxu0
        %5667 = vmatpush.bf16.msra.mxu0 %v4284
        %5668 = vmatpush.bf16.msra.mxu0 %v4276
        %5669 = vmatpush.bf16.msra.mxu0 %v4268
        %5670 = vmatpush.bf16.msra.mxu0 %v4260
        %5671 = vmatpush.bf16.msra.mxu0 %v4252
        %5672 = vmatpush.bf16.msra.mxu0 %v4244
        %5673 = vmatpush.bf16.msra.mxu0 %v4236
        %5674 = vmatpush.bf16.msra.mxu0 %v4228
        %5675 = vmatmul.bf16.gmra.mxu0 %v2291
        %v5676 = vpop.f32.mrf.mxu0
        %v5677 = vadd.f32 %v5664, %v5676
        %v5678 = vpop.f32.mrf.mxu0
        %5679 = vdwg.mxu0
        %5680 = vmatpush.bf16.msra.mxu0 %v4348
        %5681 = vmatpush.bf16.msra.mxu0 %v4340
        %5682 = vmatpush.bf16.msra.mxu0 %v4332
        %5683 = vmatpush.bf16.msra.mxu0 %v4324
        %5684 = vmatpush.bf16.msra.mxu0 %v4316
        %5685 = vmatpush.bf16.msra.mxu0 %v4308
        %5686 = vmatpush.bf16.msra.mxu0 %v4300
        %5687 = vmatpush.bf16.msra.mxu0 %v4292
        %5688 = vmatmul.bf16.gmra.mxu0 %v2292
        %v5689 = vpop.f32.mrf.mxu0
        %v5690 = vadd.f32 %v5677, %v5689
        %v5691 = vpop.f32.mrf.mxu0
        %5692 = vdwg.mxu0
        %5694 = vst [vmem:[#allocation1] ss:$9 sm:$0xff] %v1257
        %v5695 = vld [vmem:[#allocation1] sm:$0xff]
        %v5696 = vld [vmem:[#allocation1 + $0x9] sm:$0xff]
        %v5697 = vld [vmem:[#allocation1 + $0x12] sm:$0xff]
        %v5698 = vld [vmem:[#allocation1 + $0x1b] sm:$0xff]
        %v5699 = vld [vmem:[#allocation1 + $0x24] sm:$0xff]
        %v5700 = vld [vmem:[#allocation1 + $0x2d] sm:$0xff]
        %v5701 = vld [vmem:[#allocation1 + $0x36] sm:$0xff]
        %v5702 = vld [vmem:[#allocation1 + $0x3f] sm:$0xff]
        %v6223 = vunpack.c.l.b16 %v1258
        %v6224 = vunpack.c.h.b16 %v1258
        %v6225 = vunpack.c.l.b16 %v1259
        %v6226 = vunpack.c.h.b16 %v1259
        %v6227 = vunpack.c.l.b16 %v1260
        %v6228 = vunpack.c.h.b16 %v1260
        %v6229 = vunpack.c.l.b16 %v1261
        %v6230 = vunpack.c.h.b16 %v1261
        %v6231 = vunpack.c.l.b16 %v1262
        %v6232 = vunpack.c.h.b16 %v1262
        %v6233 = vunpack.c.l.b16 %v1263
        %v6234 = vunpack.c.h.b16 %v1263
        %v6235 = vunpack.c.l.b16 %v1264
        %v6236 = vunpack.c.h.b16 %v1264
        %v6237 = vunpack.c.l.b16 %v1265
        %v6238 = vunpack.c.h.b16 %v1265
        %v6239 = vunpack.c.l.b16 %v1266
        %v6240 = vunpack.c.h.b16 %v1266
        %v6241 = vunpack.c.l.b16 %v1267
        %v6242 = vunpack.c.h.b16 %v1267
        %v6243 = vunpack.c.l.b16 %v1268
        %v6244 = vunpack.c.h.b16 %v1268
        %v6245 = vunpack.c.l.b16 %v1269
        %v6246 = vunpack.c.h.b16 %v1269
        %v6247 = vunpack.c.l.b16 %v1270
        %v6248 = vunpack.c.h.b16 %v1270
        %v6249 = vunpack.c.l.b16 %v1271
        %v6250 = vunpack.c.h.b16 %v1271
        %v6251 = vunpack.c.l.b16 %v1272
        %v6252 = vunpack.c.h.b16 %v1272
        %v6253 = vunpack.c.l.b16 %v1273
        %v6254 = vunpack.c.h.b16 %v1273
        %v6255 = vunpack.c.l.b16 %v1274
        %v6256 = vunpack.c.h.b16 %v1274
        %v6257 = vunpack.c.l.b16 %v1275
        %v6258 = vunpack.c.h.b16 %v1275
        %v6259 = vunpack.c.l.b16 %v1276
        %v6260 = vunpack.c.h.b16 %v1276
        %v6261 = vunpack.c.l.b16 %v1277
        %v6262 = vunpack.c.h.b16 %v1277
        %v6263 = vunpack.c.l.b16 %v1278
        %v6264 = vunpack.c.h.b16 %v1278
        %v6265 = vunpack.c.l.b16 %v1279
        %v6266 = vunpack.c.h.b16 %v1279
        %v6267 = vunpack.c.l.b16 %v1280
        %v6268 = vunpack.c.h.b16 %v1280
        %v6269 = vunpack.c.l.b16 %v1281
        %v6270 = vunpack.c.h.b16 %v1281
        %v6271 = vunpack.c.l.b16 %v1282
        %v6272 = vunpack.c.h.b16 %v1282
        %v6273 = vunpack.c.l.b16 %v1283
        %v6274 = vunpack.c.h.b16 %v1283
        %v6275 = vunpack.c.l.b16 %v1284
        %v6276 = vunpack.c.h.b16 %v1284
        %v6277 = vunpack.c.l.b16 %v1285
        %v6278 = vunpack.c.h.b16 %v1285
        %v6279 = vunpack.c.l.b16 %v1286
        %v6280 = vunpack.c.h.b16 %v1286
        %v6281 = vunpack.c.l.b16 %v1287
        %v6282 = vunpack.c.h.b16 %v1287
        %v6283 = vunpack.c.l.b16 %v1288
        %v6284 = vunpack.c.h.b16 %v1288
        %v6285 = vunpack.c.l.b16 %v1289
        %v6286 = vunpack.c.h.b16 %v1289
        %v6287 = vunpack.c.l.b16 %v1290
        %v6288 = vunpack.c.h.b16 %v1290
        %v6289 = vunpack.c.l.b16 %v1291
        %v6290 = vunpack.c.h.b16 %v1291
        %v6291 = vunpack.c.l.b16 %v1292
        %v6292 = vunpack.c.h.b16 %v1292
        %v6293 = vunpack.c.l.b16 %v1293
        %v6294 = vunpack.c.h.b16 %v1293
        %v6295 = vunpack.c.l.b16 %v1294
        %v6296 = vunpack.c.h.b16 %v1294
        %v6297 = vunpack.c.l.b16 %v1295
        %v6298 = vunpack.c.h.b16 %v1295
        %v6299 = vunpack.c.l.b16 %v1296
        %v6300 = vunpack.c.h.b16 %v1296
        %v6301 = vunpack.c.l.b16 %v1297
        %v6302 = vunpack.c.h.b16 %v1297
        %v6303 = vunpack.c.l.b16 %v1298
        %v6304 = vunpack.c.h.b16 %v1298
        %v6305 = vunpack.c.l.b16 %v1299
        %v6306 = vunpack.c.h.b16 %v1299
        %v6307 = vunpack.c.l.b16 %v1300
        %v6308 = vunpack.c.h.b16 %v1300
        %v6309 = vunpack.c.l.b16 %v1301
        %v6310 = vunpack.c.h.b16 %v1301
        %v6311 = vunpack.c.l.b16 %v1302
        %v6312 = vunpack.c.h.b16 %v1302
        %v6313 = vunpack.c.l.b16 %v1303
        %v6314 = vunpack.c.h.b16 %v1303
        %v6315 = vunpack.c.l.b16 %v1304
        %v6316 = vunpack.c.h.b16 %v1304
        %v6317 = vunpack.c.l.b16 %v1305
        %v6318 = vunpack.c.h.b16 %v1305
        %v6319 = vunpack.c.l.b16 %v1306
        %v6320 = vunpack.c.h.b16 %v1306
        %v6321 = vunpack.c.l.b16 %v1307
        %v6322 = vunpack.c.h.b16 %v1307
        %v6323 = vunpack.c.l.b16 %v1308
        %v6324 = vunpack.c.h.b16 %v1308
        %v6325 = vunpack.c.l.b16 %v1309
        %v6326 = vunpack.c.h.b16 %v1309
        %v6327 = vunpack.c.l.b16 %v1310
        %v6328 = vunpack.c.h.b16 %v1310
        %v6329 = vunpack.c.l.b16 %v1311
        %v6330 = vunpack.c.h.b16 %v1311
        %v6331 = vunpack.c.l.b16 %v1312
        %v6332 = vunpack.c.h.b16 %v1312
        %v6333 = vunpack.c.l.b16 %v1313
        %v6334 = vunpack.c.h.b16 %v1313
        %v6335 = vunpack.c.l.b16 %v1314
        %v6336 = vunpack.c.h.b16 %v1314
        %v6337 = vunpack.c.l.b16 %v1315
        %v6338 = vunpack.c.h.b16 %v1315
        %v6339 = vunpack.c.l.b16 %v1316
        %v6340 = vunpack.c.h.b16 %v1316
        %v6341 = vunpack.c.l.b16 %v1317
        %v6342 = vunpack.c.h.b16 %v1317
        %v6343 = vunpack.c.l.b16 %v1318
        %v6344 = vunpack.c.h.b16 %v1318
        %v6345 = vunpack.c.l.b16 %v1319
        %v6346 = vunpack.c.h.b16 %v1319
        %v6347 = vunpack.c.l.b16 %v1320
        %v6348 = vunpack.c.h.b16 %v1320
        %v6349 = vunpack.c.l.b16 %v1321
        %v6350 = vunpack.c.h.b16 %v1321
        %v6351 = vunpack.c.l.b16 %v1322
        %v6352 = vunpack.c.h.b16 %v1322
        %v6353 = vunpack.c.l.b16 %v1323
        %v6354 = vunpack.c.h.b16 %v1323
        %v6355 = vunpack.c.l.b16 %v1324
        %v6356 = vunpack.c.h.b16 %v1324
        %v6357 = vunpack.c.l.b16 %v1325
        %v6358 = vunpack.c.h.b16 %v1325
        %v6359 = vunpack.c.l.b16 %v1326
        %v6360 = vunpack.c.h.b16 %v1326
        %v6361 = vunpack.c.l.b16 %v1327
        %v6362 = vunpack.c.h.b16 %v1327
        %v6363 = vunpack.c.l.b16 %v1328
        %v6364 = vunpack.c.h.b16 %v1328
        %v6365 = vunpack.c.l.b16 %v1329
        %v6366 = vunpack.c.h.b16 %v1329
        %v6367 = vunpack.c.l.b16 %v1330
        %v6368 = vunpack.c.h.b16 %v1330
        %v6369 = vunpack.c.l.b16 %v1331
        %v6370 = vunpack.c.h.b16 %v1331
        %v6371 = vunpack.c.l.b16 %v1332
        %v6372 = vunpack.c.h.b16 %v1332
        %v6373 = vunpack.c.l.b16 %v1333
        %v6374 = vunpack.c.h.b16 %v1333
        %v6375 = vunpack.c.l.b16 %v1334
        %v6376 = vunpack.c.h.b16 %v1334
        %v6377 = vunpack.c.l.b16 %v1335
        %v6378 = vunpack.c.h.b16 %v1335
        %v6379 = vunpack.c.l.b16 %v1336
        %v6380 = vunpack.c.h.b16 %v1336
        %v6381 = vunpack.c.l.b16 %v1337
        %v6382 = vunpack.c.h.b16 %v1337
        %v6383 = vunpack.c.l.b16 %v1338
        %v6384 = vunpack.c.h.b16 %v1338
        %v6385 = vunpack.c.l.b16 %v1339
        %v6386 = vunpack.c.h.b16 %v1339
        %v6387 = vunpack.c.l.b16 %v1340
        %v6388 = vunpack.c.h.b16 %v1340
        %v6389 = vunpack.c.l.b16 %v1341
        %v6390 = vunpack.c.h.b16 %v1341
        %v6391 = vunpack.c.l.b16 %v1342
        %v6392 = vunpack.c.h.b16 %v1342
        %v6393 = vunpack.c.l.b16 %v1343
        %v6394 = vunpack.c.h.b16 %v1343
        %v6395 = vunpack.c.l.b16 %v1344
        %v6396 = vunpack.c.h.b16 %v1344
        %v6397 = vunpack.c.l.b16 %v1345
        %v6398 = vunpack.c.h.b16 %v1345
        %v6399 = vunpack.c.l.b16 %v1346
        %v6400 = vunpack.c.h.b16 %v1346
        %v6401 = vunpack.c.l.b16 %v1347
        %v6402 = vunpack.c.h.b16 %v1347
        %v6403 = vunpack.c.l.b16 %v1348
        %v6404 = vunpack.c.h.b16 %v1348
        %v6405 = vunpack.c.l.b16 %v1349
        %v6406 = vunpack.c.h.b16 %v1349
        %v6407 = vunpack.c.l.b16 %v1350
        %v6408 = vunpack.c.h.b16 %v1350
        %v6409 = vunpack.c.l.b16 %v1351
        %v6410 = vunpack.c.h.b16 %v1351
        %v6411 = vunpack.c.l.b16 %v1352
        %v6412 = vunpack.c.h.b16 %v1352
        %v6413 = vunpack.c.l.b16 %v1353
        %v6414 = vunpack.c.h.b16 %v1353
        %v6415 = vunpack.c.l.b16 %v1354
        %v6416 = vunpack.c.h.b16 %v1354
        %v6417 = vunpack.c.l.b16 %v1355
        %v6418 = vunpack.c.h.b16 %v1355
        %v6419 = vunpack.c.l.b16 %v1356
        %v6420 = vunpack.c.h.b16 %v1356
        %v6421 = vunpack.c.l.b16 %v1357
        %v6422 = vunpack.c.h.b16 %v1357
        %v6423 = vunpack.c.l.b16 %v1358
        %v6424 = vunpack.c.h.b16 %v1358
        %v6425 = vunpack.c.l.b16 %v1359
        %v6426 = vunpack.c.h.b16 %v1359
        %v6427 = vunpack.c.l.b16 %v1360
        %v6428 = vunpack.c.h.b16 %v1360
        %v6429 = vunpack.c.l.b16 %v1361
        %v6430 = vunpack.c.h.b16 %v1361
        %v6431 = vunpack.c.l.b16 %v1362
        %v6432 = vunpack.c.h.b16 %v1362
        %v6433 = vunpack.c.l.b16 %v1363
        %v6434 = vunpack.c.h.b16 %v1363
        %v6435 = vunpack.c.l.b16 %v1364
        %v6436 = vunpack.c.h.b16 %v1364
        %v6437 = vunpack.c.l.b16 %v1365
        %v6438 = vunpack.c.h.b16 %v1365
        %v6439 = vunpack.c.l.b16 %v1366
        %v6440 = vunpack.c.h.b16 %v1366
        %v6441 = vunpack.c.l.b16 %v1367
        %v6442 = vunpack.c.h.b16 %v1367
        %v6443 = vunpack.c.l.b16 %v1368
        %v6444 = vunpack.c.h.b16 %v1368
        %v6445 = vunpack.c.l.b16 %v1369
        %v6446 = vunpack.c.h.b16 %v1369
        %v6447 = vunpack.c.l.b16 %v1370
        %v6448 = vunpack.c.h.b16 %v1370
        %v6449 = vunpack.c.l.b16 %v1371
        %v6450 = vunpack.c.h.b16 %v1371
        %v6451 = vunpack.c.l.b16 %v1372
        %v6452 = vunpack.c.h.b16 %v1372
        %v6453 = vunpack.c.l.b16 %v1373
        %v6454 = vunpack.c.h.b16 %v1373
        %v6455 = vunpack.c.l.b16 %v1374
        %v6456 = vunpack.c.h.b16 %v1374
        %v6457 = vunpack.c.l.b16 %v1375
        %v6458 = vunpack.c.h.b16 %v1375
        %v6459 = vunpack.c.l.b16 %v1376
        %v6460 = vunpack.c.h.b16 %v1376
        %v6461 = vunpack.c.l.b16 %v1377
        %v6462 = vunpack.c.h.b16 %v1377
        %v6463 = vunpack.c.l.b16 %v1378
        %v6464 = vunpack.c.h.b16 %v1378
        %v6465 = vunpack.c.l.b16 %v1379
        %v6466 = vunpack.c.h.b16 %v1379
        %v6467 = vunpack.c.l.b16 %v1380
        %v6468 = vunpack.c.h.b16 %v1380
        %v6469 = vunpack.c.l.b16 %v1381
        %v6470 = vunpack.c.h.b16 %v1381
        %v6471 = vunpack.c.l.b16 %v1382
        %v6472 = vunpack.c.h.b16 %v1382
        %v6473 = vunpack.c.l.b16 %v1383
        %v6474 = vunpack.c.h.b16 %v1383
        %v6475 = vunpack.c.l.b16 %v1384
        %v6476 = vunpack.c.h.b16 %v1384
        %v6477 = vunpack.c.l.b16 %v1385
        %v6478 = vunpack.c.h.b16 %v1385
        %v6479 = vunpack.c.l.b16 %v1386
        %v6480 = vunpack.c.h.b16 %v1386
        %v6481 = vunpack.c.l.b16 %v1387
        %v6482 = vunpack.c.h.b16 %v1387
        %v6483 = vunpack.c.l.b16 %v1388
        %v6484 = vunpack.c.h.b16 %v1388
        %v6485 = vunpack.c.l.b16 %v1389
        %v6486 = vunpack.c.h.b16 %v1389
        %v6487 = vunpack.c.l.b16 %v1390
        %v6488 = vunpack.c.h.b16 %v1390
        %v6489 = vunpack.c.l.b16 %v1391
        %v6490 = vunpack.c.h.b16 %v1391
        %v6491 = vunpack.c.l.b16 %v1392
        %v6492 = vunpack.c.h.b16 %v1392
        %v6493 = vunpack.c.l.b16 %v1393
        %v6494 = vunpack.c.h.b16 %v1393
        %v6495 = vunpack.c.l.b16 %v1394
        %v6496 = vunpack.c.h.b16 %v1394
        %v6497 = vunpack.c.l.b16 %v1395
        %v6498 = vunpack.c.h.b16 %v1395
        %v6499 = vunpack.c.l.b16 %v1396
        %v6500 = vunpack.c.h.b16 %v1396
        %v6501 = vunpack.c.l.b16 %v1397
        %v6502 = vunpack.c.h.b16 %v1397
        %v6503 = vunpack.c.l.b16 %v1398
        %v6504 = vunpack.c.h.b16 %v1398
        %v6505 = vunpack.c.l.b16 %v1399
        %v6506 = vunpack.c.h.b16 %v1399
        %v6507 = vunpack.c.l.b16 %v1400
        %v6508 = vunpack.c.h.b16 %v1400
        %v6509 = vunpack.c.l.b16 %v1401
        %v6510 = vunpack.c.h.b16 %v1401
        %v6511 = vunpack.c.l.b16 %v1402
        %v6512 = vunpack.c.h.b16 %v1402
        %v6513 = vunpack.c.l.b16 %v1403
        %v6514 = vunpack.c.h.b16 %v1403
        %v6515 = vunpack.c.l.b16 %v1404
        %v6516 = vunpack.c.h.b16 %v1404
        %v6517 = vunpack.c.l.b16 %v1405
        %v6518 = vunpack.c.h.b16 %v1405
        %v6519 = vunpack.c.l.b16 %v1406
        %v6520 = vunpack.c.h.b16 %v1406
        %v6521 = vunpack.c.l.b16 %v1407
        %v6522 = vunpack.c.h.b16 %v1407
        %v6523 = vunpack.c.l.b16 %v1408
        %v6524 = vunpack.c.h.b16 %v1408
        %v6525 = vunpack.c.l.b16 %v1409
        %v6526 = vunpack.c.h.b16 %v1409
        %v6527 = vunpack.c.l.b16 %v1410
        %v6528 = vunpack.c.h.b16 %v1410
        %v6529 = vunpack.c.l.b16 %v1411
        %v6530 = vunpack.c.h.b16 %v1411
        %v6531 = vunpack.c.l.b16 %v1412
        %v6532 = vunpack.c.h.b16 %v1412
        %v6533 = vunpack.c.l.b16 %v1413
        %v6534 = vunpack.c.h.b16 %v1413
        %v6535 = vunpack.c.l.b16 %v1414
        %v6536 = vunpack.c.h.b16 %v1414
        %v6537 = vunpack.c.l.b16 %v1415
        %v6538 = vunpack.c.h.b16 %v1415
        %v6539 = vunpack.c.l.b16 %v1416
        %v6540 = vunpack.c.h.b16 %v1416
        %v6541 = vunpack.c.l.b16 %v1417
        %v6542 = vunpack.c.h.b16 %v1417
        %v6543 = vunpack.c.l.b16 %v1418
        %v6544 = vunpack.c.h.b16 %v1418
        %v6545 = vunpack.c.l.b16 %v1419
        %v6546 = vunpack.c.h.b16 %v1419
        %v6547 = vunpack.c.l.b16 %v1420
        %v6548 = vunpack.c.h.b16 %v1420
        %v6549 = vunpack.c.l.b16 %v1421
        %v6550 = vunpack.c.h.b16 %v1421
        %v6551 = vunpack.c.l.b16 %v1422
        %v6552 = vunpack.c.h.b16 %v1422
        %v6553 = vunpack.c.l.b16 %v1423
        %v6554 = vunpack.c.h.b16 %v1423
        %v6555 = vunpack.c.l.b16 %v1424
        %v6556 = vunpack.c.h.b16 %v1424
        %v6557 = vunpack.c.l.b16 %v1425
        %v6558 = vunpack.c.h.b16 %v1425
        %v6559 = vunpack.c.l.b16 %v1426
        %v6560 = vunpack.c.h.b16 %v1426
        %v6561 = vunpack.c.l.b16 %v1427
        %v6562 = vunpack.c.h.b16 %v1427
        %v6563 = vunpack.c.l.b16 %v1428
        %v6564 = vunpack.c.h.b16 %v1428
        %v6565 = vunpack.c.l.b16 %v1429
        %v6566 = vunpack.c.h.b16 %v1429
        %v6567 = vunpack.c.l.b16 %v1430
        %v6568 = vunpack.c.h.b16 %v1430
        %v6569 = vunpack.c.l.b16 %v1431
        %v6570 = vunpack.c.h.b16 %v1431
        %v6571 = vunpack.c.l.b16 %v1432
        %v6572 = vunpack.c.h.b16 %v1432
        %v6573 = vunpack.c.l.b16 %v1433
        %v6574 = vunpack.c.h.b16 %v1433
        %v6575 = vunpack.c.l.b16 %v1434
        %v6576 = vunpack.c.h.b16 %v1434
        %v6577 = vunpack.c.l.b16 %v1435
        %v6578 = vunpack.c.h.b16 %v1435
        %v6579 = vunpack.c.l.b16 %v1436
        %v6580 = vunpack.c.h.b16 %v1436
        %v6581 = vunpack.c.l.b16 %v1437
        %v6582 = vunpack.c.h.b16 %v1437
        %v6583 = vunpack.c.l.b16 %v1438
        %v6584 = vunpack.c.h.b16 %v1438
        %v6585 = vunpack.c.l.b16 %v1439
        %v6586 = vunpack.c.h.b16 %v1439
        %v6587 = vunpack.c.l.b16 %v1440
        %v6588 = vunpack.c.h.b16 %v1440
        %v6589 = vunpack.c.l.b16 %v1441
        %v6590 = vunpack.c.h.b16 %v1441
        %v6591 = vunpack.c.l.b16 %v1442
        %v6592 = vunpack.c.h.b16 %v1442
        %v6593 = vunpack.c.l.b16 %v1443
        %v6594 = vunpack.c.h.b16 %v1443
        %v6595 = vunpack.c.l.b16 %v1444
        %v6596 = vunpack.c.h.b16 %v1444
        %v6597 = vunpack.c.l.b16 %v1445
        %v6598 = vunpack.c.h.b16 %v1445
        %v6599 = vunpack.c.l.b16 %v1446
        %v6600 = vunpack.c.h.b16 %v1446
        %v6601 = vunpack.c.l.b16 %v1447
        %v6602 = vunpack.c.h.b16 %v1447
        %v6603 = vunpack.c.l.b16 %v1448
        %v6604 = vunpack.c.h.b16 %v1448
        %v6605 = vunpack.c.l.b16 %v1449
        %v6606 = vunpack.c.h.b16 %v1449
        %v6607 = vunpack.c.l.b16 %v1450
        %v6608 = vunpack.c.h.b16 %v1450
        %v6609 = vunpack.c.l.b16 %v1451
        %v6610 = vunpack.c.h.b16 %v1451
        %v6611 = vunpack.c.l.b16 %v1452
        %v6612 = vunpack.c.h.b16 %v1452
        %v6613 = vunpack.c.l.b16 %v1453
        %v6614 = vunpack.c.h.b16 %v1453
        %v6615 = vunpack.c.l.b16 %v1454
        %v6616 = vunpack.c.h.b16 %v1454
        %v6617 = vunpack.c.l.b16 %v1455
        %v6618 = vunpack.c.h.b16 %v1455
        %v6619 = vunpack.c.l.b16 %v1456
        %v6620 = vunpack.c.h.b16 %v1456
        %v6621 = vunpack.c.l.b16 %v1457
        %v6622 = vunpack.c.h.b16 %v1457
        %v6623 = vunpack.c.l.b16 %v1458
        %v6624 = vunpack.c.h.b16 %v1458
        %v6625 = vunpack.c.l.b16 %v1459
        %v6626 = vunpack.c.h.b16 %v1459
        %v6627 = vunpack.c.l.b16 %v1460
        %v6628 = vunpack.c.h.b16 %v1460
        %v6629 = vunpack.c.l.b16 %v1461
        %v6630 = vunpack.c.h.b16 %v1461
        %v6631 = vunpack.c.l.b16 %v1462
        %v6632 = vunpack.c.h.b16 %v1462
        %v6633 = vunpack.c.l.b16 %v1463
        %v6634 = vunpack.c.h.b16 %v1463
        %v6635 = vunpack.c.l.b16 %v1464
        %v6636 = vunpack.c.h.b16 %v1464
        %v6637 = vunpack.c.l.b16 %v1465
        %v6638 = vunpack.c.h.b16 %v1465
        %v6639 = vunpack.c.l.b16 %v1466
        %v6640 = vunpack.c.h.b16 %v1466
        %v6641 = vunpack.c.l.b16 %v1467
        %v6642 = vunpack.c.h.b16 %v1467
        %v6643 = vunpack.c.l.b16 %v1468
        %v6644 = vunpack.c.h.b16 %v1468
        %v6645 = vunpack.c.l.b16 %v1469
        %v6646 = vunpack.c.h.b16 %v1469
        %v6647 = vunpack.c.l.b16 %v1470
        %v6648 = vunpack.c.h.b16 %v1470
        %v6649 = vunpack.c.l.b16 %v1471
        %v6650 = vunpack.c.h.b16 %v1471
        %v6651 = vunpack.c.l.b16 %v1472
        %v6652 = vunpack.c.h.b16 %v1472
        %v6653 = vunpack.c.l.b16 %v1473
        %v6654 = vunpack.c.h.b16 %v1473
        %v6655 = vunpack.c.l.b16 %v1474
        %v6656 = vunpack.c.h.b16 %v1474
        %v6657 = vunpack.c.l.b16 %v1475
        %v6658 = vunpack.c.h.b16 %v1475
        %v6659 = vunpack.c.l.b16 %v1476
        %v6660 = vunpack.c.h.b16 %v1476
        %v6661 = vunpack.c.l.b16 %v1477
        %v6662 = vunpack.c.h.b16 %v1477
        %v6663 = vunpack.c.l.b16 %v1478
        %v6664 = vunpack.c.h.b16 %v1478
        %v6665 = vunpack.c.l.b16 %v1479
        %v6666 = vunpack.c.h.b16 %v1479
        %v6667 = vunpack.c.l.b16 %v1480
        %v6668 = vunpack.c.h.b16 %v1480
        %v6669 = vunpack.c.l.b16 %v1481
        %v6670 = vunpack.c.h.b16 %v1481
        %v6671 = vunpack.c.l.b16 %v1482
        %v6672 = vunpack.c.h.b16 %v1482
        %v6673 = vunpack.c.l.b16 %v1483
        %v6674 = vunpack.c.h.b16 %v1483
        %v6675 = vunpack.c.l.b16 %v1484
        %v6676 = vunpack.c.h.b16 %v1484
        %v6677 = vunpack.c.l.b16 %v1485
        %v6678 = vunpack.c.h.b16 %v1485
        %v6679 = vunpack.c.l.b16 %v1486
        %v6680 = vunpack.c.h.b16 %v1486
        %v6681 = vunpack.c.l.b16 %v1487
        %v6682 = vunpack.c.h.b16 %v1487
        %v6683 = vunpack.c.l.b16 %v1488
        %v6684 = vunpack.c.h.b16 %v1488
        %v6685 = vunpack.c.l.b16 %v1489
        %v6686 = vunpack.c.h.b16 %v1489
        %v6687 = vunpack.c.l.b16 %v1490
        %v6688 = vunpack.c.h.b16 %v1490
        %v6689 = vunpack.c.l.b16 %v1491
        %v6690 = vunpack.c.h.b16 %v1491
        %v6691 = vunpack.c.l.b16 %v1492
        %v6692 = vunpack.c.h.b16 %v1492
        %v6693 = vunpack.c.l.b16 %v1493
        %v6694 = vunpack.c.h.b16 %v1493
        %v6695 = vunpack.c.l.b16 %v1494
        %v6696 = vunpack.c.h.b16 %v1494
        %v6697 = vunpack.c.l.b16 %v1495
        %v6698 = vunpack.c.h.b16 %v1495
        %v6699 = vunpack.c.l.b16 %v1496
        %v6700 = vunpack.c.h.b16 %v1496
        %v6701 = vunpack.c.l.b16 %v1497
        %v6702 = vunpack.c.h.b16 %v1497
        %v6703 = vunpack.c.l.b16 %v1498
        %v6704 = vunpack.c.h.b16 %v1498
        %v6705 = vunpack.c.l.b16 %v1499
        %v6706 = vunpack.c.h.b16 %v1499
        %v6707 = vunpack.c.l.b16 %v1500
        %v6708 = vunpack.c.h.b16 %v1500
        %v6709 = vunpack.c.l.b16 %v1501
        %v6710 = vunpack.c.h.b16 %v1501
        %v6711 = vunpack.c.l.b16 %v1502
        %v6712 = vunpack.c.h.b16 %v1502
        %v6713 = vunpack.c.l.b16 %v1503
        %v6714 = vunpack.c.h.b16 %v1503
        %v6715 = vunpack.c.l.b16 %v1504
        %v6716 = vunpack.c.h.b16 %v1504
        %v6717 = vunpack.c.l.b16 %v1505
        %v6718 = vunpack.c.h.b16 %v1505
        %v6719 = vunpack.c.l.b16 %v1506
        %v6720 = vunpack.c.h.b16 %v1506
        %v6721 = vunpack.c.l.b16 %v1507
        %v6722 = vunpack.c.h.b16 %v1507
        %v6723 = vunpack.c.l.b16 %v1508
        %v6724 = vunpack.c.h.b16 %v1508
        %v6725 = vunpack.c.l.b16 %v1509
        %v6726 = vunpack.c.h.b16 %v1509
        %v6727 = vunpack.c.l.b16 %v1510
        %v6728 = vunpack.c.h.b16 %v1510
        %v6729 = vunpack.c.l.b16 %v1511
        %v6730 = vunpack.c.h.b16 %v1511
        %v6731 = vunpack.c.l.b16 %v1512
        %v6732 = vunpack.c.h.b16 %v1512
        %v6733 = vunpack.c.l.b16 %v1513
        %v6734 = vunpack.c.h.b16 %v1513
        %v6735 = vunpack.c.l.b16 %v1514
        %v6736 = vunpack.c.h.b16 %v1514
        %v6737 = vunpack.c.l.b16 %v1515
        %v6738 = vunpack.c.h.b16 %v1515
        %v6739 = vunpack.c.l.b16 %v1516
        %v6740 = vunpack.c.h.b16 %v1516
        %v6741 = vunpack.c.l.b16 %v1517
        %v6742 = vunpack.c.h.b16 %v1517
        %v6743 = vunpack.c.l.b16 %v1518
        %v6744 = vunpack.c.h.b16 %v1518
        %v6745 = vunpack.c.l.b16 %v1519
        %v6746 = vunpack.c.h.b16 %v1519
        %v6747 = vunpack.c.l.b16 %v1520
        %v6748 = vunpack.c.h.b16 %v1520
        %v6749 = vunpack.c.l.b16 %v1521
        %v6750 = vunpack.c.h.b16 %v1521
        %v6751 = vunpack.c.l.b16 %v1522
        %v6752 = vunpack.c.h.b16 %v1522
        %v6753 = vunpack.c.l.b16 %v1523
        %v6754 = vunpack.c.h.b16 %v1523
        %v6755 = vunpack.c.l.b16 %v1524
        %v6756 = vunpack.c.h.b16 %v1524
        %v6757 = vunpack.c.l.b16 %v1525
        %v6758 = vunpack.c.h.b16 %v1525
        %v6759 = vunpack.c.l.b16 %v1526
        %v6760 = vunpack.c.h.b16 %v1526
        %v6761 = vunpack.c.l.b16 %v1527
        %v6762 = vunpack.c.h.b16 %v1527
        %v6763 = vunpack.c.l.b16 %v1528
        %v6764 = vunpack.c.h.b16 %v1528
        %v6765 = vunpack.c.l.b16 %v1529
        %v6766 = vunpack.c.h.b16 %v1529
        %v6767 = vunpack.c.l.b16 %v1530
        %v6768 = vunpack.c.h.b16 %v1530
        %v6769 = vunpack.c.l.b16 %v1531
        %v6770 = vunpack.c.h.b16 %v1531
        %v6771 = vunpack.c.l.b16 %v1532
        %v6772 = vunpack.c.h.b16 %v1532
        %v6773 = vunpack.c.l.b16 %v1533
        %v6774 = vunpack.c.h.b16 %v1533
        %v6775 = vunpack.c.l.b16 %v1534
        %v6776 = vunpack.c.h.b16 %v1534
        %v6777 = vunpack.c.l.b16 %v1535
        %v6778 = vunpack.c.h.b16 %v1535
        %v6779 = vunpack.c.l.b16 %v1536
        %v6780 = vunpack.c.h.b16 %v1536
        %v6781 = vunpack.c.l.b16 %v1537
        %v6782 = vunpack.c.h.b16 %v1537
        %v6783 = vunpack.c.l.b16 %v1538
        %v6784 = vunpack.c.h.b16 %v1538
        %v6785 = vunpack.c.l.b16 %v1539
        %v6786 = vunpack.c.h.b16 %v1539
        %v6787 = vunpack.c.l.b16 %v1540
        %v6788 = vunpack.c.h.b16 %v1540
        %v6789 = vunpack.c.l.b16 %v1541
        %v6790 = vunpack.c.h.b16 %v1541
        %v6791 = vunpack.c.l.b16 %v1542
        %v6792 = vunpack.c.h.b16 %v1542
        %v6793 = vunpack.c.l.b16 %v1543
        %v6794 = vunpack.c.h.b16 %v1543
        %v6795 = vunpack.c.l.b16 %v1544
        %v6796 = vunpack.c.h.b16 %v1544
        %v6797 = vunpack.c.l.b16 %v1545
        %v6798 = vunpack.c.h.b16 %v1545
        %v6799 = vunpack.c.l.b16 %v1546
        %v6800 = vunpack.c.h.b16 %v1546
        %v6801 = vunpack.c.l.b16 %v1547
        %v6802 = vunpack.c.h.b16 %v1547
        %v6803 = vunpack.c.l.b16 %v1548
        %v6804 = vunpack.c.h.b16 %v1548
        %v6805 = vunpack.c.l.b16 %v1549
        %v6806 = vunpack.c.h.b16 %v1549
        %v6807 = vunpack.c.l.b16 %v1550
        %v6808 = vunpack.c.h.b16 %v1550
        %v6809 = vunpack.c.l.b16 %v1551
        %v6810 = vunpack.c.h.b16 %v1551
        %v6811 = vunpack.c.l.b16 %v1552
        %v6812 = vunpack.c.h.b16 %v1552
        %v6813 = vunpack.c.l.b16 %v1553
        %v6814 = vunpack.c.h.b16 %v1553
        %v6815 = vunpack.c.l.b16 %v1554
        %v6816 = vunpack.c.h.b16 %v1554
        %v6817 = vunpack.c.l.b16 %v1555
        %v6818 = vunpack.c.h.b16 %v1555
        %v6819 = vunpack.c.l.b16 %v1556
        %v6820 = vunpack.c.h.b16 %v1556
        %v6821 = vunpack.c.l.b16 %v1557
        %v6822 = vunpack.c.h.b16 %v1557
        %v6823 = vunpack.c.l.b16 %v1558
        %v6824 = vunpack.c.h.b16 %v1558
        %v6825 = vunpack.c.l.b16 %v1559
        %v6826 = vunpack.c.h.b16 %v1559
        %v6827 = vunpack.c.l.b16 %v1560
        %v6828 = vunpack.c.h.b16 %v1560
        %v6829 = vunpack.c.l.b16 %v1561
        %v6830 = vunpack.c.h.b16 %v1561
        %v6831 = vunpack.c.l.b16 %v1562
        %v6832 = vunpack.c.h.b16 %v1562
        %v6833 = vunpack.c.l.b16 %v1563
        %v6834 = vunpack.c.h.b16 %v1563
        %v6835 = vunpack.c.l.b16 %v1564
        %v6836 = vunpack.c.h.b16 %v1564
        %v6837 = vunpack.c.l.b16 %v1565
        %v6838 = vunpack.c.h.b16 %v1565
        %v6839 = vunpack.c.l.b16 %v1566
        %v6840 = vunpack.c.h.b16 %v1566
        %v6841 = vunpack.c.l.b16 %v1567
        %v6842 = vunpack.c.h.b16 %v1567
        %v6843 = vunpack.c.l.b16 %v1568
        %v6844 = vunpack.c.h.b16 %v1568
        %v6845 = vunpack.c.l.b16 %v1569
        %v6846 = vunpack.c.h.b16 %v1569
        %v6847 = vunpack.c.l.b16 %v1570
        %v6848 = vunpack.c.h.b16 %v1570
        %v6849 = vunpack.c.l.b16 %v1571
        %v6850 = vunpack.c.h.b16 %v1571
        %v6851 = vunpack.c.l.b16 %v1572
        %v6852 = vunpack.c.h.b16 %v1572
        %v6853 = vunpack.c.l.b16 %v1573
        %v6854 = vunpack.c.h.b16 %v1573
        %v6855 = vunpack.c.l.b16 %v1574
        %v6856 = vunpack.c.h.b16 %v1574
        %v6857 = vunpack.c.l.b16 %v1575
        %v6858 = vunpack.c.h.b16 %v1575
        %v6859 = vunpack.c.l.b16 %v1576
        %v6860 = vunpack.c.h.b16 %v1576
        %v6861 = vunpack.c.l.b16 %v1577
        %v6862 = vunpack.c.h.b16 %v1577
        %v6863 = vunpack.c.l.b16 %v1578
        %v6864 = vunpack.c.h.b16 %v1578
        %v6865 = vunpack.c.l.b16 %v1579
        %v6866 = vunpack.c.h.b16 %v1579
        %v6867 = vunpack.c.l.b16 %v1580
        %v6868 = vunpack.c.h.b16 %v1580
        %v6869 = vunpack.c.l.b16 %v1581
        %v6870 = vunpack.c.h.b16 %v1581
        %v6871 = vunpack.c.l.b16 %v1582
        %v6872 = vunpack.c.h.b16 %v1582
        %v6873 = vunpack.c.l.b16 %v1583
        %v6874 = vunpack.c.h.b16 %v1583
        %v6875 = vunpack.c.l.b16 %v1584
        %v6876 = vunpack.c.h.b16 %v1584
        %v6877 = vunpack.c.l.b16 %v1585
        %v6878 = vunpack.c.h.b16 %v1585
        %v6879 = vunpack.c.l.b16 %v1586
        %v6880 = vunpack.c.h.b16 %v1586
        %v6881 = vunpack.c.l.b16 %v1587
        %v6882 = vunpack.c.h.b16 %v1587
        %v6883 = vunpack.c.l.b16 %v1588
        %v6884 = vunpack.c.h.b16 %v1588
        %v6885 = vunpack.c.l.b16 %v1589
        %v6886 = vunpack.c.h.b16 %v1589
        %v6887 = vunpack.c.l.b16 %v1590
        %v6888 = vunpack.c.h.b16 %v1590
        %v6889 = vunpack.c.l.b16 %v1591
        %v6890 = vunpack.c.h.b16 %v1591
        %v6891 = vunpack.c.l.b16 %v1592
        %v6892 = vunpack.c.h.b16 %v1592
        %v6893 = vunpack.c.l.b16 %v1593
        %v6894 = vunpack.c.h.b16 %v1593
        %v6895 = vunpack.c.l.b16 %v1594
        %v6896 = vunpack.c.h.b16 %v1594
        %v6897 = vunpack.c.l.b16 %v1595
        %v6898 = vunpack.c.h.b16 %v1595
        %v6899 = vunpack.c.l.b16 %v1596
        %v6900 = vunpack.c.h.b16 %v1596
        %v6901 = vunpack.c.l.b16 %v1597
        %v6902 = vunpack.c.h.b16 %v1597
        %v6903 = vunpack.c.l.b16 %v1598
        %v6904 = vunpack.c.h.b16 %v1598
        %v6905 = vunpack.c.l.b16 %v1599
        %v6906 = vunpack.c.h.b16 %v1599
        %v6907 = vunpack.c.l.b16 %v1600
        %v6908 = vunpack.c.h.b16 %v1600
        %v6909 = vunpack.c.l.b16 %v1601
        %v6910 = vunpack.c.h.b16 %v1601
        %v6911 = vunpack.c.l.b16 %v1602
        %v6912 = vunpack.c.h.b16 %v1602
        %v6913 = vunpack.c.l.b16 %v1603
        %v6914 = vunpack.c.h.b16 %v1603
        %v6915 = vunpack.c.l.b16 %v1604
        %v6916 = vunpack.c.h.b16 %v1604
        %v6917 = vunpack.c.l.b16 %v1605
        %v6918 = vunpack.c.h.b16 %v1605
        %v6919 = vunpack.c.l.b16 %v1606
        %v6920 = vunpack.c.h.b16 %v1606
        %v6921 = vunpack.c.l.b16 %v1607
        %v6922 = vunpack.c.h.b16 %v1607
        %v6923 = vunpack.c.l.b16 %v1608
        %v6924 = vunpack.c.h.b16 %v1608
        %v6925 = vunpack.c.l.b16 %v1609
        %v6926 = vunpack.c.h.b16 %v1609
        %v6927 = vunpack.c.l.b16 %v1610
        %v6928 = vunpack.c.h.b16 %v1610
        %v6929 = vunpack.c.l.b16 %v1611
        %v6930 = vunpack.c.h.b16 %v1611
        %v6931 = vunpack.c.l.b16 %v1612
        %v6932 = vunpack.c.h.b16 %v1612
        %v6933 = vunpack.c.l.b16 %v1613
        %v6934 = vunpack.c.h.b16 %v1613
        %v6935 = vunpack.c.l.b16 %v1614
        %v6936 = vunpack.c.h.b16 %v1614
        %v6937 = vunpack.c.l.b16 %v1615
        %v6938 = vunpack.c.h.b16 %v1615
        %v6939 = vunpack.c.l.b16 %v1616
        %v6940 = vunpack.c.h.b16 %v1616
        %v6941 = vunpack.c.l.b16 %v1617
        %v6942 = vunpack.c.h.b16 %v1617
        %v6943 = vunpack.c.l.b16 %v1618
        %v6944 = vunpack.c.h.b16 %v1618
        %v6945 = vunpack.c.l.b16 %v1619
        %v6946 = vunpack.c.h.b16 %v1619
        %v6947 = vunpack.c.l.b16 %v1620
        %v6948 = vunpack.c.h.b16 %v1620
        %v6949 = vunpack.c.l.b16 %v1621
        %v6950 = vunpack.c.h.b16 %v1621
        %v6951 = vunpack.c.l.b16 %v1622
        %v6952 = vunpack.c.h.b16 %v1622
        %v6953 = vunpack.c.l.b16 %v1623
        %v6954 = vunpack.c.h.b16 %v1623
        %v6955 = vunpack.c.l.b16 %v1624
        %v6956 = vunpack.c.h.b16 %v1624
        %v6957 = vunpack.c.l.b16 %v1625
        %v6958 = vunpack.c.h.b16 %v1625
        %v6959 = vunpack.c.l.b16 %v1626
        %v6960 = vunpack.c.h.b16 %v1626
        %v6961 = vunpack.c.l.b16 %v1627
        %v6962 = vunpack.c.h.b16 %v1627
        %v6963 = vunpack.c.l.b16 %v1628
        %v6964 = vunpack.c.h.b16 %v1628
        %v6965 = vunpack.c.l.b16 %v1629
        %v6966 = vunpack.c.h.b16 %v1629
        %v6967 = vunpack.c.l.b16 %v1630
        %v6968 = vunpack.c.h.b16 %v1630
        %v6969 = vunpack.c.l.b16 %v1631
        %v6970 = vunpack.c.h.b16 %v1631
        %v6971 = vunpack.c.l.b16 %v1632
        %v6972 = vunpack.c.h.b16 %v1632
        %v6973 = vunpack.c.l.b16 %v1633
        %v6974 = vunpack.c.h.b16 %v1633
        %v6975 = vunpack.c.l.b16 %v1634
        %v6976 = vunpack.c.h.b16 %v1634
        %v6977 = vunpack.c.l.b16 %v1635
        %v6978 = vunpack.c.h.b16 %v1635
        %v6979 = vunpack.c.l.b16 %v1636
        %v6980 = vunpack.c.h.b16 %v1636
        %v6981 = vunpack.c.l.b16 %v1637
        %v6982 = vunpack.c.h.b16 %v1637
        %v6983 = vunpack.c.l.b16 %v1638
        %v6984 = vunpack.c.h.b16 %v1638
        %v6985 = vunpack.c.l.b16 %v1639
        %v6986 = vunpack.c.h.b16 %v1639
        %v6987 = vunpack.c.l.b16 %v1640
        %v6988 = vunpack.c.h.b16 %v1640
        %v6989 = vunpack.c.l.b16 %v1641
        %v6990 = vunpack.c.h.b16 %v1641
        %v6991 = vunpack.c.l.b16 %v1642
        %v6992 = vunpack.c.h.b16 %v1642
        %v6993 = vunpack.c.l.b16 %v1643
        %v6994 = vunpack.c.h.b16 %v1643
        %v6995 = vunpack.c.l.b16 %v1644
        %v6996 = vunpack.c.h.b16 %v1644
        %v6997 = vunpack.c.l.b16 %v1645
        %v6998 = vunpack.c.h.b16 %v1645
        %v6999 = vunpack.c.l.b16 %v1646
        %v7000 = vunpack.c.h.b16 %v1646
        %v7001 = vunpack.c.l.b16 %v1647
        %v7002 = vunpack.c.h.b16 %v1647
        %v7003 = vunpack.c.l.b16 %v1648
        %v7004 = vunpack.c.h.b16 %v1648
        %v7005 = vunpack.c.l.b16 %v1649
        %v7006 = vunpack.c.h.b16 %v1649
        %v7007 = vunpack.c.l.b16 %v1650
        %v7008 = vunpack.c.h.b16 %v1650
        %v7009 = vunpack.c.l.b16 %v1651
        %v7010 = vunpack.c.h.b16 %v1651
        %v7011 = vunpack.c.l.b16 %v1652
        %v7012 = vunpack.c.h.b16 %v1652
        %v7013 = vunpack.c.l.b16 %v1653
        %v7014 = vunpack.c.h.b16 %v1653
        %v7015 = vunpack.c.l.b16 %v1654
        %v7016 = vunpack.c.h.b16 %v1654
        %v7017 = vunpack.c.l.b16 %v1655
        %v7018 = vunpack.c.h.b16 %v1655
        %v7019 = vunpack.c.l.b16 %v1656
        %v7020 = vunpack.c.h.b16 %v1656
        %v7021 = vunpack.c.l.b16 %v1657
        %v7022 = vunpack.c.h.b16 %v1657
        %v7023 = vunpack.c.l.b16 %v1658
        %v7024 = vunpack.c.h.b16 %v1658
        %v7025 = vunpack.c.l.b16 %v1659
        %v7026 = vunpack.c.h.b16 %v1659
        %v7027 = vunpack.c.l.b16 %v1660
        %v7028 = vunpack.c.h.b16 %v1660
        %v7029 = vunpack.c.l.b16 %v1661
        %v7030 = vunpack.c.h.b16 %v1661
        %v7031 = vunpack.c.l.b16 %v1662
        %v7032 = vunpack.c.h.b16 %v1662
        %v7033 = vunpack.c.l.b16 %v1663
        %v7034 = vunpack.c.h.b16 %v1663
        %v7035 = vunpack.c.l.b16 %v1664
        %v7036 = vunpack.c.h.b16 %v1664
        %v7037 = vunpack.c.l.b16 %v1665
        %v7038 = vunpack.c.h.b16 %v1665
        %v7039 = vunpack.c.l.b16 %v1666
        %v7040 = vunpack.c.h.b16 %v1666
        %v7041 = vunpack.c.l.b16 %v1667
        %v7042 = vunpack.c.h.b16 %v1667
        %v7043 = vunpack.c.l.b16 %v1668
        %v7044 = vunpack.c.h.b16 %v1668
        %v7045 = vunpack.c.l.b16 %v1669
        %v7046 = vunpack.c.h.b16 %v1669
        %v7047 = vunpack.c.l.b16 %v1670
        %v7048 = vunpack.c.h.b16 %v1670
        %v7049 = vunpack.c.l.b16 %v1671
        %v7050 = vunpack.c.h.b16 %v1671
        %v7051 = vunpack.c.l.b16 %v1672
        %v7052 = vunpack.c.h.b16 %v1672
        %v7053 = vunpack.c.l.b16 %v1673
        %v7054 = vunpack.c.h.b16 %v1673
        %v7055 = vunpack.c.l.b16 %v1674
        %v7056 = vunpack.c.h.b16 %v1674
        %v7057 = vunpack.c.l.b16 %v1675
        %v7058 = vunpack.c.h.b16 %v1675
        %v7059 = vunpack.c.l.b16 %v1676
        %v7060 = vunpack.c.h.b16 %v1676
        %v7061 = vunpack.c.l.b16 %v1677
        %v7062 = vunpack.c.h.b16 %v1677
        %v7063 = vunpack.c.l.b16 %v1678
        %v7064 = vunpack.c.h.b16 %v1678
        %v7065 = vunpack.c.l.b16 %v1679
        %v7066 = vunpack.c.h.b16 %v1679
        %v7067 = vunpack.c.l.b16 %v1680
        %v7068 = vunpack.c.h.b16 %v1680
        %v7069 = vunpack.c.l.b16 %v1681
        %v7070 = vunpack.c.h.b16 %v1681
        %v7071 = vunpack.c.l.b16 %v1682
        %v7072 = vunpack.c.h.b16 %v1682
        %v7073 = vunpack.c.l.b16 %v1683
        %v7074 = vunpack.c.h.b16 %v1683
        %v7075 = vunpack.c.l.b16 %v1684
        %v7076 = vunpack.c.h.b16 %v1684
        %v7077 = vunpack.c.l.b16 %v1685
        %v7078 = vunpack.c.h.b16 %v1685
        %v7079 = vunpack.c.l.b16 %v1686
        %v7080 = vunpack.c.h.b16 %v1686
        %v7081 = vunpack.c.l.b16 %v1687
        %v7082 = vunpack.c.h.b16 %v1687
        %v7083 = vunpack.c.l.b16 %v1688
        %v7084 = vunpack.c.h.b16 %v1688
        %v7085 = vunpack.c.l.b16 %v1689
        %v7086 = vunpack.c.h.b16 %v1689
        %v7087 = vunpack.c.l.b16 %v1690
        %v7088 = vunpack.c.h.b16 %v1690
        %v7089 = vunpack.c.l.b16 %v1691
        %v7090 = vunpack.c.h.b16 %v1691
        %v7091 = vunpack.c.l.b16 %v1692
        %v7092 = vunpack.c.h.b16 %v1692
        %v7093 = vunpack.c.l.b16 %v1693
        %v7094 = vunpack.c.h.b16 %v1693
        %v7095 = vunpack.c.l.b16 %v1694
        %v7096 = vunpack.c.h.b16 %v1694
        %v7097 = vunpack.c.l.b16 %v1695
        %v7098 = vunpack.c.h.b16 %v1695
        %v7099 = vunpack.c.l.b16 %v1696
        %v7100 = vunpack.c.h.b16 %v1696
        %v7101 = vunpack.c.l.b16 %v1697
        %v7102 = vunpack.c.h.b16 %v1697
        %v7103 = vunpack.c.l.b16 %v1698
        %v7104 = vunpack.c.h.b16 %v1698
        %v7105 = vunpack.c.l.b16 %v1699
        %v7106 = vunpack.c.h.b16 %v1699
        %v7107 = vunpack.c.l.b16 %v1700
        %v7108 = vunpack.c.h.b16 %v1700
        %v7109 = vunpack.c.l.b16 %v1701
        %v7110 = vunpack.c.h.b16 %v1701
        %v7111 = vunpack.c.l.b16 %v1702
        %v7112 = vunpack.c.h.b16 %v1702
        %v7113 = vunpack.c.l.b16 %v1703
        %v7114 = vunpack.c.h.b16 %v1703
        %v7115 = vunpack.c.l.b16 %v1704
        %v7116 = vunpack.c.h.b16 %v1704
        %v7117 = vunpack.c.l.b16 %v1705
        %v7118 = vunpack.c.h.b16 %v1705
        %v7119 = vunpack.c.l.b16 %v1706
        %v7120 = vunpack.c.h.b16 %v1706
        %v7121 = vunpack.c.l.b16 %v1707
        %v7122 = vunpack.c.h.b16 %v1707
        %v7123 = vunpack.c.l.b16 %v1708
        %v7124 = vunpack.c.h.b16 %v1708
        %v7125 = vunpack.c.l.b16 %v1709
        %v7126 = vunpack.c.h.b16 %v1709
        %v7127 = vunpack.c.l.b16 %v1710
        %v7128 = vunpack.c.h.b16 %v1710
        %v7129 = vunpack.c.l.b16 %v1711
        %v7130 = vunpack.c.h.b16 %v1711
        %v7131 = vunpack.c.l.b16 %v1712
        %v7132 = vunpack.c.h.b16 %v1712
        %v7133 = vunpack.c.l.b16 %v1713
        %v7134 = vunpack.c.h.b16 %v1713
        %v7135 = vunpack.c.l.b16 %v1714
        %v7136 = vunpack.c.h.b16 %v1714
        %v7137 = vunpack.c.l.b16 %v1715
        %v7138 = vunpack.c.h.b16 %v1715
        %v7139 = vunpack.c.l.b16 %v1716
        %v7140 = vunpack.c.h.b16 %v1716
        %v7141 = vunpack.c.l.b16 %v1717
        %v7142 = vunpack.c.h.b16 %v1717
        %v7143 = vunpack.c.l.b16 %v1718
        %v7144 = vunpack.c.h.b16 %v1718
        %v7145 = vunpack.c.l.b16 %v1719
        %v7146 = vunpack.c.h.b16 %v1719
        %v7147 = vunpack.c.l.b16 %v1720
        %v7148 = vunpack.c.h.b16 %v1720
        %v7149 = vunpack.c.l.b16 %v1721
        %v7150 = vunpack.c.h.b16 %v1721
        %v7151 = vunpack.c.l.b16 %v1722
        %v7152 = vunpack.c.h.b16 %v1722
        %v7153 = vunpack.c.l.b16 %v1723
        %v7154 = vunpack.c.h.b16 %v1723
        %v7155 = vunpack.c.l.b16 %v1724
        %v7156 = vunpack.c.h.b16 %v1724
        %v7157 = vunpack.c.l.b16 %v1725
        %v7158 = vunpack.c.h.b16 %v1725
        %v7159 = vunpack.c.l.b16 %v1726
        %v7160 = vunpack.c.h.b16 %v1726
        %v7161 = vunpack.c.l.b16 %v1727
        %v7162 = vunpack.c.h.b16 %v1727
        %v7163 = vunpack.c.l.b16 %v1728
        %v7164 = vunpack.c.h.b16 %v1728
        %v7165 = vunpack.c.l.b16 %v1729
        %v7166 = vunpack.c.h.b16 %v1729
        %v7167 = vunpack.c.l.b16 %v1730
        %v7168 = vunpack.c.h.b16 %v1730
        %v7169 = vunpack.c.l.b16 %v1731
        %v7170 = vunpack.c.h.b16 %v1731
        %v7171 = vunpack.c.l.b16 %v1732
        %v7172 = vunpack.c.h.b16 %v1732
        %v7173 = vunpack.c.l.b16 %v1733
        %v7174 = vunpack.c.h.b16 %v1733
        %v7175 = vunpack.c.l.b16 %v1734
        %v7176 = vunpack.c.h.b16 %v1734
        %v7177 = vunpack.c.l.b16 %v1735
        %v7178 = vunpack.c.h.b16 %v1735
        %v7179 = vunpack.c.l.b16 %v1736
        %v7180 = vunpack.c.h.b16 %v1736
        %v7181 = vunpack.c.l.b16 %v1737
        %v7182 = vunpack.c.h.b16 %v1737
        %v7183 = vunpack.c.l.b16 %v1738
        %v7184 = vunpack.c.h.b16 %v1738
        %v7185 = vunpack.c.l.b16 %v1739
        %v7186 = vunpack.c.h.b16 %v1739
        %v7187 = vunpack.c.l.b16 %v1740
        %v7188 = vunpack.c.h.b16 %v1740
        %v7189 = vunpack.c.l.b16 %v1741
        %v7190 = vunpack.c.h.b16 %v1741
        %v7191 = vunpack.c.l.b16 %v1742
        %v7192 = vunpack.c.h.b16 %v1742
        %v7193 = vunpack.c.l.b16 %v1743
        %v7194 = vunpack.c.h.b16 %v1743
        %v7195 = vunpack.c.l.b16 %v1744
        %v7196 = vunpack.c.h.b16 %v1744
        %v7197 = vunpack.c.l.b16 %v1745
        %v7198 = vunpack.c.h.b16 %v1745
        %v7199 = vunpack.c.l.b16 %v1746
        %v7200 = vunpack.c.h.b16 %v1746
        %v7201 = vunpack.c.l.b16 %v1747
        %v7202 = vunpack.c.h.b16 %v1747
        %v7203 = vunpack.c.l.b16 %v1748
        %v7204 = vunpack.c.h.b16 %v1748
        %v7205 = vunpack.c.l.b16 %v1749
        %v7206 = vunpack.c.h.b16 %v1749
        %v7207 = vunpack.c.l.b16 %v1750
        %v7208 = vunpack.c.h.b16 %v1750
        %v7209 = vunpack.c.l.b16 %v1751
        %v7210 = vunpack.c.h.b16 %v1751
        %v7211 = vunpack.c.l.b16 %v1752
        %v7212 = vunpack.c.h.b16 %v1752
        %v7213 = vunpack.c.l.b16 %v1753
        %v7214 = vunpack.c.h.b16 %v1753
        %v7215 = vunpack.c.l.b16 %v1754
        %v7216 = vunpack.c.h.b16 %v1754
        %v7217 = vunpack.c.l.b16 %v1755
        %v7218 = vunpack.c.h.b16 %v1755
        %v7219 = vunpack.c.l.b16 %v1756
        %v7220 = vunpack.c.h.b16 %v1756
        %v7221 = vunpack.c.l.b16 %v1757
        %v7222 = vunpack.c.h.b16 %v1757
        %v7223 = vunpack.c.l.b16 %v1758
        %v7224 = vunpack.c.h.b16 %v1758
        %v7225 = vunpack.c.l.b16 %v1759
        %v7226 = vunpack.c.h.b16 %v1759
        %v7227 = vunpack.c.l.b16 %v1760
        %v7228 = vunpack.c.h.b16 %v1760
        %v7229 = vunpack.c.l.b16 %v1761
        %v7230 = vunpack.c.h.b16 %v1761
        %v7231 = vunpack.c.l.b16 %v1762
        %v7232 = vunpack.c.h.b16 %v1762
        %v7233 = vunpack.c.l.b16 %v1763
        %v7234 = vunpack.c.h.b16 %v1763
        %v7235 = vunpack.c.l.b16 %v1764
        %v7236 = vunpack.c.h.b16 %v1764
        %v7237 = vunpack.c.l.b16 %v1765
        %v7238 = vunpack.c.h.b16 %v1765
        %v7239 = vunpack.c.l.b16 %v1766
        %v7240 = vunpack.c.h.b16 %v1766
        %v7241 = vunpack.c.l.b16 %v1767
        %v7242 = vunpack.c.h.b16 %v1767
        %v7243 = vunpack.c.l.b16 %v1768
        %v7244 = vunpack.c.h.b16 %v1768
        %v7245 = vunpack.c.l.b16 %v1769
        %v7246 = vunpack.c.h.b16 %v1769
        %v7247 = vpack.c.b16 %v6231, %v6223
        %v7248 = vpack.c.b16 %v6232, %v6224
        %v7249 = vpack.c.b16 %v6233, %v6225
        %v7250 = vpack.c.b16 %v6234, %v6226
        %v7251 = vpack.c.b16 %v6235, %v6227
        %v7252 = vpack.c.b16 %v6236, %v6228
        %v7253 = vpack.c.b16 %v6237, %v6229
        %v7254 = vpack.c.b16 %v6238, %v6230
        %v7255 = vpack.c.b16 %v6247, %v6239
        %v7256 = vpack.c.b16 %v6248, %v6240
        %v7257 = vpack.c.b16 %v6249, %v6241
        %v7258 = vpack.c.b16 %v6250, %v6242
        %v7259 = vpack.c.b16 %v6251, %v6243
        %v7260 = vpack.c.b16 %v6252, %v6244
        %v7261 = vpack.c.b16 %v6253, %v6245
        %v7262 = vpack.c.b16 %v6254, %v6246
        %v7263 = vpack.c.b16 %v6263, %v6255
        %v7264 = vpack.c.b16 %v6264, %v6256
        %v7265 = vpack.c.b16 %v6265, %v6257
        %v7266 = vpack.c.b16 %v6266, %v6258
        %v7267 = vpack.c.b16 %v6267, %v6259
        %v7268 = vpack.c.b16 %v6268, %v6260
        %v7269 = vpack.c.b16 %v6269, %v6261
        %v7270 = vpack.c.b16 %v6270, %v6262
        %v7271 = vpack.c.b16 %v6279, %v6271
        %v7272 = vpack.c.b16 %v6280, %v6272
        %v7273 = vpack.c.b16 %v6281, %v6273
        %v7274 = vpack.c.b16 %v6282, %v6274
        %v7275 = vpack.c.b16 %v6283, %v6275
        %v7276 = vpack.c.b16 %v6284, %v6276
        %v7277 = vpack.c.b16 %v6285, %v6277
        %v7278 = vpack.c.b16 %v6286, %v6278
        %v7279 = vpack.c.b16 %v6295, %v6287
        %v7280 = vpack.c.b16 %v6296, %v6288
        %v7281 = vpack.c.b16 %v6297, %v6289
        %v7282 = vpack.c.b16 %v6298, %v6290
        %v7283 = vpack.c.b16 %v6299, %v6291
        %v7284 = vpack.c.b16 %v6300, %v6292
        %v7285 = vpack.c.b16 %v6301, %v6293
        %v7286 = vpack.c.b16 %v6302, %v6294
        %v7287 = vpack.c.b16 %v6311, %v6303
        %v7288 = vpack.c.b16 %v6312, %v6304
        %v7289 = vpack.c.b16 %v6313, %v6305
        %v7290 = vpack.c.b16 %v6314, %v6306
        %v7291 = vpack.c.b16 %v6315, %v6307
        %v7292 = vpack.c.b16 %v6316, %v6308
        %v7293 = vpack.c.b16 %v6317, %v6309
        %v7294 = vpack.c.b16 %v6318, %v6310
        %v7295 = vpack.c.b16 %v6327, %v6319
        %v7296 = vpack.c.b16 %v6328, %v6320
        %v7297 = vpack.c.b16 %v6329, %v6321
        %v7298 = vpack.c.b16 %v6330, %v6322
        %v7299 = vpack.c.b16 %v6331, %v6323
        %v7300 = vpack.c.b16 %v6332, %v6324
        %v7301 = vpack.c.b16 %v6333, %v6325
        %v7302 = vpack.c.b16 %v6334, %v6326
        %v7303 = vpack.c.b16 %v6343, %v6335
        %v7304 = vpack.c.b16 %v6344, %v6336
        %v7305 = vpack.c.b16 %v6345, %v6337
        %v7306 = vpack.c.b16 %v6346, %v6338
        %v7307 = vpack.c.b16 %v6347, %v6339
        %v7308 = vpack.c.b16 %v6348, %v6340
        %v7309 = vpack.c.b16 %v6349, %v6341
        %v7310 = vpack.c.b16 %v6350, %v6342
        %v7311 = vpack.c.b16 %v6359, %v6351
        %v7312 = vpack.c.b16 %v6360, %v6352
        %v7313 = vpack.c.b16 %v6361, %v6353
        %v7314 = vpack.c.b16 %v6362, %v6354
        %v7315 = vpack.c.b16 %v6363, %v6355
        %v7316 = vpack.c.b16 %v6364, %v6356
        %v7317 = vpack.c.b16 %v6365, %v6357
        %v7318 = vpack.c.b16 %v6366, %v6358
        %v7319 = vpack.c.b16 %v6375, %v6367
        %v7320 = vpack.c.b16 %v6376, %v6368
        %v7321 = vpack.c.b16 %v6377, %v6369
        %v7322 = vpack.c.b16 %v6378, %v6370
        %v7323 = vpack.c.b16 %v6379, %v6371
        %v7324 = vpack.c.b16 %v6380, %v6372
        %v7325 = vpack.c.b16 %v6381, %v6373
        %v7326 = vpack.c.b16 %v6382, %v6374
        %v7327 = vpack.c.b16 %v6391, %v6383
        %v7328 = vpack.c.b16 %v6392, %v6384
        %v7329 = vpack.c.b16 %v6393, %v6385
        %v7330 = vpack.c.b16 %v6394, %v6386
        %v7331 = vpack.c.b16 %v6395, %v6387
        %v7332 = vpack.c.b16 %v6396, %v6388
        %v7333 = vpack.c.b16 %v6397, %v6389
        %v7334 = vpack.c.b16 %v6398, %v6390
        %v7335 = vpack.c.b16 %v6407, %v6399
        %v7336 = vpack.c.b16 %v6408, %v6400
        %v7337 = vpack.c.b16 %v6409, %v6401
        %v7338 = vpack.c.b16 %v6410, %v6402
        %v7339 = vpack.c.b16 %v6411, %v6403
        %v7340 = vpack.c.b16 %v6412, %v6404
        %v7341 = vpack.c.b16 %v6413, %v6405
        %v7342 = vpack.c.b16 %v6414, %v6406
        %v7343 = vpack.c.b16 %v6423, %v6415
        %v7344 = vpack.c.b16 %v6424, %v6416
        %v7345 = vpack.c.b16 %v6425, %v6417
        %v7346 = vpack.c.b16 %v6426, %v6418
        %v7347 = vpack.c.b16 %v6427, %v6419
        %v7348 = vpack.c.b16 %v6428, %v6420
        %v7349 = vpack.c.b16 %v6429, %v6421
        %v7350 = vpack.c.b16 %v6430, %v6422
        %v7351 = vpack.c.b16 %v6439, %v6431
        %v7352 = vpack.c.b16 %v6440, %v6432
        %v7353 = vpack.c.b16 %v6441, %v6433
        %v7354 = vpack.c.b16 %v6442, %v6434
        %v7355 = vpack.c.b16 %v6443, %v6435
        %v7356 = vpack.c.b16 %v6444, %v6436
        %v7357 = vpack.c.b16 %v6445, %v6437
        %v7358 = vpack.c.b16 %v6446, %v6438
        %v7359 = vpack.c.b16 %v6455, %v6447
        %v7360 = vpack.c.b16 %v6456, %v6448
        %v7361 = vpack.c.b16 %v6457, %v6449
        %v7362 = vpack.c.b16 %v6458, %v6450
        %v7363 = vpack.c.b16 %v6459, %v6451
        %v7364 = vpack.c.b16 %v6460, %v6452
        %v7365 = vpack.c.b16 %v6461, %v6453
        %v7366 = vpack.c.b16 %v6462, %v6454
        %v7367 = vpack.c.b16 %v6471, %v6463
        %v7368 = vpack.c.b16 %v6472, %v6464
        %v7369 = vpack.c.b16 %v6473, %v6465
        %v7370 = vpack.c.b16 %v6474, %v6466
        %v7371 = vpack.c.b16 %v6475, %v6467
        %v7372 = vpack.c.b16 %v6476, %v6468
        %v7373 = vpack.c.b16 %v6477, %v6469
        %v7374 = vpack.c.b16 %v6478, %v6470
        %v7375 = vpack.c.b16 %v6487, %v6479
        %v7376 = vpack.c.b16 %v6488, %v6480
        %v7377 = vpack.c.b16 %v6489, %v6481
        %v7378 = vpack.c.b16 %v6490, %v6482
        %v7379 = vpack.c.b16 %v6491, %v6483
        %v7380 = vpack.c.b16 %v6492, %v6484
        %v7381 = vpack.c.b16 %v6493, %v6485
        %v7382 = vpack.c.b16 %v6494, %v6486
        %v7383 = vpack.c.b16 %v6503, %v6495
        %v7384 = vpack.c.b16 %v6504, %v6496
        %v7385 = vpack.c.b16 %v6505, %v6497
        %v7386 = vpack.c.b16 %v6506, %v6498
        %v7387 = vpack.c.b16 %v6507, %v6499
        %v7388 = vpack.c.b16 %v6508, %v6500
        %v7389 = vpack.c.b16 %v6509, %v6501
        %v7390 = vpack.c.b16 %v6510, %v6502
        %v7391 = vpack.c.b16 %v6519, %v6511
        %v7392 = vpack.c.b16 %v6520, %v6512
        %v7393 = vpack.c.b16 %v6521, %v6513
        %v7394 = vpack.c.b16 %v6522, %v6514
        %v7395 = vpack.c.b16 %v6523, %v6515
        %v7396 = vpack.c.b16 %v6524, %v6516
        %v7397 = vpack.c.b16 %v6525, %v6517
        %v7398 = vpack.c.b16 %v6526, %v6518
        %v7399 = vpack.c.b16 %v6535, %v6527
        %v7400 = vpack.c.b16 %v6536, %v6528
        %v7401 = vpack.c.b16 %v6537, %v6529
        %v7402 = vpack.c.b16 %v6538, %v6530
        %v7403 = vpack.c.b16 %v6539, %v6531
        %v7404 = vpack.c.b16 %v6540, %v6532
        %v7405 = vpack.c.b16 %v6541, %v6533
        %v7406 = vpack.c.b16 %v6542, %v6534
        %v7407 = vpack.c.b16 %v6551, %v6543
        %v7408 = vpack.c.b16 %v6552, %v6544
        %v7409 = vpack.c.b16 %v6553, %v6545
        %v7410 = vpack.c.b16 %v6554, %v6546
        %v7411 = vpack.c.b16 %v6555, %v6547
        %v7412 = vpack.c.b16 %v6556, %v6548
        %v7413 = vpack.c.b16 %v6557, %v6549
        %v7414 = vpack.c.b16 %v6558, %v6550
        %v7415 = vpack.c.b16 %v6567, %v6559
        %v7416 = vpack.c.b16 %v6568, %v6560
        %v7417 = vpack.c.b16 %v6569, %v6561
        %v7418 = vpack.c.b16 %v6570, %v6562
        %v7419 = vpack.c.b16 %v6571, %v6563
        %v7420 = vpack.c.b16 %v6572, %v6564
        %v7421 = vpack.c.b16 %v6573, %v6565
        %v7422 = vpack.c.b16 %v6574, %v6566
        %v7423 = vpack.c.b16 %v6583, %v6575
        %v7424 = vpack.c.b16 %v6584, %v6576
        %v7425 = vpack.c.b16 %v6585, %v6577
        %v7426 = vpack.c.b16 %v6586, %v6578
        %v7427 = vpack.c.b16 %v6587, %v6579
        %v7428 = vpack.c.b16 %v6588, %v6580
        %v7429 = vpack.c.b16 %v6589, %v6581
        %v7430 = vpack.c.b16 %v6590, %v6582
        %v7431 = vpack.c.b16 %v6599, %v6591
        %v7432 = vpack.c.b16 %v6600, %v6592
        %v7433 = vpack.c.b16 %v6601, %v6593
        %v7434 = vpack.c.b16 %v6602, %v6594
        %v7435 = vpack.c.b16 %v6603, %v6595
        %v7436 = vpack.c.b16 %v6604, %v6596
        %v7437 = vpack.c.b16 %v6605, %v6597
        %v7438 = vpack.c.b16 %v6606, %v6598
        %v7439 = vpack.c.b16 %v6615, %v6607
        %v7440 = vpack.c.b16 %v6616, %v6608
        %v7441 = vpack.c.b16 %v6617, %v6609
        %v7442 = vpack.c.b16 %v6618, %v6610
        %v7443 = vpack.c.b16 %v6619, %v6611
        %v7444 = vpack.c.b16 %v6620, %v6612
        %v7445 = vpack.c.b16 %v6621, %v6613
        %v7446 = vpack.c.b16 %v6622, %v6614
        %v7447 = vpack.c.b16 %v6631, %v6623
        %v7448 = vpack.c.b16 %v6632, %v6624
        %v7449 = vpack.c.b16 %v6633, %v6625
        %v7450 = vpack.c.b16 %v6634, %v6626
        %v7451 = vpack.c.b16 %v6635, %v6627
        %v7452 = vpack.c.b16 %v6636, %v6628
        %v7453 = vpack.c.b16 %v6637, %v6629
        %v7454 = vpack.c.b16 %v6638, %v6630
        %v7455 = vpack.c.b16 %v6647, %v6639
        %v7456 = vpack.c.b16 %v6648, %v6640
        %v7457 = vpack.c.b16 %v6649, %v6641
        %v7458 = vpack.c.b16 %v6650, %v6642
        %v7459 = vpack.c.b16 %v6651, %v6643
        %v7460 = vpack.c.b16 %v6652, %v6644
        %v7461 = vpack.c.b16 %v6653, %v6645
        %v7462 = vpack.c.b16 %v6654, %v6646
        %v7463 = vpack.c.b16 %v6663, %v6655
        %v7464 = vpack.c.b16 %v6664, %v6656
        %v7465 = vpack.c.b16 %v6665, %v6657
        %v7466 = vpack.c.b16 %v6666, %v6658
        %v7467 = vpack.c.b16 %v6667, %v6659
        %v7468 = vpack.c.b16 %v6668, %v6660
        %v7469 = vpack.c.b16 %v6669, %v6661
        %v7470 = vpack.c.b16 %v6670, %v6662
        %v7471 = vpack.c.b16 %v6679, %v6671
        %v7472 = vpack.c.b16 %v6680, %v6672
        %v7473 = vpack.c.b16 %v6681, %v6673
        %v7474 = vpack.c.b16 %v6682, %v6674
        %v7475 = vpack.c.b16 %v6683, %v6675
        %v7476 = vpack.c.b16 %v6684, %v6676
        %v7477 = vpack.c.b16 %v6685, %v6677
        %v7478 = vpack.c.b16 %v6686, %v6678
        %v7479 = vpack.c.b16 %v6695, %v6687
        %v7480 = vpack.c.b16 %v6696, %v6688
        %v7481 = vpack.c.b16 %v6697, %v6689
        %v7482 = vpack.c.b16 %v6698, %v6690
        %v7483 = vpack.c.b16 %v6699, %v6691
        %v7484 = vpack.c.b16 %v6700, %v6692
        %v7485 = vpack.c.b16 %v6701, %v6693
        %v7486 = vpack.c.b16 %v6702, %v6694
        %v7487 = vpack.c.b16 %v6711, %v6703
        %v7488 = vpack.c.b16 %v6712, %v6704
        %v7489 = vpack.c.b16 %v6713, %v6705
        %v7490 = vpack.c.b16 %v6714, %v6706
        %v7491 = vpack.c.b16 %v6715, %v6707
        %v7492 = vpack.c.b16 %v6716, %v6708
        %v7493 = vpack.c.b16 %v6717, %v6709
        %v7494 = vpack.c.b16 %v6718, %v6710
        %v7495 = vpack.c.b16 %v6727, %v6719
        %v7496 = vpack.c.b16 %v6728, %v6720
        %v7497 = vpack.c.b16 %v6729, %v6721
        %v7498 = vpack.c.b16 %v6730, %v6722
        %v7499 = vpack.c.b16 %v6731, %v6723
        %v7500 = vpack.c.b16 %v6732, %v6724
        %v7501 = vpack.c.b16 %v6733, %v6725
        %v7502 = vpack.c.b16 %v6734, %v6726
        %v7503 = vpack.c.b16 %v6743, %v6735
        %v7504 = vpack.c.b16 %v6744, %v6736
        %v7505 = vpack.c.b16 %v6745, %v6737
        %v7506 = vpack.c.b16 %v6746, %v6738
        %v7507 = vpack.c.b16 %v6747, %v6739
        %v7508 = vpack.c.b16 %v6748, %v6740
        %v7509 = vpack.c.b16 %v6749, %v6741
        %v7510 = vpack.c.b16 %v6750, %v6742
        %v7511 = vpack.c.b16 %v6759, %v6751
        %v7512 = vpack.c.b16 %v6760, %v6752
        %v7513 = vpack.c.b16 %v6761, %v6753
        %v7514 = vpack.c.b16 %v6762, %v6754
        %v7515 = vpack.c.b16 %v6763, %v6755
        %v7516 = vpack.c.b16 %v6764, %v6756
        %v7517 = vpack.c.b16 %v6765, %v6757
        %v7518 = vpack.c.b16 %v6766, %v6758
        %v7519 = vpack.c.b16 %v6775, %v6767
        %v7520 = vpack.c.b16 %v6776, %v6768
        %v7521 = vpack.c.b16 %v6777, %v6769
        %v7522 = vpack.c.b16 %v6778, %v6770
        %v7523 = vpack.c.b16 %v6779, %v6771
        %v7524 = vpack.c.b16 %v6780, %v6772
        %v7525 = vpack.c.b16 %v6781, %v6773
        %v7526 = vpack.c.b16 %v6782, %v6774
        %v7527 = vpack.c.b16 %v6791, %v6783
        %v7528 = vpack.c.b16 %v6792, %v6784
        %v7529 = vpack.c.b16 %v6793, %v6785
        %v7530 = vpack.c.b16 %v6794, %v6786
        %v7531 = vpack.c.b16 %v6795, %v6787
        %v7532 = vpack.c.b16 %v6796, %v6788
        %v7533 = vpack.c.b16 %v6797, %v6789
        %v7534 = vpack.c.b16 %v6798, %v6790
        %v7535 = vpack.c.b16 %v6807, %v6799
        %v7536 = vpack.c.b16 %v6808, %v6800
        %v7537 = vpack.c.b16 %v6809, %v6801
        %v7538 = vpack.c.b16 %v6810, %v6802
        %v7539 = vpack.c.b16 %v6811, %v6803
        %v7540 = vpack.c.b16 %v6812, %v6804
        %v7541 = vpack.c.b16 %v6813, %v6805
        %v7542 = vpack.c.b16 %v6814, %v6806
        %v7543 = vpack.c.b16 %v6823, %v6815
        %v7544 = vpack.c.b16 %v6824, %v6816
        %v7545 = vpack.c.b16 %v6825, %v6817
        %v7546 = vpack.c.b16 %v6826, %v6818
        %v7547 = vpack.c.b16 %v6827, %v6819
        %v7548 = vpack.c.b16 %v6828, %v6820
        %v7549 = vpack.c.b16 %v6829, %v6821
        %v7550 = vpack.c.b16 %v6830, %v6822
        %v7551 = vpack.c.b16 %v6839, %v6831
        %v7552 = vpack.c.b16 %v6840, %v6832
        %v7553 = vpack.c.b16 %v6841, %v6833
        %v7554 = vpack.c.b16 %v6842, %v6834
        %v7555 = vpack.c.b16 %v6843, %v6835
        %v7556 = vpack.c.b16 %v6844, %v6836
        %v7557 = vpack.c.b16 %v6845, %v6837
        %v7558 = vpack.c.b16 %v6846, %v6838
        %v7559 = vpack.c.b16 %v6855, %v6847
        %v7560 = vpack.c.b16 %v6856, %v6848
        %v7561 = vpack.c.b16 %v6857, %v6849
        %v7562 = vpack.c.b16 %v6858, %v6850
        %v7563 = vpack.c.b16 %v6859, %v6851
        %v7564 = vpack.c.b16 %v6860, %v6852
        %v7565 = vpack.c.b16 %v6861, %v6853
        %v7566 = vpack.c.b16 %v6862, %v6854
        %v7567 = vpack.c.b16 %v6871, %v6863
        %v7568 = vpack.c.b16 %v6872, %v6864
        %v7569 = vpack.c.b16 %v6873, %v6865
        %v7570 = vpack.c.b16 %v6874, %v6866
        %v7571 = vpack.c.b16 %v6875, %v6867
        %v7572 = vpack.c.b16 %v6876, %v6868
        %v7573 = vpack.c.b16 %v6877, %v6869
        %v7574 = vpack.c.b16 %v6878, %v6870
        %v7575 = vpack.c.b16 %v6887, %v6879
        %v7576 = vpack.c.b16 %v6888, %v6880
        %v7577 = vpack.c.b16 %v6889, %v6881
        %v7578 = vpack.c.b16 %v6890, %v6882
        %v7579 = vpack.c.b16 %v6891, %v6883
        %v7580 = vpack.c.b16 %v6892, %v6884
        %v7581 = vpack.c.b16 %v6893, %v6885
        %v7582 = vpack.c.b16 %v6894, %v6886
        %v7583 = vpack.c.b16 %v6903, %v6895
        %v7584 = vpack.c.b16 %v6904, %v6896
        %v7585 = vpack.c.b16 %v6905, %v6897
        %v7586 = vpack.c.b16 %v6906, %v6898
        %v7587 = vpack.c.b16 %v6907, %v6899
        %v7588 = vpack.c.b16 %v6908, %v6900
        %v7589 = vpack.c.b16 %v6909, %v6901
        %v7590 = vpack.c.b16 %v6910, %v6902
        %v7591 = vpack.c.b16 %v6919, %v6911
        %v7592 = vpack.c.b16 %v6920, %v6912
        %v7593 = vpack.c.b16 %v6921, %v6913
        %v7594 = vpack.c.b16 %v6922, %v6914
        %v7595 = vpack.c.b16 %v6923, %v6915
        %v7596 = vpack.c.b16 %v6924, %v6916
        %v7597 = vpack.c.b16 %v6925, %v6917
        %v7598 = vpack.c.b16 %v6926, %v6918
        %v7599 = vpack.c.b16 %v6935, %v6927
        %v7600 = vpack.c.b16 %v6936, %v6928
        %v7601 = vpack.c.b16 %v6937, %v6929
        %v7602 = vpack.c.b16 %v6938, %v6930
        %v7603 = vpack.c.b16 %v6939, %v6931
        %v7604 = vpack.c.b16 %v6940, %v6932
        %v7605 = vpack.c.b16 %v6941, %v6933
        %v7606 = vpack.c.b16 %v6942, %v6934
        %v7607 = vpack.c.b16 %v6951, %v6943
        %v7608 = vpack.c.b16 %v6952, %v6944
        %v7609 = vpack.c.b16 %v6953, %v6945
        %v7610 = vpack.c.b16 %v6954, %v6946
        %v7611 = vpack.c.b16 %v6955, %v6947
        %v7612 = vpack.c.b16 %v6956, %v6948
        %v7613 = vpack.c.b16 %v6957, %v6949
        %v7614 = vpack.c.b16 %v6958, %v6950
        %v7615 = vpack.c.b16 %v6967, %v6959
        %v7616 = vpack.c.b16 %v6968, %v6960
        %v7617 = vpack.c.b16 %v6969, %v6961
        %v7618 = vpack.c.b16 %v6970, %v6962
        %v7619 = vpack.c.b16 %v6971, %v6963
        %v7620 = vpack.c.b16 %v6972, %v6964
        %v7621 = vpack.c.b16 %v6973, %v6965
        %v7622 = vpack.c.b16 %v6974, %v6966
        %v7623 = vpack.c.b16 %v6983, %v6975
        %v7624 = vpack.c.b16 %v6984, %v6976
        %v7625 = vpack.c.b16 %v6985, %v6977
        %v7626 = vpack.c.b16 %v6986, %v6978
        %v7627 = vpack.c.b16 %v6987, %v6979
        %v7628 = vpack.c.b16 %v6988, %v6980
        %v7629 = vpack.c.b16 %v6989, %v6981
        %v7630 = vpack.c.b16 %v6990, %v6982
        %v7631 = vpack.c.b16 %v6999, %v6991
        %v7632 = vpack.c.b16 %v7000, %v6992
        %v7633 = vpack.c.b16 %v7001, %v6993
        %v7634 = vpack.c.b16 %v7002, %v6994
        %v7635 = vpack.c.b16 %v7003, %v6995
        %v7636 = vpack.c.b16 %v7004, %v6996
        %v7637 = vpack.c.b16 %v7005, %v6997
        %v7638 = vpack.c.b16 %v7006, %v6998
        %v7639 = vpack.c.b16 %v7015, %v7007
        %v7640 = vpack.c.b16 %v7016, %v7008
        %v7641 = vpack.c.b16 %v7017, %v7009
        %v7642 = vpack.c.b16 %v7018, %v7010
        %v7643 = vpack.c.b16 %v7019, %v7011
        %v7644 = vpack.c.b16 %v7020, %v7012
        %v7645 = vpack.c.b16 %v7021, %v7013
        %v7646 = vpack.c.b16 %v7022, %v7014
        %v7647 = vpack.c.b16 %v7031, %v7023
        %v7648 = vpack.c.b16 %v7032, %v7024
        %v7649 = vpack.c.b16 %v7033, %v7025
        %v7650 = vpack.c.b16 %v7034, %v7026
        %v7651 = vpack.c.b16 %v7035, %v7027
        %v7652 = vpack.c.b16 %v7036, %v7028
        %v7653 = vpack.c.b16 %v7037, %v7029
        %v7654 = vpack.c.b16 %v7038, %v7030
        %v7655 = vpack.c.b16 %v7047, %v7039
        %v7656 = vpack.c.b16 %v7048, %v7040
        %v7657 = vpack.c.b16 %v7049, %v7041
        %v7658 = vpack.c.b16 %v7050, %v7042
        %v7659 = vpack.c.b16 %v7051, %v7043
        %v7660 = vpack.c.b16 %v7052, %v7044
        %v7661 = vpack.c.b16 %v7053, %v7045
        %v7662 = vpack.c.b16 %v7054, %v7046
        %v7663 = vpack.c.b16 %v7063, %v7055
        %v7664 = vpack.c.b16 %v7064, %v7056
        %v7665 = vpack.c.b16 %v7065, %v7057
        %v7666 = vpack.c.b16 %v7066, %v7058
        %v7667 = vpack.c.b16 %v7067, %v7059
        %v7668 = vpack.c.b16 %v7068, %v7060
        %v7669 = vpack.c.b16 %v7069, %v7061
        %v7670 = vpack.c.b16 %v7070, %v7062
        %v7671 = vpack.c.b16 %v7079, %v7071
        %v7672 = vpack.c.b16 %v7080, %v7072
        %v7673 = vpack.c.b16 %v7081, %v7073
        %v7674 = vpack.c.b16 %v7082, %v7074
        %v7675 = vpack.c.b16 %v7083, %v7075
        %v7676 = vpack.c.b16 %v7084, %v7076
        %v7677 = vpack.c.b16 %v7085, %v7077
        %v7678 = vpack.c.b16 %v7086, %v7078
        %v7679 = vpack.c.b16 %v7095, %v7087
        %v7680 = vpack.c.b16 %v7096, %v7088
        %v7681 = vpack.c.b16 %v7097, %v7089
        %v7682 = vpack.c.b16 %v7098, %v7090
        %v7683 = vpack.c.b16 %v7099, %v7091
        %v7684 = vpack.c.b16 %v7100, %v7092
        %v7685 = vpack.c.b16 %v7101, %v7093
        %v7686 = vpack.c.b16 %v7102, %v7094
        %v7687 = vpack.c.b16 %v7111, %v7103
        %v7688 = vpack.c.b16 %v7112, %v7104
        %v7689 = vpack.c.b16 %v7113, %v7105
        %v7690 = vpack.c.b16 %v7114, %v7106
        %v7691 = vpack.c.b16 %v7115, %v7107
        %v7692 = vpack.c.b16 %v7116, %v7108
        %v7693 = vpack.c.b16 %v7117, %v7109
        %v7694 = vpack.c.b16 %v7118, %v7110
        %v7695 = vpack.c.b16 %v7127, %v7119
        %v7696 = vpack.c.b16 %v7128, %v7120
        %v7697 = vpack.c.b16 %v7129, %v7121
        %v7698 = vpack.c.b16 %v7130, %v7122
        %v7699 = vpack.c.b16 %v7131, %v7123
        %v7700 = vpack.c.b16 %v7132, %v7124
        %v7701 = vpack.c.b16 %v7133, %v7125
        %v7702 = vpack.c.b16 %v7134, %v7126
        %v7703 = vpack.c.b16 %v7143, %v7135
        %v7704 = vpack.c.b16 %v7144, %v7136
        %v7705 = vpack.c.b16 %v7145, %v7137
        %v7706 = vpack.c.b16 %v7146, %v7138
        %v7707 = vpack.c.b16 %v7147, %v7139
        %v7708 = vpack.c.b16 %v7148, %v7140
        %v7709 = vpack.c.b16 %v7149, %v7141
        %v7710 = vpack.c.b16 %v7150, %v7142
        %v7711 = vpack.c.b16 %v7159, %v7151
        %v7712 = vpack.c.b16 %v7160, %v7152
        %v7713 = vpack.c.b16 %v7161, %v7153
        %v7714 = vpack.c.b16 %v7162, %v7154
        %v7715 = vpack.c.b16 %v7163, %v7155
        %v7716 = vpack.c.b16 %v7164, %v7156
        %v7717 = vpack.c.b16 %v7165, %v7157
        %v7718 = vpack.c.b16 %v7166, %v7158
        %v7719 = vpack.c.b16 %v7175, %v7167
        %v7720 = vpack.c.b16 %v7176, %v7168
        %v7721 = vpack.c.b16 %v7177, %v7169
        %v7722 = vpack.c.b16 %v7178, %v7170
        %v7723 = vpack.c.b16 %v7179, %v7171
        %v7724 = vpack.c.b16 %v7180, %v7172
        %v7725 = vpack.c.b16 %v7181, %v7173
        %v7726 = vpack.c.b16 %v7182, %v7174
        %v7727 = vpack.c.b16 %v7191, %v7183
        %v7728 = vpack.c.b16 %v7192, %v7184
        %v7729 = vpack.c.b16 %v7193, %v7185
        %v7730 = vpack.c.b16 %v7194, %v7186
        %v7731 = vpack.c.b16 %v7195, %v7187
        %v7732 = vpack.c.b16 %v7196, %v7188
        %v7733 = vpack.c.b16 %v7197, %v7189
        %v7734 = vpack.c.b16 %v7198, %v7190
        %v7735 = vpack.c.b16 %v7207, %v7199
        %v7736 = vpack.c.b16 %v7208, %v7200
        %v7737 = vpack.c.b16 %v7209, %v7201
        %v7738 = vpack.c.b16 %v7210, %v7202
        %v7739 = vpack.c.b16 %v7211, %v7203
        %v7740 = vpack.c.b16 %v7212, %v7204
        %v7741 = vpack.c.b16 %v7213, %v7205
        %v7742 = vpack.c.b16 %v7214, %v7206
        %v7743 = vpack.c.b16 %v7223, %v7215
        %v7744 = vpack.c.b16 %v7224, %v7216
        %v7745 = vpack.c.b16 %v7225, %v7217
        %v7746 = vpack.c.b16 %v7226, %v7218
        %v7747 = vpack.c.b16 %v7227, %v7219
        %v7748 = vpack.c.b16 %v7228, %v7220
        %v7749 = vpack.c.b16 %v7229, %v7221
        %v7750 = vpack.c.b16 %v7230, %v7222
        %v7751 = vpack.c.b16 %v7239, %v7231
        %v7752 = vpack.c.b16 %v7240, %v7232
        %v7753 = vpack.c.b16 %v7241, %v7233
        %v7754 = vpack.c.b16 %v7242, %v7234
        %v7755 = vpack.c.b16 %v7243, %v7235
        %v7756 = vpack.c.b16 %v7244, %v7236
        %v7757 = vpack.c.b16 %v7245, %v7237
        %v7758 = vpack.c.b16 %v7246, %v7238
        %8271 = vmatpush.bf16.msra.mxu0 %v7303
        %8272 = vmatpush.bf16.msra.mxu0 %v7295
        %8273 = vmatpush.bf16.msra.mxu0 %v7287
        %8274 = vmatpush.bf16.msra.mxu0 %v7279
        %8275 = vmatpush.bf16.msra.mxu0 %v7271
        %8276 = vmatpush.bf16.msra.mxu0 %v7263
        %8277 = vmatpush.bf16.msra.mxu0 %v7255
        %8278 = vmatpush.bf16.msra.mxu0 %v7247
        %8279 = vmatmul.bf16.gmra.mxu0 %v5695
        %v8280 = vpop.f32.mrf.mxu0
        %v8281 = vadd.f32 %v4962, %v8280
        %v8282 = vpop.f32.mrf.mxu0
        %8283 = vdwg.mxu0
        %8284 = vmatpush.bf16.msra.mxu0 %v7367
        %8285 = vmatpush.bf16.msra.mxu0 %v7359
        %8286 = vmatpush.bf16.msra.mxu0 %v7351
        %8287 = vmatpush.bf16.msra.mxu0 %v7343
        %8288 = vmatpush.bf16.msra.mxu0 %v7335
        %8289 = vmatpush.bf16.msra.mxu0 %v7327
        %8290 = vmatpush.bf16.msra.mxu0 %v7319
        %8291 = vmatpush.bf16.msra.mxu0 %v7311
        %8292 = vmatmul.bf16.gmra.mxu0 %v5696
        %v8293 = vpop.f32.mrf.mxu0
        %v8294 = vadd.f32 %v8281, %v8293
        %v8295 = vpop.f32.mrf.mxu0
        %8296 = vdwg.mxu0
        %8297 = vmatpush.bf16.msra.mxu0 %v7431
        %8298 = vmatpush.bf16.msra.mxu0 %v7423
        %8299 = vmatpush.bf16.msra.mxu0 %v7415
        %8300 = vmatpush.bf16.msra.mxu0 %v7407
        %8301 = vmatpush.bf16.msra.mxu0 %v7399
        %8302 = vmatpush.bf16.msra.mxu0 %v7391
        %8303 = vmatpush.bf16.msra.mxu0 %v7383
        %8304 = vmatpush.bf16.msra.mxu0 %v7375
        %8305 = vmatmul.bf16.gmra.mxu0 %v5697
        %v8306 = vpop.f32.mrf.mxu0
        %v8307 = vadd.f32 %v8294, %v8306
        %v8308 = vpop.f32.mrf.mxu0
        %8309 = vdwg.mxu0
        %8310 = vmatpush.bf16.msra.mxu0 %v7495
        %8311 = vmatpush.bf16.msra.mxu0 %v7487
        %8312 = vmatpush.bf16.msra.mxu0 %v7479
        %8313 = vmatpush.bf16.msra.mxu0 %v7471
        %8314 = vmatpush.bf16.msra.mxu0 %v7463
        %8315 = vmatpush.bf16.msra.mxu0 %v7455
        %8316 = vmatpush.bf16.msra.mxu0 %v7447
        %8317 = vmatpush.bf16.msra.mxu0 %v7439
        %8318 = vmatmul.bf16.gmra.mxu0 %v5698
        %v8319 = vpop.f32.mrf.mxu0
        %v8320 = vadd.f32 %v8307, %v8319
        %v8321 = vpop.f32.mrf.mxu0
        %8322 = vdwg.mxu0
        %8323 = vmatpush.bf16.msra.mxu0 %v7559
        %8324 = vmatpush.bf16.msra.mxu0 %v7551
        %8325 = vmatpush.bf16.msra.mxu0 %v7543
        %8326 = vmatpush.bf16.msra.mxu0 %v7535
        %8327 = vmatpush.bf16.msra.mxu0 %v7527
        %8328 = vmatpush.bf16.msra.mxu0 %v7519
        %8329 = vmatpush.bf16.msra.mxu0 %v7511
        %8330 = vmatpush.bf16.msra.mxu0 %v7503
        %8331 = vmatmul.bf16.gmra.mxu0 %v5699
        %v8332 = vpop.f32.mrf.mxu0
        %v8333 = vadd.f32 %v8320, %v8332
        %v8334 = vpop.f32.mrf.mxu0
        %8335 = vdwg.mxu0
        %8336 = vmatpush.bf16.msra.mxu0 %v7623
        %8337 = vmatpush.bf16.msra.mxu0 %v7615
        %8338 = vmatpush.bf16.msra.mxu0 %v7607
        %8339 = vmatpush.bf16.msra.mxu0 %v7599
        %8340 = vmatpush.bf16.msra.mxu0 %v7591
        %8341 = vmatpush.bf16.msra.mxu0 %v7583
        %8342 = vmatpush.bf16.msra.mxu0 %v7575
        %8343 = vmatpush.bf16.msra.mxu0 %v7567
        %8344 = vmatmul.bf16.gmra.mxu0 %v5700
        %v8345 = vpop.f32.mrf.mxu0
        %v8346 = vadd.f32 %v8333, %v8345
        %v8347 = vpop.f32.mrf.mxu0
        %8348 = vdwg.mxu0
        %8349 = vmatpush.bf16.msra.mxu0 %v7687
        %8350 = vmatpush.bf16.msra.mxu0 %v7679
        %8351 = vmatpush.bf16.msra.mxu0 %v7671
        %8352 = vmatpush.bf16.msra.mxu0 %v7663
        %8353 = vmatpush.bf16.msra.mxu0 %v7655
        %8354 = vmatpush.bf16.msra.mxu0 %v7647
        %8355 = vmatpush.bf16.msra.mxu0 %v7639
        %8356 = vmatpush.bf16.msra.mxu0 %v7631
        %8357 = vmatmul.bf16.gmra.mxu0 %v5701
        %v8358 = vpop.f32.mrf.mxu0
        %v8359 = vadd.f32 %v8346, %v8358
        %v8360 = vpop.f32.mrf.mxu0
        %8361 = vdwg.mxu0
        %8362 = vmatpush.bf16.msra.mxu0 %v7751
        %8363 = vmatpush.bf16.msra.mxu0 %v7743
        %8364 = vmatpush.bf16.msra.mxu0 %v7735
        %8365 = vmatpush.bf16.msra.mxu0 %v7727
        %8366 = vmatpush.bf16.msra.mxu0 %v7719
        %8367 = vmatpush.bf16.msra.mxu0 %v7711
        %8368 = vmatpush.bf16.msra.mxu0 %v7703
        %8369 = vmatpush.bf16.msra.mxu0 %v7695
        %8370 = vmatmul.bf16.gmra.mxu0 %v5702
        %v8371 = vpop.f32.mrf.mxu0
        %v8372 = vadd.f32 %v8359, %v8371
        %v8373 = vpop.f32.mrf.mxu0
        %8374 = vdwg.mxu0
        %8375 = vmatpush.bf16.msra.mxu0 %v7304
        %8376 = vmatpush.bf16.msra.mxu0 %v7296
        %8377 = vmatpush.bf16.msra.mxu0 %v7288
        %8378 = vmatpush.bf16.msra.mxu0 %v7280
        %8379 = vmatpush.bf16.msra.mxu0 %v7272
        %8380 = vmatpush.bf16.msra.mxu0 %v7264
        %8381 = vmatpush.bf16.msra.mxu0 %v7256
        %8382 = vmatpush.bf16.msra.mxu0 %v7248
        %8383 = vmatmul.bf16.gmra.mxu0 %v5695
        %v8384 = vpop.f32.mrf.mxu0
        %v8385 = vadd.f32 %v5066, %v8384
        %v8386 = vpop.f32.mrf.mxu0
        %8387 = vdwg.mxu0
        %8388 = vmatpush.bf16.msra.mxu0 %v7368
        %8389 = vmatpush.bf16.msra.mxu0 %v7360
        %8390 = vmatpush.bf16.msra.mxu0 %v7352
        %8391 = vmatpush.bf16.msra.mxu0 %v7344
        %8392 = vmatpush.bf16.msra.mxu0 %v7336
        %8393 = vmatpush.bf16.msra.mxu0 %v7328
        %8394 = vmatpush.bf16.msra.mxu0 %v7320
        %8395 = vmatpush.bf16.msra.mxu0 %v7312
        %8396 = vmatmul.bf16.gmra.mxu0 %v5696
        %v8397 = vpop.f32.mrf.mxu0
        %v8398 = vadd.f32 %v8385, %v8397
        %v8399 = vpop.f32.mrf.mxu0
        %8400 = vdwg.mxu0
        %8401 = vmatpush.bf16.msra.mxu0 %v7432
        %8402 = vmatpush.bf16.msra.mxu0 %v7424
        %8403 = vmatpush.bf16.msra.mxu0 %v7416
        %8404 = vmatpush.bf16.msra.mxu0 %v7408
        %8405 = vmatpush.bf16.msra.mxu0 %v7400
        %8406 = vmatpush.bf16.msra.mxu0 %v7392
        %8407 = vmatpush.bf16.msra.mxu0 %v7384
        %8408 = vmatpush.bf16.msra.mxu0 %v7376
        %8409 = vmatmul.bf16.gmra.mxu0 %v5697
        %v8410 = vpop.f32.mrf.mxu0
        %v8411 = vadd.f32 %v8398, %v8410
        %v8412 = vpop.f32.mrf.mxu0
        %8413 = vdwg.mxu0
        %8414 = vmatpush.bf16.msra.mxu0 %v7496
        %8415 = vmatpush.bf16.msra.mxu0 %v7488
        %8416 = vmatpush.bf16.msra.mxu0 %v7480
        %8417 = vmatpush.bf16.msra.mxu0 %v7472
        %8418 = vmatpush.bf16.msra.mxu0 %v7464
        %8419 = vmatpush.bf16.msra.mxu0 %v7456
        %8420 = vmatpush.bf16.msra.mxu0 %v7448
        %8421 = vmatpush.bf16.msra.mxu0 %v7440
        %8422 = vmatmul.bf16.gmra.mxu0 %v5698
        %v8423 = vpop.f32.mrf.mxu0
        %v8424 = vadd.f32 %v8411, %v8423
        %v8425 = vpop.f32.mrf.mxu0
        %8426 = vdwg.mxu0
        %8427 = vmatpush.bf16.msra.mxu0 %v7560
        %8428 = vmatpush.bf16.msra.mxu0 %v7552
        %8429 = vmatpush.bf16.msra.mxu0 %v7544
        %8430 = vmatpush.bf16.msra.mxu0 %v7536
        %8431 = vmatpush.bf16.msra.mxu0 %v7528
        %8432 = vmatpush.bf16.msra.mxu0 %v7520
        %8433 = vmatpush.bf16.msra.mxu0 %v7512
        %8434 = vmatpush.bf16.msra.mxu0 %v7504
        %8435 = vmatmul.bf16.gmra.mxu0 %v5699
        %v8436 = vpop.f32.mrf.mxu0
        %v8437 = vadd.f32 %v8424, %v8436
        %v8438 = vpop.f32.mrf.mxu0
        %8439 = vdwg.mxu0
        %8440 = vmatpush.bf16.msra.mxu0 %v7624
        %8441 = vmatpush.bf16.msra.mxu0 %v7616
        %8442 = vmatpush.bf16.msra.mxu0 %v7608
        %8443 = vmatpush.bf16.msra.mxu0 %v7600
        %8444 = vmatpush.bf16.msra.mxu0 %v7592
        %8445 = vmatpush.bf16.msra.mxu0 %v7584
        %8446 = vmatpush.bf16.msra.mxu0 %v7576
        %8447 = vmatpush.bf16.msra.mxu0 %v7568
        %8448 = vmatmul.bf16.gmra.mxu0 %v5700
        %v8449 = vpop.f32.mrf.mxu0
        %v8450 = vadd.f32 %v8437, %v8449
        %v8451 = vpop.f32.mrf.mxu0
        %8452 = vdwg.mxu0
        %8453 = vmatpush.bf16.msra.mxu0 %v7688
        %8454 = vmatpush.bf16.msra.mxu0 %v7680
        %8455 = vmatpush.bf16.msra.mxu0 %v7672
        %8456 = vmatpush.bf16.msra.mxu0 %v7664
        %8457 = vmatpush.bf16.msra.mxu0 %v7656
        %8458 = vmatpush.bf16.msra.mxu0 %v7648
        %8459 = vmatpush.bf16.msra.mxu0 %v7640
        %8460 = vmatpush.bf16.msra.mxu0 %v7632
        %8461 = vmatmul.bf16.gmra.mxu0 %v5701
        %v8462 = vpop.f32.mrf.mxu0
        %v8463 = vadd.f32 %v8450, %v8462
        %v8464 = vpop.f32.mrf.mxu0
        %8465 = vdwg.mxu0
        %8466 = vmatpush.bf16.msra.mxu0 %v7752
        %8467 = vmatpush.bf16.msra.mxu0 %v7744
        %8468 = vmatpush.bf16.msra.mxu0 %v7736
        %8469 = vmatpush.bf16.msra.mxu0 %v7728
        %8470 = vmatpush.bf16.msra.mxu0 %v7720
        %8471 = vmatpush.bf16.msra.mxu0 %v7712
        %8472 = vmatpush.bf16.msra.mxu0 %v7704
        %8473 = vmatpush.bf16.msra.mxu0 %v7696
        %8474 = vmatmul.bf16.gmra.mxu0 %v5702
        %v8475 = vpop.f32.mrf.mxu0
        %v8476 = vadd.f32 %v8463, %v8475
        %v8477 = vpop.f32.mrf.mxu0
        %8478 = vdwg.mxu0
        %8479 = vmatpush.bf16.msra.mxu0 %v7305
        %8480 = vmatpush.bf16.msra.mxu0 %v7297
        %8481 = vmatpush.bf16.msra.mxu0 %v7289
        %8482 = vmatpush.bf16.msra.mxu0 %v7281
        %8483 = vmatpush.bf16.msra.mxu0 %v7273
        %8484 = vmatpush.bf16.msra.mxu0 %v7265
        %8485 = vmatpush.bf16.msra.mxu0 %v7257
        %8486 = vmatpush.bf16.msra.mxu0 %v7249
        %8487 = vmatmul.bf16.gmra.mxu0 %v5695
        %v8488 = vpop.f32.mrf.mxu0
        %v8489 = vadd.f32 %v5170, %v8488
        %v8490 = vpop.f32.mrf.mxu0
        %8491 = vdwg.mxu0
        %8492 = vmatpush.bf16.msra.mxu0 %v7369
        %8493 = vmatpush.bf16.msra.mxu0 %v7361
        %8494 = vmatpush.bf16.msra.mxu0 %v7353
        %8495 = vmatpush.bf16.msra.mxu0 %v7345
        %8496 = vmatpush.bf16.msra.mxu0 %v7337
        %8497 = vmatpush.bf16.msra.mxu0 %v7329
        %8498 = vmatpush.bf16.msra.mxu0 %v7321
        %8499 = vmatpush.bf16.msra.mxu0 %v7313
        %8500 = vmatmul.bf16.gmra.mxu0 %v5696
        %v8501 = vpop.f32.mrf.mxu0
        %v8502 = vadd.f32 %v8489, %v8501
        %v8503 = vpop.f32.mrf.mxu0
        %8504 = vdwg.mxu0
        %8505 = vmatpush.bf16.msra.mxu0 %v7433
        %8506 = vmatpush.bf16.msra.mxu0 %v7425
        %8507 = vmatpush.bf16.msra.mxu0 %v7417
        %8508 = vmatpush.bf16.msra.mxu0 %v7409
        %8509 = vmatpush.bf16.msra.mxu0 %v7401
        %8510 = vmatpush.bf16.msra.mxu0 %v7393
        %8511 = vmatpush.bf16.msra.mxu0 %v7385
        %8512 = vmatpush.bf16.msra.mxu0 %v7377
        %8513 = vmatmul.bf16.gmra.mxu0 %v5697
        %v8514 = vpop.f32.mrf.mxu0
        %v8515 = vadd.f32 %v8502, %v8514
        %v8516 = vpop.f32.mrf.mxu0
        %8517 = vdwg.mxu0
        %8518 = vmatpush.bf16.msra.mxu0 %v7497
        %8519 = vmatpush.bf16.msra.mxu0 %v7489
        %8520 = vmatpush.bf16.msra.mxu0 %v7481
        %8521 = vmatpush.bf16.msra.mxu0 %v7473
        %8522 = vmatpush.bf16.msra.mxu0 %v7465
        %8523 = vmatpush.bf16.msra.mxu0 %v7457
        %8524 = vmatpush.bf16.msra.mxu0 %v7449
        %8525 = vmatpush.bf16.msra.mxu0 %v7441
        %8526 = vmatmul.bf16.gmra.mxu0 %v5698
        %v8527 = vpop.f32.mrf.mxu0
        %v8528 = vadd.f32 %v8515, %v8527
        %v8529 = vpop.f32.mrf.mxu0
        %8530 = vdwg.mxu0
        %8531 = vmatpush.bf16.msra.mxu0 %v7561
        %8532 = vmatpush.bf16.msra.mxu0 %v7553
        %8533 = vmatpush.bf16.msra.mxu0 %v7545
        %8534 = vmatpush.bf16.msra.mxu0 %v7537
        %8535 = vmatpush.bf16.msra.mxu0 %v7529
        %8536 = vmatpush.bf16.msra.mxu0 %v7521
        %8537 = vmatpush.bf16.msra.mxu0 %v7513
        %8538 = vmatpush.bf16.msra.mxu0 %v7505
        %8539 = vmatmul.bf16.gmra.mxu0 %v5699
        %v8540 = vpop.f32.mrf.mxu0
        %v8541 = vadd.f32 %v8528, %v8540
        %v8542 = vpop.f32.mrf.mxu0
        %8543 = vdwg.mxu0
        %8544 = vmatpush.bf16.msra.mxu0 %v7625
        %8545 = vmatpush.bf16.msra.mxu0 %v7617
        %8546 = vmatpush.bf16.msra.mxu0 %v7609
        %8547 = vmatpush.bf16.msra.mxu0 %v7601
        %8548 = vmatpush.bf16.msra.mxu0 %v7593
        %8549 = vmatpush.bf16.msra.mxu0 %v7585
        %8550 = vmatpush.bf16.msra.mxu0 %v7577
        %8551 = vmatpush.bf16.msra.mxu0 %v7569
        %8552 = vmatmul.bf16.gmra.mxu0 %v5700
        %v8553 = vpop.f32.mrf.mxu0
        %v8554 = vadd.f32 %v8541, %v8553
        %v8555 = vpop.f32.mrf.mxu0
        %8556 = vdwg.mxu0
        %8557 = vmatpush.bf16.msra.mxu0 %v7689
        %8558 = vmatpush.bf16.msra.mxu0 %v7681
        %8559 = vmatpush.bf16.msra.mxu0 %v7673
        %8560 = vmatpush.bf16.msra.mxu0 %v7665
        %8561 = vmatpush.bf16.msra.mxu0 %v7657
        %8562 = vmatpush.bf16.msra.mxu0 %v7649
        %8563 = vmatpush.bf16.msra.mxu0 %v7641
        %8564 = vmatpush.bf16.msra.mxu0 %v7633
        %8565 = vmatmul.bf16.gmra.mxu0 %v5701
        %v8566 = vpop.f32.mrf.mxu0
        %v8567 = vadd.f32 %v8554, %v8566
        %v8568 = vpop.f32.mrf.mxu0
        %8569 = vdwg.mxu0
        %8570 = vmatpush.bf16.msra.mxu0 %v7753
        %8571 = vmatpush.bf16.msra.mxu0 %v7745
        %8572 = vmatpush.bf16.msra.mxu0 %v7737
        %8573 = vmatpush.bf16.msra.mxu0 %v7729
        %8574 = vmatpush.bf16.msra.mxu0 %v7721
        %8575 = vmatpush.bf16.msra.mxu0 %v7713
        %8576 = vmatpush.bf16.msra.mxu0 %v7705
        %8577 = vmatpush.bf16.msra.mxu0 %v7697
        %8578 = vmatmul.bf16.gmra.mxu0 %v5702
        %v8579 = vpop.f32.mrf.mxu0
        %v8580 = vadd.f32 %v8567, %v8579
        %v8581 = vpop.f32.mrf.mxu0
        %8582 = vdwg.mxu0
        %8583 = vmatpush.bf16.msra.mxu0 %v7306
        %8584 = vmatpush.bf16.msra.mxu0 %v7298
        %8585 = vmatpush.bf16.msra.mxu0 %v7290
        %8586 = vmatpush.bf16.msra.mxu0 %v7282
        %8587 = vmatpush.bf16.msra.mxu0 %v7274
        %8588 = vmatpush.bf16.msra.mxu0 %v7266
        %8589 = vmatpush.bf16.msra.mxu0 %v7258
        %8590 = vmatpush.bf16.msra.mxu0 %v7250
        %8591 = vmatmul.bf16.gmra.mxu0 %v5695
        %v8592 = vpop.f32.mrf.mxu0
        %v8593 = vadd.f32 %v5274, %v8592
        %v8594 = vpop.f32.mrf.mxu0
        %8595 = vdwg.mxu0
        %8596 = vmatpush.bf16.msra.mxu0 %v7370
        %8597 = vmatpush.bf16.msra.mxu0 %v7362
        %8598 = vmatpush.bf16.msra.mxu0 %v7354
        %8599 = vmatpush.bf16.msra.mxu0 %v7346
        %8600 = vmatpush.bf16.msra.mxu0 %v7338
        %8601 = vmatpush.bf16.msra.mxu0 %v7330
        %8602 = vmatpush.bf16.msra.mxu0 %v7322
        %8603 = vmatpush.bf16.msra.mxu0 %v7314
        %8604 = vmatmul.bf16.gmra.mxu0 %v5696
        %v8605 = vpop.f32.mrf.mxu0
        %v8606 = vadd.f32 %v8593, %v8605
        %v8607 = vpop.f32.mrf.mxu0
        %8608 = vdwg.mxu0
        %8609 = vmatpush.bf16.msra.mxu0 %v7434
        %8610 = vmatpush.bf16.msra.mxu0 %v7426
        %8611 = vmatpush.bf16.msra.mxu0 %v7418
        %8612 = vmatpush.bf16.msra.mxu0 %v7410
        %8613 = vmatpush.bf16.msra.mxu0 %v7402
        %8614 = vmatpush.bf16.msra.mxu0 %v7394
        %8615 = vmatpush.bf16.msra.mxu0 %v7386
        %8616 = vmatpush.bf16.msra.mxu0 %v7378
        %8617 = vmatmul.bf16.gmra.mxu0 %v5697
        %v8618 = vpop.f32.mrf.mxu0
        %v8619 = vadd.f32 %v8606, %v8618
        %v8620 = vpop.f32.mrf.mxu0
        %8621 = vdwg.mxu0
        %8622 = vmatpush.bf16.msra.mxu0 %v7498
        %8623 = vmatpush.bf16.msra.mxu0 %v7490
        %8624 = vmatpush.bf16.msra.mxu0 %v7482
        %8625 = vmatpush.bf16.msra.mxu0 %v7474
        %8626 = vmatpush.bf16.msra.mxu0 %v7466
        %8627 = vmatpush.bf16.msra.mxu0 %v7458
        %8628 = vmatpush.bf16.msra.mxu0 %v7450
        %8629 = vmatpush.bf16.msra.mxu0 %v7442
        %8630 = vmatmul.bf16.gmra.mxu0 %v5698
        %v8631 = vpop.f32.mrf.mxu0
        %v8632 = vadd.f32 %v8619, %v8631
        %v8633 = vpop.f32.mrf.mxu0
        %8634 = vdwg.mxu0
        %8635 = vmatpush.bf16.msra.mxu0 %v7562
        %8636 = vmatpush.bf16.msra.mxu0 %v7554
        %8637 = vmatpush.bf16.msra.mxu0 %v7546
        %8638 = vmatpush.bf16.msra.mxu0 %v7538
        %8639 = vmatpush.bf16.msra.mxu0 %v7530
        %8640 = vmatpush.bf16.msra.mxu0 %v7522
        %8641 = vmatpush.bf16.msra.mxu0 %v7514
        %8642 = vmatpush.bf16.msra.mxu0 %v7506
        %8643 = vmatmul.bf16.gmra.mxu0 %v5699
        %v8644 = vpop.f32.mrf.mxu0
        %v8645 = vadd.f32 %v8632, %v8644
        %v8646 = vpop.f32.mrf.mxu0
        %8647 = vdwg.mxu0
        %8648 = vmatpush.bf16.msra.mxu0 %v7626
        %8649 = vmatpush.bf16.msra.mxu0 %v7618
        %8650 = vmatpush.bf16.msra.mxu0 %v7610
        %8651 = vmatpush.bf16.msra.mxu0 %v7602
        %8652 = vmatpush.bf16.msra.mxu0 %v7594
        %8653 = vmatpush.bf16.msra.mxu0 %v7586
        %8654 = vmatpush.bf16.msra.mxu0 %v7578
        %8655 = vmatpush.bf16.msra.mxu0 %v7570
        %8656 = vmatmul.bf16.gmra.mxu0 %v5700
        %v8657 = vpop.f32.mrf.mxu0
        %v8658 = vadd.f32 %v8645, %v8657
        %v8659 = vpop.f32.mrf.mxu0
        %8660 = vdwg.mxu0
        %8661 = vmatpush.bf16.msra.mxu0 %v7690
        %8662 = vmatpush.bf16.msra.mxu0 %v7682
        %8663 = vmatpush.bf16.msra.mxu0 %v7674
        %8664 = vmatpush.bf16.msra.mxu0 %v7666
        %8665 = vmatpush.bf16.msra.mxu0 %v7658
        %8666 = vmatpush.bf16.msra.mxu0 %v7650
        %8667 = vmatpush.bf16.msra.mxu0 %v7642
        %8668 = vmatpush.bf16.msra.mxu0 %v7634
        %8669 = vmatmul.bf16.gmra.mxu0 %v5701
        %v8670 = vpop.f32.mrf.mxu0
        %v8671 = vadd.f32 %v8658, %v8670
        %v8672 = vpop.f32.mrf.mxu0
        %8673 = vdwg.mxu0
        %8674 = vmatpush.bf16.msra.mxu0 %v7754
        %8675 = vmatpush.bf16.msra.mxu0 %v7746
        %8676 = vmatpush.bf16.msra.mxu0 %v7738
        %8677 = vmatpush.bf16.msra.mxu0 %v7730
        %8678 = vmatpush.bf16.msra.mxu0 %v7722
        %8679 = vmatpush.bf16.msra.mxu0 %v7714
        %8680 = vmatpush.bf16.msra.mxu0 %v7706
        %8681 = vmatpush.bf16.msra.mxu0 %v7698
        %8682 = vmatmul.bf16.gmra.mxu0 %v5702
        %v8683 = vpop.f32.mrf.mxu0
        %v8684 = vadd.f32 %v8671, %v8683
        %v8685 = vpop.f32.mrf.mxu0
        %8686 = vdwg.mxu0
        %8687 = vmatpush.bf16.msra.mxu0 %v7307
        %8688 = vmatpush.bf16.msra.mxu0 %v7299
        %8689 = vmatpush.bf16.msra.mxu0 %v7291
        %8690 = vmatpush.bf16.msra.mxu0 %v7283
        %8691 = vmatpush.bf16.msra.mxu0 %v7275
        %8692 = vmatpush.bf16.msra.mxu0 %v7267
        %8693 = vmatpush.bf16.msra.mxu0 %v7259
        %8694 = vmatpush.bf16.msra.mxu0 %v7251
        %8695 = vmatmul.bf16.gmra.mxu0 %v5695
        %v8696 = vpop.f32.mrf.mxu0
        %v8697 = vadd.f32 %v5378, %v8696
        %v8698 = vpop.f32.mrf.mxu0
        %8699 = vdwg.mxu0
        %8700 = vmatpush.bf16.msra.mxu0 %v7371
        %8701 = vmatpush.bf16.msra.mxu0 %v7363
        %8702 = vmatpush.bf16.msra.mxu0 %v7355
        %8703 = vmatpush.bf16.msra.mxu0 %v7347
        %8704 = vmatpush.bf16.msra.mxu0 %v7339
        %8705 = vmatpush.bf16.msra.mxu0 %v7331
        %8706 = vmatpush.bf16.msra.mxu0 %v7323
        %8707 = vmatpush.bf16.msra.mxu0 %v7315
        %8708 = vmatmul.bf16.gmra.mxu0 %v5696
        %v8709 = vpop.f32.mrf.mxu0
        %v8710 = vadd.f32 %v8697, %v8709
        %v8711 = vpop.f32.mrf.mxu0
        %8712 = vdwg.mxu0
        %8713 = vmatpush.bf16.msra.mxu0 %v7435
        %8714 = vmatpush.bf16.msra.mxu0 %v7427
        %8715 = vmatpush.bf16.msra.mxu0 %v7419
        %8716 = vmatpush.bf16.msra.mxu0 %v7411
        %8717 = vmatpush.bf16.msra.mxu0 %v7403
        %8718 = vmatpush.bf16.msra.mxu0 %v7395
        %8719 = vmatpush.bf16.msra.mxu0 %v7387
        %8720 = vmatpush.bf16.msra.mxu0 %v7379
        %8721 = vmatmul.bf16.gmra.mxu0 %v5697
        %v8722 = vpop.f32.mrf.mxu0
        %v8723 = vadd.f32 %v8710, %v8722
        %v8724 = vpop.f32.mrf.mxu0
        %8725 = vdwg.mxu0
        %8726 = vmatpush.bf16.msra.mxu0 %v7499
        %8727 = vmatpush.bf16.msra.mxu0 %v7491
        %8728 = vmatpush.bf16.msra.mxu0 %v7483
        %8729 = vmatpush.bf16.msra.mxu0 %v7475
        %8730 = vmatpush.bf16.msra.mxu0 %v7467
        %8731 = vmatpush.bf16.msra.mxu0 %v7459
        %8732 = vmatpush.bf16.msra.mxu0 %v7451
        %8733 = vmatpush.bf16.msra.mxu0 %v7443
        %8734 = vmatmul.bf16.gmra.mxu0 %v5698
        %v8735 = vpop.f32.mrf.mxu0
        %v8736 = vadd.f32 %v8723, %v8735
        %v8737 = vpop.f32.mrf.mxu0
        %8738 = vdwg.mxu0
        %8739 = vmatpush.bf16.msra.mxu0 %v7563
        %8740 = vmatpush.bf16.msra.mxu0 %v7555
        %8741 = vmatpush.bf16.msra.mxu0 %v7547
        %8742 = vmatpush.bf16.msra.mxu0 %v7539
        %8743 = vmatpush.bf16.msra.mxu0 %v7531
        %8744 = vmatpush.bf16.msra.mxu0 %v7523
        %8745 = vmatpush.bf16.msra.mxu0 %v7515
        %8746 = vmatpush.bf16.msra.mxu0 %v7507
        %8747 = vmatmul.bf16.gmra.mxu0 %v5699
        %v8748 = vpop.f32.mrf.mxu0
        %v8749 = vadd.f32 %v8736, %v8748
        %v8750 = vpop.f32.mrf.mxu0
        %8751 = vdwg.mxu0
        %8752 = vmatpush.bf16.msra.mxu0 %v7627
        %8753 = vmatpush.bf16.msra.mxu0 %v7619
        %8754 = vmatpush.bf16.msra.mxu0 %v7611
        %8755 = vmatpush.bf16.msra.mxu0 %v7603
        %8756 = vmatpush.bf16.msra.mxu0 %v7595
        %8757 = vmatpush.bf16.msra.mxu0 %v7587
        %8758 = vmatpush.bf16.msra.mxu0 %v7579
        %8759 = vmatpush.bf16.msra.mxu0 %v7571
        %8760 = vmatmul.bf16.gmra.mxu0 %v5700
        %v8761 = vpop.f32.mrf.mxu0
        %v8762 = vadd.f32 %v8749, %v8761
        %v8763 = vpop.f32.mrf.mxu0
        %8764 = vdwg.mxu0
        %8765 = vmatpush.bf16.msra.mxu0 %v7691
        %8766 = vmatpush.bf16.msra.mxu0 %v7683
        %8767 = vmatpush.bf16.msra.mxu0 %v7675
        %8768 = vmatpush.bf16.msra.mxu0 %v7667
        %8769 = vmatpush.bf16.msra.mxu0 %v7659
        %8770 = vmatpush.bf16.msra.mxu0 %v7651
        %8771 = vmatpush.bf16.msra.mxu0 %v7643
        %8772 = vmatpush.bf16.msra.mxu0 %v7635
        %8773 = vmatmul.bf16.gmra.mxu0 %v5701
        %v8774 = vpop.f32.mrf.mxu0
        %v8775 = vadd.f32 %v8762, %v8774
        %v8776 = vpop.f32.mrf.mxu0
        %8777 = vdwg.mxu0
        %8778 = vmatpush.bf16.msra.mxu0 %v7755
        %8779 = vmatpush.bf16.msra.mxu0 %v7747
        %8780 = vmatpush.bf16.msra.mxu0 %v7739
        %8781 = vmatpush.bf16.msra.mxu0 %v7731
        %8782 = vmatpush.bf16.msra.mxu0 %v7723
        %8783 = vmatpush.bf16.msra.mxu0 %v7715
        %8784 = vmatpush.bf16.msra.mxu0 %v7707
        %8785 = vmatpush.bf16.msra.mxu0 %v7699
        %8786 = vmatmul.bf16.gmra.mxu0 %v5702
        %v8787 = vpop.f32.mrf.mxu0
        %v8788 = vadd.f32 %v8775, %v8787
        %v8789 = vpop.f32.mrf.mxu0
        %8790 = vdwg.mxu0
        %8791 = vmatpush.bf16.msra.mxu0 %v7308
        %8792 = vmatpush.bf16.msra.mxu0 %v7300
        %8793 = vmatpush.bf16.msra.mxu0 %v7292
        %8794 = vmatpush.bf16.msra.mxu0 %v7284
        %8795 = vmatpush.bf16.msra.mxu0 %v7276
        %8796 = vmatpush.bf16.msra.mxu0 %v7268
        %8797 = vmatpush.bf16.msra.mxu0 %v7260
        %8798 = vmatpush.bf16.msra.mxu0 %v7252
        %8799 = vmatmul.bf16.gmra.mxu0 %v5695
        %v8800 = vpop.f32.mrf.mxu0
        %v8801 = vadd.f32 %v5482, %v8800
        %v8802 = vpop.f32.mrf.mxu0
        %8803 = vdwg.mxu0
        %8804 = vmatpush.bf16.msra.mxu0 %v7372
        %8805 = vmatpush.bf16.msra.mxu0 %v7364
        %8806 = vmatpush.bf16.msra.mxu0 %v7356
        %8807 = vmatpush.bf16.msra.mxu0 %v7348
        %8808 = vmatpush.bf16.msra.mxu0 %v7340
        %8809 = vmatpush.bf16.msra.mxu0 %v7332
        %8810 = vmatpush.bf16.msra.mxu0 %v7324
        %8811 = vmatpush.bf16.msra.mxu0 %v7316
        %8812 = vmatmul.bf16.gmra.mxu0 %v5696
        %v8813 = vpop.f32.mrf.mxu0
        %v8814 = vadd.f32 %v8801, %v8813
        %v8815 = vpop.f32.mrf.mxu0
        %8816 = vdwg.mxu0
        %8817 = vmatpush.bf16.msra.mxu0 %v7436
        %8818 = vmatpush.bf16.msra.mxu0 %v7428
        %8819 = vmatpush.bf16.msra.mxu0 %v7420
        %8820 = vmatpush.bf16.msra.mxu0 %v7412
        %8821 = vmatpush.bf16.msra.mxu0 %v7404
        %8822 = vmatpush.bf16.msra.mxu0 %v7396
        %8823 = vmatpush.bf16.msra.mxu0 %v7388
        %8824 = vmatpush.bf16.msra.mxu0 %v7380
        %8825 = vmatmul.bf16.gmra.mxu0 %v5697
        %v8826 = vpop.f32.mrf.mxu0
        %v8827 = vadd.f32 %v8814, %v8826
        %v8828 = vpop.f32.mrf.mxu0
        %8829 = vdwg.mxu0
        %8830 = vmatpush.bf16.msra.mxu0 %v7500
        %8831 = vmatpush.bf16.msra.mxu0 %v7492
        %8832 = vmatpush.bf16.msra.mxu0 %v7484
        %8833 = vmatpush.bf16.msra.mxu0 %v7476
        %8834 = vmatpush.bf16.msra.mxu0 %v7468
        %8835 = vmatpush.bf16.msra.mxu0 %v7460
        %8836 = vmatpush.bf16.msra.mxu0 %v7452
        %8837 = vmatpush.bf16.msra.mxu0 %v7444
        %8838 = vmatmul.bf16.gmra.mxu0 %v5698
        %v8839 = vpop.f32.mrf.mxu0
        %v8840 = vadd.f32 %v8827, %v8839
        %v8841 = vpop.f32.mrf.mxu0
        %8842 = vdwg.mxu0
        %8843 = vmatpush.bf16.msra.mxu0 %v7564
        %8844 = vmatpush.bf16.msra.mxu0 %v7556
        %8845 = vmatpush.bf16.msra.mxu0 %v7548
        %8846 = vmatpush.bf16.msra.mxu0 %v7540
        %8847 = vmatpush.bf16.msra.mxu0 %v7532
        %8848 = vmatpush.bf16.msra.mxu0 %v7524
        %8849 = vmatpush.bf16.msra.mxu0 %v7516
        %8850 = vmatpush.bf16.msra.mxu0 %v7508
        %8851 = vmatmul.bf16.gmra.mxu0 %v5699
        %v8852 = vpop.f32.mrf.mxu0
        %v8853 = vadd.f32 %v8840, %v8852
        %v8854 = vpop.f32.mrf.mxu0
        %8855 = vdwg.mxu0
        %8856 = vmatpush.bf16.msra.mxu0 %v7628
        %8857 = vmatpush.bf16.msra.mxu0 %v7620
        %8858 = vmatpush.bf16.msra.mxu0 %v7612
        %8859 = vmatpush.bf16.msra.mxu0 %v7604
        %8860 = vmatpush.bf16.msra.mxu0 %v7596
        %8861 = vmatpush.bf16.msra.mxu0 %v7588
        %8862 = vmatpush.bf16.msra.mxu0 %v7580
        %8863 = vmatpush.bf16.msra.mxu0 %v7572
        %8864 = vmatmul.bf16.gmra.mxu0 %v5700
        %v8865 = vpop.f32.mrf.mxu0
        %v8866 = vadd.f32 %v8853, %v8865
        %v8867 = vpop.f32.mrf.mxu0
        %8868 = vdwg.mxu0
        %8869 = vmatpush.bf16.msra.mxu0 %v7692
        %8870 = vmatpush.bf16.msra.mxu0 %v7684
        %8871 = vmatpush.bf16.msra.mxu0 %v7676
        %8872 = vmatpush.bf16.msra.mxu0 %v7668
        %8873 = vmatpush.bf16.msra.mxu0 %v7660
        %8874 = vmatpush.bf16.msra.mxu0 %v7652
        %8875 = vmatpush.bf16.msra.mxu0 %v7644
        %8876 = vmatpush.bf16.msra.mxu0 %v7636
        %8877 = vmatmul.bf16.gmra.mxu0 %v5701
        %v8878 = vpop.f32.mrf.mxu0
        %v8879 = vadd.f32 %v8866, %v8878
        %v8880 = vpop.f32.mrf.mxu0
        %8881 = vdwg.mxu0
        %8882 = vmatpush.bf16.msra.mxu0 %v7756
        %8883 = vmatpush.bf16.msra.mxu0 %v7748
        %8884 = vmatpush.bf16.msra.mxu0 %v7740
        %8885 = vmatpush.bf16.msra.mxu0 %v7732
        %8886 = vmatpush.bf16.msra.mxu0 %v7724
        %8887 = vmatpush.bf16.msra.mxu0 %v7716
        %8888 = vmatpush.bf16.msra.mxu0 %v7708
        %8889 = vmatpush.bf16.msra.mxu0 %v7700
        %8890 = vmatmul.bf16.gmra.mxu0 %v5702
        %v8891 = vpop.f32.mrf.mxu0
        %v8892 = vadd.f32 %v8879, %v8891
        %v8893 = vpop.f32.mrf.mxu0
        %8894 = vdwg.mxu0
        %8895 = vmatpush.bf16.msra.mxu0 %v7309
        %8896 = vmatpush.bf16.msra.mxu0 %v7301
        %8897 = vmatpush.bf16.msra.mxu0 %v7293
        %8898 = vmatpush.bf16.msra.mxu0 %v7285
        %8899 = vmatpush.bf16.msra.mxu0 %v7277
        %8900 = vmatpush.bf16.msra.mxu0 %v7269
        %8901 = vmatpush.bf16.msra.mxu0 %v7261
        %8902 = vmatpush.bf16.msra.mxu0 %v7253
        %8903 = vmatmul.bf16.gmra.mxu0 %v5695
        %v8904 = vpop.f32.mrf.mxu0
        %v8905 = vadd.f32 %v5586, %v8904
        %v8906 = vpop.f32.mrf.mxu0
        %8907 = vdwg.mxu0
        %8908 = vmatpush.bf16.msra.mxu0 %v7373
        %8909 = vmatpush.bf16.msra.mxu0 %v7365
        %8910 = vmatpush.bf16.msra.mxu0 %v7357
        %8911 = vmatpush.bf16.msra.mxu0 %v7349
        %8912 = vmatpush.bf16.msra.mxu0 %v7341
        %8913 = vmatpush.bf16.msra.mxu0 %v7333
        %8914 = vmatpush.bf16.msra.mxu0 %v7325
        %8915 = vmatpush.bf16.msra.mxu0 %v7317
        %8916 = vmatmul.bf16.gmra.mxu0 %v5696
        %v8917 = vpop.f32.mrf.mxu0
        %v8918 = vadd.f32 %v8905, %v8917
        %v8919 = vpop.f32.mrf.mxu0
        %8920 = vdwg.mxu0
        %8921 = vmatpush.bf16.msra.mxu0 %v7437
        %8922 = vmatpush.bf16.msra.mxu0 %v7429
        %8923 = vmatpush.bf16.msra.mxu0 %v7421
        %8924 = vmatpush.bf16.msra.mxu0 %v7413
        %8925 = vmatpush.bf16.msra.mxu0 %v7405
        %8926 = vmatpush.bf16.msra.mxu0 %v7397
        %8927 = vmatpush.bf16.msra.mxu0 %v7389
        %8928 = vmatpush.bf16.msra.mxu0 %v7381
        %8929 = vmatmul.bf16.gmra.mxu0 %v5697
        %v8930 = vpop.f32.mrf.mxu0
        %v8931 = vadd.f32 %v8918, %v8930
        %v8932 = vpop.f32.mrf.mxu0
        %8933 = vdwg.mxu0
        %8934 = vmatpush.bf16.msra.mxu0 %v7501
        %8935 = vmatpush.bf16.msra.mxu0 %v7493
        %8936 = vmatpush.bf16.msra.mxu0 %v7485
        %8937 = vmatpush.bf16.msra.mxu0 %v7477
        %8938 = vmatpush.bf16.msra.mxu0 %v7469
        %8939 = vmatpush.bf16.msra.mxu0 %v7461
        %8940 = vmatpush.bf16.msra.mxu0 %v7453
        %8941 = vmatpush.bf16.msra.mxu0 %v7445
        %8942 = vmatmul.bf16.gmra.mxu0 %v5698
        %v8943 = vpop.f32.mrf.mxu0
        %v8944 = vadd.f32 %v8931, %v8943
        %v8945 = vpop.f32.mrf.mxu0
        %8946 = vdwg.mxu0
        %8947 = vmatpush.bf16.msra.mxu0 %v7565
        %8948 = vmatpush.bf16.msra.mxu0 %v7557
        %8949 = vmatpush.bf16.msra.mxu0 %v7549
        %8950 = vmatpush.bf16.msra.mxu0 %v7541
        %8951 = vmatpush.bf16.msra.mxu0 %v7533
        %8952 = vmatpush.bf16.msra.mxu0 %v7525
        %8953 = vmatpush.bf16.msra.mxu0 %v7517
        %8954 = vmatpush.bf16.msra.mxu0 %v7509
        %8955 = vmatmul.bf16.gmra.mxu0 %v5699
        %v8956 = vpop.f32.mrf.mxu0
        %v8957 = vadd.f32 %v8944, %v8956
        %v8958 = vpop.f32.mrf.mxu0
        %8959 = vdwg.mxu0
        %8960 = vmatpush.bf16.msra.mxu0 %v7629
        %8961 = vmatpush.bf16.msra.mxu0 %v7621
        %8962 = vmatpush.bf16.msra.mxu0 %v7613
        %8963 = vmatpush.bf16.msra.mxu0 %v7605
        %8964 = vmatpush.bf16.msra.mxu0 %v7597
        %8965 = vmatpush.bf16.msra.mxu0 %v7589
        %8966 = vmatpush.bf16.msra.mxu0 %v7581
        %8967 = vmatpush.bf16.msra.mxu0 %v7573
        %8968 = vmatmul.bf16.gmra.mxu0 %v5700
        %v8969 = vpop.f32.mrf.mxu0
        %v8970 = vadd.f32 %v8957, %v8969
        %v8971 = vpop.f32.mrf.mxu0
        %8972 = vdwg.mxu0
        %8973 = vmatpush.bf16.msra.mxu0 %v7693
        %8974 = vmatpush.bf16.msra.mxu0 %v7685
        %8975 = vmatpush.bf16.msra.mxu0 %v7677
        %8976 = vmatpush.bf16.msra.mxu0 %v7669
        %8977 = vmatpush.bf16.msra.mxu0 %v7661
        %8978 = vmatpush.bf16.msra.mxu0 %v7653
        %8979 = vmatpush.bf16.msra.mxu0 %v7645
        %8980 = vmatpush.bf16.msra.mxu0 %v7637
        %8981 = vmatmul.bf16.gmra.mxu0 %v5701
        %v8982 = vpop.f32.mrf.mxu0
        %v8983 = vadd.f32 %v8970, %v8982
        %v8984 = vpop.f32.mrf.mxu0
        %8985 = vdwg.mxu0
        %8986 = vmatpush.bf16.msra.mxu0 %v7757
        %8987 = vmatpush.bf16.msra.mxu0 %v7749
        %8988 = vmatpush.bf16.msra.mxu0 %v7741
        %8989 = vmatpush.bf16.msra.mxu0 %v7733
        %8990 = vmatpush.bf16.msra.mxu0 %v7725
        %8991 = vmatpush.bf16.msra.mxu0 %v7717
        %8992 = vmatpush.bf16.msra.mxu0 %v7709
        %8993 = vmatpush.bf16.msra.mxu0 %v7701
        %8994 = vmatmul.bf16.gmra.mxu0 %v5702
        %v8995 = vpop.f32.mrf.mxu0
        %v8996 = vadd.f32 %v8983, %v8995
        %v8997 = vpop.f32.mrf.mxu0
        %8998 = vdwg.mxu0
        %8999 = vmatpush.bf16.msra.mxu0 %v7310
        %9000 = vmatpush.bf16.msra.mxu0 %v7302
        %9001 = vmatpush.bf16.msra.mxu0 %v7294
        %9002 = vmatpush.bf16.msra.mxu0 %v7286
        %9003 = vmatpush.bf16.msra.mxu0 %v7278
        %9004 = vmatpush.bf16.msra.mxu0 %v7270
        %9005 = vmatpush.bf16.msra.mxu0 %v7262
        %9006 = vmatpush.bf16.msra.mxu0 %v7254
        %9007 = vmatmul.bf16.gmra.mxu0 %v5695
        %v9008 = vpop.f32.mrf.mxu0
        %v9009 = vadd.f32 %v5690, %v9008
        %v9010 = vpop.f32.mrf.mxu0
        %9011 = vdwg.mxu0
        %9012 = vmatpush.bf16.msra.mxu0 %v7374
        %9013 = vmatpush.bf16.msra.mxu0 %v7366
        %9014 = vmatpush.bf16.msra.mxu0 %v7358
        %9015 = vmatpush.bf16.msra.mxu0 %v7350
        %9016 = vmatpush.bf16.msra.mxu0 %v7342
        %9017 = vmatpush.bf16.msra.mxu0 %v7334
        %9018 = vmatpush.bf16.msra.mxu0 %v7326
        %9019 = vmatpush.bf16.msra.mxu0 %v7318
        %9020 = vmatmul.bf16.gmra.mxu0 %v5696
        %v9021 = vpop.f32.mrf.mxu0
        %v9022 = vadd.f32 %v9009, %v9021
        %v9023 = vpop.f32.mrf.mxu0
        %9024 = vdwg.mxu0
        %9025 = vmatpush.bf16.msra.mxu0 %v7438
        %9026 = vmatpush.bf16.msra.mxu0 %v7430
        %9027 = vmatpush.bf16.msra.mxu0 %v7422
        %9028 = vmatpush.bf16.msra.mxu0 %v7414
        %9029 = vmatpush.bf16.msra.mxu0 %v7406
        %9030 = vmatpush.bf16.msra.mxu0 %v7398
        %9031 = vmatpush.bf16.msra.mxu0 %v7390
        %9032 = vmatpush.bf16.msra.mxu0 %v7382
        %9033 = vmatmul.bf16.gmra.mxu0 %v5697
        %v9034 = vpop.f32.mrf.mxu0
        %v9035 = vadd.f32 %v9022, %v9034
        %v9036 = vpop.f32.mrf.mxu0
        %9037 = vdwg.mxu0
        %9038 = vmatpush.bf16.msra.mxu0 %v7502
        %9039 = vmatpush.bf16.msra.mxu0 %v7494
        %9040 = vmatpush.bf16.msra.mxu0 %v7486
        %9041 = vmatpush.bf16.msra.mxu0 %v7478
        %9042 = vmatpush.bf16.msra.mxu0 %v7470
        %9043 = vmatpush.bf16.msra.mxu0 %v7462
        %9044 = vmatpush.bf16.msra.mxu0 %v7454
        %9045 = vmatpush.bf16.msra.mxu0 %v7446
        %9046 = vmatmul.bf16.gmra.mxu0 %v5698
        %v9047 = vpop.f32.mrf.mxu0
        %v9048 = vadd.f32 %v9035, %v9047
        %v9049 = vpop.f32.mrf.mxu0
        %9050 = vdwg.mxu0
        %9051 = vmatpush.bf16.msra.mxu0 %v7566
        %9052 = vmatpush.bf16.msra.mxu0 %v7558
        %9053 = vmatpush.bf16.msra.mxu0 %v7550
        %9054 = vmatpush.bf16.msra.mxu0 %v7542
        %9055 = vmatpush.bf16.msra.mxu0 %v7534
        %9056 = vmatpush.bf16.msra.mxu0 %v7526
        %9057 = vmatpush.bf16.msra.mxu0 %v7518
        %9058 = vmatpush.bf16.msra.mxu0 %v7510
        %9059 = vmatmul.bf16.gmra.mxu0 %v5699
        %v9060 = vpop.f32.mrf.mxu0
        %v9061 = vadd.f32 %v9048, %v9060
        %v9062 = vpop.f32.mrf.mxu0
        %9063 = vdwg.mxu0
        %9064 = vmatpush.bf16.msra.mxu0 %v7630
        %9065 = vmatpush.bf16.msra.mxu0 %v7622
        %9066 = vmatpush.bf16.msra.mxu0 %v7614
        %9067 = vmatpush.bf16.msra.mxu0 %v7606
        %9068 = vmatpush.bf16.msra.mxu0 %v7598
        %9069 = vmatpush.bf16.msra.mxu0 %v7590
        %9070 = vmatpush.bf16.msra.mxu0 %v7582
        %9071 = vmatpush.bf16.msra.mxu0 %v7574
        %9072 = vmatmul.bf16.gmra.mxu0 %v5700
        %v9073 = vpop.f32.mrf.mxu0
        %v9074 = vadd.f32 %v9061, %v9073
        %v9075 = vpop.f32.mrf.mxu0
        %9076 = vdwg.mxu0
        %9077 = vmatpush.bf16.msra.mxu0 %v7694
        %9078 = vmatpush.bf16.msra.mxu0 %v7686
        %9079 = vmatpush.bf16.msra.mxu0 %v7678
        %9080 = vmatpush.bf16.msra.mxu0 %v7670
        %9081 = vmatpush.bf16.msra.mxu0 %v7662
        %9082 = vmatpush.bf16.msra.mxu0 %v7654
        %9083 = vmatpush.bf16.msra.mxu0 %v7646
        %9084 = vmatpush.bf16.msra.mxu0 %v7638
        %9085 = vmatmul.bf16.gmra.mxu0 %v5701
        %v9086 = vpop.f32.mrf.mxu0
        %v9087 = vadd.f32 %v9074, %v9086
        %v9088 = vpop.f32.mrf.mxu0
        %9089 = vdwg.mxu0
        %9090 = vmatpush.bf16.msra.mxu0 %v7758
        %9091 = vmatpush.bf16.msra.mxu0 %v7750
        %9092 = vmatpush.bf16.msra.mxu0 %v7742
        %9093 = vmatpush.bf16.msra.mxu0 %v7734
        %9094 = vmatpush.bf16.msra.mxu0 %v7726
        %9095 = vmatpush.bf16.msra.mxu0 %v7718
        %9096 = vmatpush.bf16.msra.mxu0 %v7710
        %9097 = vmatpush.bf16.msra.mxu0 %v7702
        %9098 = vmatmul.bf16.gmra.mxu0 %v5702
        %v9099 = vpop.f32.mrf.mxu0
        %v9100 = vadd.f32 %v9087, %v9099
        %v9101 = vpop.f32.mrf.mxu0
        %9102 = vdwg.mxu0
        %v9103 = vld [vmem:[%s496] sm:$0xff]
        %v9105 = vperm.slane %v9103, 0
        %v9106 = vperm.slane %v9103, 1
        %v9107 = vperm.slane %v9103, 2
        %v9108 = vperm.slane %v9103, 3
        %v9109 = vperm.slane %v9103, 4
        %v9110 = vperm.slane %v9103, 5
        %v9111 = vperm.slane %v9103, 6
        %v9112 = vperm.slane %v9103, 7
        %v9121 = vadd.f32 %v8372, %v9105
        %v9122 = vadd.f32 %v8476, %v9106
        %v9123 = vadd.f32 %v8580, %v9107
        %v9124 = vadd.f32 %v8684, %v9108
        %v9125 = vadd.f32 %v8788, %v9109
        %v9126 = vadd.f32 %v8892, %v9110
        %v9127 = vadd.f32 %v8996, %v9111
        %v9128 = vadd.f32 %v9100, %v9112
        %vm9129 = vcmp.ge.f32.partialorder %v9121, 0.0
        %vm9130 = vcmp.ge.f32.partialorder %v9122, 0.0
        %vm9131 = vcmp.ge.f32.partialorder %v9123, 0.0
        %vm9132 = vcmp.ge.f32.partialorder %v9124, 0.0
        %vm9133 = vcmp.ge.f32.partialorder %v9125, 0.0
        %vm9134 = vcmp.ge.f32.partialorder %v9126, 0.0
        %vm9135 = vcmp.ge.f32.partialorder %v9127, 0.0
        %vm9136 = vcmp.ge.f32.partialorder %v9128, 0.0
        %v9137 = vmul.f32 %v9121, 0.2
        %v9138 = vmul.f32 %v9122, 0.2
        %v9139 = vmul.f32 %v9123, 0.2
        %v9140 = vmul.f32 %v9124, 0.2
        %v9141 = vmul.f32 %v9125, 0.2
        %v9142 = vmul.f32 %v9126, 0.2
        %v9143 = vmul.f32 %v9127, 0.2
        %v9144 = vmul.f32 %v9128, 0.2
        %v9145 = vsel %vm9129, %v9121, %v9137
        %v9146 = vsel %vm9130, %v9122, %v9138
        %v9147 = vsel %vm9131, %v9123, %v9139
        %v9148 = vsel %vm9132, %v9124, %v9140
        %v9149 = vsel %vm9133, %v9125, %v9141
        %v9150 = vsel %vm9134, %v9126, %v9142
        %v9151 = vsel %vm9135, %v9127, %v9143
        %v9152 = vsel %vm9136, %v9128, %v9144
        %v9153 = vld [vmem:[%s573] sm:$0x3]
        %v9154 = vld [vmem:[%s506] sm:$0xff]
        %v9155 = vld [vmem:[%s506 + $0x8] sm:$0xff]
        %9158 = vst [vmem:[#allocation1] ss:$4 sm:$0xff] %v9154
        %s9159 = scalar_lea.vmem [#allocation1], 32
        %9160 = vst [vmem:[%s9159] ss:$4 sm:$0xff] %v9155
        %v9161 = vld.sshfl [vmem:[#allocation1] sm:$0xff pattern:$0x73625140]
        %v9162 = vld.sshfl [vmem:[#allocation1 + $0x8] sm:$0xff pattern:$0x73625140]
        %v9163 = vld.sshfl [vmem:[#allocation1 + $0x10] sm:$0xff pattern:$0x73625140]
        %v9164 = vld.sshfl [vmem:[#allocation1 + $0x18] sm:$0xff pattern:$0x73625140]
        %v9165 = vld.sshfl [vmem:[#allocation1 + $0x20] sm:$0xff pattern:$0x73625140]
        %v9166 = vld.sshfl [vmem:[#allocation1 + $0x28] sm:$0xff pattern:$0x73625140]
        %v9167 = vld.sshfl [vmem:[#allocation1 + $0x30] sm:$0xff pattern:$0x73625140]
        %v9168 = vld.sshfl [vmem:[#allocation1 + $0x38] sm:$0xff pattern:$0x73625140]
        %9177 = vmatpush.xpose.msra.mxu0 0.0
        %9178 = vmatpush.xpose.msra.mxu0 0.0
        %9179 = vmatpush.xpose.msra.mxu0 0.0
        %9180 = vmatpush.xpose.msra.mxu0 0.0
        %9181 = vmatpush.xpose.msra.mxu0 0.0
        %9182 = vmatpush.xpose.msra.mxu0 0.0
        %9183 = vmatpush.xpose.msra.mxu0 0.0
        %9184 = vmatpush.xpose.msra.mxu0 0.0
        %9185 = vmatpush.xpose.msra.mxu0 0.0
        %9186 = vmatpush.xpose.msra.mxu0 0.0
        %9187 = vmatpush.xpose.msra.mxu0 0.0
        %9188 = vmatpush.xpose.msra.mxu0 0.0
        %9189 = vmatpush.xpose.msra.mxu0 0.0
        %9190 = vmatpush.xpose.msra.mxu0 0.0
        %9191 = vmatpush.xpose.msra.mxu0 0.0
        %9192 = vmatpush.xpose.msra.mxu0 %v9161
        %9193 = vmatmul.f32.gmra.mxu0 %v9145
        %v9194 = vpop.f32.mrf.mxu0
        %v9195 = vadd.f32 0.0, %v9194
        %9196 = vdwg.mxu0
        %9197 = vmatpush.xpose.msra.mxu0 0.0
        %9198 = vmatpush.xpose.msra.mxu0 0.0
        %9199 = vmatpush.xpose.msra.mxu0 0.0
        %9200 = vmatpush.xpose.msra.mxu0 0.0
        %9201 = vmatpush.xpose.msra.mxu0 0.0
        %9202 = vmatpush.xpose.msra.mxu0 0.0
        %9203 = vmatpush.xpose.msra.mxu0 0.0
        %9204 = vmatpush.xpose.msra.mxu0 0.0
        %9205 = vmatpush.xpose.msra.mxu0 0.0
        %9206 = vmatpush.xpose.msra.mxu0 0.0
        %9207 = vmatpush.xpose.msra.mxu0 0.0
        %9208 = vmatpush.xpose.msra.mxu0 0.0
        %9209 = vmatpush.xpose.msra.mxu0 0.0
        %9210 = vmatpush.xpose.msra.mxu0 0.0
        %9211 = vmatpush.xpose.msra.mxu0 0.0
        %9212 = vmatpush.xpose.msra.mxu0 %v9162
        %9213 = vmatmul.f32.gmra.mxu0 %v9146
        %v9214 = vpop.f32.mrf.mxu0
        %v9215 = vadd.f32 %v9195, %v9214
        %9216 = vdwg.mxu0
        %9217 = vmatpush.xpose.msra.mxu0 0.0
        %9218 = vmatpush.xpose.msra.mxu0 0.0
        %9219 = vmatpush.xpose.msra.mxu0 0.0
        %9220 = vmatpush.xpose.msra.mxu0 0.0
        %9221 = vmatpush.xpose.msra.mxu0 0.0
        %9222 = vmatpush.xpose.msra.mxu0 0.0
        %9223 = vmatpush.xpose.msra.mxu0 0.0
        %9224 = vmatpush.xpose.msra.mxu0 0.0
        %9225 = vmatpush.xpose.msra.mxu0 0.0
        %9226 = vmatpush.xpose.msra.mxu0 0.0
        %9227 = vmatpush.xpose.msra.mxu0 0.0
        %9228 = vmatpush.xpose.msra.mxu0 0.0
        %9229 = vmatpush.xpose.msra.mxu0 0.0
        %9230 = vmatpush.xpose.msra.mxu0 0.0
        %9231 = vmatpush.xpose.msra.mxu0 0.0
        %9232 = vmatpush.xpose.msra.mxu0 %v9163
        %9233 = vmatmul.f32.gmra.mxu0 %v9147
        %v9234 = vpop.f32.mrf.mxu0
        %v9235 = vadd.f32 %v9215, %v9234
        %9236 = vdwg.mxu0
        %9237 = vmatpush.xpose.msra.mxu0 0.0
        %9238 = vmatpush.xpose.msra.mxu0 0.0
        %9239 = vmatpush.xpose.msra.mxu0 0.0
        %9240 = vmatpush.xpose.msra.mxu0 0.0
        %9241 = vmatpush.xpose.msra.mxu0 0.0
        %9242 = vmatpush.xpose.msra.mxu0 0.0
        %9243 = vmatpush.xpose.msra.mxu0 0.0
        %9244 = vmatpush.xpose.msra.mxu0 0.0
        %9245 = vmatpush.xpose.msra.mxu0 0.0
        %9246 = vmatpush.xpose.msra.mxu0 0.0
        %9247 = vmatpush.xpose.msra.mxu0 0.0
        %9248 = vmatpush.xpose.msra.mxu0 0.0
        %9249 = vmatpush.xpose.msra.mxu0 0.0
        %9250 = vmatpush.xpose.msra.mxu0 0.0
        %9251 = vmatpush.xpose.msra.mxu0 0.0
        %9252 = vmatpush.xpose.msra.mxu0 %v9164
        %9253 = vmatmul.f32.gmra.mxu0 %v9148
        %v9254 = vpop.f32.mrf.mxu0
        %v9255 = vadd.f32 %v9235, %v9254
        %9256 = vdwg.mxu0
        %9257 = vmatpush.xpose.msra.mxu0 0.0
        %9258 = vmatpush.xpose.msra.mxu0 0.0
        %9259 = vmatpush.xpose.msra.mxu0 0.0
        %9260 = vmatpush.xpose.msra.mxu0 0.0
        %9261 = vmatpush.xpose.msra.mxu0 0.0
        %9262 = vmatpush.xpose.msra.mxu0 0.0
        %9263 = vmatpush.xpose.msra.mxu0 0.0
        %9264 = vmatpush.xpose.msra.mxu0 0.0
        %9265 = vmatpush.xpose.msra.mxu0 0.0
        %9266 = vmatpush.xpose.msra.mxu0 0.0
        %9267 = vmatpush.xpose.msra.mxu0 0.0
        %9268 = vmatpush.xpose.msra.mxu0 0.0
        %9269 = vmatpush.xpose.msra.mxu0 0.0
        %9270 = vmatpush.xpose.msra.mxu0 0.0
        %9271 = vmatpush.xpose.msra.mxu0 0.0
        %9272 = vmatpush.xpose.msra.mxu0 %v9165
        %9273 = vmatmul.f32.gmra.mxu0 %v9149
        %v9274 = vpop.f32.mrf.mxu0
        %v9275 = vadd.f32 %v9255, %v9274
        %9276 = vdwg.mxu0
        %9277 = vmatpush.xpose.msra.mxu0 0.0
        %9278 = vmatpush.xpose.msra.mxu0 0.0
        %9279 = vmatpush.xpose.msra.mxu0 0.0
        %9280 = vmatpush.xpose.msra.mxu0 0.0
        %9281 = vmatpush.xpose.msra.mxu0 0.0
        %9282 = vmatpush.xpose.msra.mxu0 0.0
        %9283 = vmatpush.xpose.msra.mxu0 0.0
        %9284 = vmatpush.xpose.msra.mxu0 0.0
        %9285 = vmatpush.xpose.msra.mxu0 0.0
        %9286 = vmatpush.xpose.msra.mxu0 0.0
        %9287 = vmatpush.xpose.msra.mxu0 0.0
        %9288 = vmatpush.xpose.msra.mxu0 0.0
        %9289 = vmatpush.xpose.msra.mxu0 0.0
        %9290 = vmatpush.xpose.msra.mxu0 0.0
        %9291 = vmatpush.xpose.msra.mxu0 0.0
        %9292 = vmatpush.xpose.msra.mxu0 %v9166
        %9293 = vmatmul.f32.gmra.mxu0 %v9150
        %v9294 = vpop.f32.mrf.mxu0
        %v9295 = vadd.f32 %v9275, %v9294
        %9296 = vdwg.mxu0
        %9297 = vmatpush.xpose.msra.mxu0 0.0
        %9298 = vmatpush.xpose.msra.mxu0 0.0
        %9299 = vmatpush.xpose.msra.mxu0 0.0
        %9300 = vmatpush.xpose.msra.mxu0 0.0
        %9301 = vmatpush.xpose.msra.mxu0 0.0
        %9302 = vmatpush.xpose.msra.mxu0 0.0
        %9303 = vmatpush.xpose.msra.mxu0 0.0
        %9304 = vmatpush.xpose.msra.mxu0 0.0
        %9305 = vmatpush.xpose.msra.mxu0 0.0
        %9306 = vmatpush.xpose.msra.mxu0 0.0
        %9307 = vmatpush.xpose.msra.mxu0 0.0
        %9308 = vmatpush.xpose.msra.mxu0 0.0
        %9309 = vmatpush.xpose.msra.mxu0 0.0
        %9310 = vmatpush.xpose.msra.mxu0 0.0
        %9311 = vmatpush.xpose.msra.mxu0 0.0
        %9312 = vmatpush.xpose.msra.mxu0 %v9167
        %9313 = vmatmul.f32.gmra.mxu0 %v9151
        %v9314 = vpop.f32.mrf.mxu0
        %v9315 = vadd.f32 %v9295, %v9314
        %9316 = vdwg.mxu0
        %9317 = vmatpush.xpose.msra.mxu0 0.0
        %9318 = vmatpush.xpose.msra.mxu0 0.0
        %9319 = vmatpush.xpose.msra.mxu0 0.0
        %9320 = vmatpush.xpose.msra.mxu0 0.0
        %9321 = vmatpush.xpose.msra.mxu0 0.0
        %9322 = vmatpush.xpose.msra.mxu0 0.0
        %9323 = vmatpush.xpose.msra.mxu0 0.0
        %9324 = vmatpush.xpose.msra.mxu0 0.0
        %9325 = vmatpush.xpose.msra.mxu0 0.0
        %9326 = vmatpush.xpose.msra.mxu0 0.0
        %9327 = vmatpush.xpose.msra.mxu0 0.0
        %9328 = vmatpush.xpose.msra.mxu0 0.0
        %9329 = vmatpush.xpose.msra.mxu0 0.0
        %9330 = vmatpush.xpose.msra.mxu0 0.0
        %9331 = vmatpush.xpose.msra.mxu0 0.0
        %9332 = vmatpush.xpose.msra.mxu0 %v9168
        %9333 = vmatmul.f32.gmra.mxu0 %v9152
        %v9334 = vpop.f32.mrf.mxu0
        %v9335 = vadd.f32 %v9315, %v9334
        %9336 = vdwg.mxu0
        %v9337 = vadd.f32 %v9153, %v9335
        %vm9338 = vcmask 9216
        %9339 = vst.msk [vmem:[%s573] sm:$0x3] %vm9338, %v9337
        %p9340 = scmp.lt.s32.totalorder %s30, 0
        %s9341 = scalar_select %p9340, %s30, 0
        %s9342 = smul.addr %s9341, 2
        %s9343 = scalar_lea.vmem %s8, %s9342
        // Predicated region
        $region81: #{discriminator_forward.1} parent=51 // pred_check
          %p9344 = pneg %p260
        $region82: #{discriminator_forward.1} parent=51 // pred_check_branch
          %9346 = sbr.rel (%p9344) target = $region84
        $region83: #{discriminator_forward.1} parent=51 // pred_region
          _
        $region84: #{discriminator_forward.1} parent=51 // pred_fallthru
          _
        // Predicated region
        $region85: #{discriminator_forward.1} parent=51 // pred_check
          %p9347 = pneg %p286
        $region86: #{discriminator_forward.1} parent=51 // pred_check_branch
          %9349 = sbr.rel (%p9347) target = $region88
        $region87: #{discriminator_forward.1} parent=51 // pred_region
          %9351 = vsyncadd [#allocation6], 0
          %s9352 = smul.addr %s30, 2
          %s9353 = scalar_lea.hbm %s9, %s9352
          %s9355 = sshll.u32 [#allocation13], 4
          %s9356 = int_to_ptr.vmem [resolvable:$true] %s9355
          %s9357 = sshll.u32 %s9353, 4
          %s9358 = int_to_ptr.hbm [resolvable:$true] %s9357
          %9360 = dma.vmem_to_hbm [thread:$0]  %s9356, 32, %s9358, [#allocation6]
        $region88: #{discriminator_forward.1} parent=51 // pred_fallthru
          _
        // Predicated region
        $region89: #{discriminator_forward.1} parent=51 // pred_check
          %p9361 = pneg %p312
        $region90: #{discriminator_forward.1} parent=51 // pred_check_branch
          %9363 = sbr.rel (%p9361) target = $region92
        $region91: #{discriminator_forward.1} parent=51 // pred_region
          %9365 = vsyncadd [#allocation15], 0
          %s9366 = smul.addr %s30, 2
          %s9367 = scalar_lea.hbm %s10, %s9366
          %s9369 = sshll.u32 [#allocation14], 4
          %s9370 = int_to_ptr.vmem [resolvable:$true] %s9369
          %s9371 = sshll.u32 %s9367, 4
          %s9372 = int_to_ptr.hbm [resolvable:$true] %s9371
          %9374 = dma.vmem_to_hbm [thread:$0]  %s9370, 32, %s9372, [#allocation15]
        $region92: #{discriminator_forward.1} parent=51 // pred_fallthru
          _
        // Predicated region
        $region93: #{discriminator_forward.1} parent=51 // pred_check
          %p9375 = pneg %p260
        $region94: #{discriminator_forward.1} parent=51 // pred_check_branch
          %9377 = sbr.rel (%p9375) target = $region96
        $region95: #{discriminator_forward.1} parent=51 // pred_region
          %p9378 = scmp.lt.s32.totalorder %s30, 0
          %s9379 = scalar_select %p9378, %s30, 0
          %s9380 = smul.addr %s9379, 2
          %s9381 = scalar_lea.vmem %s8, %s9380
        $region96: #{discriminator_forward.1} parent=51 // pred_fallthru
          _
        // Predicated region
        $region97: #{discriminator_forward.1} parent=51 // pred_check
          %p9382 = pneg %p286
        $region98: #{discriminator_forward.1} parent=51 // pred_check_branch
          %9384 = sbr.rel (%p9382) target = $region100
        $region99: #{discriminator_forward.1} parent=51 // pred_region
          %9386 = dma.done [#allocation6], 32
        $region100: #{discriminator_forward.1} parent=51 // pred_fallthru
          _
        // Predicated region
        $region101: #{discriminator_forward.1} parent=51 // pred_check
          %p9387 = pneg %p312
        $region102: #{discriminator_forward.1} parent=51 // pred_check_branch
          %9389 = sbr.rel (%p9387) target = $region104
        $region103: #{discriminator_forward.1} parent=51 // pred_region
          %9391 = dma.done [#allocation15], 32
        $region104: #{discriminator_forward.1} parent=51 // pred_fallthru
          _
      $region52: #{discriminator_forward.1} parent=5 // pred_fallthru
        _
      %p9392 = scmp.le.s32.totalorder 2, %s21
      // Predicated region
      $region105: #{discriminator_forward.1} parent=5 // pred_check
        %p9393 = pneg %p9392
      $region106: #{discriminator_forward.1} parent=5 // pred_check_branch
        %9395 = sbr.rel (%p9393) target = $region108
      $region107: #{discriminator_forward.1} parent=5 // pred_region
        %s9396 = ssub.s32 %s21, 2
      $region108: #{discriminator_forward.1} parent=5 // pred_fallthru
        _
    $region6: #{discriminator_forward.1} parent=1 // loop_footer
      %s25 = sadd.s32 1, %s21
    $region7: #{discriminator_forward.1} parent=1 // loop_footer_branch
      %20 = sbr.rel target = $region3
    $region8: #{discriminator_forward.1} parent=1 // loop_exit
      _
    %9397 = vsyncpa [#allocation5], 1
    %s9398 = scalar_lea.sflag [#allocation5], 1
    %9399 = vsyncpa %s9398, 1
    %9400 = vsyncpa [#allocation8], 1
    %9401 = vsyncpa [#allocation6], 1
    %s9402 = scalar_lea.sflag [#allocation6], 1
    %9403 = vsyncpa %s9402, 1
    %9404 = vsyncpa [#allocation15], 1

</llo_original>
